<compile_context>
chip_gen: v7x
topology: tpu7x:2x2x1
jax: 0.10.0
libtpu: 0.0.40
codegen_flags: <defaults>
</compile_context>

<pallas_src>
import math
import functools

import jax
import jax.numpy as jnp
from jax.experimental import pallas as pl
from jax.experimental.pallas import tpu as pltpu


def _ib_vae_gmm_kernel(x_ref, w1_ref, b1_ref, w2_ref, b2_ref, w3_ref, b3_ref,
                       eps_ref, m_ref, bd_ref,
                       mu_ref, std_ref, logit_ref):
    """One batch tile of the forward pass; weights are VMEM-resident blocks."""
    # encoder: Linear(784,1024) -> ReLU -> Linear(1024,1024) -> ReLU
    #          -> Linear(1024, 2*k*w).  bf16 MXU inputs, f32 accumulation.
    x = x_ref[...].astype(jnp.bfloat16)
    h1 = jnp.maximum(
        jnp.dot(x, w1_ref[...], preferred_element_type=jnp.float32)
        + b1_ref[...], 0.0)
    h2 = jnp.maximum(
        jnp.dot(h1.astype(jnp.bfloat16), w2_ref[...],
                preferred_element_type=jnp.float32) + b2_ref[...], 0.0)
    zp = jnp.dot(h2.astype(jnp.bfloat16), w3_ref[...],
                 preferred_element_type=jnp.float32) + b3_ref[...]

    kw = mu_ref.shape[1]                       # k * w (multiple of 128 here)
    mu = zp[:, :kw]                            # flat mu   (tb, k*w)
    std = jax.nn.softplus(zp[:, kw:] - 5.0)    # flat std  (tb, k*w), beta=1
    mu_ref[...] = mu
    std_ref[...] = std

    # reparametrize: z = mu + std * eps  (eps supplied in flat layout)
    z = mu + std * eps_ref[...]

    # GMM strided sum over k + raw (non-softmaxed, faithful to the torch code)
    # gmm weights + decoder Linear(k,10) are all folded into the constant
    # matrix M (k*w, 128-padded); bias padded likewise -> lane-dense store.
    logit_ref[...] = jnp.dot(z, m_ref[...],
                             preferred_element_type=jnp.float32) + bd_ref[...]


def _xavier_uniform(key, fan_in, fan_out, gain):
    a = gain * math.sqrt(6.0 / (fan_in + fan_out))
    return jax.random.uniform(key, (fan_in, fan_out), jnp.float32, minval=-a, maxval=a)


def init_params(key, k, w):
    gain = math.sqrt(2.0)  # nn.init.calculate_gain('relu')
    ks = jax.random.split(key, 4)
    return dict(
        # big encoder weights stored in bf16 (the kernel is weight-DMA bound)
        w1=_xavier_uniform(ks[0], 784, 1024, gain).astype(jnp.bfloat16),
        b1=jnp.zeros((1, 1024), jnp.float32),
        w2=_xavier_uniform(ks[1], 1024, 1024, gain).astype(jnp.bfloat16),
        b2=jnp.zeros((1, 1024), jnp.float32),
        w3=_xavier_uniform(ks[2], 1024, 2 * k * w, gain).astype(jnp.bfloat16),
        b3=jnp.zeros((1, 2 * k * w), jnp.float32),
        gw=jnp.full((1, w), 1.0 / w, jnp.float32),   # MixtureModle.weights
        wd=_xavier_uniform(ks[3], k, 10, gain),
        bd=jnp.zeros((1, 10), jnp.float32),
    )


@functools.partial(jax.jit, static_argnames=("k", "w", "tb"))
def mnist_ib_vae_gmm_forward(x, eps, params, *, k, w, tb=128):
    """x: (B, ...) image batch (flattened inside, like torch's x.view(B, -1)),
    eps: (B, w, k) standard-normal sample for the reparametrization trick."""
    assert k % w == 0 and k == w, "module shapes only line up when k == w"
    B = x.shape[0]
    kw = k * w

    # batch tile: sublane-aligned, never larger than the (padded) batch
    tb = min(tb, B)
    tb = max(8, (tb // 8) * 8)
    B_pad = pl.cdiv(B, tb) * tb

    x_flat = x.reshape(B, -1).astype(jnp.float32)                 # x.view(B, -1)
    # eps in kernel-flat layout: eps_flat[b, i*w + j] = eps[b, j, i]
    eps_flat = jnp.transpose(eps, (0, 2, 1)).reshape(B, kw).astype(jnp.float32)
    if B_pad != B:
        pad = ((0, B_pad - B), (0, 0))
        x_flat = jnp.pad(x_flat, pad)
        eps_flat = jnp.pad(eps_flat, pad)

    # Fold GMM reduction + raw gmm weights + decoder into one constant matrix,
    # padded to 128 output lanes (lane-dense logits store).
    sel = (jnp.arange(kw)[:, None] % w == jnp.arange(w)[None, :]).astype(jnp.float32)
    m = jnp.dot(sel * params["gw"], params["wd"])                 # (kw, 10)
    m = jnp.pad(m, ((0, 0), (0, 128 - m.shape[1])))               # (kw, 128)
    bd = jnp.pad(params["bd"], ((0, 0), (0, 128 - params["bd"].shape[1])))

    grid = (B_pad // tb,)
    flops = 2 * B_pad * (784 * 1024 + 1024 * 1024 + 1024 * 2 * kw + kw * 128)
    bytes_w = (2 * (784 * 1024 + 1024 * 1024 + 1024 * 2 * kw)
               + 4 * (1024 + 1024 + 2 * kw + kw * 128 + 128))
    bytes_act = 4 * B_pad * (784 + 3 * kw + 128)
    cost = pl.CostEstimate(flops=flops, transcendentals=B_pad * kw,
                           bytes_accessed=bytes_w + bytes_act)

    # TODO(synk): for repeated inference, weights could be kept VMEM-resident
    # across calls (cross-call prefetch / pl.ANY + manual DMA) to skip re-DMA.
    mu_flat, std_flat, logits_pad = pl.pallas_call(
        _ib_vae_gmm_kernel,
        out_shape=(
            jax.ShapeDtypeStruct((B_pad, kw), jnp.float32),
            jax.ShapeDtypeStruct((B_pad, kw), jnp.float32),
            jax.ShapeDtypeStruct((B_pad, 128), jnp.float32),
        ),
        grid=grid,
        in_specs=[
            pl.BlockSpec((tb, 784), lambda i: (i, 0)),        # x (pipelined)
            pl.BlockSpec((784, 1024), lambda i: (0, 0)),      # w1 (resident)
            pl.BlockSpec((1, 1024), lambda i: (0, 0)),        # b1
            pl.BlockSpec((1024, 1024), lambda i: (0, 0)),     # w2 (resident)
            pl.BlockSpec((1, 1024), lambda i: (0, 0)),        # b2
            pl.BlockSpec((1024, 2 * kw), lambda i: (0, 0)),   # w3 (resident)
            pl.BlockSpec((1, 2 * kw), lambda i: (0, 0)),      # b3
            pl.BlockSpec((tb, kw), lambda i: (i, 0)),         # eps (pipelined)
            pl.BlockSpec((kw, 128), lambda i: (0, 0)),        # fused gmm+decoder
            pl.BlockSpec((1, 128), lambda i: (0, 0)),         # decoder bias (padded)
        ],
        out_specs=(
            pl.BlockSpec((tb, kw), lambda i: (i, 0)),
            pl.BlockSpec((tb, kw), lambda i: (i, 0)),
            pl.BlockSpec((tb, 128), lambda i: (i, 0)),
        ),
        compiler_params=pltpu.CompilerParams(
            dimension_semantics=("parallel",),
            vmem_limit_bytes=24 * 1024 * 1024),
        cost_estimate=cost,
    )(x_flat, params["w1"], params["b1"], params["w2"], params["b2"],
      params["w3"], params["b3"], eps_flat, m, bd)

    # glue: rebuild torch's (B, w, k) "stacked" views from the flat layout.
    mu = jnp.transpose(mu_flat[:B].reshape(B, k, w), (0, 2, 1))
    std = jnp.transpose(std_flat[:B].reshape(B, k, w), (0, 2, 1))
    logits = logits_pad[:B, :10]
    # MixtureModle returns the raw (non-softmaxed) weights, tiled to (1, w, k).
    weights = jnp.broadcast_to(params["gw"][:, :, None], (1, w, k))
    # module returns logit[0]: logits of batch element 0 only, shape (10,)
    return (mu, std), logits[0], weights


if __name__ == "__main__":
    B, k, w = 16, 16, 16  # small; k == w required for the module's shapes to line up

    key = jax.random.PRNGKey(0)
    kx, keps, kp = jax.random.split(key, 3)
    x = jax.random.uniform(kx, (B, 1, 28, 28), jnp.float32)          # MNIST-like NCHW
    # TODO(synk): utils.reparametrize is not provided; standard z = mu + std * N(0,1) assumed.
    eps = jax.random.normal(keps, (B, w, k), jnp.float32)
    params = init_params(kp, k, w)

    # tb=8 -> grid of 2 batch tiles, exercising the pipelined/parallel batch axis.
    (mu, std), logit0, weights = mnist_ib_vae_gmm_forward(
        x, eps, params, k=k, w=w, tb=8)
    jax.block_until_ready((mu, std, logit0, weights))

    assert mu.shape == (B, w, k) and std.shape == (B, w, k)
    assert logit0.shape == (10,) and weights.shape == (1, w, k)
    assert bool(jnp.all(jnp.isfinite(mu))) and bool(jnp.all(jnp.isfinite(logit0)))
    print("KERNEL_OK")
</pallas_src>

<mosaic_0001>
module attributes {stable_mosaic.version = 11 : i64} {
  func.func @_ib_vae_gmm_kernel(%arg0: i32, %arg1: memref<8x784xf32, #tpu.memory_space<vmem>>, %arg2: memref<784x1024xbf16, #tpu.memory_space<vmem>>, %arg3: memref<1x1024xf32, #tpu.memory_space<vmem>>, %arg4: memref<1024x1024xbf16, #tpu.memory_space<vmem>>, %arg5: memref<1x1024xf32, #tpu.memory_space<vmem>>, %arg6: memref<1024x512xbf16, #tpu.memory_space<vmem>>, %arg7: memref<1x512xf32, #tpu.memory_space<vmem>>, %arg8: memref<8x256xf32, #tpu.memory_space<vmem>>, %arg9: memref<256x128xf32, #tpu.memory_space<vmem>>, %arg10: memref<1x128xf32, #tpu.memory_space<vmem>>, %arg11: memref<8x256xf32, #tpu.memory_space<vmem>>, %arg12: memref<8x256xf32, #tpu.memory_space<vmem>>, %arg13: memref<8x128xf32, #tpu.memory_space<vmem>>) attributes {dimension_semantics = [#tpu.dimension_semantics<parallel>], iteration_bounds = array<i64: 2>, scalar_prefetch = 0 : i64, scratch_operands = 0 : i64, tpu.core_type = #tpu.core_type<tc>, window_params = [{transform_indices = @transform_0, window_bounds = array<i64: 8, 784>}, {pipeline_mode = #tpu.pipeline_mode<synchronous>, transform_indices = @transform_1, window_bounds = array<i64: 784, 1024>}, {pipeline_mode = #tpu.pipeline_mode<synchronous>, transform_indices = @transform_2, window_bounds = array<i64: 1, 1024>}, {pipeline_mode = #tpu.pipeline_mode<synchronous>, transform_indices = @transform_3, window_bounds = array<i64: 1024, 1024>}, {pipeline_mode = #tpu.pipeline_mode<synchronous>, transform_indices = @transform_4, window_bounds = array<i64: 1, 1024>}, {pipeline_mode = #tpu.pipeline_mode<synchronous>, transform_indices = @transform_5, window_bounds = array<i64: 1024, 512>}, {pipeline_mode = #tpu.pipeline_mode<synchronous>, transform_indices = @transform_6, window_bounds = array<i64: 1, 512>}, {transform_indices = @transform_7, window_bounds = array<i64: 8, 256>}, {pipeline_mode = #tpu.pipeline_mode<synchronous>, transform_indices = @transform_8, window_bounds = array<i64: 256, 128>}, {pipeline_mode = #tpu.pipeline_mode<synchronous>, transform_indices = @transform_9, window_bounds = array<i64: 1, 128>}, {transform_indices = @transform_10, window_bounds = array<i64: 8, 256>}, {transform_indices = @transform_11, window_bounds = array<i64: 8, 256>}, {transform_indices = @transform_12, window_bounds = array<i64: 8, 128>}]} {
    %c0 = arith.constant 0 : index
    %c0_0 = arith.constant 0 : index
    %0 = vector.load %arg1[%c0, %c0_0] : memref<8x784xf32, #tpu.memory_space<vmem>>, vector<8x784xf32>
    %1 = arith.truncf %0 : vector<8x784xf32> to vector<8x784xbf16>
    %c0_1 = arith.constant 0 : index
    %c0_2 = arith.constant 0 : index
    %2 = vector.load %arg2[%c0_1, %c0_2] : memref<784x1024xbf16, #tpu.memory_space<vmem>>, vector<784x1024xbf16>
    %cst = arith.constant dense<0.000000e+00> : vector<8x1024xf32>
    %3 = tpu.matmul %1, %2, %cst {dimension_numbers = #tpu.dot_dimension_numbers<[1], [0], [0], [1], [0, 0, 1, 1], [], []>} : vector<8x784xbf16>, vector<784x1024xbf16>, vector<8x1024xf32> -> vector<8x1024xf32>
    %c0_3 = arith.constant 0 : index
    %c0_4 = arith.constant 0 : index
    %4 = vector.load %arg3[%c0_3, %c0_4] : memref<1x1024xf32, #tpu.memory_space<vmem>>, vector<1x1024xf32>
    %5 = vector.broadcast %4 : vector<1x1024xf32> to vector<8x1024xf32>
    %6 = arith.addf %3, %5 : vector<8x1024xf32>
    %cst_5 = arith.constant 0.000000e+00 : f32
    %7 = vector.broadcast %cst_5 : f32 to vector<8x1024xf32>
    %8 = arith.maximumf %6, %7 : vector<8x1024xf32>
    %9 = arith.truncf %8 : vector<8x1024xf32> to vector<8x1024xbf16>
    %c0_6 = arith.constant 0 : index
    %c0_7 = arith.constant 0 : index
    %10 = vector.load %arg4[%c0_6, %c0_7] : memref<1024x1024xbf16, #tpu.memory_space<vmem>>, vector<1024x1024xbf16>
    %cst_8 = arith.constant dense<0.000000e+00> : vector<8x1024xf32>
    %11 = tpu.matmul %9, %10, %cst_8 {dimension_numbers = #tpu.dot_dimension_numbers<[1], [0], [0], [1], [0, 0, 1, 1], [], []>} : vector<8x1024xbf16>, vector<1024x1024xbf16>, vector<8x1024xf32> -> vector<8x1024xf32>
    %c0_9 = arith.constant 0 : index
    %c0_10 = arith.constant 0 : index
    %12 = vector.load %arg5[%c0_9, %c0_10] : memref<1x1024xf32, #tpu.memory_space<vmem>>, vector<1x1024xf32>
    %13 = vector.broadcast %12 : vector<1x1024xf32> to vector<8x1024xf32>
    %14 = arith.addf %11, %13 : vector<8x1024xf32>
    %cst_11 = arith.constant 0.000000e+00 : f32
    %15 = vector.broadcast %cst_11 : f32 to vector<8x1024xf32>
    %16 = arith.maximumf %14, %15 : vector<8x1024xf32>
    %17 = arith.truncf %16 : vector<8x1024xf32> to vector<8x1024xbf16>
    %c0_12 = arith.constant 0 : index
    %c0_13 = arith.constant 0 : index
    %18 = vector.load %arg6[%c0_12, %c0_13] : memref<1024x512xbf16, #tpu.memory_space<vmem>>, vector<1024x512xbf16>
    %cst_14 = arith.constant dense<0.000000e+00> : vector<8x512xf32>
    %19 = tpu.matmul %17, %18, %cst_14 {dimension_numbers = #tpu.dot_dimension_numbers<[1], [0], [0], [1], [0, 0, 1, 1], [], []>} : vector<8x1024xbf16>, vector<1024x512xbf16>, vector<8x512xf32> -> vector<8x512xf32>
    %c0_15 = arith.constant 0 : index
    %c0_16 = arith.constant 0 : index
    %20 = vector.load %arg7[%c0_15, %c0_16] : memref<1x512xf32, #tpu.memory_space<vmem>>, vector<1x512xf32>
    %21 = vector.broadcast %20 : vector<1x512xf32> to vector<8x512xf32>
    %22 = arith.addf %19, %21 : vector<8x512xf32>
    %23 = vector.extract_strided_slice %22 {offsets = [0, 0], sizes = [8, 256], strides = [1, 1]} : vector<8x512xf32> to vector<8x256xf32>
    %24 = vector.extract_strided_slice %22 {offsets = [0, 256], sizes = [8, 256], strides = [1, 1]} : vector<8x512xf32> to vector<8x256xf32>
    %cst_17 = arith.constant 5.000000e+00 : f32
    %25 = vector.broadcast %cst_17 : f32 to vector<8x256xf32>
    %26 = arith.subf %24, %25 : vector<8x256xf32>
    %cst_18 = arith.constant 0.000000e+00 : f32
    %27 = vector.broadcast %cst_18 : f32 to vector<8x256xf32>
    %28 = arith.maximumf %26, %27 : vector<8x256xf32>
    %29 = vector.broadcast %cst_18 : f32 to vector<8x256xf32>
    %30 = arith.subf %26, %29 : vector<8x256xf32>
    %31 = arith.cmpf one, %30, %30 : vector<8x256xf32>
    %32 = vector.broadcast %cst_18 : f32 to vector<8x256xf32>
    %33 = arith.addf %26, %32 : vector<8x256xf32>
    %34 = math.absf %30 : vector<8x256xf32>
    %cst_19 = arith.constant 0.000000e+00 : f32
    %35 = vector.broadcast %cst_19 : f32 to vector<8x256xf32>
    %36 = arith.subf %35, %34 : vector<8x256xf32>
    %37 = math.exp %36 : vector<8x256xf32>
    %38 = math.log1p %37 : vector<8x256xf32>
    %39 = arith.addf %28, %38 : vector<8x256xf32>
    %40 = arith.select %31, %33, %39 : vector<8x256xi1>, vector<8x256xf32>
    %c0_20 = arith.constant 0 : index
    %c0_21 = arith.constant 0 : index
    %41 = vector.load %arg11[%c0_20, %c0_21] : memref<8x256xf32, #tpu.memory_space<vmem>>, vector<8x256xf32>
    tpu.vector_store %arg11[%c0_20, %c0_21], %23 {strides = array<i32>} : memref<8x256xf32, #tpu.memory_space<vmem>>, vector<8x256xf32>,
    %c0_22 = arith.constant 0 : index
    %c0_23 = arith.constant 0 : index
    %42 = vector.load %arg12[%c0_22, %c0_23] : memref<8x256xf32, #tpu.memory_space<vmem>>, vector<8x256xf32>
    tpu.vector_store %arg12[%c0_22, %c0_23], %40 {strides = array<i32>} : memref<8x256xf32, #tpu.memory_space<vmem>>, vector<8x256xf32>,
    %c0_24 = arith.constant 0 : index
    %c0_25 = arith.constant 0 : index
    %43 = vector.load %arg8[%c0_24, %c0_25] : memref<8x256xf32, #tpu.memory_space<vmem>>, vector<8x256xf32>
    %44 = arith.mulf %40, %43 : vector<8x256xf32>
    %45 = arith.addf %23, %44 : vector<8x256xf32>
    %c0_26 = arith.constant 0 : index
    %c0_27 = arith.constant 0 : index
    %46 = vector.load %arg9[%c0_26, %c0_27] : memref<256x128xf32, #tpu.memory_space<vmem>>, vector<256x128xf32>
    %cst_28 = arith.constant dense<0.000000e+00> : vector<8x128xf32>
    %47 = tpu.matmul %45, %46, %cst_28 {dimension_numbers = #tpu.dot_dimension_numbers<[1], [0], [0], [1], [0, 0, 1, 1], [], []>} : vector<8x256xf32>, vector<256x128xf32>, vector<8x128xf32> -> vector<8x128xf32>
    %c0_29 = arith.constant 0 : index
    %c0_30 = arith.constant 0 : index
    %48 = vector.load %arg10[%c0_29, %c0_30] : memref<1x128xf32, #tpu.memory_space<vmem>>, vector<1x128xf32>
    %49 = vector.broadcast %48 : vector<1x128xf32> to vector<8x128xf32>
    %50 = arith.addf %47, %49 : vector<8x128xf32>
    %c0_31 = arith.constant 0 : index
    %c0_32 = arith.constant 0 : index
    %51 = vector.load %arg13[%c0_31, %c0_32] : memref<8x128xf32, #tpu.memory_space<vmem>>, vector<8x128xf32>
    tpu.vector_store %arg13[%c0_31, %c0_32], %50 {strides = array<i32>} : memref<8x128xf32, #tpu.memory_space<vmem>>, vector<8x128xf32>,
    return
  }
  func.func @transform_0(%arg0: i32) -> (i32, i32) {
    %c0_i32 = arith.constant 0 : i32
    %c0_i32_0 = arith.constant 0 : i32
    return %arg0, %c0_i32 : i32, i32
  }
  func.func @transform_1(%arg0: i32) -> (i32, i32) {
    %c0_i32 = arith.constant 0 : i32
    %c0_i32_0 = arith.constant 0 : i32
    %c0_i32_1 = arith.constant 0 : i32
    return %c0_i32, %c0_i32_0 : i32, i32
  }
  func.func @transform_2(%arg0: i32) -> (i32, i32) {
    %c0_i32 = arith.constant 0 : i32
    %c0_i32_0 = arith.constant 0 : i32
    %c0_i32_1 = arith.constant 0 : i32
    return %c0_i32, %c0_i32_0 : i32, i32
  }
  func.func @transform_3(%arg0: i32) -> (i32, i32) {
    %c0_i32 = arith.constant 0 : i32
    %c0_i32_0 = arith.constant 0 : i32
    %c0_i32_1 = arith.constant 0 : i32
    return %c0_i32, %c0_i32_0 : i32, i32
  }
  func.func @transform_4(%arg0: i32) -> (i32, i32) {
    %c0_i32 = arith.constant 0 : i32
    %c0_i32_0 = arith.constant 0 : i32
    %c0_i32_1 = arith.constant 0 : i32
    return %c0_i32, %c0_i32_0 : i32, i32
  }
  func.func @transform_5(%arg0: i32) -> (i32, i32) {
    %c0_i32 = arith.constant 0 : i32
    %c0_i32_0 = arith.constant 0 : i32
    %c0_i32_1 = arith.constant 0 : i32
    return %c0_i32, %c0_i32_0 : i32, i32
  }
  func.func @transform_6(%arg0: i32) -> (i32, i32) {
    %c0_i32 = arith.constant 0 : i32
    %c0_i32_0 = arith.constant 0 : i32
    %c0_i32_1 = arith.constant 0 : i32
    return %c0_i32, %c0_i32_0 : i32, i32
  }
  func.func @transform_7(%arg0: i32) -> (i32, i32) {
    %c0_i32 = arith.constant 0 : i32
    %c0_i32_0 = arith.constant 0 : i32
    return %arg0, %c0_i32 : i32, i32
  }
  func.func @transform_8(%arg0: i32) -> (i32, i32) {
    %c0_i32 = arith.constant 0 : i32
    %c0_i32_0 = arith.constant 0 : i32
    %c0_i32_1 = arith.constant 0 : i32
    return %c0_i32, %c0_i32_0 : i32, i32
  }
  func.func @transform_9(%arg0: i32) -> (i32, i32) {
    %c0_i32 = arith.constant 0 : i32
    %c0_i32_0 = arith.constant 0 : i32
    %c0_i32_1 = arith.constant 0 : i32
    return %c0_i32, %c0_i32_0 : i32, i32
  }
  func.func @transform_10(%arg0: i32) -> (i32, i32) {
    %c0_i32 = arith.constant 0 : i32
    %c0_i32_0 = arith.constant 0 : i32
    return %arg0, %c0_i32 : i32, i32
  }
  func.func @transform_11(%arg0: i32) -> (i32, i32) {
    %c0_i32 = arith.constant 0 : i32
    %c0_i32_0 = arith.constant 0 : i32
    return %arg0, %c0_i32 : i32, i32
  }
  func.func @transform_12(%arg0: i32) -> (i32, i32) {
    %c0_i32 = arith.constant 0 : i32
    %c0_i32_0 = arith.constant 0 : i32
    return %arg0, %c0_i32 : i32, i32
  }
}

</mosaic_0001>

<llo_original>
// kernel: mnist_ib_vae_gmm_forward.1
$region0: #{mnist_ib_vae_gmm_forward.1}
  #allocation0 [shape = 'u32[]', space=smem, size = 0x4, offset = 0x4, fixed_abs, tag = 'smem constant byte address 0x4 - core index']
  #allocation1 [shape = 'u32[144,128]{1,0:T(1,128)}', space=vmem, size = 0x12000, scoped, tag = 'internal scratch']
  %s0 = inlined_call_operand.vmem [shape: f32[16,784], index: 0, kind: input, shape index: {}]
  %s1 = inlined_call_operand.vmem [shape: bf16[784,1024], index: 1, kind: input, shape index: {}]
  %s2 = inlined_call_operand.hbm [shape: f32[1,1024], index: 2, kind: input, shape index: {}]
  %s3 = inlined_call_operand.hbm [shape: bf16[1024,1024], index: 3, kind: input, shape index: {}]
  %s4 = inlined_call_operand.hbm [shape: f32[1,1024], index: 4, kind: input, shape index: {}]
  %s5 = inlined_call_operand.hbm [shape: bf16[1024,512], index: 5, kind: input, shape index: {}]
  %s6 = inlined_call_operand.hbm [shape: f32[1,512], index: 6, kind: input, shape index: {}]
  %s7 = inlined_call_operand.vmem [shape: f32[16,256], index: 7, kind: input, shape index: {}]
  %s8 = inlined_call_operand.vmem [shape: f32[256,128], index: 8, kind: input, shape index: {}]
  %s9 = inlined_call_operand.vmem [shape: f32[1,128], index: 9, kind: input, shape index: {}]
  %s10 = inlined_call_operand.vmem [shape: f32[16,256], index: 10, kind: output, shape index: {0}]
  %s11 = inlined_call_operand.vmem [shape: f32[16,256], index: 11, kind: output, shape index: {1}]
  %s12 = inlined_call_operand.vmem [shape: f32[16,128], index: 12, kind: output, shape index: {2}]
  %13 = xla_tuple %s10, %s11, %s12
  %s14 = sld [smem:[#allocation0]]
  $region109: #{mnist_ib_vae_gmm_forward.1} parent=0
    _
  %s16 = ssub.s32 1, %s14
  %s17 = scalar_select 0, %s16, %s14
  $region1: #{mnist_ib_vae_gmm_forward.1} parent=0
    #allocation2 [shape = 'u8[4096]{0}', space=vmem, size = 0x1000, scoped, tag = 'input window, operand 2, single buffered']
    #allocation3 [shape = 's32[2]{0}', space=sflag, size = 0x8, scoped, tag = 'scoped memory for mnist_ib_vae_gmm_forward.1']
    #allocation4 [shape = 'u8[2097152]{0}', space=vmem, size = 0x200000, scoped, tag = 'input window, operand 3, single buffered']
    #allocation5 [shape = 's32[1]{0}', space=sflag, size = 0x4, scoped, tag = 'scoped memory for mnist_ib_vae_gmm_forward.1']
    #allocation6 [shape = 'u8[4096]{0}', space=vmem, size = 0x1000, scoped, tag = 'input window, operand 4, single buffered']
    #allocation7 [shape = 'u8[1048576]{0}', space=vmem, size = 0x100000, scoped, tag = 'input window, operand 5, single buffered']
    #allocation8 [shape = 's32[1]{0}', space=sflag, size = 0x4, scoped, tag = 'scoped memory for mnist_ib_vae_gmm_forward.1']
    #allocation9 [shape = 'u8[2048]{0}', space=vmem, size = 0x800, scoped, tag = 'input window, operand 6, single buffered']
    %18 = vsyncpa [#allocation3], 0
    %19 = vsyncpa [#allocation5], 0
    %20 = vsyncpa [#allocation8], 0
    loop: start=0, step=1, limit=4
    $region2: #{mnist_ib_vae_gmm_forward.1} parent=1 // loop_pre_header
      _
    $region3: #{mnist_ib_vae_gmm_forward.1} parent=1 // loop_header
      %s22 = sphi 0, %s26
      %p23 = scmp.ge.s32.totalorder %s22, 4
      %s32 = sphi 0, %s34
      %s35 = sphi 0, %s32
      %s36 = sphi 0, %s35
      %s52 = sphi 0, %s36
      %s56 = sphi 0, %s56
      %s58 = sphi 0, %s56
      %s59 = sphi 0, %s58
      %s73 = sphi 0, %s59
      %s77 = sphi 0, %s77
      %s79 = sphi 0, %s77
      %s80 = sphi 0, %s79
      %s94 = sphi 0, %s80
      %s98 = sphi 0, %s98
      %s100 = sphi 0, %s98
      %s101 = sphi 0, %s100
      %s115 = sphi 0, %s101
      %s119 = sphi 0, %s119
      %s121 = sphi 0, %s119
      %s122 = sphi 0, %s121
      %s136 = sphi 0, %s122
      %s140 = sphi 0, %s140
      %s142 = sphi 0, %s140
      %s143 = sphi 0, %s142
      %s157 = sphi 0, %s143
      %s161 = sphi 0, %s161
      %s163 = sphi 0, %s161
      %s164 = sphi 0, %s163
      %s178 = sphi 0, %s164
      %s184 = sphi 0, %s186
      %s187 = sphi 0, %s184
      %s188 = sphi 0, %s187
      %s204 = sphi 0, %s188
      %s208 = sphi 0, %s208
      %s210 = sphi 0, %s208
      %s211 = sphi 0, %s210
      %s225 = sphi 0, %s211
      %s229 = sphi 0, %s229
      %s231 = sphi 0, %s229
      %s232 = sphi 0, %s231
      %s246 = sphi 0, %s232
      %s252 = sphi 0, %s254
      %s255 = sphi 0, %s252
      %s256 = sphi 0, %s255
      %s272 = sphi 0, %s256
      %s278 = sphi 0, %s280
      %s281 = sphi 0, %s278
      %s282 = sphi 0, %s281
      %s298 = sphi 0, %s282
      %s304 = sphi 0, %s306
      %s307 = sphi 0, %s304
      %s308 = sphi 0, %s307
      %s324 = sphi 0, %s308
    $region4: #{mnist_ib_vae_gmm_forward.1} parent=1 // loop_header_branch
      %25 = sbr.rel (%p23) target = $region8
    $region5: #{mnist_ib_vae_gmm_forward.1} parent=1 // loop_body
      %s27 = ssub.s32 %s22, 1
      %s28 = ssub.s32 %s22, 2
      %s29 = sadd.s32 %s22, 1
      %s30 = ssub.s32 %s22, %s29
      %p31 = scmp.eq.s32.totalorder %s30, 0
      %s33 = sadd.s32 %s32, 1
      %s34 = scalar_select %p31, %s32, %s33
      %p37 = pneg %p31
      %p38 = scmp.eq.s32.totalorder %s22, 1
      %p39 = por %p37, %p38
      %p40 = scmp.ne.s32.totalorder %s32, %s35
      %p41 = scmp.eq.s32.totalorder %s22, 0
      %p42 = por %p40, %p41
      %p43 = scmp.ne.s32.totalorder %s32, %s35
      %p44 = scmp.eq.s32.totalorder %s27, 1
      %p45 = por %p43, %p44
      %p46 = scmp.ne.s32.totalorder %s35, %s36
      %p47 = scmp.eq.s32.totalorder %s27, 0
      %p48 = por %p46, %p47
      %p49 = scmp.ne.s32.totalorder %s35, %s36
      %p50 = scmp.eq.s32.totalorder %s28, 1
      %p51 = por %p49, %p50
      %p53 = scmp.ne.s32.totalorder %s36, %s52
      %p54 = scmp.eq.s32.totalorder %s28, 0
      %p55 = por %p53, %p54
      %s57 = sadd.s32 %s56, 1
      %p60 = scmp.eq.s32.totalorder %s22, 1
      %p61 = scmp.ne.s32.totalorder %s56, %s58
      %p62 = scmp.eq.s32.totalorder %s22, 0
      %p63 = por %p61, %p62
      %p64 = scmp.ne.s32.totalorder %s56, %s58
      %p65 = scmp.eq.s32.totalorder %s27, 1
      %p66 = por %p64, %p65
      %p67 = scmp.ne.s32.totalorder %s58, %s59
      %p68 = scmp.eq.s32.totalorder %s27, 0
      %p69 = por %p67, %p68
      %p70 = scmp.ne.s32.totalorder %s58, %s59
      %p71 = scmp.eq.s32.totalorder %s28, 1
      %p72 = por %p70, %p71
      %p74 = scmp.ne.s32.totalorder %s59, %s73
      %p75 = scmp.eq.s32.totalorder %s28, 0
      %p76 = por %p74, %p75
      %s78 = sadd.s32 %s77, 1
      %p81 = scmp.eq.s32.totalorder %s22, 1
      %p82 = scmp.ne.s32.totalorder %s77, %s79
      %p83 = scmp.eq.s32.totalorder %s22, 0
      %p84 = por %p82, %p83
      %p85 = scmp.ne.s32.totalorder %s77, %s79
      %p86 = scmp.eq.s32.totalorder %s27, 1
      %p87 = por %p85, %p86
      %p88 = scmp.ne.s32.totalorder %s79, %s80
      %p89 = scmp.eq.s32.totalorder %s27, 0
      %p90 = por %p88, %p89
      %p91 = scmp.ne.s32.totalorder %s79, %s80
      %p92 = scmp.eq.s32.totalorder %s28, 1
      %p93 = por %p91, %p92
      %p95 = scmp.ne.s32.totalorder %s80, %s94
      %p96 = scmp.eq.s32.totalorder %s28, 0
      %p97 = por %p95, %p96
      %s99 = sadd.s32 %s98, 1
      %p102 = scmp.eq.s32.totalorder %s22, 1
      %p103 = scmp.ne.s32.totalorder %s98, %s100
      %p104 = scmp.eq.s32.totalorder %s22, 0
      %p105 = por %p103, %p104
      %p106 = scmp.ne.s32.totalorder %s98, %s100
      %p107 = scmp.eq.s32.totalorder %s27, 1
      %p108 = por %p106, %p107
      %p109 = scmp.ne.s32.totalorder %s100, %s101
      %p110 = scmp.eq.s32.totalorder %s27, 0
      %p111 = por %p109, %p110
      %p112 = scmp.ne.s32.totalorder %s100, %s101
      %p113 = scmp.eq.s32.totalorder %s28, 1
      %p114 = por %p112, %p113
      %p116 = scmp.ne.s32.totalorder %s101, %s115
      %p117 = scmp.eq.s32.totalorder %s28, 0
      %p118 = por %p116, %p117
      %s120 = sadd.s32 %s119, 1
      %p123 = scmp.eq.s32.totalorder %s22, 1
      %p124 = scmp.ne.s32.totalorder %s119, %s121
      %p125 = scmp.eq.s32.totalorder %s22, 0
      %p126 = por %p124, %p125
      %p127 = scmp.ne.s32.totalorder %s119, %s121
      %p128 = scmp.eq.s32.totalorder %s27, 1
      %p129 = por %p127, %p128
      %p130 = scmp.ne.s32.totalorder %s121, %s122
      %p131 = scmp.eq.s32.totalorder %s27, 0
      %p132 = por %p130, %p131
      %p133 = scmp.ne.s32.totalorder %s121, %s122
      %p134 = scmp.eq.s32.totalorder %s28, 1
      %p135 = por %p133, %p134
      %p137 = scmp.ne.s32.totalorder %s122, %s136
      %p138 = scmp.eq.s32.totalorder %s28, 0
      %p139 = por %p137, %p138
      %s141 = sadd.s32 %s140, 1
      %p144 = scmp.eq.s32.totalorder %s22, 1
      %p145 = scmp.ne.s32.totalorder %s140, %s142
      %p146 = scmp.eq.s32.totalorder %s22, 0
      %p147 = por %p145, %p146
      %p148 = scmp.ne.s32.totalorder %s140, %s142
      %p149 = scmp.eq.s32.totalorder %s27, 1
      %p150 = por %p148, %p149
      %p151 = scmp.ne.s32.totalorder %s142, %s143
      %p152 = scmp.eq.s32.totalorder %s27, 0
      %p153 = por %p151, %p152
      %p154 = scmp.ne.s32.totalorder %s142, %s143
      %p155 = scmp.eq.s32.totalorder %s28, 1
      %p156 = por %p154, %p155
      %p158 = scmp.ne.s32.totalorder %s143, %s157
      %p159 = scmp.eq.s32.totalorder %s28, 0
      %p160 = por %p158, %p159
      %s162 = sadd.s32 %s161, 1
      %p165 = scmp.eq.s32.totalorder %s22, 1
      %p166 = scmp.ne.s32.totalorder %s161, %s163
      %p167 = scmp.eq.s32.totalorder %s22, 0
      %p168 = por %p166, %p167
      %p169 = scmp.ne.s32.totalorder %s161, %s163
      %p170 = scmp.eq.s32.totalorder %s27, 1
      %p171 = por %p169, %p170
      %p172 = scmp.ne.s32.totalorder %s163, %s164
      %p173 = scmp.eq.s32.totalorder %s27, 0
      %p174 = por %p172, %p173
      %p175 = scmp.ne.s32.totalorder %s163, %s164
      %p176 = scmp.eq.s32.totalorder %s28, 1
      %p177 = por %p175, %p176
      %p179 = scmp.ne.s32.totalorder %s164, %s178
      %p180 = scmp.eq.s32.totalorder %s28, 0
      %p181 = por %p179, %p180
      %s182 = ssub.s32 %s22, %s29
      %p183 = scmp.eq.s32.totalorder %s182, 0
      %s185 = sadd.s32 %s184, 1
      %s186 = scalar_select %p183, %s184, %s185
      %p189 = pneg %p183
      %p190 = scmp.eq.s32.totalorder %s22, 1
      %p191 = por %p189, %p190
      %p192 = scmp.ne.s32.totalorder %s184, %s187
      %p193 = scmp.eq.s32.totalorder %s22, 0
      %p194 = por %p192, %p193
      %p195 = scmp.ne.s32.totalorder %s184, %s187
      %p196 = scmp.eq.s32.totalorder %s27, 1
      %p197 = por %p195, %p196
      %p198 = scmp.ne.s32.totalorder %s187, %s188
      %p199 = scmp.eq.s32.totalorder %s27, 0
      %p200 = por %p198, %p199
      %p201 = scmp.ne.s32.totalorder %s187, %s188
      %p202 = scmp.eq.s32.totalorder %s28, 1
      %p203 = por %p201, %p202
      %p205 = scmp.ne.s32.totalorder %s188, %s204
      %p206 = scmp.eq.s32.totalorder %s28, 0
      %p207 = por %p205, %p206
      %s209 = sadd.s32 %s208, 1
      %p212 = scmp.eq.s32.totalorder %s22, 1
      %p213 = scmp.ne.s32.totalorder %s208, %s210
      %p214 = scmp.eq.s32.totalorder %s22, 0
      %p215 = por %p213, %p214
      %p216 = scmp.ne.s32.totalorder %s208, %s210
      %p217 = scmp.eq.s32.totalorder %s27, 1
      %p218 = por %p216, %p217
      %p219 = scmp.ne.s32.totalorder %s210, %s211
      %p220 = scmp.eq.s32.totalorder %s27, 0
      %p221 = por %p219, %p220
      %p222 = scmp.ne.s32.totalorder %s210, %s211
      %p223 = scmp.eq.s32.totalorder %s28, 1
      %p224 = por %p222, %p223
      %p226 = scmp.ne.s32.totalorder %s211, %s225
      %p227 = scmp.eq.s32.totalorder %s28, 0
      %p228 = por %p226, %p227
      %s230 = sadd.s32 %s229, 1
      %p233 = scmp.eq.s32.totalorder %s22, 1
      %p234 = scmp.ne.s32.totalorder %s229, %s231
      %p235 = scmp.eq.s32.totalorder %s22, 0
      %p236 = por %p234, %p235
      %p237 = scmp.ne.s32.totalorder %s229, %s231
      %p238 = scmp.eq.s32.totalorder %s27, 1
      %p239 = por %p237, %p238
      %p240 = scmp.ne.s32.totalorder %s231, %s232
      %p241 = scmp.eq.s32.totalorder %s27, 0
      %p242 = por %p240, %p241
      %p243 = scmp.ne.s32.totalorder %s231, %s232
      %p244 = scmp.eq.s32.totalorder %s28, 1
      %p245 = por %p243, %p244
      %p247 = scmp.ne.s32.totalorder %s232, %s246
      %p248 = scmp.eq.s32.totalorder %s28, 0
      %p249 = por %p247, %p248
      %s250 = ssub.s32 %s22, %s29
      %p251 = scmp.eq.s32.totalorder %s250, 0
      %s253 = sadd.s32 %s252, 1
      %s254 = scalar_select %p251, %s252, %s253
      %p257 = pneg %p251
      %p258 = scmp.eq.s32.totalorder %s22, 1
      %p259 = por %p257, %p258
      %p260 = scmp.ne.s32.totalorder %s252, %s255
      %p261 = scmp.eq.s32.totalorder %s22, 0
      %p262 = por %p260, %p261
      %p263 = scmp.ne.s32.totalorder %s252, %s255
      %p264 = scmp.eq.s32.totalorder %s27, 1
      %p265 = por %p263, %p264
      %p266 = scmp.ne.s32.totalorder %s255, %s256
      %p267 = scmp.eq.s32.totalorder %s27, 0
      %p268 = por %p266, %p267
      %p269 = scmp.ne.s32.totalorder %s255, %s256
      %p270 = scmp.eq.s32.totalorder %s28, 1
      %p271 = por %p269, %p270
      %p273 = scmp.ne.s32.totalorder %s256, %s272
      %p274 = scmp.eq.s32.totalorder %s28, 0
      %p275 = por %p273, %p274
      %s276 = ssub.s32 %s22, %s29
      %p277 = scmp.eq.s32.totalorder %s276, 0
      %s279 = sadd.s32 %s278, 1
      %s280 = scalar_select %p277, %s278, %s279
      %p283 = pneg %p277
      %p284 = scmp.eq.s32.totalorder %s22, 1
      %p285 = por %p283, %p284
      %p286 = scmp.ne.s32.totalorder %s278, %s281
      %p287 = scmp.eq.s32.totalorder %s22, 0
      %p288 = por %p286, %p287
      %p289 = scmp.ne.s32.totalorder %s278, %s281
      %p290 = scmp.eq.s32.totalorder %s27, 1
      %p291 = por %p289, %p290
      %p292 = scmp.ne.s32.totalorder %s281, %s282
      %p293 = scmp.eq.s32.totalorder %s27, 0
      %p294 = por %p292, %p293
      %p295 = scmp.ne.s32.totalorder %s281, %s282
      %p296 = scmp.eq.s32.totalorder %s28, 1
      %p297 = por %p295, %p296
      %p299 = scmp.ne.s32.totalorder %s282, %s298
      %p300 = scmp.eq.s32.totalorder %s28, 0
      %p301 = por %p299, %p300
      %s302 = ssub.s32 %s22, %s29
      %p303 = scmp.eq.s32.totalorder %s302, 0
      %s305 = sadd.s32 %s304, 1
      %s306 = scalar_select %p303, %s304, %s305
      %p309 = pneg %p303
      %p310 = scmp.eq.s32.totalorder %s22, 1
      %p311 = por %p309, %p310
      %p312 = scmp.ne.s32.totalorder %s304, %s307
      %p313 = scmp.eq.s32.totalorder %s22, 0
      %p314 = por %p312, %p313
      %p315 = scmp.ne.s32.totalorder %s304, %s307
      %p316 = scmp.eq.s32.totalorder %s27, 1
      %p317 = por %p315, %p316
      %p318 = scmp.ne.s32.totalorder %s307, %s308
      %p319 = scmp.eq.s32.totalorder %s27, 0
      %p320 = por %p318, %p319
      %p321 = scmp.ne.s32.totalorder %s307, %s308
      %p322 = scmp.eq.s32.totalorder %s28, 1
      %p323 = por %p321, %p322
      %p325 = scmp.ne.s32.totalorder %s308, %s324
      %p326 = scmp.eq.s32.totalorder %s28, 0
      %p327 = por %p325, %p326
      %p328 = scmp.le.s32.totalorder 1, %s22
      %p329 = scmp.lt.s32.totalorder %s22, 3
      %p330 = pnand %p328, %p329
      %p331 = pneg %p330
      // Predicated region
      $region9: #{mnist_ib_vae_gmm_forward.1} parent=5 // pred_check
        _
      $region10: #{mnist_ib_vae_gmm_forward.1} parent=5 // pred_check_branch
        %333 = sbr.rel (%p330) target = $region12
      $region11: #{mnist_ib_vae_gmm_forward.1} parent=5 // pred_region
        %s334 = ssub.s32 %s22, 1
        // Predicated region
        $region13: #{mnist_ib_vae_gmm_forward.1} parent=11 // pred_check
          %p335 = pneg %p69
        $region14: #{mnist_ib_vae_gmm_forward.1} parent=11 // pred_check_branch
          %337 = sbr.rel (%p335) target = $region16
        $region15: #{mnist_ib_vae_gmm_forward.1} parent=11 // pred_region
          _
        $region16: #{mnist_ib_vae_gmm_forward.1} parent=11 // pred_fallthru
          _
        // Predicated region
        $region17: #{mnist_ib_vae_gmm_forward.1} parent=11 // pred_check
          %p338 = pneg %p90
        $region18: #{mnist_ib_vae_gmm_forward.1} parent=11 // pred_check_branch
          %340 = sbr.rel (%p338) target = $region20
        $region19: #{mnist_ib_vae_gmm_forward.1} parent=11 // pred_region
          %s342 = ssub.s32 128, 128
          %343 = vsyncadd [#allocation3], %s342
          %s345 = sshll.u32 [#allocation2], 4
          %s346 = int_to_ptr.vmem [resolvable:$true] %s345
          %348 = dma.hbm_to_vmem [thread:$0]  %s2, 128, %s346, [#allocation3]
        $region20: #{mnist_ib_vae_gmm_forward.1} parent=11 // pred_fallthru
          _
        // Predicated region
        $region21: #{mnist_ib_vae_gmm_forward.1} parent=11 // pred_check
          %p349 = pneg %p111
        $region22: #{mnist_ib_vae_gmm_forward.1} parent=11 // pred_check_branch
          %351 = sbr.rel (%p349) target = $region24
        $region23: #{mnist_ib_vae_gmm_forward.1} parent=11 // pred_region
          %s353 = ssub.s32 65536, 65536
          %354 = vsyncadd [#allocation5], %s353
          %s355 = sshll.u32 [#allocation4], 4
          %s356 = int_to_ptr.vmem [resolvable:$true] %s355
          %361 = dma.hbm_to_vmem [thread:$0]  %s3, 65536, %s356, [#allocation5], 512, 512, 32
        $region24: #{mnist_ib_vae_gmm_forward.1} parent=11 // pred_fallthru
          _
        // Predicated region
        $region25: #{mnist_ib_vae_gmm_forward.1} parent=11 // pred_check
          %p362 = pneg %p132
        $region26: #{mnist_ib_vae_gmm_forward.1} parent=11 // pred_check_branch
          %364 = sbr.rel (%p362) target = $region28
        $region27: #{mnist_ib_vae_gmm_forward.1} parent=11 // pred_region
          %s366 = ssub.s32 128, 128
          %367 = vsyncadd [#allocation5], %s366
          %s369 = sshll.u32 [#allocation6], 4
          %s370 = int_to_ptr.vmem [resolvable:$true] %s369
          %372 = dma.hbm_to_vmem [thread:$0]  %s4, 128, %s370, [#allocation5]
        $region28: #{mnist_ib_vae_gmm_forward.1} parent=11 // pred_fallthru
          _
        // Predicated region
        $region29: #{mnist_ib_vae_gmm_forward.1} parent=11 // pred_check
          %p373 = pneg %p153
        $region30: #{mnist_ib_vae_gmm_forward.1} parent=11 // pred_check_branch
          %375 = sbr.rel (%p373) target = $region32
        $region31: #{mnist_ib_vae_gmm_forward.1} parent=11 // pred_region
          %s377 = ssub.s32 32768, 32768
          %378 = vsyncadd [#allocation8], %s377
          %s379 = sshll.u32 [#allocation7], 4
          %s380 = int_to_ptr.vmem [resolvable:$true] %s379
          %385 = dma.hbm_to_vmem [thread:$0]  %s5, 32768, %s380, [#allocation8], 256, 256, 16
        $region32: #{mnist_ib_vae_gmm_forward.1} parent=11 // pred_fallthru
          _
        // Predicated region
        $region33: #{mnist_ib_vae_gmm_forward.1} parent=11 // pred_check
          %p386 = pneg %p174
        $region34: #{mnist_ib_vae_gmm_forward.1} parent=11 // pred_check_branch
          %388 = sbr.rel (%p386) target = $region36
        $region35: #{mnist_ib_vae_gmm_forward.1} parent=11 // pred_region
          %s390 = ssub.s32 64, 64
          %391 = vsyncadd [#allocation8], %s390
          %s393 = sshll.u32 [#allocation9], 4
          %s394 = int_to_ptr.vmem [resolvable:$true] %s393
          %396 = dma.hbm_to_vmem [thread:$0]  %s6, 64, %s394, [#allocation8]
        $region36: #{mnist_ib_vae_gmm_forward.1} parent=11 // pred_fallthru
          _
        // Predicated region
        $region37: #{mnist_ib_vae_gmm_forward.1} parent=11 // pred_check
          %p397 = pneg %p221
        $region38: #{mnist_ib_vae_gmm_forward.1} parent=11 // pred_check_branch
          %399 = sbr.rel (%p397) target = $region40
        $region39: #{mnist_ib_vae_gmm_forward.1} parent=11 // pred_region
          _
        $region40: #{mnist_ib_vae_gmm_forward.1} parent=11 // pred_fallthru
          _
        // Predicated region
        $region41: #{mnist_ib_vae_gmm_forward.1} parent=11 // pred_check
          %p400 = pneg %p242
        $region42: #{mnist_ib_vae_gmm_forward.1} parent=11 // pred_check_branch
          %402 = sbr.rel (%p400) target = $region44
        $region43: #{mnist_ib_vae_gmm_forward.1} parent=11 // pred_region
          _
        $region44: #{mnist_ib_vae_gmm_forward.1} parent=11 // pred_fallthru
          _
      $region12: #{mnist_ib_vae_gmm_forward.1} parent=5 // pred_fallthru
        _
      %p403 = scmp.lt.s32.totalorder %s22, 2
      // Predicated region
      $region45: #{mnist_ib_vae_gmm_forward.1} parent=5 // pred_check
        %p404 = pneg %p403
      $region46: #{mnist_ib_vae_gmm_forward.1} parent=5 // pred_check_branch
        %406 = sbr.rel (%p404) target = $region48
      $region47: #{mnist_ib_vae_gmm_forward.1} parent=5 // pred_region
        // Predicated region
        $region49: #{mnist_ib_vae_gmm_forward.1} parent=47 // pred_check
          %p407 = pneg %p42
        $region50: #{mnist_ib_vae_gmm_forward.1} parent=47 // pred_check_branch
          %409 = sbr.rel (%p407) target = $region52
        $region51: #{mnist_ib_vae_gmm_forward.1} parent=47 // pred_region
          %p410 = scmp.lt.s32.totalorder %s22, 1
          %s411 = scalar_select %p410, %s22, 1
          %s412 = smul.addr %s411, 7
          %s413 = smul.addr %s412, 8
          %s414 = scalar_lea.vmem %s0, %s413
        $region52: #{mnist_ib_vae_gmm_forward.1} parent=47 // pred_fallthru
          _
        // Predicated region
        $region53: #{mnist_ib_vae_gmm_forward.1} parent=47 // pred_check
          %p415 = pneg %p194
        $region54: #{mnist_ib_vae_gmm_forward.1} parent=47 // pred_check_branch
          %417 = sbr.rel (%p415) target = $region56
        $region55: #{mnist_ib_vae_gmm_forward.1} parent=47 // pred_region
          %p418 = scmp.lt.s32.totalorder %s22, 1
          %s419 = scalar_select %p418, %s22, 1
          %s420 = smul.addr %s419, 2
          %s421 = smul.addr %s420, 8
          %s422 = scalar_lea.vmem %s7, %s421
        $region56: #{mnist_ib_vae_gmm_forward.1} parent=47 // pred_fallthru
          _
      $region48: #{mnist_ib_vae_gmm_forward.1} parent=5 // pred_fallthru
        _
      %p423 = scmp.le.s32.totalorder 1, %s22
      %p424 = scmp.lt.s32.totalorder %s22, 3
      %p425 = pnand %p423, %p424
      %p426 = pneg %p425
      // Predicated region
      $region57: #{mnist_ib_vae_gmm_forward.1} parent=5 // pred_check
        _
      $region58: #{mnist_ib_vae_gmm_forward.1} parent=5 // pred_check_branch
        %428 = sbr.rel (%p425) target = $region60
      $region59: #{mnist_ib_vae_gmm_forward.1} parent=5 // pred_region
        %s429 = ssub.s32 %s22, 1
        // Predicated region
        $region61: #{mnist_ib_vae_gmm_forward.1} parent=59 // pred_check
          %p430 = pneg %p90
        $region62: #{mnist_ib_vae_gmm_forward.1} parent=59 // pred_check_branch
          %432 = sbr.rel (%p430) target = $region64
        $region63: #{mnist_ib_vae_gmm_forward.1} parent=59 // pred_region
          %433 = dma.done [#allocation3], 128
        $region64: #{mnist_ib_vae_gmm_forward.1} parent=59 // pred_fallthru
          _
        // Predicated region
        $region65: #{mnist_ib_vae_gmm_forward.1} parent=59 // pred_check
          %p434 = pneg %p111
        $region66: #{mnist_ib_vae_gmm_forward.1} parent=59 // pred_check_branch
          %436 = sbr.rel (%p434) target = $region68
        $region67: #{mnist_ib_vae_gmm_forward.1} parent=59 // pred_region
          %437 = dma.done [#allocation5], 65536
        $region68: #{mnist_ib_vae_gmm_forward.1} parent=59 // pred_fallthru
          _
        // Predicated region
        $region69: #{mnist_ib_vae_gmm_forward.1} parent=59 // pred_check
          %p438 = pneg %p132
        $region70: #{mnist_ib_vae_gmm_forward.1} parent=59 // pred_check_branch
          %440 = sbr.rel (%p438) target = $region72
        $region71: #{mnist_ib_vae_gmm_forward.1} parent=59 // pred_region
          %441 = dma.done [#allocation5], 128
        $region72: #{mnist_ib_vae_gmm_forward.1} parent=59 // pred_fallthru
          _
        // Predicated region
        $region73: #{mnist_ib_vae_gmm_forward.1} parent=59 // pred_check
          %p442 = pneg %p153
        $region74: #{mnist_ib_vae_gmm_forward.1} parent=59 // pred_check_branch
          %444 = sbr.rel (%p442) target = $region76
        $region75: #{mnist_ib_vae_gmm_forward.1} parent=59 // pred_region
          %445 = dma.done [#allocation8], 32768
        $region76: #{mnist_ib_vae_gmm_forward.1} parent=59 // pred_fallthru
          _
        // Predicated region
        $region77: #{mnist_ib_vae_gmm_forward.1} parent=59 // pred_check
          %p446 = pneg %p174
        $region78: #{mnist_ib_vae_gmm_forward.1} parent=59 // pred_check_branch
          %448 = sbr.rel (%p446) target = $region80
        $region79: #{mnist_ib_vae_gmm_forward.1} parent=59 // pred_region
          %449 = dma.done [#allocation8], 64
        $region80: #{mnist_ib_vae_gmm_forward.1} parent=59 // pred_fallthru
          _
        %p450 = scmp.lt.s32.totalorder %s27, 1
        %s451 = scalar_select %p450, %s27, 1
        %s452 = smul.addr %s451, 7
        %s453 = smul.addr %s452, 8
        %s454 = scalar_lea.vmem %s0, %s453
        %p455 = pneg %p48
        %p456 = pneg %p45
        %p457 = pneg %p69
        %p458 = pneg %p66
        %p459 = pneg %p90
        %p460 = pneg %p87
        %p461 = pneg %p111
        %p462 = pneg %p108
        %p463 = pneg %p132
        %p464 = pneg %p129
        %p465 = pneg %p153
        %p466 = pneg %p150
        %p467 = pneg %p174
        %p468 = pneg %p171
        %p469 = scmp.lt.s32.totalorder %s27, 1
        %s470 = scalar_select %p469, %s27, 1
        %s471 = smul.addr %s470, 2
        %s472 = smul.addr %s471, 8
        %s473 = scalar_lea.vmem %s7, %s472
        %p474 = pneg %p200
        %p475 = pneg %p197
        %p476 = pneg %p221
        %p477 = pneg %p218
        %p478 = pneg %p242
        %p479 = pneg %p239
        %p480 = pneg %p268
        %p481 = pneg %p265
        %p482 = scmp.lt.s32.totalorder %s27, 1
        %s483 = scalar_select %p482, %s27, 1
        %s484 = smul.addr %s483, 2
        %s485 = smul.addr %s484, 8
        %s486 = scalar_lea.vmem %s10, %s485
        %p487 = pneg %p294
        %p488 = pneg %p291
        %p489 = scmp.lt.s32.totalorder %s27, 1
        %s490 = scalar_select %p489, %s27, 1
        %s491 = smul.addr %s490, 2
        %s492 = smul.addr %s491, 8
        %s493 = scalar_lea.vmem %s11, %s492
        %p494 = pneg %p320
        %p495 = pneg %p317
        %p496 = scmp.lt.s32.totalorder %s27, 1
        %s497 = scalar_select %p496, %s27, 1
        %s498 = smul.addr %s497, 8
        %s499 = scalar_lea.vmem %s12, %s498
        %p500 = scmp.lt.s32.totalorder %s27, 1
        %s501 = scalar_select %p500, %s27, 1
        %s502 = smul.addr %s501, 7
        %s503 = smul.addr %s502, 8
        %s504 = scalar_lea.vmem %s0, %s503
        %p505 = scmp.lt.s32.totalorder %s27, 1
        %s506 = scalar_select %p505, %s27, 1
        %s507 = smul.addr %s506, 2
        %s508 = smul.addr %s507, 8
        %s509 = scalar_lea.vmem %s7, %s508
        %p510 = scmp.lt.s32.totalorder %s27, 1
        %s511 = scalar_select %p510, %s27, 1
        %s512 = smul.addr %s511, 2
        %s513 = smul.addr %s512, 8
        %s514 = scalar_lea.vmem %s10, %s513
        %p515 = scmp.lt.s32.totalorder %s27, 1
        %s516 = scalar_select %p515, %s27, 1
        %s517 = smul.addr %s516, 2
        %s518 = smul.addr %s517, 8
        %s519 = scalar_lea.vmem %s11, %s518
        %p520 = scmp.lt.s32.totalorder %s27, 1
        %s521 = scalar_select %p520, %s27, 1
        %s522 = smul.addr %s521, 8
        %s523 = scalar_lea.vmem %s12, %s522
        %v525 = vld [vmem:[%s504] sm:$0xff]
        %v526 = vld [vmem:[%s504 + $0x8] sm:$0xff]
        %v527 = vld [vmem:[%s504 + $0x10] sm:$0xff]
        %v528 = vld [vmem:[%s504 + $0x18] sm:$0xff]
        %v529 = vld [vmem:[%s504 + $0x20] sm:$0xff]
        %v530 = vld [vmem:[%s504 + $0x28] sm:$0xff]
        %v531 = vld [vmem:[%s504 + $0x30] sm:$0xff]
        %v532 = vpack.c.bf16 %v525, %v525
        %v533 = vpack.c.bf16 %v526, %v526
        %v534 = vpack.c.bf16 %v527, %v527
        %v535 = vpack.c.bf16 %v528, %v528
        %v536 = vpack.c.bf16 %v529, %v529
        %v537 = vpack.c.bf16 %v530, %v530
        %v538 = vpack.c.bf16 %v531, %v531
        %v539 = vld [vmem:[%s1] sm:$0xff]
        %v540 = vld [vmem:[%s1 + $0x8] sm:$0xff]
        %v541 = vld [vmem:[%s1 + $0x10] sm:$0xff]
        %v542 = vld [vmem:[%s1 + $0x18] sm:$0xff]
        %v543 = vld [vmem:[%s1 + $0x20] sm:$0xff]
        %v544 = vld [vmem:[%s1 + $0x28] sm:$0xff]
        %v545 = vld [vmem:[%s1 + $0x30] sm:$0xff]
        %v546 = vld [vmem:[%s1 + $0x38] sm:$0xff]
        %v547 = vld [vmem:[%s1 + $0x40] sm:$0xff]
        %v548 = vld [vmem:[%s1 + $0x48] sm:$0xff]
        %v549 = vld [vmem:[%s1 + $0x50] sm:$0xff]
        %v550 = vld [vmem:[%s1 + $0x58] sm:$0xff]
        %v551 = vld [vmem:[%s1 + $0x60] sm:$0xff]
        %v552 = vld [vmem:[%s1 + $0x68] sm:$0xff]
        %v553 = vld [vmem:[%s1 + $0x70] sm:$0xff]
        %v554 = vld [vmem:[%s1 + $0x78] sm:$0xff]
        %v555 = vld [vmem:[%s1 + $0x80] sm:$0xff]
        %v556 = vld [vmem:[%s1 + $0x88] sm:$0xff]
        %v557 = vld [vmem:[%s1 + $0x90] sm:$0xff]
        %v558 = vld [vmem:[%s1 + $0x98] sm:$0xff]
        %v559 = vld [vmem:[%s1 + $0xa0] sm:$0xff]
        %v560 = vld [vmem:[%s1 + $0xa8] sm:$0xff]
        %v561 = vld [vmem:[%s1 + $0xb0] sm:$0xff]
        %v562 = vld [vmem:[%s1 + $0xb8] sm:$0xff]
        %v563 = vld [vmem:[%s1 + $0xc0] sm:$0xff]
        %v564 = vld [vmem:[%s1 + $0xc8] sm:$0xff]
        %v565 = vld [vmem:[%s1 + $0xd0] sm:$0xff]
        %v566 = vld [vmem:[%s1 + $0xd8] sm:$0xff]
        %v567 = vld [vmem:[%s1 + $0xe0] sm:$0xff]
        %v568 = vld [vmem:[%s1 + $0xe8] sm:$0xff]
        %v569 = vld [vmem:[%s1 + $0xf0] sm:$0xff]
        %v570 = vld [vmem:[%s1 + $0xf8] sm:$0xff]
        %v571 = vld [vmem:[%s1 + $0x100] sm:$0xff]
        %v572 = vld [vmem:[%s1 + $0x108] sm:$0xff]
        %v573 = vld [vmem:[%s1 + $0x110] sm:$0xff]
        %v574 = vld [vmem:[%s1 + $0x118] sm:$0xff]
        %v575 = vld [vmem:[%s1 + $0x120] sm:$0xff]
        %v576 = vld [vmem:[%s1 + $0x128] sm:$0xff]
        %v577 = vld [vmem:[%s1 + $0x130] sm:$0xff]
        %v578 = vld [vmem:[%s1 + $0x138] sm:$0xff]
        %v579 = vld [vmem:[%s1 + $0x140] sm:$0xff]
        %v580 = vld [vmem:[%s1 + $0x148] sm:$0xff]
        %v581 = vld [vmem:[%s1 + $0x150] sm:$0xff]
        %v582 = vld [vmem:[%s1 + $0x158] sm:$0xff]
        %v583 = vld [vmem:[%s1 + $0x160] sm:$0xff]
        %v584 = vld [vmem:[%s1 + $0x168] sm:$0xff]
        %v585 = vld [vmem:[%s1 + $0x170] sm:$0xff]
        %v586 = vld [vmem:[%s1 + $0x178] sm:$0xff]
        %v587 = vld [vmem:[%s1 + $0x180] sm:$0xff]
        %v588 = vld [vmem:[%s1 + $0x188] sm:$0xff]
        %v589 = vld [vmem:[%s1 + $0x190] sm:$0xff]
        %v590 = vld [vmem:[%s1 + $0x198] sm:$0xff]
        %v591 = vld [vmem:[%s1 + $0x1a0] sm:$0xff]
        %v592 = vld [vmem:[%s1 + $0x1a8] sm:$0xff]
        %v593 = vld [vmem:[%s1 + $0x1b0] sm:$0xff]
        %v594 = vld [vmem:[%s1 + $0x1b8] sm:$0xff]
        %v595 = vld [vmem:[%s1 + $0x1c0] sm:$0xff]
        %v596 = vld [vmem:[%s1 + $0x1c8] sm:$0xff]
        %v597 = vld [vmem:[%s1 + $0x1d0] sm:$0xff]
        %v598 = vld [vmem:[%s1 + $0x1d8] sm:$0xff]
        %v599 = vld [vmem:[%s1 + $0x1e0] sm:$0xff]
        %v600 = vld [vmem:[%s1 + $0x1e8] sm:$0xff]
        %v601 = vld [vmem:[%s1 + $0x1f0] sm:$0xff]
        %v602 = vld [vmem:[%s1 + $0x1f8] sm:$0xff]
        %v603 = vld [vmem:[%s1 + $0x200] sm:$0xff]
        %v604 = vld [vmem:[%s1 + $0x208] sm:$0xff]
        %v605 = vld [vmem:[%s1 + $0x210] sm:$0xff]
        %v606 = vld [vmem:[%s1 + $0x218] sm:$0xff]
        %v607 = vld [vmem:[%s1 + $0x220] sm:$0xff]
        %v608 = vld [vmem:[%s1 + $0x228] sm:$0xff]
        %v609 = vld [vmem:[%s1 + $0x230] sm:$0xff]
        %v610 = vld [vmem:[%s1 + $0x238] sm:$0xff]
        %v611 = vld [vmem:[%s1 + $0x240] sm:$0xff]
        %v612 = vld [vmem:[%s1 + $0x248] sm:$0xff]
        %v613 = vld [vmem:[%s1 + $0x250] sm:$0xff]
        %v614 = vld [vmem:[%s1 + $0x258] sm:$0xff]
        %v615 = vld [vmem:[%s1 + $0x260] sm:$0xff]
        %v616 = vld [vmem:[%s1 + $0x268] sm:$0xff]
        %v617 = vld [vmem:[%s1 + $0x270] sm:$0xff]
        %v618 = vld [vmem:[%s1 + $0x278] sm:$0xff]
        %v619 = vld [vmem:[%s1 + $0x280] sm:$0xff]
        %v620 = vld [vmem:[%s1 + $0x288] sm:$0xff]
        %v621 = vld [vmem:[%s1 + $0x290] sm:$0xff]
        %v622 = vld [vmem:[%s1 + $0x298] sm:$0xff]
        %v623 = vld [vmem:[%s1 + $0x2a0] sm:$0xff]
        %v624 = vld [vmem:[%s1 + $0x2a8] sm:$0xff]
        %v625 = vld [vmem:[%s1 + $0x2b0] sm:$0xff]
        %v626 = vld [vmem:[%s1 + $0x2b8] sm:$0xff]
        %v627 = vld [vmem:[%s1 + $0x2c0] sm:$0xff]
        %v628 = vld [vmem:[%s1 + $0x2c8] sm:$0xff]
        %v629 = vld [vmem:[%s1 + $0x2d0] sm:$0xff]
        %v630 = vld [vmem:[%s1 + $0x2d8] sm:$0xff]
        %v631 = vld [vmem:[%s1 + $0x2e0] sm:$0xff]
        %v632 = vld [vmem:[%s1 + $0x2e8] sm:$0xff]
        %v633 = vld [vmem:[%s1 + $0x2f0] sm:$0xff]
        %v634 = vld [vmem:[%s1 + $0x2f8] sm:$0xff]
        %v635 = vld [vmem:[%s1 + $0x300] sm:$0xff]
        %v636 = vld [vmem:[%s1 + $0x308] sm:$0xff]
        %v637 = vld [vmem:[%s1 + $0x310] sm:$0xff]
        %v638 = vld [vmem:[%s1 + $0x318] sm:$0xff]
        %v639 = vld [vmem:[%s1 + $0x320] sm:$0xff]
        %v640 = vld [vmem:[%s1 + $0x328] sm:$0xff]
        %v641 = vld [vmem:[%s1 + $0x330] sm:$0xff]
        %v642 = vld [vmem:[%s1 + $0x338] sm:$0xff]
        %v643 = vld [vmem:[%s1 + $0x340] sm:$0xff]
        %v644 = vld [vmem:[%s1 + $0x348] sm:$0xff]
        %v645 = vld [vmem:[%s1 + $0x350] sm:$0xff]
        %v646 = vld [vmem:[%s1 + $0x358] sm:$0xff]
        %v647 = vld [vmem:[%s1 + $0x360] sm:$0xff]
        %v648 = vld [vmem:[%s1 + $0x368] sm:$0xff]
        %v649 = vld [vmem:[%s1 + $0x370] sm:$0xff]
        %v650 = vld [vmem:[%s1 + $0x378] sm:$0xff]
        %v651 = vld [vmem:[%s1 + $0x380] sm:$0xff]
        %v652 = vld [vmem:[%s1 + $0x388] sm:$0xff]
        %v653 = vld [vmem:[%s1 + $0x390] sm:$0xff]
        %v654 = vld [vmem:[%s1 + $0x398] sm:$0xff]
        %v655 = vld [vmem:[%s1 + $0x3a0] sm:$0xff]
        %v656 = vld [vmem:[%s1 + $0x3a8] sm:$0xff]
        %v657 = vld [vmem:[%s1 + $0x3b0] sm:$0xff]
        %v658 = vld [vmem:[%s1 + $0x3b8] sm:$0xff]
        %v659 = vld [vmem:[%s1 + $0x3c0] sm:$0xff]
        %v660 = vld [vmem:[%s1 + $0x3c8] sm:$0xff]
        %v661 = vld [vmem:[%s1 + $0x3d0] sm:$0xff]
        %v662 = vld [vmem:[%s1 + $0x3d8] sm:$0xff]
        %v663 = vld [vmem:[%s1 + $0x3e0] sm:$0xff]
        %v664 = vld [vmem:[%s1 + $0x3e8] sm:$0xff]
        %v665 = vld [vmem:[%s1 + $0x3f0] sm:$0xff]
        %v666 = vld [vmem:[%s1 + $0x3f8] sm:$0xff]
        %v667 = vld [vmem:[%s1 + $0x400] sm:$0xff]
        %v668 = vld [vmem:[%s1 + $0x408] sm:$0xff]
        %v669 = vld [vmem:[%s1 + $0x410] sm:$0xff]
        %v670 = vld [vmem:[%s1 + $0x418] sm:$0xff]
        %v671 = vld [vmem:[%s1 + $0x420] sm:$0xff]
        %v672 = vld [vmem:[%s1 + $0x428] sm:$0xff]
        %v673 = vld [vmem:[%s1 + $0x430] sm:$0xff]
        %v674 = vld [vmem:[%s1 + $0x438] sm:$0xff]
        %v675 = vld [vmem:[%s1 + $0x440] sm:$0xff]
        %v676 = vld [vmem:[%s1 + $0x448] sm:$0xff]
        %v677 = vld [vmem:[%s1 + $0x450] sm:$0xff]
        %v678 = vld [vmem:[%s1 + $0x458] sm:$0xff]
        %v679 = vld [vmem:[%s1 + $0x460] sm:$0xff]
        %v680 = vld [vmem:[%s1 + $0x468] sm:$0xff]
        %v681 = vld [vmem:[%s1 + $0x470] sm:$0xff]
        %v682 = vld [vmem:[%s1 + $0x478] sm:$0xff]
        %v683 = vld [vmem:[%s1 + $0x480] sm:$0xff]
        %v684 = vld [vmem:[%s1 + $0x488] sm:$0xff]
        %v685 = vld [vmem:[%s1 + $0x490] sm:$0xff]
        %v686 = vld [vmem:[%s1 + $0x498] sm:$0xff]
        %v687 = vld [vmem:[%s1 + $0x4a0] sm:$0xff]
        %v688 = vld [vmem:[%s1 + $0x4a8] sm:$0xff]
        %v689 = vld [vmem:[%s1 + $0x4b0] sm:$0xff]
        %v690 = vld [vmem:[%s1 + $0x4b8] sm:$0xff]
        %v691 = vld [vmem:[%s1 + $0x4c0] sm:$0xff]
        %v692 = vld [vmem:[%s1 + $0x4c8] sm:$0xff]
        %v693 = vld [vmem:[%s1 + $0x4d0] sm:$0xff]
        %v694 = vld [vmem:[%s1 + $0x4d8] sm:$0xff]
        %v695 = vld [vmem:[%s1 + $0x4e0] sm:$0xff]
        %v696 = vld [vmem:[%s1 + $0x4e8] sm:$0xff]
        %v697 = vld [vmem:[%s1 + $0x4f0] sm:$0xff]
        %v698 = vld [vmem:[%s1 + $0x4f8] sm:$0xff]
        %v699 = vld [vmem:[%s1 + $0x500] sm:$0xff]
        %v700 = vld [vmem:[%s1 + $0x508] sm:$0xff]
        %v701 = vld [vmem:[%s1 + $0x510] sm:$0xff]
        %v702 = vld [vmem:[%s1 + $0x518] sm:$0xff]
        %v703 = vld [vmem:[%s1 + $0x520] sm:$0xff]
        %v704 = vld [vmem:[%s1 + $0x528] sm:$0xff]
        %v705 = vld [vmem:[%s1 + $0x530] sm:$0xff]
        %v706 = vld [vmem:[%s1 + $0x538] sm:$0xff]
        %v707 = vld [vmem:[%s1 + $0x540] sm:$0xff]
        %v708 = vld [vmem:[%s1 + $0x548] sm:$0xff]
        %v709 = vld [vmem:[%s1 + $0x550] sm:$0xff]
        %v710 = vld [vmem:[%s1 + $0x558] sm:$0xff]
        %v711 = vld [vmem:[%s1 + $0x560] sm:$0xff]
        %v712 = vld [vmem:[%s1 + $0x568] sm:$0xff]
        %v713 = vld [vmem:[%s1 + $0x570] sm:$0xff]
        %v714 = vld [vmem:[%s1 + $0x578] sm:$0xff]
        %v715 = vld [vmem:[%s1 + $0x580] sm:$0xff]
        %v716 = vld [vmem:[%s1 + $0x588] sm:$0xff]
        %v717 = vld [vmem:[%s1 + $0x590] sm:$0xff]
        %v718 = vld [vmem:[%s1 + $0x598] sm:$0xff]
        %v719 = vld [vmem:[%s1 + $0x5a0] sm:$0xff]
        %v720 = vld [vmem:[%s1 + $0x5a8] sm:$0xff]
        %v721 = vld [vmem:[%s1 + $0x5b0] sm:$0xff]
        %v722 = vld [vmem:[%s1 + $0x5b8] sm:$0xff]
        %v723 = vld [vmem:[%s1 + $0x5c0] sm:$0xff]
        %v724 = vld [vmem:[%s1 + $0x5c8] sm:$0xff]
        %v725 = vld [vmem:[%s1 + $0x5d0] sm:$0xff]
        %v726 = vld [vmem:[%s1 + $0x5d8] sm:$0xff]
        %v727 = vld [vmem:[%s1 + $0x5e0] sm:$0xff]
        %v728 = vld [vmem:[%s1 + $0x5e8] sm:$0xff]
        %v729 = vld [vmem:[%s1 + $0x5f0] sm:$0xff]
        %v730 = vld [vmem:[%s1 + $0x5f8] sm:$0xff]
        %v731 = vld [vmem:[%s1 + $0x600] sm:$0xff]
        %v732 = vld [vmem:[%s1 + $0x608] sm:$0xff]
        %v733 = vld [vmem:[%s1 + $0x610] sm:$0xff]
        %v734 = vld [vmem:[%s1 + $0x618] sm:$0xff]
        %v735 = vld [vmem:[%s1 + $0x620] sm:$0xff]
        %v736 = vld [vmem:[%s1 + $0x628] sm:$0xff]
        %v737 = vld [vmem:[%s1 + $0x630] sm:$0xff]
        %v738 = vld [vmem:[%s1 + $0x638] sm:$0xff]
        %v739 = vld [vmem:[%s1 + $0x640] sm:$0xff]
        %v740 = vld [vmem:[%s1 + $0x648] sm:$0xff]
        %v741 = vld [vmem:[%s1 + $0x650] sm:$0xff]
        %v742 = vld [vmem:[%s1 + $0x658] sm:$0xff]
        %v743 = vld [vmem:[%s1 + $0x660] sm:$0xff]
        %v744 = vld [vmem:[%s1 + $0x668] sm:$0xff]
        %v745 = vld [vmem:[%s1 + $0x670] sm:$0xff]
        %v746 = vld [vmem:[%s1 + $0x678] sm:$0xff]
        %v747 = vld [vmem:[%s1 + $0x680] sm:$0xff]
        %v748 = vld [vmem:[%s1 + $0x688] sm:$0xff]
        %v749 = vld [vmem:[%s1 + $0x690] sm:$0xff]
        %v750 = vld [vmem:[%s1 + $0x698] sm:$0xff]
        %v751 = vld [vmem:[%s1 + $0x6a0] sm:$0xff]
        %v752 = vld [vmem:[%s1 + $0x6a8] sm:$0xff]
        %v753 = vld [vmem:[%s1 + $0x6b0] sm:$0xff]
        %v754 = vld [vmem:[%s1 + $0x6b8] sm:$0xff]
        %v755 = vld [vmem:[%s1 + $0x6c0] sm:$0xff]
        %v756 = vld [vmem:[%s1 + $0x6c8] sm:$0xff]
        %v757 = vld [vmem:[%s1 + $0x6d0] sm:$0xff]
        %v758 = vld [vmem:[%s1 + $0x6d8] sm:$0xff]
        %v759 = vld [vmem:[%s1 + $0x6e0] sm:$0xff]
        %v760 = vld [vmem:[%s1 + $0x6e8] sm:$0xff]
        %v761 = vld [vmem:[%s1 + $0x6f0] sm:$0xff]
        %v762 = vld [vmem:[%s1 + $0x6f8] sm:$0xff]
        %v763 = vld [vmem:[%s1 + $0x700] sm:$0xff]
        %v764 = vld [vmem:[%s1 + $0x708] sm:$0xff]
        %v765 = vld [vmem:[%s1 + $0x710] sm:$0xff]
        %v766 = vld [vmem:[%s1 + $0x718] sm:$0xff]
        %v767 = vld [vmem:[%s1 + $0x720] sm:$0xff]
        %v768 = vld [vmem:[%s1 + $0x728] sm:$0xff]
        %v769 = vld [vmem:[%s1 + $0x730] sm:$0xff]
        %v770 = vld [vmem:[%s1 + $0x738] sm:$0xff]
        %v771 = vld [vmem:[%s1 + $0x740] sm:$0xff]
        %v772 = vld [vmem:[%s1 + $0x748] sm:$0xff]
        %v773 = vld [vmem:[%s1 + $0x750] sm:$0xff]
        %v774 = vld [vmem:[%s1 + $0x758] sm:$0xff]
        %v775 = vld [vmem:[%s1 + $0x760] sm:$0xff]
        %v776 = vld [vmem:[%s1 + $0x768] sm:$0xff]
        %v777 = vld [vmem:[%s1 + $0x770] sm:$0xff]
        %v778 = vld [vmem:[%s1 + $0x778] sm:$0xff]
        %v779 = vld [vmem:[%s1 + $0x780] sm:$0xff]
        %v780 = vld [vmem:[%s1 + $0x788] sm:$0xff]
        %v781 = vld [vmem:[%s1 + $0x790] sm:$0xff]
        %v782 = vld [vmem:[%s1 + $0x798] sm:$0xff]
        %v783 = vld [vmem:[%s1 + $0x7a0] sm:$0xff]
        %v784 = vld [vmem:[%s1 + $0x7a8] sm:$0xff]
        %v785 = vld [vmem:[%s1 + $0x7b0] sm:$0xff]
        %v786 = vld [vmem:[%s1 + $0x7b8] sm:$0xff]
        %v787 = vld [vmem:[%s1 + $0x7c0] sm:$0xff]
        %v788 = vld [vmem:[%s1 + $0x7c8] sm:$0xff]
        %v789 = vld [vmem:[%s1 + $0x7d0] sm:$0xff]
        %v790 = vld [vmem:[%s1 + $0x7d8] sm:$0xff]
        %v791 = vld [vmem:[%s1 + $0x7e0] sm:$0xff]
        %v792 = vld [vmem:[%s1 + $0x7e8] sm:$0xff]
        %v793 = vld [vmem:[%s1 + $0x7f0] sm:$0xff]
        %v794 = vld [vmem:[%s1 + $0x7f8] sm:$0xff]
        %v795 = vld [vmem:[%s1 + $0x800] sm:$0xff]
        %v796 = vld [vmem:[%s1 + $0x808] sm:$0xff]
        %v797 = vld [vmem:[%s1 + $0x810] sm:$0xff]
        %v798 = vld [vmem:[%s1 + $0x818] sm:$0xff]
        %v799 = vld [vmem:[%s1 + $0x820] sm:$0xff]
        %v800 = vld [vmem:[%s1 + $0x828] sm:$0xff]
        %v801 = vld [vmem:[%s1 + $0x830] sm:$0xff]
        %v802 = vld [vmem:[%s1 + $0x838] sm:$0xff]
        %v803 = vld [vmem:[%s1 + $0x840] sm:$0xff]
        %v804 = vld [vmem:[%s1 + $0x848] sm:$0xff]
        %v805 = vld [vmem:[%s1 + $0x850] sm:$0xff]
        %v806 = vld [vmem:[%s1 + $0x858] sm:$0xff]
        %v807 = vld [vmem:[%s1 + $0x860] sm:$0xff]
        %v808 = vld [vmem:[%s1 + $0x868] sm:$0xff]
        %v809 = vld [vmem:[%s1 + $0x870] sm:$0xff]
        %v810 = vld [vmem:[%s1 + $0x878] sm:$0xff]
        %v811 = vld [vmem:[%s1 + $0x880] sm:$0xff]
        %v812 = vld [vmem:[%s1 + $0x888] sm:$0xff]
        %v813 = vld [vmem:[%s1 + $0x890] sm:$0xff]
        %v814 = vld [vmem:[%s1 + $0x898] sm:$0xff]
        %v815 = vld [vmem:[%s1 + $0x8a0] sm:$0xff]
        %v816 = vld [vmem:[%s1 + $0x8a8] sm:$0xff]
        %v817 = vld [vmem:[%s1 + $0x8b0] sm:$0xff]
        %v818 = vld [vmem:[%s1 + $0x8b8] sm:$0xff]
        %v819 = vld [vmem:[%s1 + $0x8c0] sm:$0xff]
        %v820 = vld [vmem:[%s1 + $0x8c8] sm:$0xff]
        %v821 = vld [vmem:[%s1 + $0x8d0] sm:$0xff]
        %v822 = vld [vmem:[%s1 + $0x8d8] sm:$0xff]
        %v823 = vld [vmem:[%s1 + $0x8e0] sm:$0xff]
        %v824 = vld [vmem:[%s1 + $0x8e8] sm:$0xff]
        %v825 = vld [vmem:[%s1 + $0x8f0] sm:$0xff]
        %v826 = vld [vmem:[%s1 + $0x8f8] sm:$0xff]
        %v827 = vld [vmem:[%s1 + $0x900] sm:$0xff]
        %v828 = vld [vmem:[%s1 + $0x908] sm:$0xff]
        %v829 = vld [vmem:[%s1 + $0x910] sm:$0xff]
        %v830 = vld [vmem:[%s1 + $0x918] sm:$0xff]
        %v831 = vld [vmem:[%s1 + $0x920] sm:$0xff]
        %v832 = vld [vmem:[%s1 + $0x928] sm:$0xff]
        %v833 = vld [vmem:[%s1 + $0x930] sm:$0xff]
        %v834 = vld [vmem:[%s1 + $0x938] sm:$0xff]
        %v835 = vld [vmem:[%s1 + $0x940] sm:$0xff]
        %v836 = vld [vmem:[%s1 + $0x948] sm:$0xff]
        %v837 = vld [vmem:[%s1 + $0x950] sm:$0xff]
        %v838 = vld [vmem:[%s1 + $0x958] sm:$0xff]
        %v839 = vld [vmem:[%s1 + $0x960] sm:$0xff]
        %v840 = vld [vmem:[%s1 + $0x968] sm:$0xff]
        %v841 = vld [vmem:[%s1 + $0x970] sm:$0xff]
        %v842 = vld [vmem:[%s1 + $0x978] sm:$0xff]
        %v843 = vld [vmem:[%s1 + $0x980] sm:$0xff]
        %v844 = vld [vmem:[%s1 + $0x988] sm:$0xff]
        %v845 = vld [vmem:[%s1 + $0x990] sm:$0xff]
        %v846 = vld [vmem:[%s1 + $0x998] sm:$0xff]
        %v847 = vld [vmem:[%s1 + $0x9a0] sm:$0xff]
        %v848 = vld [vmem:[%s1 + $0x9a8] sm:$0xff]
        %v849 = vld [vmem:[%s1 + $0x9b0] sm:$0xff]
        %v850 = vld [vmem:[%s1 + $0x9b8] sm:$0xff]
        %v851 = vld [vmem:[%s1 + $0x9c0] sm:$0xff]
        %v852 = vld [vmem:[%s1 + $0x9c8] sm:$0xff]
        %v853 = vld [vmem:[%s1 + $0x9d0] sm:$0xff]
        %v854 = vld [vmem:[%s1 + $0x9d8] sm:$0xff]
        %v855 = vld [vmem:[%s1 + $0x9e0] sm:$0xff]
        %v856 = vld [vmem:[%s1 + $0x9e8] sm:$0xff]
        %v857 = vld [vmem:[%s1 + $0x9f0] sm:$0xff]
        %v858 = vld [vmem:[%s1 + $0x9f8] sm:$0xff]
        %v859 = vld [vmem:[%s1 + $0xa00] sm:$0xff]
        %v860 = vld [vmem:[%s1 + $0xa08] sm:$0xff]
        %v861 = vld [vmem:[%s1 + $0xa10] sm:$0xff]
        %v862 = vld [vmem:[%s1 + $0xa18] sm:$0xff]
        %v863 = vld [vmem:[%s1 + $0xa20] sm:$0xff]
        %v864 = vld [vmem:[%s1 + $0xa28] sm:$0xff]
        %v865 = vld [vmem:[%s1 + $0xa30] sm:$0xff]
        %v866 = vld [vmem:[%s1 + $0xa38] sm:$0xff]
        %v867 = vld [vmem:[%s1 + $0xa40] sm:$0xff]
        %v868 = vld [vmem:[%s1 + $0xa48] sm:$0xff]
        %v869 = vld [vmem:[%s1 + $0xa50] sm:$0xff]
        %v870 = vld [vmem:[%s1 + $0xa58] sm:$0xff]
        %v871 = vld [vmem:[%s1 + $0xa60] sm:$0xff]
        %v872 = vld [vmem:[%s1 + $0xa68] sm:$0xff]
        %v873 = vld [vmem:[%s1 + $0xa70] sm:$0xff]
        %v874 = vld [vmem:[%s1 + $0xa78] sm:$0xff]
        %v875 = vld [vmem:[%s1 + $0xa80] sm:$0xff]
        %v876 = vld [vmem:[%s1 + $0xa88] sm:$0xff]
        %v877 = vld [vmem:[%s1 + $0xa90] sm:$0xff]
        %v878 = vld [vmem:[%s1 + $0xa98] sm:$0xff]
        %v879 = vld [vmem:[%s1 + $0xaa0] sm:$0xff]
        %v880 = vld [vmem:[%s1 + $0xaa8] sm:$0xff]
        %v881 = vld [vmem:[%s1 + $0xab0] sm:$0xff]
        %v882 = vld [vmem:[%s1 + $0xab8] sm:$0xff]
        %v883 = vld [vmem:[%s1 + $0xac0] sm:$0xff]
        %v884 = vld [vmem:[%s1 + $0xac8] sm:$0xff]
        %v885 = vld [vmem:[%s1 + $0xad0] sm:$0xff]
        %v886 = vld [vmem:[%s1 + $0xad8] sm:$0xff]
        %v887 = vld [vmem:[%s1 + $0xae0] sm:$0xff]
        %v888 = vld [vmem:[%s1 + $0xae8] sm:$0xff]
        %v889 = vld [vmem:[%s1 + $0xaf0] sm:$0xff]
        %v890 = vld [vmem:[%s1 + $0xaf8] sm:$0xff]
        %v891 = vld [vmem:[%s1 + $0xb00] sm:$0xff]
        %v892 = vld [vmem:[%s1 + $0xb08] sm:$0xff]
        %v893 = vld [vmem:[%s1 + $0xb10] sm:$0xff]
        %v894 = vld [vmem:[%s1 + $0xb18] sm:$0xff]
        %v895 = vld [vmem:[%s1 + $0xb20] sm:$0xff]
        %v896 = vld [vmem:[%s1 + $0xb28] sm:$0xff]
        %v897 = vld [vmem:[%s1 + $0xb30] sm:$0xff]
        %v898 = vld [vmem:[%s1 + $0xb38] sm:$0xff]
        %v899 = vld [vmem:[%s1 + $0xb40] sm:$0xff]
        %v900 = vld [vmem:[%s1 + $0xb48] sm:$0xff]
        %v901 = vld [vmem:[%s1 + $0xb50] sm:$0xff]
        %v902 = vld [vmem:[%s1 + $0xb58] sm:$0xff]
        %v903 = vld [vmem:[%s1 + $0xb60] sm:$0xff]
        %v904 = vld [vmem:[%s1 + $0xb68] sm:$0xff]
        %v905 = vld [vmem:[%s1 + $0xb70] sm:$0xff]
        %v906 = vld [vmem:[%s1 + $0xb78] sm:$0xff]
        %v907 = vld [vmem:[%s1 + $0xb80] sm:$0xff]
        %v908 = vld [vmem:[%s1 + $0xb88] sm:$0xff]
        %v909 = vld [vmem:[%s1 + $0xb90] sm:$0xff]
        %v910 = vld [vmem:[%s1 + $0xb98] sm:$0xff]
        %v911 = vld [vmem:[%s1 + $0xba0] sm:$0xff]
        %v912 = vld [vmem:[%s1 + $0xba8] sm:$0xff]
        %v913 = vld [vmem:[%s1 + $0xbb0] sm:$0xff]
        %v914 = vld [vmem:[%s1 + $0xbb8] sm:$0xff]
        %v915 = vld [vmem:[%s1 + $0xbc0] sm:$0xff]
        %v916 = vld [vmem:[%s1 + $0xbc8] sm:$0xff]
        %v917 = vld [vmem:[%s1 + $0xbd0] sm:$0xff]
        %v918 = vld [vmem:[%s1 + $0xbd8] sm:$0xff]
        %v919 = vld [vmem:[%s1 + $0xbe0] sm:$0xff]
        %v920 = vld [vmem:[%s1 + $0xbe8] sm:$0xff]
        %v921 = vld [vmem:[%s1 + $0xbf0] sm:$0xff]
        %v922 = vld [vmem:[%s1 + $0xbf8] sm:$0xff]
        %v923 = vld [vmem:[%s1 + $0xc00] sm:$0xff]
        %v924 = vld [vmem:[%s1 + $0xc08] sm:$0xff]
        %v925 = vld [vmem:[%s1 + $0xc10] sm:$0xff]
        %v926 = vld [vmem:[%s1 + $0xc18] sm:$0xff]
        %v927 = vld [vmem:[%s1 + $0xc20] sm:$0xff]
        %v928 = vld [vmem:[%s1 + $0xc28] sm:$0xff]
        %v929 = vld [vmem:[%s1 + $0xc30] sm:$0xff]
        %v930 = vld [vmem:[%s1 + $0xc38] sm:$0xff]
        %v931 = vld [vmem:[#allocation2] sm:$0xff]
        %v933 = vlaneseq
        %v934 = vshrl.u32 %v933, 7
        %v935 = vsub.s32 0, %v934
        %v936 = vrot.slane %v931, %v935
        %v937 = vlaneseq
        %v938 = vshrl.u32 %v937, 7
        %v939 = vsub.s32 1, %v938
        %v940 = vrot.slane %v931, %v939
        %v941 = vlaneseq
        %v942 = vshrl.u32 %v941, 7
        %v943 = vsub.s32 2, %v942
        %v944 = vrot.slane %v931, %v943
        %v945 = vlaneseq
        %v946 = vshrl.u32 %v945, 7
        %v947 = vsub.s32 3, %v946
        %v948 = vrot.slane %v931, %v947
        %v949 = vlaneseq
        %v950 = vshrl.u32 %v949, 7
        %v951 = vsub.s32 4, %v950
        %v952 = vrot.slane %v931, %v951
        %v953 = vlaneseq
        %v954 = vshrl.u32 %v953, 7
        %v955 = vsub.s32 5, %v954
        %v956 = vrot.slane %v931, %v955
        %v957 = vlaneseq
        %v958 = vshrl.u32 %v957, 7
        %v959 = vsub.s32 6, %v958
        %v960 = vrot.slane %v931, %v959
        %v961 = vlaneseq
        %v962 = vshrl.u32 %v961, 7
        %v963 = vsub.s32 7, %v962
        %v964 = vrot.slane %v931, %v963
        %v1365 = vunpack.c.l.b16 %v539
        %v1366 = vunpack.c.h.b16 %v539
        %v1367 = vunpack.c.l.b16 %v540
        %v1368 = vunpack.c.h.b16 %v540
        %v1369 = vunpack.c.l.b16 %v541
        %v1370 = vunpack.c.h.b16 %v541
        %v1371 = vunpack.c.l.b16 %v542
        %v1372 = vunpack.c.h.b16 %v542
        %v1373 = vunpack.c.l.b16 %v543
        %v1374 = vunpack.c.h.b16 %v543
        %v1375 = vunpack.c.l.b16 %v544
        %v1376 = vunpack.c.h.b16 %v544
        %v1377 = vunpack.c.l.b16 %v545
        %v1378 = vunpack.c.h.b16 %v545
        %v1379 = vunpack.c.l.b16 %v546
        %v1380 = vunpack.c.h.b16 %v546
        %v1381 = vunpack.c.l.b16 %v547
        %v1382 = vunpack.c.h.b16 %v547
        %v1383 = vunpack.c.l.b16 %v548
        %v1384 = vunpack.c.h.b16 %v548
        %v1385 = vunpack.c.l.b16 %v549
        %v1386 = vunpack.c.h.b16 %v549
        %v1387 = vunpack.c.l.b16 %v550
        %v1388 = vunpack.c.h.b16 %v550
        %v1389 = vunpack.c.l.b16 %v551
        %v1390 = vunpack.c.h.b16 %v551
        %v1391 = vunpack.c.l.b16 %v552
        %v1392 = vunpack.c.h.b16 %v552
        %v1393 = vunpack.c.l.b16 %v553
        %v1394 = vunpack.c.h.b16 %v553
        %v1395 = vunpack.c.l.b16 %v554
        %v1396 = vunpack.c.h.b16 %v554
        %v1397 = vunpack.c.l.b16 %v555
        %v1398 = vunpack.c.h.b16 %v555
        %v1399 = vunpack.c.l.b16 %v556
        %v1400 = vunpack.c.h.b16 %v556
        %v1401 = vunpack.c.l.b16 %v557
        %v1402 = vunpack.c.h.b16 %v557
        %v1403 = vunpack.c.l.b16 %v558
        %v1404 = vunpack.c.h.b16 %v558
        %v1405 = vunpack.c.l.b16 %v559
        %v1406 = vunpack.c.h.b16 %v559
        %v1407 = vunpack.c.l.b16 %v560
        %v1408 = vunpack.c.h.b16 %v560
        %v1409 = vunpack.c.l.b16 %v561
        %v1410 = vunpack.c.h.b16 %v561
        %v1411 = vunpack.c.l.b16 %v562
        %v1412 = vunpack.c.h.b16 %v562
        %v1413 = vunpack.c.l.b16 %v563
        %v1414 = vunpack.c.h.b16 %v563
        %v1415 = vunpack.c.l.b16 %v564
        %v1416 = vunpack.c.h.b16 %v564
        %v1417 = vunpack.c.l.b16 %v565
        %v1418 = vunpack.c.h.b16 %v565
        %v1419 = vunpack.c.l.b16 %v566
        %v1420 = vunpack.c.h.b16 %v566
        %v1421 = vunpack.c.l.b16 %v567
        %v1422 = vunpack.c.h.b16 %v567
        %v1423 = vunpack.c.l.b16 %v568
        %v1424 = vunpack.c.h.b16 %v568
        %v1425 = vunpack.c.l.b16 %v569
        %v1426 = vunpack.c.h.b16 %v569
        %v1427 = vunpack.c.l.b16 %v570
        %v1428 = vunpack.c.h.b16 %v570
        %v1429 = vunpack.c.l.b16 %v571
        %v1430 = vunpack.c.h.b16 %v571
        %v1431 = vunpack.c.l.b16 %v572
        %v1432 = vunpack.c.h.b16 %v572
        %v1433 = vunpack.c.l.b16 %v573
        %v1434 = vunpack.c.h.b16 %v573
        %v1435 = vunpack.c.l.b16 %v574
        %v1436 = vunpack.c.h.b16 %v574
        %v1437 = vunpack.c.l.b16 %v575
        %v1438 = vunpack.c.h.b16 %v575
        %v1439 = vunpack.c.l.b16 %v576
        %v1440 = vunpack.c.h.b16 %v576
        %v1441 = vunpack.c.l.b16 %v577
        %v1442 = vunpack.c.h.b16 %v577
        %v1443 = vunpack.c.l.b16 %v578
        %v1444 = vunpack.c.h.b16 %v578
        %v1445 = vunpack.c.l.b16 %v579
        %v1446 = vunpack.c.h.b16 %v579
        %v1447 = vunpack.c.l.b16 %v580
        %v1448 = vunpack.c.h.b16 %v580
        %v1449 = vunpack.c.l.b16 %v581
        %v1450 = vunpack.c.h.b16 %v581
        %v1451 = vunpack.c.l.b16 %v582
        %v1452 = vunpack.c.h.b16 %v582
        %v1453 = vunpack.c.l.b16 %v583
        %v1454 = vunpack.c.h.b16 %v583
        %v1455 = vunpack.c.l.b16 %v584
        %v1456 = vunpack.c.h.b16 %v584
        %v1457 = vunpack.c.l.b16 %v585
        %v1458 = vunpack.c.h.b16 %v585
        %v1459 = vunpack.c.l.b16 %v586
        %v1460 = vunpack.c.h.b16 %v586
        %v1461 = vunpack.c.l.b16 %v587
        %v1462 = vunpack.c.h.b16 %v587
        %v1463 = vunpack.c.l.b16 %v588
        %v1464 = vunpack.c.h.b16 %v588
        %v1465 = vunpack.c.l.b16 %v589
        %v1466 = vunpack.c.h.b16 %v589
        %v1467 = vunpack.c.l.b16 %v590
        %v1468 = vunpack.c.h.b16 %v590
        %v1469 = vunpack.c.l.b16 %v591
        %v1470 = vunpack.c.h.b16 %v591
        %v1471 = vunpack.c.l.b16 %v592
        %v1472 = vunpack.c.h.b16 %v592
        %v1473 = vunpack.c.l.b16 %v593
        %v1474 = vunpack.c.h.b16 %v593
        %v1475 = vunpack.c.l.b16 %v594
        %v1476 = vunpack.c.h.b16 %v594
        %v1477 = vunpack.c.l.b16 %v595
        %v1478 = vunpack.c.h.b16 %v595
        %v1479 = vunpack.c.l.b16 %v596
        %v1480 = vunpack.c.h.b16 %v596
        %v1481 = vunpack.c.l.b16 %v597
        %v1482 = vunpack.c.h.b16 %v597
        %v1483 = vunpack.c.l.b16 %v598
        %v1484 = vunpack.c.h.b16 %v598
        %v1485 = vunpack.c.l.b16 %v599
        %v1486 = vunpack.c.h.b16 %v599
        %v1487 = vunpack.c.l.b16 %v600
        %v1488 = vunpack.c.h.b16 %v600
        %v1489 = vunpack.c.l.b16 %v601
        %v1490 = vunpack.c.h.b16 %v601
        %v1491 = vunpack.c.l.b16 %v602
        %v1492 = vunpack.c.h.b16 %v602
        %v1493 = vunpack.c.l.b16 %v603
        %v1494 = vunpack.c.h.b16 %v603
        %v1495 = vunpack.c.l.b16 %v604
        %v1496 = vunpack.c.h.b16 %v604
        %v1497 = vunpack.c.l.b16 %v605
        %v1498 = vunpack.c.h.b16 %v605
        %v1499 = vunpack.c.l.b16 %v606
        %v1500 = vunpack.c.h.b16 %v606
        %v1501 = vunpack.c.l.b16 %v607
        %v1502 = vunpack.c.h.b16 %v607
        %v1503 = vunpack.c.l.b16 %v608
        %v1504 = vunpack.c.h.b16 %v608
        %v1505 = vunpack.c.l.b16 %v609
        %v1506 = vunpack.c.h.b16 %v609
        %v1507 = vunpack.c.l.b16 %v610
        %v1508 = vunpack.c.h.b16 %v610
        %v1509 = vunpack.c.l.b16 %v611
        %v1510 = vunpack.c.h.b16 %v611
        %v1511 = vunpack.c.l.b16 %v612
        %v1512 = vunpack.c.h.b16 %v612
        %v1513 = vunpack.c.l.b16 %v613
        %v1514 = vunpack.c.h.b16 %v613
        %v1515 = vunpack.c.l.b16 %v614
        %v1516 = vunpack.c.h.b16 %v614
        %v1517 = vunpack.c.l.b16 %v615
        %v1518 = vunpack.c.h.b16 %v615
        %v1519 = vunpack.c.l.b16 %v616
        %v1520 = vunpack.c.h.b16 %v616
        %v1521 = vunpack.c.l.b16 %v617
        %v1522 = vunpack.c.h.b16 %v617
        %v1523 = vunpack.c.l.b16 %v618
        %v1524 = vunpack.c.h.b16 %v618
        %v1525 = vunpack.c.l.b16 %v619
        %v1526 = vunpack.c.h.b16 %v619
        %v1527 = vunpack.c.l.b16 %v620
        %v1528 = vunpack.c.h.b16 %v620
        %v1529 = vunpack.c.l.b16 %v621
        %v1530 = vunpack.c.h.b16 %v621
        %v1531 = vunpack.c.l.b16 %v622
        %v1532 = vunpack.c.h.b16 %v622
        %v1533 = vunpack.c.l.b16 %v623
        %v1534 = vunpack.c.h.b16 %v623
        %v1535 = vunpack.c.l.b16 %v624
        %v1536 = vunpack.c.h.b16 %v624
        %v1537 = vunpack.c.l.b16 %v625
        %v1538 = vunpack.c.h.b16 %v625
        %v1539 = vunpack.c.l.b16 %v626
        %v1540 = vunpack.c.h.b16 %v626
        %v1541 = vunpack.c.l.b16 %v627
        %v1542 = vunpack.c.h.b16 %v627
        %v1543 = vunpack.c.l.b16 %v628
        %v1544 = vunpack.c.h.b16 %v628
        %v1545 = vunpack.c.l.b16 %v629
        %v1546 = vunpack.c.h.b16 %v629
        %v1547 = vunpack.c.l.b16 %v630
        %v1548 = vunpack.c.h.b16 %v630
        %v1549 = vunpack.c.l.b16 %v631
        %v1550 = vunpack.c.h.b16 %v631
        %v1551 = vunpack.c.l.b16 %v632
        %v1552 = vunpack.c.h.b16 %v632
        %v1553 = vunpack.c.l.b16 %v633
        %v1554 = vunpack.c.h.b16 %v633
        %v1555 = vunpack.c.l.b16 %v634
        %v1556 = vunpack.c.h.b16 %v634
        %v1557 = vunpack.c.l.b16 %v635
        %v1558 = vunpack.c.h.b16 %v635
        %v1559 = vunpack.c.l.b16 %v636
        %v1560 = vunpack.c.h.b16 %v636
        %v1561 = vunpack.c.l.b16 %v637
        %v1562 = vunpack.c.h.b16 %v637
        %v1563 = vunpack.c.l.b16 %v638
        %v1564 = vunpack.c.h.b16 %v638
        %v1565 = vunpack.c.l.b16 %v639
        %v1566 = vunpack.c.h.b16 %v639
        %v1567 = vunpack.c.l.b16 %v640
        %v1568 = vunpack.c.h.b16 %v640
        %v1569 = vunpack.c.l.b16 %v641
        %v1570 = vunpack.c.h.b16 %v641
        %v1571 = vunpack.c.l.b16 %v642
        %v1572 = vunpack.c.h.b16 %v642
        %v1573 = vunpack.c.l.b16 %v643
        %v1574 = vunpack.c.h.b16 %v643
        %v1575 = vunpack.c.l.b16 %v644
        %v1576 = vunpack.c.h.b16 %v644
        %v1577 = vunpack.c.l.b16 %v645
        %v1578 = vunpack.c.h.b16 %v645
        %v1579 = vunpack.c.l.b16 %v646
        %v1580 = vunpack.c.h.b16 %v646
        %v1581 = vunpack.c.l.b16 %v647
        %v1582 = vunpack.c.h.b16 %v647
        %v1583 = vunpack.c.l.b16 %v648
        %v1584 = vunpack.c.h.b16 %v648
        %v1585 = vunpack.c.l.b16 %v649
        %v1586 = vunpack.c.h.b16 %v649
        %v1587 = vunpack.c.l.b16 %v650
        %v1588 = vunpack.c.h.b16 %v650
        %v1589 = vunpack.c.l.b16 %v651
        %v1590 = vunpack.c.h.b16 %v651
        %v1591 = vunpack.c.l.b16 %v652
        %v1592 = vunpack.c.h.b16 %v652
        %v1593 = vunpack.c.l.b16 %v653
        %v1594 = vunpack.c.h.b16 %v653
        %v1595 = vunpack.c.l.b16 %v654
        %v1596 = vunpack.c.h.b16 %v654
        %v1597 = vunpack.c.l.b16 %v655
        %v1598 = vunpack.c.h.b16 %v655
        %v1599 = vunpack.c.l.b16 %v656
        %v1600 = vunpack.c.h.b16 %v656
        %v1601 = vunpack.c.l.b16 %v657
        %v1602 = vunpack.c.h.b16 %v657
        %v1603 = vunpack.c.l.b16 %v658
        %v1604 = vunpack.c.h.b16 %v658
        %v1605 = vunpack.c.l.b16 %v659
        %v1606 = vunpack.c.h.b16 %v659
        %v1607 = vunpack.c.l.b16 %v660
        %v1608 = vunpack.c.h.b16 %v660
        %v1609 = vunpack.c.l.b16 %v661
        %v1610 = vunpack.c.h.b16 %v661
        %v1611 = vunpack.c.l.b16 %v662
        %v1612 = vunpack.c.h.b16 %v662
        %v1613 = vunpack.c.l.b16 %v663
        %v1614 = vunpack.c.h.b16 %v663
        %v1615 = vunpack.c.l.b16 %v664
        %v1616 = vunpack.c.h.b16 %v664
        %v1617 = vunpack.c.l.b16 %v665
        %v1618 = vunpack.c.h.b16 %v665
        %v1619 = vunpack.c.l.b16 %v666
        %v1620 = vunpack.c.h.b16 %v666
        %v1621 = vunpack.c.l.b16 %v667
        %v1622 = vunpack.c.h.b16 %v667
        %v1623 = vunpack.c.l.b16 %v668
        %v1624 = vunpack.c.h.b16 %v668
        %v1625 = vunpack.c.l.b16 %v669
        %v1626 = vunpack.c.h.b16 %v669
        %v1627 = vunpack.c.l.b16 %v670
        %v1628 = vunpack.c.h.b16 %v670
        %v1629 = vunpack.c.l.b16 %v671
        %v1630 = vunpack.c.h.b16 %v671
        %v1631 = vunpack.c.l.b16 %v672
        %v1632 = vunpack.c.h.b16 %v672
        %v1633 = vunpack.c.l.b16 %v673
        %v1634 = vunpack.c.h.b16 %v673
        %v1635 = vunpack.c.l.b16 %v674
        %v1636 = vunpack.c.h.b16 %v674
        %v1637 = vunpack.c.l.b16 %v675
        %v1638 = vunpack.c.h.b16 %v675
        %v1639 = vunpack.c.l.b16 %v676
        %v1640 = vunpack.c.h.b16 %v676
        %v1641 = vunpack.c.l.b16 %v677
        %v1642 = vunpack.c.h.b16 %v677
        %v1643 = vunpack.c.l.b16 %v678
        %v1644 = vunpack.c.h.b16 %v678
        %v1645 = vunpack.c.l.b16 %v679
        %v1646 = vunpack.c.h.b16 %v679
        %v1647 = vunpack.c.l.b16 %v680
        %v1648 = vunpack.c.h.b16 %v680
        %v1649 = vunpack.c.l.b16 %v681
        %v1650 = vunpack.c.h.b16 %v681
        %v1651 = vunpack.c.l.b16 %v682
        %v1652 = vunpack.c.h.b16 %v682
        %v1653 = vunpack.c.l.b16 %v683
        %v1654 = vunpack.c.h.b16 %v683
        %v1655 = vunpack.c.l.b16 %v684
        %v1656 = vunpack.c.h.b16 %v684
        %v1657 = vunpack.c.l.b16 %v685
        %v1658 = vunpack.c.h.b16 %v685
        %v1659 = vunpack.c.l.b16 %v686
        %v1660 = vunpack.c.h.b16 %v686
        %v1661 = vunpack.c.l.b16 %v687
        %v1662 = vunpack.c.h.b16 %v687
        %v1663 = vunpack.c.l.b16 %v688
        %v1664 = vunpack.c.h.b16 %v688
        %v1665 = vunpack.c.l.b16 %v689
        %v1666 = vunpack.c.h.b16 %v689
        %v1667 = vunpack.c.l.b16 %v690
        %v1668 = vunpack.c.h.b16 %v690
        %v1669 = vunpack.c.l.b16 %v691
        %v1670 = vunpack.c.h.b16 %v691
        %v1671 = vunpack.c.l.b16 %v692
        %v1672 = vunpack.c.h.b16 %v692
        %v1673 = vunpack.c.l.b16 %v693
        %v1674 = vunpack.c.h.b16 %v693
        %v1675 = vunpack.c.l.b16 %v694
        %v1676 = vunpack.c.h.b16 %v694
        %v1677 = vunpack.c.l.b16 %v695
        %v1678 = vunpack.c.h.b16 %v695
        %v1679 = vunpack.c.l.b16 %v696
        %v1680 = vunpack.c.h.b16 %v696
        %v1681 = vunpack.c.l.b16 %v697
        %v1682 = vunpack.c.h.b16 %v697
        %v1683 = vunpack.c.l.b16 %v698
        %v1684 = vunpack.c.h.b16 %v698
        %v1685 = vunpack.c.l.b16 %v699
        %v1686 = vunpack.c.h.b16 %v699
        %v1687 = vunpack.c.l.b16 %v700
        %v1688 = vunpack.c.h.b16 %v700
        %v1689 = vunpack.c.l.b16 %v701
        %v1690 = vunpack.c.h.b16 %v701
        %v1691 = vunpack.c.l.b16 %v702
        %v1692 = vunpack.c.h.b16 %v702
        %v1693 = vunpack.c.l.b16 %v703
        %v1694 = vunpack.c.h.b16 %v703
        %v1695 = vunpack.c.l.b16 %v704
        %v1696 = vunpack.c.h.b16 %v704
        %v1697 = vunpack.c.l.b16 %v705
        %v1698 = vunpack.c.h.b16 %v705
        %v1699 = vunpack.c.l.b16 %v706
        %v1700 = vunpack.c.h.b16 %v706
        %v1701 = vunpack.c.l.b16 %v707
        %v1702 = vunpack.c.h.b16 %v707
        %v1703 = vunpack.c.l.b16 %v708
        %v1704 = vunpack.c.h.b16 %v708
        %v1705 = vunpack.c.l.b16 %v709
        %v1706 = vunpack.c.h.b16 %v709
        %v1707 = vunpack.c.l.b16 %v710
        %v1708 = vunpack.c.h.b16 %v710
        %v1709 = vunpack.c.l.b16 %v711
        %v1710 = vunpack.c.h.b16 %v711
        %v1711 = vunpack.c.l.b16 %v712
        %v1712 = vunpack.c.h.b16 %v712
        %v1713 = vunpack.c.l.b16 %v713
        %v1714 = vunpack.c.h.b16 %v713
        %v1715 = vunpack.c.l.b16 %v714
        %v1716 = vunpack.c.h.b16 %v714
        %v1717 = vunpack.c.l.b16 %v715
        %v1718 = vunpack.c.h.b16 %v715
        %v1719 = vunpack.c.l.b16 %v716
        %v1720 = vunpack.c.h.b16 %v716
        %v1721 = vunpack.c.l.b16 %v717
        %v1722 = vunpack.c.h.b16 %v717
        %v1723 = vunpack.c.l.b16 %v718
        %v1724 = vunpack.c.h.b16 %v718
        %v1725 = vunpack.c.l.b16 %v719
        %v1726 = vunpack.c.h.b16 %v719
        %v1727 = vunpack.c.l.b16 %v720
        %v1728 = vunpack.c.h.b16 %v720
        %v1729 = vunpack.c.l.b16 %v721
        %v1730 = vunpack.c.h.b16 %v721
        %v1731 = vunpack.c.l.b16 %v722
        %v1732 = vunpack.c.h.b16 %v722
        %v1733 = vunpack.c.l.b16 %v723
        %v1734 = vunpack.c.h.b16 %v723
        %v1735 = vunpack.c.l.b16 %v724
        %v1736 = vunpack.c.h.b16 %v724
        %v1737 = vunpack.c.l.b16 %v725
        %v1738 = vunpack.c.h.b16 %v725
        %v1739 = vunpack.c.l.b16 %v726
        %v1740 = vunpack.c.h.b16 %v726
        %v1741 = vunpack.c.l.b16 %v727
        %v1742 = vunpack.c.h.b16 %v727
        %v1743 = vunpack.c.l.b16 %v728
        %v1744 = vunpack.c.h.b16 %v728
        %v1745 = vunpack.c.l.b16 %v729
        %v1746 = vunpack.c.h.b16 %v729
        %v1747 = vunpack.c.l.b16 %v730
        %v1748 = vunpack.c.h.b16 %v730
        %v1749 = vunpack.c.l.b16 %v731
        %v1750 = vunpack.c.h.b16 %v731
        %v1751 = vunpack.c.l.b16 %v732
        %v1752 = vunpack.c.h.b16 %v732
        %v1753 = vunpack.c.l.b16 %v733
        %v1754 = vunpack.c.h.b16 %v733
        %v1755 = vunpack.c.l.b16 %v734
        %v1756 = vunpack.c.h.b16 %v734
        %v1757 = vunpack.c.l.b16 %v735
        %v1758 = vunpack.c.h.b16 %v735
        %v1759 = vunpack.c.l.b16 %v736
        %v1760 = vunpack.c.h.b16 %v736
        %v1761 = vunpack.c.l.b16 %v737
        %v1762 = vunpack.c.h.b16 %v737
        %v1763 = vunpack.c.l.b16 %v738
        %v1764 = vunpack.c.h.b16 %v738
        %v1765 = vunpack.c.l.b16 %v739
        %v1766 = vunpack.c.h.b16 %v739
        %v1767 = vunpack.c.l.b16 %v740
        %v1768 = vunpack.c.h.b16 %v740
        %v1769 = vunpack.c.l.b16 %v741
        %v1770 = vunpack.c.h.b16 %v741
        %v1771 = vunpack.c.l.b16 %v742
        %v1772 = vunpack.c.h.b16 %v742
        %v1773 = vunpack.c.l.b16 %v743
        %v1774 = vunpack.c.h.b16 %v743
        %v1775 = vunpack.c.l.b16 %v744
        %v1776 = vunpack.c.h.b16 %v744
        %v1777 = vunpack.c.l.b16 %v745
        %v1778 = vunpack.c.h.b16 %v745
        %v1779 = vunpack.c.l.b16 %v746
        %v1780 = vunpack.c.h.b16 %v746
        %v1781 = vunpack.c.l.b16 %v747
        %v1782 = vunpack.c.h.b16 %v747
        %v1783 = vunpack.c.l.b16 %v748
        %v1784 = vunpack.c.h.b16 %v748
        %v1785 = vunpack.c.l.b16 %v749
        %v1786 = vunpack.c.h.b16 %v749
        %v1787 = vunpack.c.l.b16 %v750
        %v1788 = vunpack.c.h.b16 %v750
        %v1789 = vunpack.c.l.b16 %v751
        %v1790 = vunpack.c.h.b16 %v751
        %v1791 = vunpack.c.l.b16 %v752
        %v1792 = vunpack.c.h.b16 %v752
        %v1793 = vunpack.c.l.b16 %v753
        %v1794 = vunpack.c.h.b16 %v753
        %v1795 = vunpack.c.l.b16 %v754
        %v1796 = vunpack.c.h.b16 %v754
        %v1797 = vunpack.c.l.b16 %v755
        %v1798 = vunpack.c.h.b16 %v755
        %v1799 = vunpack.c.l.b16 %v756
        %v1800 = vunpack.c.h.b16 %v756
        %v1801 = vunpack.c.l.b16 %v757
        %v1802 = vunpack.c.h.b16 %v757
        %v1803 = vunpack.c.l.b16 %v758
        %v1804 = vunpack.c.h.b16 %v758
        %v1805 = vunpack.c.l.b16 %v759
        %v1806 = vunpack.c.h.b16 %v759
        %v1807 = vunpack.c.l.b16 %v760
        %v1808 = vunpack.c.h.b16 %v760
        %v1809 = vunpack.c.l.b16 %v761
        %v1810 = vunpack.c.h.b16 %v761
        %v1811 = vunpack.c.l.b16 %v762
        %v1812 = vunpack.c.h.b16 %v762
        %v1813 = vunpack.c.l.b16 %v763
        %v1814 = vunpack.c.h.b16 %v763
        %v1815 = vunpack.c.l.b16 %v764
        %v1816 = vunpack.c.h.b16 %v764
        %v1817 = vunpack.c.l.b16 %v765
        %v1818 = vunpack.c.h.b16 %v765
        %v1819 = vunpack.c.l.b16 %v766
        %v1820 = vunpack.c.h.b16 %v766
        %v1821 = vunpack.c.l.b16 %v767
        %v1822 = vunpack.c.h.b16 %v767
        %v1823 = vunpack.c.l.b16 %v768
        %v1824 = vunpack.c.h.b16 %v768
        %v1825 = vunpack.c.l.b16 %v769
        %v1826 = vunpack.c.h.b16 %v769
        %v1827 = vunpack.c.l.b16 %v770
        %v1828 = vunpack.c.h.b16 %v770
        %v1829 = vunpack.c.l.b16 %v771
        %v1830 = vunpack.c.h.b16 %v771
        %v1831 = vunpack.c.l.b16 %v772
        %v1832 = vunpack.c.h.b16 %v772
        %v1833 = vunpack.c.l.b16 %v773
        %v1834 = vunpack.c.h.b16 %v773
        %v1835 = vunpack.c.l.b16 %v774
        %v1836 = vunpack.c.h.b16 %v774
        %v1837 = vunpack.c.l.b16 %v775
        %v1838 = vunpack.c.h.b16 %v775
        %v1839 = vunpack.c.l.b16 %v776
        %v1840 = vunpack.c.h.b16 %v776
        %v1841 = vunpack.c.l.b16 %v777
        %v1842 = vunpack.c.h.b16 %v777
        %v1843 = vunpack.c.l.b16 %v778
        %v1844 = vunpack.c.h.b16 %v778
        %v1845 = vunpack.c.l.b16 %v779
        %v1846 = vunpack.c.h.b16 %v779
        %v1847 = vunpack.c.l.b16 %v780
        %v1848 = vunpack.c.h.b16 %v780
        %v1849 = vunpack.c.l.b16 %v781
        %v1850 = vunpack.c.h.b16 %v781
        %v1851 = vunpack.c.l.b16 %v782
        %v1852 = vunpack.c.h.b16 %v782
        %v1853 = vunpack.c.l.b16 %v783
        %v1854 = vunpack.c.h.b16 %v783
        %v1855 = vunpack.c.l.b16 %v784
        %v1856 = vunpack.c.h.b16 %v784
        %v1857 = vunpack.c.l.b16 %v785
        %v1858 = vunpack.c.h.b16 %v785
        %v1859 = vunpack.c.l.b16 %v786
        %v1860 = vunpack.c.h.b16 %v786
        %v1861 = vunpack.c.l.b16 %v787
        %v1862 = vunpack.c.h.b16 %v787
        %v1863 = vunpack.c.l.b16 %v788
        %v1864 = vunpack.c.h.b16 %v788
        %v1865 = vunpack.c.l.b16 %v789
        %v1866 = vunpack.c.h.b16 %v789
        %v1867 = vunpack.c.l.b16 %v790
        %v1868 = vunpack.c.h.b16 %v790
        %v1869 = vunpack.c.l.b16 %v791
        %v1870 = vunpack.c.h.b16 %v791
        %v1871 = vunpack.c.l.b16 %v792
        %v1872 = vunpack.c.h.b16 %v792
        %v1873 = vunpack.c.l.b16 %v793
        %v1874 = vunpack.c.h.b16 %v793
        %v1875 = vunpack.c.l.b16 %v794
        %v1876 = vunpack.c.h.b16 %v794
        %v1877 = vunpack.c.l.b16 %v795
        %v1878 = vunpack.c.h.b16 %v795
        %v1879 = vunpack.c.l.b16 %v796
        %v1880 = vunpack.c.h.b16 %v796
        %v1881 = vunpack.c.l.b16 %v797
        %v1882 = vunpack.c.h.b16 %v797
        %v1883 = vunpack.c.l.b16 %v798
        %v1884 = vunpack.c.h.b16 %v798
        %v1885 = vunpack.c.l.b16 %v799
        %v1886 = vunpack.c.h.b16 %v799
        %v1887 = vunpack.c.l.b16 %v800
        %v1888 = vunpack.c.h.b16 %v800
        %v1889 = vunpack.c.l.b16 %v801
        %v1890 = vunpack.c.h.b16 %v801
        %v1891 = vunpack.c.l.b16 %v802
        %v1892 = vunpack.c.h.b16 %v802
        %v1893 = vunpack.c.l.b16 %v803
        %v1894 = vunpack.c.h.b16 %v803
        %v1895 = vunpack.c.l.b16 %v804
        %v1896 = vunpack.c.h.b16 %v804
        %v1897 = vunpack.c.l.b16 %v805
        %v1898 = vunpack.c.h.b16 %v805
        %v1899 = vunpack.c.l.b16 %v806
        %v1900 = vunpack.c.h.b16 %v806
        %v1901 = vunpack.c.l.b16 %v807
        %v1902 = vunpack.c.h.b16 %v807
        %v1903 = vunpack.c.l.b16 %v808
        %v1904 = vunpack.c.h.b16 %v808
        %v1905 = vunpack.c.l.b16 %v809
        %v1906 = vunpack.c.h.b16 %v809
        %v1907 = vunpack.c.l.b16 %v810
        %v1908 = vunpack.c.h.b16 %v810
        %v1909 = vunpack.c.l.b16 %v811
        %v1910 = vunpack.c.h.b16 %v811
        %v1911 = vunpack.c.l.b16 %v812
        %v1912 = vunpack.c.h.b16 %v812
        %v1913 = vunpack.c.l.b16 %v813
        %v1914 = vunpack.c.h.b16 %v813
        %v1915 = vunpack.c.l.b16 %v814
        %v1916 = vunpack.c.h.b16 %v814
        %v1917 = vunpack.c.l.b16 %v815
        %v1918 = vunpack.c.h.b16 %v815
        %v1919 = vunpack.c.l.b16 %v816
        %v1920 = vunpack.c.h.b16 %v816
        %v1921 = vunpack.c.l.b16 %v817
        %v1922 = vunpack.c.h.b16 %v817
        %v1923 = vunpack.c.l.b16 %v818
        %v1924 = vunpack.c.h.b16 %v818
        %v1925 = vunpack.c.l.b16 %v819
        %v1926 = vunpack.c.h.b16 %v819
        %v1927 = vunpack.c.l.b16 %v820
        %v1928 = vunpack.c.h.b16 %v820
        %v1929 = vunpack.c.l.b16 %v821
        %v1930 = vunpack.c.h.b16 %v821
        %v1931 = vunpack.c.l.b16 %v822
        %v1932 = vunpack.c.h.b16 %v822
        %v1933 = vunpack.c.l.b16 %v823
        %v1934 = vunpack.c.h.b16 %v823
        %v1935 = vunpack.c.l.b16 %v824
        %v1936 = vunpack.c.h.b16 %v824
        %v1937 = vunpack.c.l.b16 %v825
        %v1938 = vunpack.c.h.b16 %v825
        %v1939 = vunpack.c.l.b16 %v826
        %v1940 = vunpack.c.h.b16 %v826
        %v1941 = vunpack.c.l.b16 %v827
        %v1942 = vunpack.c.h.b16 %v827
        %v1943 = vunpack.c.l.b16 %v828
        %v1944 = vunpack.c.h.b16 %v828
        %v1945 = vunpack.c.l.b16 %v829
        %v1946 = vunpack.c.h.b16 %v829
        %v1947 = vunpack.c.l.b16 %v830
        %v1948 = vunpack.c.h.b16 %v830
        %v1949 = vunpack.c.l.b16 %v831
        %v1950 = vunpack.c.h.b16 %v831
        %v1951 = vunpack.c.l.b16 %v832
        %v1952 = vunpack.c.h.b16 %v832
        %v1953 = vunpack.c.l.b16 %v833
        %v1954 = vunpack.c.h.b16 %v833
        %v1955 = vunpack.c.l.b16 %v834
        %v1956 = vunpack.c.h.b16 %v834
        %v1957 = vunpack.c.l.b16 %v835
        %v1958 = vunpack.c.h.b16 %v835
        %v1959 = vunpack.c.l.b16 %v836
        %v1960 = vunpack.c.h.b16 %v836
        %v1961 = vunpack.c.l.b16 %v837
        %v1962 = vunpack.c.h.b16 %v837
        %v1963 = vunpack.c.l.b16 %v838
        %v1964 = vunpack.c.h.b16 %v838
        %v1965 = vunpack.c.l.b16 %v839
        %v1966 = vunpack.c.h.b16 %v839
        %v1967 = vunpack.c.l.b16 %v840
        %v1968 = vunpack.c.h.b16 %v840
        %v1969 = vunpack.c.l.b16 %v841
        %v1970 = vunpack.c.h.b16 %v841
        %v1971 = vunpack.c.l.b16 %v842
        %v1972 = vunpack.c.h.b16 %v842
        %v1973 = vunpack.c.l.b16 %v843
        %v1974 = vunpack.c.h.b16 %v843
        %v1975 = vunpack.c.l.b16 %v844
        %v1976 = vunpack.c.h.b16 %v844
        %v1977 = vunpack.c.l.b16 %v845
        %v1978 = vunpack.c.h.b16 %v845
        %v1979 = vunpack.c.l.b16 %v846
        %v1980 = vunpack.c.h.b16 %v846
        %v1981 = vunpack.c.l.b16 %v847
        %v1982 = vunpack.c.h.b16 %v847
        %v1983 = vunpack.c.l.b16 %v848
        %v1984 = vunpack.c.h.b16 %v848
        %v1985 = vunpack.c.l.b16 %v849
        %v1986 = vunpack.c.h.b16 %v849
        %v1987 = vunpack.c.l.b16 %v850
        %v1988 = vunpack.c.h.b16 %v850
        %v1989 = vunpack.c.l.b16 %v851
        %v1990 = vunpack.c.h.b16 %v851
        %v1991 = vunpack.c.l.b16 %v852
        %v1992 = vunpack.c.h.b16 %v852
        %v1993 = vunpack.c.l.b16 %v853
        %v1994 = vunpack.c.h.b16 %v853
        %v1995 = vunpack.c.l.b16 %v854
        %v1996 = vunpack.c.h.b16 %v854
        %v1997 = vunpack.c.l.b16 %v855
        %v1998 = vunpack.c.h.b16 %v855
        %v1999 = vunpack.c.l.b16 %v856
        %v2000 = vunpack.c.h.b16 %v856
        %v2001 = vunpack.c.l.b16 %v857
        %v2002 = vunpack.c.h.b16 %v857
        %v2003 = vunpack.c.l.b16 %v858
        %v2004 = vunpack.c.h.b16 %v858
        %v2005 = vunpack.c.l.b16 %v859
        %v2006 = vunpack.c.h.b16 %v859
        %v2007 = vunpack.c.l.b16 %v860
        %v2008 = vunpack.c.h.b16 %v860
        %v2009 = vunpack.c.l.b16 %v861
        %v2010 = vunpack.c.h.b16 %v861
        %v2011 = vunpack.c.l.b16 %v862
        %v2012 = vunpack.c.h.b16 %v862
        %v2013 = vunpack.c.l.b16 %v863
        %v2014 = vunpack.c.h.b16 %v863
        %v2015 = vunpack.c.l.b16 %v864
        %v2016 = vunpack.c.h.b16 %v864
        %v2017 = vunpack.c.l.b16 %v865
        %v2018 = vunpack.c.h.b16 %v865
        %v2019 = vunpack.c.l.b16 %v866
        %v2020 = vunpack.c.h.b16 %v866
        %v2021 = vunpack.c.l.b16 %v867
        %v2022 = vunpack.c.h.b16 %v867
        %v2023 = vunpack.c.l.b16 %v868
        %v2024 = vunpack.c.h.b16 %v868
        %v2025 = vunpack.c.l.b16 %v869
        %v2026 = vunpack.c.h.b16 %v869
        %v2027 = vunpack.c.l.b16 %v870
        %v2028 = vunpack.c.h.b16 %v870
        %v2029 = vunpack.c.l.b16 %v871
        %v2030 = vunpack.c.h.b16 %v871
        %v2031 = vunpack.c.l.b16 %v872
        %v2032 = vunpack.c.h.b16 %v872
        %v2033 = vunpack.c.l.b16 %v873
        %v2034 = vunpack.c.h.b16 %v873
        %v2035 = vunpack.c.l.b16 %v874
        %v2036 = vunpack.c.h.b16 %v874
        %v2037 = vunpack.c.l.b16 %v875
        %v2038 = vunpack.c.h.b16 %v875
        %v2039 = vunpack.c.l.b16 %v876
        %v2040 = vunpack.c.h.b16 %v876
        %v2041 = vunpack.c.l.b16 %v877
        %v2042 = vunpack.c.h.b16 %v877
        %v2043 = vunpack.c.l.b16 %v878
        %v2044 = vunpack.c.h.b16 %v878
        %v2045 = vunpack.c.l.b16 %v879
        %v2046 = vunpack.c.h.b16 %v879
        %v2047 = vunpack.c.l.b16 %v880
        %v2048 = vunpack.c.h.b16 %v880
        %v2049 = vunpack.c.l.b16 %v881
        %v2050 = vunpack.c.h.b16 %v881
        %v2051 = vunpack.c.l.b16 %v882
        %v2052 = vunpack.c.h.b16 %v882
        %v2053 = vunpack.c.l.b16 %v883
        %v2054 = vunpack.c.h.b16 %v883
        %v2055 = vunpack.c.l.b16 %v884
        %v2056 = vunpack.c.h.b16 %v884
        %v2057 = vunpack.c.l.b16 %v885
        %v2058 = vunpack.c.h.b16 %v885
        %v2059 = vunpack.c.l.b16 %v886
        %v2060 = vunpack.c.h.b16 %v886
        %v2061 = vunpack.c.l.b16 %v887
        %v2062 = vunpack.c.h.b16 %v887
        %v2063 = vunpack.c.l.b16 %v888
        %v2064 = vunpack.c.h.b16 %v888
        %v2065 = vunpack.c.l.b16 %v889
        %v2066 = vunpack.c.h.b16 %v889
        %v2067 = vunpack.c.l.b16 %v890
        %v2068 = vunpack.c.h.b16 %v890
        %v2069 = vunpack.c.l.b16 %v891
        %v2070 = vunpack.c.h.b16 %v891
        %v2071 = vunpack.c.l.b16 %v892
        %v2072 = vunpack.c.h.b16 %v892
        %v2073 = vunpack.c.l.b16 %v893
        %v2074 = vunpack.c.h.b16 %v893
        %v2075 = vunpack.c.l.b16 %v894
        %v2076 = vunpack.c.h.b16 %v894
        %v2077 = vunpack.c.l.b16 %v895
        %v2078 = vunpack.c.h.b16 %v895
        %v2079 = vunpack.c.l.b16 %v896
        %v2080 = vunpack.c.h.b16 %v896
        %v2081 = vunpack.c.l.b16 %v897
        %v2082 = vunpack.c.h.b16 %v897
        %v2083 = vunpack.c.l.b16 %v898
        %v2084 = vunpack.c.h.b16 %v898
        %v2085 = vunpack.c.l.b16 %v899
        %v2086 = vunpack.c.h.b16 %v899
        %v2087 = vunpack.c.l.b16 %v900
        %v2088 = vunpack.c.h.b16 %v900
        %v2089 = vunpack.c.l.b16 %v901
        %v2090 = vunpack.c.h.b16 %v901
        %v2091 = vunpack.c.l.b16 %v902
        %v2092 = vunpack.c.h.b16 %v902
        %v2093 = vunpack.c.l.b16 %v903
        %v2094 = vunpack.c.h.b16 %v903
        %v2095 = vunpack.c.l.b16 %v904
        %v2096 = vunpack.c.h.b16 %v904
        %v2097 = vunpack.c.l.b16 %v905
        %v2098 = vunpack.c.h.b16 %v905
        %v2099 = vunpack.c.l.b16 %v906
        %v2100 = vunpack.c.h.b16 %v906
        %v2101 = vunpack.c.l.b16 %v907
        %v2102 = vunpack.c.h.b16 %v907
        %v2103 = vunpack.c.l.b16 %v908
        %v2104 = vunpack.c.h.b16 %v908
        %v2105 = vunpack.c.l.b16 %v909
        %v2106 = vunpack.c.h.b16 %v909
        %v2107 = vunpack.c.l.b16 %v910
        %v2108 = vunpack.c.h.b16 %v910
        %v2109 = vunpack.c.l.b16 %v911
        %v2110 = vunpack.c.h.b16 %v911
        %v2111 = vunpack.c.l.b16 %v912
        %v2112 = vunpack.c.h.b16 %v912
        %v2113 = vunpack.c.l.b16 %v913
        %v2114 = vunpack.c.h.b16 %v913
        %v2115 = vunpack.c.l.b16 %v914
        %v2116 = vunpack.c.h.b16 %v914
        %v2117 = vunpack.c.l.b16 %v915
        %v2118 = vunpack.c.h.b16 %v915
        %v2119 = vunpack.c.l.b16 %v916
        %v2120 = vunpack.c.h.b16 %v916
        %v2121 = vunpack.c.l.b16 %v917
        %v2122 = vunpack.c.h.b16 %v917
        %v2123 = vunpack.c.l.b16 %v918
        %v2124 = vunpack.c.h.b16 %v918
        %v2125 = vunpack.c.l.b16 %v919
        %v2126 = vunpack.c.h.b16 %v919
        %v2127 = vunpack.c.l.b16 %v920
        %v2128 = vunpack.c.h.b16 %v920
        %v2129 = vunpack.c.l.b16 %v921
        %v2130 = vunpack.c.h.b16 %v921
        %v2131 = vunpack.c.l.b16 %v922
        %v2132 = vunpack.c.h.b16 %v922
        %v2133 = vunpack.c.l.b16 %v923
        %v2134 = vunpack.c.h.b16 %v923
        %v2135 = vunpack.c.l.b16 %v924
        %v2136 = vunpack.c.h.b16 %v924
        %v2137 = vunpack.c.l.b16 %v925
        %v2138 = vunpack.c.h.b16 %v925
        %v2139 = vunpack.c.l.b16 %v926
        %v2140 = vunpack.c.h.b16 %v926
        %v2141 = vunpack.c.l.b16 %v927
        %v2142 = vunpack.c.h.b16 %v927
        %v2143 = vunpack.c.l.b16 %v928
        %v2144 = vunpack.c.h.b16 %v928
        %v2145 = vunpack.c.l.b16 %v929
        %v2146 = vunpack.c.h.b16 %v929
        %v2147 = vunpack.c.l.b16 %v930
        %v2148 = vunpack.c.h.b16 %v930
        %v2149 = vpack.c.b16 %v1373, %v1365
        %v2150 = vpack.c.b16 %v1374, %v1366
        %v2151 = vpack.c.b16 %v1375, %v1367
        %v2152 = vpack.c.b16 %v1376, %v1368
        %v2153 = vpack.c.b16 %v1377, %v1369
        %v2154 = vpack.c.b16 %v1378, %v1370
        %v2155 = vpack.c.b16 %v1379, %v1371
        %v2156 = vpack.c.b16 %v1380, %v1372
        %v2157 = vpack.c.b16 %v1389, %v1381
        %v2158 = vpack.c.b16 %v1390, %v1382
        %v2159 = vpack.c.b16 %v1391, %v1383
        %v2160 = vpack.c.b16 %v1392, %v1384
        %v2161 = vpack.c.b16 %v1393, %v1385
        %v2162 = vpack.c.b16 %v1394, %v1386
        %v2163 = vpack.c.b16 %v1395, %v1387
        %v2164 = vpack.c.b16 %v1396, %v1388
        %v2165 = vpack.c.b16 %v1405, %v1397
        %v2166 = vpack.c.b16 %v1406, %v1398
        %v2167 = vpack.c.b16 %v1407, %v1399
        %v2168 = vpack.c.b16 %v1408, %v1400
        %v2169 = vpack.c.b16 %v1409, %v1401
        %v2170 = vpack.c.b16 %v1410, %v1402
        %v2171 = vpack.c.b16 %v1411, %v1403
        %v2172 = vpack.c.b16 %v1412, %v1404
        %v2173 = vpack.c.b16 %v1421, %v1413
        %v2174 = vpack.c.b16 %v1422, %v1414
        %v2175 = vpack.c.b16 %v1423, %v1415
        %v2176 = vpack.c.b16 %v1424, %v1416
        %v2177 = vpack.c.b16 %v1425, %v1417
        %v2178 = vpack.c.b16 %v1426, %v1418
        %v2179 = vpack.c.b16 %v1427, %v1419
        %v2180 = vpack.c.b16 %v1428, %v1420
        %v2181 = vpack.c.b16 %v1437, %v1429
        %v2182 = vpack.c.b16 %v1438, %v1430
        %v2183 = vpack.c.b16 %v1439, %v1431
        %v2184 = vpack.c.b16 %v1440, %v1432
        %v2185 = vpack.c.b16 %v1441, %v1433
        %v2186 = vpack.c.b16 %v1442, %v1434
        %v2187 = vpack.c.b16 %v1443, %v1435
        %v2188 = vpack.c.b16 %v1444, %v1436
        %v2189 = vpack.c.b16 %v1453, %v1445
        %v2190 = vpack.c.b16 %v1454, %v1446
        %v2191 = vpack.c.b16 %v1455, %v1447
        %v2192 = vpack.c.b16 %v1456, %v1448
        %v2193 = vpack.c.b16 %v1457, %v1449
        %v2194 = vpack.c.b16 %v1458, %v1450
        %v2195 = vpack.c.b16 %v1459, %v1451
        %v2196 = vpack.c.b16 %v1460, %v1452
        %v2197 = vpack.c.b16 %v1469, %v1461
        %v2198 = vpack.c.b16 %v1470, %v1462
        %v2199 = vpack.c.b16 %v1471, %v1463
        %v2200 = vpack.c.b16 %v1472, %v1464
        %v2201 = vpack.c.b16 %v1473, %v1465
        %v2202 = vpack.c.b16 %v1474, %v1466
        %v2203 = vpack.c.b16 %v1475, %v1467
        %v2204 = vpack.c.b16 %v1476, %v1468
        %v2205 = vpack.c.b16 %v1485, %v1477
        %v2206 = vpack.c.b16 %v1486, %v1478
        %v2207 = vpack.c.b16 %v1487, %v1479
        %v2208 = vpack.c.b16 %v1488, %v1480
        %v2209 = vpack.c.b16 %v1489, %v1481
        %v2210 = vpack.c.b16 %v1490, %v1482
        %v2211 = vpack.c.b16 %v1491, %v1483
        %v2212 = vpack.c.b16 %v1492, %v1484
        %v2213 = vpack.c.b16 %v1501, %v1493
        %v2214 = vpack.c.b16 %v1502, %v1494
        %v2215 = vpack.c.b16 %v1503, %v1495
        %v2216 = vpack.c.b16 %v1504, %v1496
        %v2217 = vpack.c.b16 %v1505, %v1497
        %v2218 = vpack.c.b16 %v1506, %v1498
        %v2219 = vpack.c.b16 %v1507, %v1499
        %v2220 = vpack.c.b16 %v1508, %v1500
        %v2221 = vpack.c.b16 %v1517, %v1509
        %v2222 = vpack.c.b16 %v1518, %v1510
        %v2223 = vpack.c.b16 %v1519, %v1511
        %v2224 = vpack.c.b16 %v1520, %v1512
        %v2225 = vpack.c.b16 %v1521, %v1513
        %v2226 = vpack.c.b16 %v1522, %v1514
        %v2227 = vpack.c.b16 %v1523, %v1515
        %v2228 = vpack.c.b16 %v1524, %v1516
        %v2229 = vpack.c.b16 %v1533, %v1525
        %v2230 = vpack.c.b16 %v1534, %v1526
        %v2231 = vpack.c.b16 %v1535, %v1527
        %v2232 = vpack.c.b16 %v1536, %v1528
        %v2233 = vpack.c.b16 %v1537, %v1529
        %v2234 = vpack.c.b16 %v1538, %v1530
        %v2235 = vpack.c.b16 %v1539, %v1531
        %v2236 = vpack.c.b16 %v1540, %v1532
        %v2237 = vpack.c.b16 %v1549, %v1541
        %v2238 = vpack.c.b16 %v1550, %v1542
        %v2239 = vpack.c.b16 %v1551, %v1543
        %v2240 = vpack.c.b16 %v1552, %v1544
        %v2241 = vpack.c.b16 %v1553, %v1545
        %v2242 = vpack.c.b16 %v1554, %v1546
        %v2243 = vpack.c.b16 %v1555, %v1547
        %v2244 = vpack.c.b16 %v1556, %v1548
        %v2245 = vpack.c.b16 %v1565, %v1557
        %v2246 = vpack.c.b16 %v1566, %v1558
        %v2247 = vpack.c.b16 %v1567, %v1559
        %v2248 = vpack.c.b16 %v1568, %v1560
        %v2249 = vpack.c.b16 %v1569, %v1561
        %v2250 = vpack.c.b16 %v1570, %v1562
        %v2251 = vpack.c.b16 %v1571, %v1563
        %v2252 = vpack.c.b16 %v1572, %v1564
        %v2253 = vpack.c.b16 %v1581, %v1573
        %v2254 = vpack.c.b16 %v1582, %v1574
        %v2255 = vpack.c.b16 %v1583, %v1575
        %v2256 = vpack.c.b16 %v1584, %v1576
        %v2257 = vpack.c.b16 %v1585, %v1577
        %v2258 = vpack.c.b16 %v1586, %v1578
        %v2259 = vpack.c.b16 %v1587, %v1579
        %v2260 = vpack.c.b16 %v1588, %v1580
        %v2261 = vpack.c.b16 %v1597, %v1589
        %v2262 = vpack.c.b16 %v1598, %v1590
        %v2263 = vpack.c.b16 %v1599, %v1591
        %v2264 = vpack.c.b16 %v1600, %v1592
        %v2265 = vpack.c.b16 %v1601, %v1593
        %v2266 = vpack.c.b16 %v1602, %v1594
        %v2267 = vpack.c.b16 %v1603, %v1595
        %v2268 = vpack.c.b16 %v1604, %v1596
        %v2269 = vpack.c.b16 %v1613, %v1605
        %v2270 = vpack.c.b16 %v1614, %v1606
        %v2271 = vpack.c.b16 %v1615, %v1607
        %v2272 = vpack.c.b16 %v1616, %v1608
        %v2273 = vpack.c.b16 %v1617, %v1609
        %v2274 = vpack.c.b16 %v1618, %v1610
        %v2275 = vpack.c.b16 %v1619, %v1611
        %v2276 = vpack.c.b16 %v1620, %v1612
        %v2277 = vpack.c.b16 %v1629, %v1621
        %v2278 = vpack.c.b16 %v1630, %v1622
        %v2279 = vpack.c.b16 %v1631, %v1623
        %v2280 = vpack.c.b16 %v1632, %v1624
        %v2281 = vpack.c.b16 %v1633, %v1625
        %v2282 = vpack.c.b16 %v1634, %v1626
        %v2283 = vpack.c.b16 %v1635, %v1627
        %v2284 = vpack.c.b16 %v1636, %v1628
        %v2285 = vpack.c.b16 %v1645, %v1637
        %v2286 = vpack.c.b16 %v1646, %v1638
        %v2287 = vpack.c.b16 %v1647, %v1639
        %v2288 = vpack.c.b16 %v1648, %v1640
        %v2289 = vpack.c.b16 %v1649, %v1641
        %v2290 = vpack.c.b16 %v1650, %v1642
        %v2291 = vpack.c.b16 %v1651, %v1643
        %v2292 = vpack.c.b16 %v1652, %v1644
        %v2293 = vpack.c.b16 %v1661, %v1653
        %v2294 = vpack.c.b16 %v1662, %v1654
        %v2295 = vpack.c.b16 %v1663, %v1655
        %v2296 = vpack.c.b16 %v1664, %v1656
        %v2297 = vpack.c.b16 %v1665, %v1657
        %v2298 = vpack.c.b16 %v1666, %v1658
        %v2299 = vpack.c.b16 %v1667, %v1659
        %v2300 = vpack.c.b16 %v1668, %v1660
        %v2301 = vpack.c.b16 %v1677, %v1669
        %v2302 = vpack.c.b16 %v1678, %v1670
        %v2303 = vpack.c.b16 %v1679, %v1671
        %v2304 = vpack.c.b16 %v1680, %v1672
        %v2305 = vpack.c.b16 %v1681, %v1673
        %v2306 = vpack.c.b16 %v1682, %v1674
        %v2307 = vpack.c.b16 %v1683, %v1675
        %v2308 = vpack.c.b16 %v1684, %v1676
        %v2309 = vpack.c.b16 %v1693, %v1685
        %v2310 = vpack.c.b16 %v1694, %v1686
        %v2311 = vpack.c.b16 %v1695, %v1687
        %v2312 = vpack.c.b16 %v1696, %v1688
        %v2313 = vpack.c.b16 %v1697, %v1689
        %v2314 = vpack.c.b16 %v1698, %v1690
        %v2315 = vpack.c.b16 %v1699, %v1691
        %v2316 = vpack.c.b16 %v1700, %v1692
        %v2317 = vpack.c.b16 %v1709, %v1701
        %v2318 = vpack.c.b16 %v1710, %v1702
        %v2319 = vpack.c.b16 %v1711, %v1703
        %v2320 = vpack.c.b16 %v1712, %v1704
        %v2321 = vpack.c.b16 %v1713, %v1705
        %v2322 = vpack.c.b16 %v1714, %v1706
        %v2323 = vpack.c.b16 %v1715, %v1707
        %v2324 = vpack.c.b16 %v1716, %v1708
        %v2325 = vpack.c.b16 %v1725, %v1717
        %v2326 = vpack.c.b16 %v1726, %v1718
        %v2327 = vpack.c.b16 %v1727, %v1719
        %v2328 = vpack.c.b16 %v1728, %v1720
        %v2329 = vpack.c.b16 %v1729, %v1721
        %v2330 = vpack.c.b16 %v1730, %v1722
        %v2331 = vpack.c.b16 %v1731, %v1723
        %v2332 = vpack.c.b16 %v1732, %v1724
        %v2333 = vpack.c.b16 %v1741, %v1733
        %v2334 = vpack.c.b16 %v1742, %v1734
        %v2335 = vpack.c.b16 %v1743, %v1735
        %v2336 = vpack.c.b16 %v1744, %v1736
        %v2337 = vpack.c.b16 %v1745, %v1737
        %v2338 = vpack.c.b16 %v1746, %v1738
        %v2339 = vpack.c.b16 %v1747, %v1739
        %v2340 = vpack.c.b16 %v1748, %v1740
        %v2341 = vpack.c.b16 %v1757, %v1749
        %v2342 = vpack.c.b16 %v1758, %v1750
        %v2343 = vpack.c.b16 %v1759, %v1751
        %v2344 = vpack.c.b16 %v1760, %v1752
        %v2345 = vpack.c.b16 %v1761, %v1753
        %v2346 = vpack.c.b16 %v1762, %v1754
        %v2347 = vpack.c.b16 %v1763, %v1755
        %v2348 = vpack.c.b16 %v1764, %v1756
        %v2349 = vpack.c.b16 %v1773, %v1765
        %v2350 = vpack.c.b16 %v1774, %v1766
        %v2351 = vpack.c.b16 %v1775, %v1767
        %v2352 = vpack.c.b16 %v1776, %v1768
        %v2353 = vpack.c.b16 %v1777, %v1769
        %v2354 = vpack.c.b16 %v1778, %v1770
        %v2355 = vpack.c.b16 %v1779, %v1771
        %v2356 = vpack.c.b16 %v1780, %v1772
        %v2357 = vpack.c.b16 %v1789, %v1781
        %v2358 = vpack.c.b16 %v1790, %v1782
        %v2359 = vpack.c.b16 %v1791, %v1783
        %v2360 = vpack.c.b16 %v1792, %v1784
        %v2361 = vpack.c.b16 %v1793, %v1785
        %v2362 = vpack.c.b16 %v1794, %v1786
        %v2363 = vpack.c.b16 %v1795, %v1787
        %v2364 = vpack.c.b16 %v1796, %v1788
        %v2365 = vpack.c.b16 %v1805, %v1797
        %v2366 = vpack.c.b16 %v1806, %v1798
        %v2367 = vpack.c.b16 %v1807, %v1799
        %v2368 = vpack.c.b16 %v1808, %v1800
        %v2369 = vpack.c.b16 %v1809, %v1801
        %v2370 = vpack.c.b16 %v1810, %v1802
        %v2371 = vpack.c.b16 %v1811, %v1803
        %v2372 = vpack.c.b16 %v1812, %v1804
        %v2373 = vpack.c.b16 %v1821, %v1813
        %v2374 = vpack.c.b16 %v1822, %v1814
        %v2375 = vpack.c.b16 %v1823, %v1815
        %v2376 = vpack.c.b16 %v1824, %v1816
        %v2377 = vpack.c.b16 %v1825, %v1817
        %v2378 = vpack.c.b16 %v1826, %v1818
        %v2379 = vpack.c.b16 %v1827, %v1819
        %v2380 = vpack.c.b16 %v1828, %v1820
        %v2381 = vpack.c.b16 %v1837, %v1829
        %v2382 = vpack.c.b16 %v1838, %v1830
        %v2383 = vpack.c.b16 %v1839, %v1831
        %v2384 = vpack.c.b16 %v1840, %v1832
        %v2385 = vpack.c.b16 %v1841, %v1833
        %v2386 = vpack.c.b16 %v1842, %v1834
        %v2387 = vpack.c.b16 %v1843, %v1835
        %v2388 = vpack.c.b16 %v1844, %v1836
        %v2389 = vpack.c.b16 %v1853, %v1845
        %v2390 = vpack.c.b16 %v1854, %v1846
        %v2391 = vpack.c.b16 %v1855, %v1847
        %v2392 = vpack.c.b16 %v1856, %v1848
        %v2393 = vpack.c.b16 %v1857, %v1849
        %v2394 = vpack.c.b16 %v1858, %v1850
        %v2395 = vpack.c.b16 %v1859, %v1851
        %v2396 = vpack.c.b16 %v1860, %v1852
        %v2397 = vpack.c.b16 %v1869, %v1861
        %v2398 = vpack.c.b16 %v1870, %v1862
        %v2399 = vpack.c.b16 %v1871, %v1863
        %v2400 = vpack.c.b16 %v1872, %v1864
        %v2401 = vpack.c.b16 %v1873, %v1865
        %v2402 = vpack.c.b16 %v1874, %v1866
        %v2403 = vpack.c.b16 %v1875, %v1867
        %v2404 = vpack.c.b16 %v1876, %v1868
        %v2405 = vpack.c.b16 %v1885, %v1877
        %v2406 = vpack.c.b16 %v1886, %v1878
        %v2407 = vpack.c.b16 %v1887, %v1879
        %v2408 = vpack.c.b16 %v1888, %v1880
        %v2409 = vpack.c.b16 %v1889, %v1881
        %v2410 = vpack.c.b16 %v1890, %v1882
        %v2411 = vpack.c.b16 %v1891, %v1883
        %v2412 = vpack.c.b16 %v1892, %v1884
        %v2413 = vpack.c.b16 %v1901, %v1893
        %v2414 = vpack.c.b16 %v1902, %v1894
        %v2415 = vpack.c.b16 %v1903, %v1895
        %v2416 = vpack.c.b16 %v1904, %v1896
        %v2417 = vpack.c.b16 %v1905, %v1897
        %v2418 = vpack.c.b16 %v1906, %v1898
        %v2419 = vpack.c.b16 %v1907, %v1899
        %v2420 = vpack.c.b16 %v1908, %v1900
        %v2421 = vpack.c.b16 %v1917, %v1909
        %v2422 = vpack.c.b16 %v1918, %v1910
        %v2423 = vpack.c.b16 %v1919, %v1911
        %v2424 = vpack.c.b16 %v1920, %v1912
        %v2425 = vpack.c.b16 %v1921, %v1913
        %v2426 = vpack.c.b16 %v1922, %v1914
        %v2427 = vpack.c.b16 %v1923, %v1915
        %v2428 = vpack.c.b16 %v1924, %v1916
        %v2429 = vpack.c.b16 %v1933, %v1925
        %v2430 = vpack.c.b16 %v1934, %v1926
        %v2431 = vpack.c.b16 %v1935, %v1927
        %v2432 = vpack.c.b16 %v1936, %v1928
        %v2433 = vpack.c.b16 %v1937, %v1929
        %v2434 = vpack.c.b16 %v1938, %v1930
        %v2435 = vpack.c.b16 %v1939, %v1931
        %v2436 = vpack.c.b16 %v1940, %v1932
        %v2437 = vpack.c.b16 %v1949, %v1941
        %v2438 = vpack.c.b16 %v1950, %v1942
        %v2439 = vpack.c.b16 %v1951, %v1943
        %v2440 = vpack.c.b16 %v1952, %v1944
        %v2441 = vpack.c.b16 %v1953, %v1945
        %v2442 = vpack.c.b16 %v1954, %v1946
        %v2443 = vpack.c.b16 %v1955, %v1947
        %v2444 = vpack.c.b16 %v1956, %v1948
        %v2445 = vpack.c.b16 %v1965, %v1957
        %v2446 = vpack.c.b16 %v1966, %v1958
        %v2447 = vpack.c.b16 %v1967, %v1959
        %v2448 = vpack.c.b16 %v1968, %v1960
        %v2449 = vpack.c.b16 %v1969, %v1961
        %v2450 = vpack.c.b16 %v1970, %v1962
        %v2451 = vpack.c.b16 %v1971, %v1963
        %v2452 = vpack.c.b16 %v1972, %v1964
        %v2453 = vpack.c.b16 %v1981, %v1973
        %v2454 = vpack.c.b16 %v1982, %v1974
        %v2455 = vpack.c.b16 %v1983, %v1975
        %v2456 = vpack.c.b16 %v1984, %v1976
        %v2457 = vpack.c.b16 %v1985, %v1977
        %v2458 = vpack.c.b16 %v1986, %v1978
        %v2459 = vpack.c.b16 %v1987, %v1979
        %v2460 = vpack.c.b16 %v1988, %v1980
        %v2461 = vpack.c.b16 %v1997, %v1989
        %v2462 = vpack.c.b16 %v1998, %v1990
        %v2463 = vpack.c.b16 %v1999, %v1991
        %v2464 = vpack.c.b16 %v2000, %v1992
        %v2465 = vpack.c.b16 %v2001, %v1993
        %v2466 = vpack.c.b16 %v2002, %v1994
        %v2467 = vpack.c.b16 %v2003, %v1995
        %v2468 = vpack.c.b16 %v2004, %v1996
        %v2469 = vpack.c.b16 %v2013, %v2005
        %v2470 = vpack.c.b16 %v2014, %v2006
        %v2471 = vpack.c.b16 %v2015, %v2007
        %v2472 = vpack.c.b16 %v2016, %v2008
        %v2473 = vpack.c.b16 %v2017, %v2009
        %v2474 = vpack.c.b16 %v2018, %v2010
        %v2475 = vpack.c.b16 %v2019, %v2011
        %v2476 = vpack.c.b16 %v2020, %v2012
        %v2477 = vpack.c.b16 %v2029, %v2021
        %v2478 = vpack.c.b16 %v2030, %v2022
        %v2479 = vpack.c.b16 %v2031, %v2023
        %v2480 = vpack.c.b16 %v2032, %v2024
        %v2481 = vpack.c.b16 %v2033, %v2025
        %v2482 = vpack.c.b16 %v2034, %v2026
        %v2483 = vpack.c.b16 %v2035, %v2027
        %v2484 = vpack.c.b16 %v2036, %v2028
        %v2485 = vpack.c.b16 %v2045, %v2037
        %v2486 = vpack.c.b16 %v2046, %v2038
        %v2487 = vpack.c.b16 %v2047, %v2039
        %v2488 = vpack.c.b16 %v2048, %v2040
        %v2489 = vpack.c.b16 %v2049, %v2041
        %v2490 = vpack.c.b16 %v2050, %v2042
        %v2491 = vpack.c.b16 %v2051, %v2043
        %v2492 = vpack.c.b16 %v2052, %v2044
        %v2493 = vpack.c.b16 %v2061, %v2053
        %v2494 = vpack.c.b16 %v2062, %v2054
        %v2495 = vpack.c.b16 %v2063, %v2055
        %v2496 = vpack.c.b16 %v2064, %v2056
        %v2497 = vpack.c.b16 %v2065, %v2057
        %v2498 = vpack.c.b16 %v2066, %v2058
        %v2499 = vpack.c.b16 %v2067, %v2059
        %v2500 = vpack.c.b16 %v2068, %v2060
        %v2501 = vpack.c.b16 %v2077, %v2069
        %v2502 = vpack.c.b16 %v2078, %v2070
        %v2503 = vpack.c.b16 %v2079, %v2071
        %v2504 = vpack.c.b16 %v2080, %v2072
        %v2505 = vpack.c.b16 %v2081, %v2073
        %v2506 = vpack.c.b16 %v2082, %v2074
        %v2507 = vpack.c.b16 %v2083, %v2075
        %v2508 = vpack.c.b16 %v2084, %v2076
        %v2509 = vpack.c.b16 %v2093, %v2085
        %v2510 = vpack.c.b16 %v2094, %v2086
        %v2511 = vpack.c.b16 %v2095, %v2087
        %v2512 = vpack.c.b16 %v2096, %v2088
        %v2513 = vpack.c.b16 %v2097, %v2089
        %v2514 = vpack.c.b16 %v2098, %v2090
        %v2515 = vpack.c.b16 %v2099, %v2091
        %v2516 = vpack.c.b16 %v2100, %v2092
        %v2517 = vpack.c.b16 %v2109, %v2101
        %v2518 = vpack.c.b16 %v2110, %v2102
        %v2519 = vpack.c.b16 %v2111, %v2103
        %v2520 = vpack.c.b16 %v2112, %v2104
        %v2521 = vpack.c.b16 %v2113, %v2105
        %v2522 = vpack.c.b16 %v2114, %v2106
        %v2523 = vpack.c.b16 %v2115, %v2107
        %v2524 = vpack.c.b16 %v2116, %v2108
        %v2525 = vpack.c.b16 %v2125, %v2117
        %v2526 = vpack.c.b16 %v2126, %v2118
        %v2527 = vpack.c.b16 %v2127, %v2119
        %v2528 = vpack.c.b16 %v2128, %v2120
        %v2529 = vpack.c.b16 %v2129, %v2121
        %v2530 = vpack.c.b16 %v2130, %v2122
        %v2531 = vpack.c.b16 %v2131, %v2123
        %v2532 = vpack.c.b16 %v2132, %v2124
        %v2533 = vpack.c.b16 %v2141, %v2133
        %v2534 = vpack.c.b16 %v2142, %v2134
        %v2535 = vpack.c.b16 %v2143, %v2135
        %v2536 = vpack.c.b16 %v2144, %v2136
        %v2537 = vpack.c.b16 %v2145, %v2137
        %v2538 = vpack.c.b16 %v2146, %v2138
        %v2539 = vpack.c.b16 %v2147, %v2139
        %v2540 = vpack.c.b16 %v2148, %v2140
        %vm2933 = vcmask 130048
        %v2935 = vsel %vm2933, %v538, 0
        %2937 = vmatprep.subr.bf16.mxu0 %v2150
        %2938 = vmatpush1.bf16.msra.mxu0 %v2149
        %2939 = vmatprep.subr.bf16.mxu0 %v2158
        %2940 = vmatpush1.bf16.msra.mxu0 %v2157
        %2941 = vmatprep.subr.bf16.mxu0 %v2166
        %2942 = vmatpush1.bf16.msra.mxu0 %v2165
        %2943 = vmatprep.subr.bf16.mxu0 %v2174
        %2944 = vmatpush1.bf16.msra.mxu0 %v2173
        %2945 = vmatprep.subr.bf16.mxu0 %v2182
        %2946 = vmatpush1.bf16.msra.mxu0 %v2181
        %2947 = vmatprep.subr.bf16.mxu0 %v2190
        %2948 = vmatpush1.bf16.msra.mxu0 %v2189
        %2949 = vmatprep.subr.bf16.mxu0 %v2198
        %2950 = vmatpush1.bf16.msra.mxu0 %v2197
        %2951 = vmatprep.subr.bf16.mxu0 %v2206
        %2952 = vmatpush1.bf16.msra.mxu0 %v2205
        %2953 = vmatprep.subr.bf16.mxu0 %v2214
        %2954 = vmatpush1.bf16.msra.mxu0 %v2213
        %2955 = vmatprep.subr.bf16.mxu0 %v2222
        %2956 = vmatpush1.bf16.msra.mxu0 %v2221
        %2957 = vmatprep.subr.bf16.mxu0 %v2230
        %2958 = vmatpush1.bf16.msra.mxu0 %v2229
        %2959 = vmatprep.subr.bf16.mxu0 %v2238
        %2960 = vmatpush1.bf16.msra.mxu0 %v2237
        %2961 = vmatprep.subr.bf16.mxu0 %v2246
        %2962 = vmatpush1.bf16.msra.mxu0 %v2245
        %2963 = vmatprep.subr.bf16.mxu0 %v2254
        %2964 = vmatpush1.bf16.msra.mxu0 %v2253
        %2965 = vmatprep.subr.bf16.mxu0 %v2262
        %2966 = vmatpush1.bf16.msra.mxu0 %v2261
        %2967 = vmatprep.subr.bf16.mxu0 %v2270
        %2968 = vmatpush1.bf16.msra.mxu0 %v2269
        %2969 = vmatprep.mubr.bf16.mxu0 %v533
        %2970 = vmatmul.mubr.bf16.gmra.mrb[0].mxu0 %v532
        %v2971 = vpop.f32.mrb[0].mxu0
        %v2972 = vadd.f32 %v936, %v2971
        %v2973 = vpop.f32.mrb[0].mxu0
        %v2974 = vadd.f32 %v940, %v2973
        %v2975 = vpop.f32.mrb[0].mxu0
        %v2976 = vpop.f32.mrb[0].mxu0
        %2977 = vdwg.mxu0
        %2978 = vmatprep.subr.bf16.mxu0 %v2278
        %2979 = vmatpush1.bf16.msra.mxu0 %v2277
        %2980 = vmatprep.subr.bf16.mxu0 %v2286
        %2981 = vmatpush1.bf16.msra.mxu0 %v2285
        %2982 = vmatprep.subr.bf16.mxu0 %v2294
        %2983 = vmatpush1.bf16.msra.mxu0 %v2293
        %2984 = vmatprep.subr.bf16.mxu0 %v2302
        %2985 = vmatpush1.bf16.msra.mxu0 %v2301
        %2986 = vmatprep.subr.bf16.mxu0 %v2310
        %2987 = vmatpush1.bf16.msra.mxu0 %v2309
        %2988 = vmatprep.subr.bf16.mxu0 %v2318
        %2989 = vmatpush1.bf16.msra.mxu0 %v2317
        %2990 = vmatprep.subr.bf16.mxu0 %v2326
        %2991 = vmatpush1.bf16.msra.mxu0 %v2325
        %2992 = vmatprep.subr.bf16.mxu0 %v2334
        %2993 = vmatpush1.bf16.msra.mxu0 %v2333
        %2994 = vmatprep.subr.bf16.mxu0 %v2342
        %2995 = vmatpush1.bf16.msra.mxu0 %v2341
        %2996 = vmatprep.subr.bf16.mxu0 %v2350
        %2997 = vmatpush1.bf16.msra.mxu0 %v2349
        %2998 = vmatprep.subr.bf16.mxu0 %v2358
        %2999 = vmatpush1.bf16.msra.mxu0 %v2357
        %3000 = vmatprep.subr.bf16.mxu0 %v2366
        %3001 = vmatpush1.bf16.msra.mxu0 %v2365
        %3002 = vmatprep.subr.bf16.mxu0 %v2374
        %3003 = vmatpush1.bf16.msra.mxu0 %v2373
        %3004 = vmatprep.subr.bf16.mxu0 %v2382
        %3005 = vmatpush1.bf16.msra.mxu0 %v2381
        %3006 = vmatprep.subr.bf16.mxu0 %v2390
        %3007 = vmatpush1.bf16.msra.mxu0 %v2389
        %3008 = vmatprep.subr.bf16.mxu0 %v2398
        %3009 = vmatpush1.bf16.msra.mxu0 %v2397
        %3010 = vmatprep.mubr.bf16.mxu0 %v535
        %3011 = vmatmul.mubr.bf16.gmra.mrb[0].mxu0 %v534
        %v3012 = vpop.f32.mrb[0].mxu0
        %v3013 = vadd.f32 %v2972, %v3012
        %v3014 = vpop.f32.mrb[0].mxu0
        %v3015 = vadd.f32 %v2974, %v3014
        %v3016 = vpop.f32.mrb[0].mxu0
        %v3017 = vpop.f32.mrb[0].mxu0
        %3018 = vdwg.mxu0
        %3019 = vmatprep.subr.bf16.mxu0 %v2406
        %3020 = vmatpush1.bf16.msra.mxu0 %v2405
        %3021 = vmatprep.subr.bf16.mxu0 %v2414
        %3022 = vmatpush1.bf16.msra.mxu0 %v2413
        %3023 = vmatprep.subr.bf16.mxu0 %v2422
        %3024 = vmatpush1.bf16.msra.mxu0 %v2421
        %3025 = vmatprep.subr.bf16.mxu0 %v2430
        %3026 = vmatpush1.bf16.msra.mxu0 %v2429
        %3027 = vmatprep.subr.bf16.mxu0 %v2438
        %3028 = vmatpush1.bf16.msra.mxu0 %v2437
        %3029 = vmatprep.subr.bf16.mxu0 %v2446
        %3030 = vmatpush1.bf16.msra.mxu0 %v2445
        %3031 = vmatprep.subr.bf16.mxu0 %v2454
        %3032 = vmatpush1.bf16.msra.mxu0 %v2453
        %3033 = vmatprep.subr.bf16.mxu0 %v2462
        %3034 = vmatpush1.bf16.msra.mxu0 %v2461
        %3035 = vmatprep.subr.bf16.mxu0 %v2470
        %3036 = vmatpush1.bf16.msra.mxu0 %v2469
        %3037 = vmatprep.subr.bf16.mxu0 %v2478
        %3038 = vmatpush1.bf16.msra.mxu0 %v2477
        %3039 = vmatprep.subr.bf16.mxu0 %v2486
        %3040 = vmatpush1.bf16.msra.mxu0 %v2485
        %3041 = vmatprep.subr.bf16.mxu0 %v2494
        %3042 = vmatpush1.bf16.msra.mxu0 %v2493
        %3043 = vmatprep.subr.bf16.mxu0 %v2502
        %3044 = vmatpush1.bf16.msra.mxu0 %v2501
        %3045 = vmatprep.subr.bf16.mxu0 %v2510
        %3046 = vmatpush1.bf16.msra.mxu0 %v2509
        %3047 = vmatprep.subr.bf16.mxu0 %v2518
        %3048 = vmatpush1.bf16.msra.mxu0 %v2517
        %3049 = vmatprep.subr.bf16.mxu0 %v2526
        %3050 = vmatpush1.bf16.msra.mxu0 %v2525
        %3051 = vmatprep.mubr.bf16.mxu0 %v537
        %3052 = vmatmul.mubr.bf16.gmra.mrb[0].mxu0 %v536
        %v3053 = vpop.f32.mrb[0].mxu0
        %v3054 = vadd.f32 %v3013, %v3053
        %v3055 = vpop.f32.mrb[0].mxu0
        %v3056 = vadd.f32 %v3015, %v3055
        %v3057 = vpop.f32.mrb[0].mxu0
        %v3058 = vpop.f32.mrb[0].mxu0
        %3059 = vdwg.mxu0
        %3060 = vmatprep.subr.bf16.mxu0 %v2534
        %3061 = vmatpush1.bf16.msra.mxu0 %v2533
        %3062 = vmatprep.subr.bf16.mxu0 0
        %3063 = vmatpush1.bf16.msra.mxu0 0
        %3064 = vmatprep.subr.bf16.mxu0 0
        %3065 = vmatpush1.bf16.msra.mxu0 0
        %3066 = vmatprep.subr.bf16.mxu0 0
        %3067 = vmatpush1.bf16.msra.mxu0 0
        %3068 = vmatprep.subr.bf16.mxu0 0
        %3069 = vmatpush1.bf16.msra.mxu0 0
        %3070 = vmatprep.subr.bf16.mxu0 0
        %3071 = vmatpush1.bf16.msra.mxu0 0
        %3072 = vmatprep.subr.bf16.mxu0 0
        %3073 = vmatpush1.bf16.msra.mxu0 0
        %3074 = vmatprep.subr.bf16.mxu0 0
        %3075 = vmatpush1.bf16.msra.mxu0 0
        %3076 = vmatprep.subr.bf16.mxu0 0
        %3077 = vmatpush1.bf16.msra.mxu0 0
        %3078 = vmatprep.subr.bf16.mxu0 0
        %3079 = vmatpush1.bf16.msra.mxu0 0
        %3080 = vmatprep.subr.bf16.mxu0 0
        %3081 = vmatpush1.bf16.msra.mxu0 0
        %3082 = vmatprep.subr.bf16.mxu0 0
        %3083 = vmatpush1.bf16.msra.mxu0 0
        %3084 = vmatprep.subr.bf16.mxu0 0
        %3085 = vmatpush1.bf16.msra.mxu0 0
        %3086 = vmatprep.subr.bf16.mxu0 0
        %3087 = vmatpush1.bf16.msra.mxu0 0
        %3088 = vmatprep.subr.bf16.mxu0 0
        %3089 = vmatpush1.bf16.msra.mxu0 0
        %3090 = vmatprep.subr.bf16.mxu0 0
        %3091 = vmatpush1.bf16.msra.mxu0 0
        %3092 = vmatprep.mubr.bf16.mxu0 0
        %3093 = vmatmul.mubr.bf16.gmra.mrb[0].mxu0 %v2935
        %v3094 = vpop.f32.mrb[0].mxu0
        %v3095 = vadd.f32 %v3054, %v3094
        %v3096 = vpop.f32.mrb[0].mxu0
        %v3097 = vadd.f32 %v3056, %v3096
        %v3098 = vpop.f32.mrb[0].mxu0
        %v3099 = vpop.f32.mrb[0].mxu0
        %3100 = vdwg.mxu0
        %3101 = vmatprep.subr.bf16.mxu0 %v2152
        %3102 = vmatpush1.bf16.msra.mxu0 %v2151
        %3103 = vmatprep.subr.bf16.mxu0 %v2160
        %3104 = vmatpush1.bf16.msra.mxu0 %v2159
        %3105 = vmatprep.subr.bf16.mxu0 %v2168
        %3106 = vmatpush1.bf16.msra.mxu0 %v2167
        %3107 = vmatprep.subr.bf16.mxu0 %v2176
        %3108 = vmatpush1.bf16.msra.mxu0 %v2175
        %3109 = vmatprep.subr.bf16.mxu0 %v2184
        %3110 = vmatpush1.bf16.msra.mxu0 %v2183
        %3111 = vmatprep.subr.bf16.mxu0 %v2192
        %3112 = vmatpush1.bf16.msra.mxu0 %v2191
        %3113 = vmatprep.subr.bf16.mxu0 %v2200
        %3114 = vmatpush1.bf16.msra.mxu0 %v2199
        %3115 = vmatprep.subr.bf16.mxu0 %v2208
        %3116 = vmatpush1.bf16.msra.mxu0 %v2207
        %3117 = vmatprep.subr.bf16.mxu0 %v2216
        %3118 = vmatpush1.bf16.msra.mxu0 %v2215
        %3119 = vmatprep.subr.bf16.mxu0 %v2224
        %3120 = vmatpush1.bf16.msra.mxu0 %v2223
        %3121 = vmatprep.subr.bf16.mxu0 %v2232
        %3122 = vmatpush1.bf16.msra.mxu0 %v2231
        %3123 = vmatprep.subr.bf16.mxu0 %v2240
        %3124 = vmatpush1.bf16.msra.mxu0 %v2239
        %3125 = vmatprep.subr.bf16.mxu0 %v2248
        %3126 = vmatpush1.bf16.msra.mxu0 %v2247
        %3127 = vmatprep.subr.bf16.mxu0 %v2256
        %3128 = vmatpush1.bf16.msra.mxu0 %v2255
        %3129 = vmatprep.subr.bf16.mxu0 %v2264
        %3130 = vmatpush1.bf16.msra.mxu0 %v2263
        %3131 = vmatprep.subr.bf16.mxu0 %v2272
        %3132 = vmatpush1.bf16.msra.mxu0 %v2271
        %3133 = vmatprep.mubr.bf16.mxu0 %v533
        %3134 = vmatmul.mubr.bf16.gmra.mrb[0].mxu0 %v532
        %v3135 = vpop.f32.mrb[0].mxu0
        %v3136 = vadd.f32 %v944, %v3135
        %v3137 = vpop.f32.mrb[0].mxu0
        %v3138 = vadd.f32 %v948, %v3137
        %v3139 = vpop.f32.mrb[0].mxu0
        %v3140 = vpop.f32.mrb[0].mxu0
        %3141 = vdwg.mxu0
        %3142 = vmatprep.subr.bf16.mxu0 %v2280
        %3143 = vmatpush1.bf16.msra.mxu0 %v2279
        %3144 = vmatprep.subr.bf16.mxu0 %v2288
        %3145 = vmatpush1.bf16.msra.mxu0 %v2287
        %3146 = vmatprep.subr.bf16.mxu0 %v2296
        %3147 = vmatpush1.bf16.msra.mxu0 %v2295
        %3148 = vmatprep.subr.bf16.mxu0 %v2304
        %3149 = vmatpush1.bf16.msra.mxu0 %v2303
        %3150 = vmatprep.subr.bf16.mxu0 %v2312
        %3151 = vmatpush1.bf16.msra.mxu0 %v2311
        %3152 = vmatprep.subr.bf16.mxu0 %v2320
        %3153 = vmatpush1.bf16.msra.mxu0 %v2319
        %3154 = vmatprep.subr.bf16.mxu0 %v2328
        %3155 = vmatpush1.bf16.msra.mxu0 %v2327
        %3156 = vmatprep.subr.bf16.mxu0 %v2336
        %3157 = vmatpush1.bf16.msra.mxu0 %v2335
        %3158 = vmatprep.subr.bf16.mxu0 %v2344
        %3159 = vmatpush1.bf16.msra.mxu0 %v2343
        %3160 = vmatprep.subr.bf16.mxu0 %v2352
        %3161 = vmatpush1.bf16.msra.mxu0 %v2351
        %3162 = vmatprep.subr.bf16.mxu0 %v2360
        %3163 = vmatpush1.bf16.msra.mxu0 %v2359
        %3164 = vmatprep.subr.bf16.mxu0 %v2368
        %3165 = vmatpush1.bf16.msra.mxu0 %v2367
        %3166 = vmatprep.subr.bf16.mxu0 %v2376
        %3167 = vmatpush1.bf16.msra.mxu0 %v2375
        %3168 = vmatprep.subr.bf16.mxu0 %v2384
        %3169 = vmatpush1.bf16.msra.mxu0 %v2383
        %3170 = vmatprep.subr.bf16.mxu0 %v2392
        %3171 = vmatpush1.bf16.msra.mxu0 %v2391
        %3172 = vmatprep.subr.bf16.mxu0 %v2400
        %3173 = vmatpush1.bf16.msra.mxu0 %v2399
        %3174 = vmatprep.mubr.bf16.mxu0 %v535
        %3175 = vmatmul.mubr.bf16.gmra.mrb[0].mxu0 %v534
        %v3176 = vpop.f32.mrb[0].mxu0
        %v3177 = vadd.f32 %v3136, %v3176
        %v3178 = vpop.f32.mrb[0].mxu0
        %v3179 = vadd.f32 %v3138, %v3178
        %v3180 = vpop.f32.mrb[0].mxu0
        %v3181 = vpop.f32.mrb[0].mxu0
        %3182 = vdwg.mxu0
        %3183 = vmatprep.subr.bf16.mxu0 %v2408
        %3184 = vmatpush1.bf16.msra.mxu0 %v2407
        %3185 = vmatprep.subr.bf16.mxu0 %v2416
        %3186 = vmatpush1.bf16.msra.mxu0 %v2415
        %3187 = vmatprep.subr.bf16.mxu0 %v2424
        %3188 = vmatpush1.bf16.msra.mxu0 %v2423
        %3189 = vmatprep.subr.bf16.mxu0 %v2432
        %3190 = vmatpush1.bf16.msra.mxu0 %v2431
        %3191 = vmatprep.subr.bf16.mxu0 %v2440
        %3192 = vmatpush1.bf16.msra.mxu0 %v2439
        %3193 = vmatprep.subr.bf16.mxu0 %v2448
        %3194 = vmatpush1.bf16.msra.mxu0 %v2447
        %3195 = vmatprep.subr.bf16.mxu0 %v2456
        %3196 = vmatpush1.bf16.msra.mxu0 %v2455
        %3197 = vmatprep.subr.bf16.mxu0 %v2464
        %3198 = vmatpush1.bf16.msra.mxu0 %v2463
        %3199 = vmatprep.subr.bf16.mxu0 %v2472
        %3200 = vmatpush1.bf16.msra.mxu0 %v2471
        %3201 = vmatprep.subr.bf16.mxu0 %v2480
        %3202 = vmatpush1.bf16.msra.mxu0 %v2479
        %3203 = vmatprep.subr.bf16.mxu0 %v2488
        %3204 = vmatpush1.bf16.msra.mxu0 %v2487
        %3205 = vmatprep.subr.bf16.mxu0 %v2496
        %3206 = vmatpush1.bf16.msra.mxu0 %v2495
        %3207 = vmatprep.subr.bf16.mxu0 %v2504
        %3208 = vmatpush1.bf16.msra.mxu0 %v2503
        %3209 = vmatprep.subr.bf16.mxu0 %v2512
        %3210 = vmatpush1.bf16.msra.mxu0 %v2511
        %3211 = vmatprep.subr.bf16.mxu0 %v2520
        %3212 = vmatpush1.bf16.msra.mxu0 %v2519
        %3213 = vmatprep.subr.bf16.mxu0 %v2528
        %3214 = vmatpush1.bf16.msra.mxu0 %v2527
        %3215 = vmatprep.mubr.bf16.mxu0 %v537
        %3216 = vmatmul.mubr.bf16.gmra.mrb[0].mxu0 %v536
        %v3217 = vpop.f32.mrb[0].mxu0
        %v3218 = vadd.f32 %v3177, %v3217
        %v3219 = vpop.f32.mrb[0].mxu0
        %v3220 = vadd.f32 %v3179, %v3219
        %v3221 = vpop.f32.mrb[0].mxu0
        %v3222 = vpop.f32.mrb[0].mxu0
        %3223 = vdwg.mxu0
        %3224 = vmatprep.subr.bf16.mxu0 %v2536
        %3225 = vmatpush1.bf16.msra.mxu0 %v2535
        %3226 = vmatprep.subr.bf16.mxu0 0
        %3227 = vmatpush1.bf16.msra.mxu0 0
        %3228 = vmatprep.subr.bf16.mxu0 0
        %3229 = vmatpush1.bf16.msra.mxu0 0
        %3230 = vmatprep.subr.bf16.mxu0 0
        %3231 = vmatpush1.bf16.msra.mxu0 0
        %3232 = vmatprep.subr.bf16.mxu0 0
        %3233 = vmatpush1.bf16.msra.mxu0 0
        %3234 = vmatprep.subr.bf16.mxu0 0
        %3235 = vmatpush1.bf16.msra.mxu0 0
        %3236 = vmatprep.subr.bf16.mxu0 0
        %3237 = vmatpush1.bf16.msra.mxu0 0
        %3238 = vmatprep.subr.bf16.mxu0 0
        %3239 = vmatpush1.bf16.msra.mxu0 0
        %3240 = vmatprep.subr.bf16.mxu0 0
        %3241 = vmatpush1.bf16.msra.mxu0 0
        %3242 = vmatprep.subr.bf16.mxu0 0
        %3243 = vmatpush1.bf16.msra.mxu0 0
        %3244 = vmatprep.subr.bf16.mxu0 0
        %3245 = vmatpush1.bf16.msra.mxu0 0
        %3246 = vmatprep.subr.bf16.mxu0 0
        %3247 = vmatpush1.bf16.msra.mxu0 0
        %3248 = vmatprep.subr.bf16.mxu0 0
        %3249 = vmatpush1.bf16.msra.mxu0 0
        %3250 = vmatprep.subr.bf16.mxu0 0
        %3251 = vmatpush1.bf16.msra.mxu0 0
        %3252 = vmatprep.subr.bf16.mxu0 0
        %3253 = vmatpush1.bf16.msra.mxu0 0
        %3254 = vmatprep.subr.bf16.mxu0 0
        %3255 = vmatpush1.bf16.msra.mxu0 0
        %3256 = vmatprep.mubr.bf16.mxu0 0
        %3257 = vmatmul.mubr.bf16.gmra.mrb[0].mxu0 %v2935
        %v3258 = vpop.f32.mrb[0].mxu0
        %v3259 = vadd.f32 %v3218, %v3258
        %v3260 = vpop.f32.mrb[0].mxu0
        %v3261 = vadd.f32 %v3220, %v3260
        %v3262 = vpop.f32.mrb[0].mxu0
        %v3263 = vpop.f32.mrb[0].mxu0
        %3264 = vdwg.mxu0
        %3265 = vmatprep.subr.bf16.mxu0 %v2154
        %3266 = vmatpush1.bf16.msra.mxu0 %v2153
        %3267 = vmatprep.subr.bf16.mxu0 %v2162
        %3268 = vmatpush1.bf16.msra.mxu0 %v2161
        %3269 = vmatprep.subr.bf16.mxu0 %v2170
        %3270 = vmatpush1.bf16.msra.mxu0 %v2169
        %3271 = vmatprep.subr.bf16.mxu0 %v2178
        %3272 = vmatpush1.bf16.msra.mxu0 %v2177
        %3273 = vmatprep.subr.bf16.mxu0 %v2186
        %3274 = vmatpush1.bf16.msra.mxu0 %v2185
        %3275 = vmatprep.subr.bf16.mxu0 %v2194
        %3276 = vmatpush1.bf16.msra.mxu0 %v2193
        %3277 = vmatprep.subr.bf16.mxu0 %v2202
        %3278 = vmatpush1.bf16.msra.mxu0 %v2201
        %3279 = vmatprep.subr.bf16.mxu0 %v2210
        %3280 = vmatpush1.bf16.msra.mxu0 %v2209
        %3281 = vmatprep.subr.bf16.mxu0 %v2218
        %3282 = vmatpush1.bf16.msra.mxu0 %v2217
        %3283 = vmatprep.subr.bf16.mxu0 %v2226
        %3284 = vmatpush1.bf16.msra.mxu0 %v2225
        %3285 = vmatprep.subr.bf16.mxu0 %v2234
        %3286 = vmatpush1.bf16.msra.mxu0 %v2233
        %3287 = vmatprep.subr.bf16.mxu0 %v2242
        %3288 = vmatpush1.bf16.msra.mxu0 %v2241
        %3289 = vmatprep.subr.bf16.mxu0 %v2250
        %3290 = vmatpush1.bf16.msra.mxu0 %v2249
        %3291 = vmatprep.subr.bf16.mxu0 %v2258
        %3292 = vmatpush1.bf16.msra.mxu0 %v2257
        %3293 = vmatprep.subr.bf16.mxu0 %v2266
        %3294 = vmatpush1.bf16.msra.mxu0 %v2265
        %3295 = vmatprep.subr.bf16.mxu0 %v2274
        %3296 = vmatpush1.bf16.msra.mxu0 %v2273
        %3297 = vmatprep.mubr.bf16.mxu0 %v533
        %3298 = vmatmul.mubr.bf16.gmra.mrb[0].mxu0 %v532
        %v3299 = vpop.f32.mrb[0].mxu0
        %v3300 = vadd.f32 %v952, %v3299
        %v3301 = vpop.f32.mrb[0].mxu0
        %v3302 = vadd.f32 %v956, %v3301
        %v3303 = vpop.f32.mrb[0].mxu0
        %v3304 = vpop.f32.mrb[0].mxu0
        %3305 = vdwg.mxu0
        %3306 = vmatprep.subr.bf16.mxu0 %v2282
        %3307 = vmatpush1.bf16.msra.mxu0 %v2281
        %3308 = vmatprep.subr.bf16.mxu0 %v2290
        %3309 = vmatpush1.bf16.msra.mxu0 %v2289
        %3310 = vmatprep.subr.bf16.mxu0 %v2298
        %3311 = vmatpush1.bf16.msra.mxu0 %v2297
        %3312 = vmatprep.subr.bf16.mxu0 %v2306
        %3313 = vmatpush1.bf16.msra.mxu0 %v2305
        %3314 = vmatprep.subr.bf16.mxu0 %v2314
        %3315 = vmatpush1.bf16.msra.mxu0 %v2313
        %3316 = vmatprep.subr.bf16.mxu0 %v2322
        %3317 = vmatpush1.bf16.msra.mxu0 %v2321
        %3318 = vmatprep.subr.bf16.mxu0 %v2330
        %3319 = vmatpush1.bf16.msra.mxu0 %v2329
        %3320 = vmatprep.subr.bf16.mxu0 %v2338
        %3321 = vmatpush1.bf16.msra.mxu0 %v2337
        %3322 = vmatprep.subr.bf16.mxu0 %v2346
        %3323 = vmatpush1.bf16.msra.mxu0 %v2345
        %3324 = vmatprep.subr.bf16.mxu0 %v2354
        %3325 = vmatpush1.bf16.msra.mxu0 %v2353
        %3326 = vmatprep.subr.bf16.mxu0 %v2362
        %3327 = vmatpush1.bf16.msra.mxu0 %v2361
        %3328 = vmatprep.subr.bf16.mxu0 %v2370
        %3329 = vmatpush1.bf16.msra.mxu0 %v2369
        %3330 = vmatprep.subr.bf16.mxu0 %v2378
        %3331 = vmatpush1.bf16.msra.mxu0 %v2377
        %3332 = vmatprep.subr.bf16.mxu0 %v2386
        %3333 = vmatpush1.bf16.msra.mxu0 %v2385
        %3334 = vmatprep.subr.bf16.mxu0 %v2394
        %3335 = vmatpush1.bf16.msra.mxu0 %v2393
        %3336 = vmatprep.subr.bf16.mxu0 %v2402
        %3337 = vmatpush1.bf16.msra.mxu0 %v2401
        %3338 = vmatprep.mubr.bf16.mxu0 %v535
        %3339 = vmatmul.mubr.bf16.gmra.mrb[0].mxu0 %v534
        %v3340 = vpop.f32.mrb[0].mxu0
        %v3341 = vadd.f32 %v3300, %v3340
        %v3342 = vpop.f32.mrb[0].mxu0
        %v3343 = vadd.f32 %v3302, %v3342
        %v3344 = vpop.f32.mrb[0].mxu0
        %v3345 = vpop.f32.mrb[0].mxu0
        %3346 = vdwg.mxu0
        %3347 = vmatprep.subr.bf16.mxu0 %v2410
        %3348 = vmatpush1.bf16.msra.mxu0 %v2409
        %3349 = vmatprep.subr.bf16.mxu0 %v2418
        %3350 = vmatpush1.bf16.msra.mxu0 %v2417
        %3351 = vmatprep.subr.bf16.mxu0 %v2426
        %3352 = vmatpush1.bf16.msra.mxu0 %v2425
        %3353 = vmatprep.subr.bf16.mxu0 %v2434
        %3354 = vmatpush1.bf16.msra.mxu0 %v2433
        %3355 = vmatprep.subr.bf16.mxu0 %v2442
        %3356 = vmatpush1.bf16.msra.mxu0 %v2441
        %3357 = vmatprep.subr.bf16.mxu0 %v2450
        %3358 = vmatpush1.bf16.msra.mxu0 %v2449
        %3359 = vmatprep.subr.bf16.mxu0 %v2458
        %3360 = vmatpush1.bf16.msra.mxu0 %v2457
        %3361 = vmatprep.subr.bf16.mxu0 %v2466
        %3362 = vmatpush1.bf16.msra.mxu0 %v2465
        %3363 = vmatprep.subr.bf16.mxu0 %v2474
        %3364 = vmatpush1.bf16.msra.mxu0 %v2473
        %3365 = vmatprep.subr.bf16.mxu0 %v2482
        %3366 = vmatpush1.bf16.msra.mxu0 %v2481
        %3367 = vmatprep.subr.bf16.mxu0 %v2490
        %3368 = vmatpush1.bf16.msra.mxu0 %v2489
        %3369 = vmatprep.subr.bf16.mxu0 %v2498
        %3370 = vmatpush1.bf16.msra.mxu0 %v2497
        %3371 = vmatprep.subr.bf16.mxu0 %v2506
        %3372 = vmatpush1.bf16.msra.mxu0 %v2505
        %3373 = vmatprep.subr.bf16.mxu0 %v2514
        %3374 = vmatpush1.bf16.msra.mxu0 %v2513
        %3375 = vmatprep.subr.bf16.mxu0 %v2522
        %3376 = vmatpush1.bf16.msra.mxu0 %v2521
        %3377 = vmatprep.subr.bf16.mxu0 %v2530
        %3378 = vmatpush1.bf16.msra.mxu0 %v2529
        %3379 = vmatprep.mubr.bf16.mxu0 %v537
        %3380 = vmatmul.mubr.bf16.gmra.mrb[0].mxu0 %v536
        %v3381 = vpop.f32.mrb[0].mxu0
        %v3382 = vadd.f32 %v3341, %v3381
        %v3383 = vpop.f32.mrb[0].mxu0
        %v3384 = vadd.f32 %v3343, %v3383
        %v3385 = vpop.f32.mrb[0].mxu0
        %v3386 = vpop.f32.mrb[0].mxu0
        %3387 = vdwg.mxu0
        %3388 = vmatprep.subr.bf16.mxu0 %v2538
        %3389 = vmatpush1.bf16.msra.mxu0 %v2537
        %3390 = vmatprep.subr.bf16.mxu0 0
        %3391 = vmatpush1.bf16.msra.mxu0 0
        %3392 = vmatprep.subr.bf16.mxu0 0
        %3393 = vmatpush1.bf16.msra.mxu0 0
        %3394 = vmatprep.subr.bf16.mxu0 0
        %3395 = vmatpush1.bf16.msra.mxu0 0
        %3396 = vmatprep.subr.bf16.mxu0 0
        %3397 = vmatpush1.bf16.msra.mxu0 0
        %3398 = vmatprep.subr.bf16.mxu0 0
        %3399 = vmatpush1.bf16.msra.mxu0 0
        %3400 = vmatprep.subr.bf16.mxu0 0
        %3401 = vmatpush1.bf16.msra.mxu0 0
        %3402 = vmatprep.subr.bf16.mxu0 0
        %3403 = vmatpush1.bf16.msra.mxu0 0
        %3404 = vmatprep.subr.bf16.mxu0 0
        %3405 = vmatpush1.bf16.msra.mxu0 0
        %3406 = vmatprep.subr.bf16.mxu0 0
        %3407 = vmatpush1.bf16.msra.mxu0 0
        %3408 = vmatprep.subr.bf16.mxu0 0
        %3409 = vmatpush1.bf16.msra.mxu0 0
        %3410 = vmatprep.subr.bf16.mxu0 0
        %3411 = vmatpush1.bf16.msra.mxu0 0
        %3412 = vmatprep.subr.bf16.mxu0 0
        %3413 = vmatpush1.bf16.msra.mxu0 0
        %3414 = vmatprep.subr.bf16.mxu0 0
        %3415 = vmatpush1.bf16.msra.mxu0 0
        %3416 = vmatprep.subr.bf16.mxu0 0
        %3417 = vmatpush1.bf16.msra.mxu0 0
        %3418 = vmatprep.subr.bf16.mxu0 0
        %3419 = vmatpush1.bf16.msra.mxu0 0
        %3420 = vmatprep.mubr.bf16.mxu0 0
        %3421 = vmatmul.mubr.bf16.gmra.mrb[0].mxu0 %v2935
        %v3422 = vpop.f32.mrb[0].mxu0
        %v3423 = vadd.f32 %v3382, %v3422
        %v3424 = vpop.f32.mrb[0].mxu0
        %v3425 = vadd.f32 %v3384, %v3424
        %v3426 = vpop.f32.mrb[0].mxu0
        %v3427 = vpop.f32.mrb[0].mxu0
        %3428 = vdwg.mxu0
        %3429 = vmatprep.subr.bf16.mxu0 %v2156
        %3430 = vmatpush1.bf16.msra.mxu0 %v2155
        %3431 = vmatprep.subr.bf16.mxu0 %v2164
        %3432 = vmatpush1.bf16.msra.mxu0 %v2163
        %3433 = vmatprep.subr.bf16.mxu0 %v2172
        %3434 = vmatpush1.bf16.msra.mxu0 %v2171
        %3435 = vmatprep.subr.bf16.mxu0 %v2180
        %3436 = vmatpush1.bf16.msra.mxu0 %v2179
        %3437 = vmatprep.subr.bf16.mxu0 %v2188
        %3438 = vmatpush1.bf16.msra.mxu0 %v2187
        %3439 = vmatprep.subr.bf16.mxu0 %v2196
        %3440 = vmatpush1.bf16.msra.mxu0 %v2195
        %3441 = vmatprep.subr.bf16.mxu0 %v2204
        %3442 = vmatpush1.bf16.msra.mxu0 %v2203
        %3443 = vmatprep.subr.bf16.mxu0 %v2212
        %3444 = vmatpush1.bf16.msra.mxu0 %v2211
        %3445 = vmatprep.subr.bf16.mxu0 %v2220
        %3446 = vmatpush1.bf16.msra.mxu0 %v2219
        %3447 = vmatprep.subr.bf16.mxu0 %v2228
        %3448 = vmatpush1.bf16.msra.mxu0 %v2227
        %3449 = vmatprep.subr.bf16.mxu0 %v2236
        %3450 = vmatpush1.bf16.msra.mxu0 %v2235
        %3451 = vmatprep.subr.bf16.mxu0 %v2244
        %3452 = vmatpush1.bf16.msra.mxu0 %v2243
        %3453 = vmatprep.subr.bf16.mxu0 %v2252
        %3454 = vmatpush1.bf16.msra.mxu0 %v2251
        %3455 = vmatprep.subr.bf16.mxu0 %v2260
        %3456 = vmatpush1.bf16.msra.mxu0 %v2259
        %3457 = vmatprep.subr.bf16.mxu0 %v2268
        %3458 = vmatpush1.bf16.msra.mxu0 %v2267
        %3459 = vmatprep.subr.bf16.mxu0 %v2276
        %3460 = vmatpush1.bf16.msra.mxu0 %v2275
        %3461 = vmatprep.mubr.bf16.mxu0 %v533
        %3462 = vmatmul.mubr.bf16.gmra.mrb[0].mxu0 %v532
        %v3463 = vpop.f32.mrb[0].mxu0
        %v3464 = vadd.f32 %v960, %v3463
        %v3465 = vpop.f32.mrb[0].mxu0
        %v3466 = vadd.f32 %v964, %v3465
        %v3467 = vpop.f32.mrb[0].mxu0
        %v3468 = vpop.f32.mrb[0].mxu0
        %3469 = vdwg.mxu0
        %3470 = vmatprep.subr.bf16.mxu0 %v2284
        %3471 = vmatpush1.bf16.msra.mxu0 %v2283
        %3472 = vmatprep.subr.bf16.mxu0 %v2292
        %3473 = vmatpush1.bf16.msra.mxu0 %v2291
        %3474 = vmatprep.subr.bf16.mxu0 %v2300
        %3475 = vmatpush1.bf16.msra.mxu0 %v2299
        %3476 = vmatprep.subr.bf16.mxu0 %v2308
        %3477 = vmatpush1.bf16.msra.mxu0 %v2307
        %3478 = vmatprep.subr.bf16.mxu0 %v2316
        %3479 = vmatpush1.bf16.msra.mxu0 %v2315
        %3480 = vmatprep.subr.bf16.mxu0 %v2324
        %3481 = vmatpush1.bf16.msra.mxu0 %v2323
        %3482 = vmatprep.subr.bf16.mxu0 %v2332
        %3483 = vmatpush1.bf16.msra.mxu0 %v2331
        %3484 = vmatprep.subr.bf16.mxu0 %v2340
        %3485 = vmatpush1.bf16.msra.mxu0 %v2339
        %3486 = vmatprep.subr.bf16.mxu0 %v2348
        %3487 = vmatpush1.bf16.msra.mxu0 %v2347
        %3488 = vmatprep.subr.bf16.mxu0 %v2356
        %3489 = vmatpush1.bf16.msra.mxu0 %v2355
        %3490 = vmatprep.subr.bf16.mxu0 %v2364
        %3491 = vmatpush1.bf16.msra.mxu0 %v2363
        %3492 = vmatprep.subr.bf16.mxu0 %v2372
        %3493 = vmatpush1.bf16.msra.mxu0 %v2371
        %3494 = vmatprep.subr.bf16.mxu0 %v2380
        %3495 = vmatpush1.bf16.msra.mxu0 %v2379
        %3496 = vmatprep.subr.bf16.mxu0 %v2388
        %3497 = vmatpush1.bf16.msra.mxu0 %v2387
        %3498 = vmatprep.subr.bf16.mxu0 %v2396
        %3499 = vmatpush1.bf16.msra.mxu0 %v2395
        %3500 = vmatprep.subr.bf16.mxu0 %v2404
        %3501 = vmatpush1.bf16.msra.mxu0 %v2403
        %3502 = vmatprep.mubr.bf16.mxu0 %v535
        %3503 = vmatmul.mubr.bf16.gmra.mrb[0].mxu0 %v534
        %v3504 = vpop.f32.mrb[0].mxu0
        %v3505 = vadd.f32 %v3464, %v3504
        %v3506 = vpop.f32.mrb[0].mxu0
        %v3507 = vadd.f32 %v3466, %v3506
        %v3508 = vpop.f32.mrb[0].mxu0
        %v3509 = vpop.f32.mrb[0].mxu0
        %3510 = vdwg.mxu0
        %3511 = vmatprep.subr.bf16.mxu0 %v2412
        %3512 = vmatpush1.bf16.msra.mxu0 %v2411
        %3513 = vmatprep.subr.bf16.mxu0 %v2420
        %3514 = vmatpush1.bf16.msra.mxu0 %v2419
        %3515 = vmatprep.subr.bf16.mxu0 %v2428
        %3516 = vmatpush1.bf16.msra.mxu0 %v2427
        %3517 = vmatprep.subr.bf16.mxu0 %v2436
        %3518 = vmatpush1.bf16.msra.mxu0 %v2435
        %3519 = vmatprep.subr.bf16.mxu0 %v2444
        %3520 = vmatpush1.bf16.msra.mxu0 %v2443
        %3521 = vmatprep.subr.bf16.mxu0 %v2452
        %3522 = vmatpush1.bf16.msra.mxu0 %v2451
        %3523 = vmatprep.subr.bf16.mxu0 %v2460
        %3524 = vmatpush1.bf16.msra.mxu0 %v2459
        %3525 = vmatprep.subr.bf16.mxu0 %v2468
        %3526 = vmatpush1.bf16.msra.mxu0 %v2467
        %3527 = vmatprep.subr.bf16.mxu0 %v2476
        %3528 = vmatpush1.bf16.msra.mxu0 %v2475
        %3529 = vmatprep.subr.bf16.mxu0 %v2484
        %3530 = vmatpush1.bf16.msra.mxu0 %v2483
        %3531 = vmatprep.subr.bf16.mxu0 %v2492
        %3532 = vmatpush1.bf16.msra.mxu0 %v2491
        %3533 = vmatprep.subr.bf16.mxu0 %v2500
        %3534 = vmatpush1.bf16.msra.mxu0 %v2499
        %3535 = vmatprep.subr.bf16.mxu0 %v2508
        %3536 = vmatpush1.bf16.msra.mxu0 %v2507
        %3537 = vmatprep.subr.bf16.mxu0 %v2516
        %3538 = vmatpush1.bf16.msra.mxu0 %v2515
        %3539 = vmatprep.subr.bf16.mxu0 %v2524
        %3540 = vmatpush1.bf16.msra.mxu0 %v2523
        %3541 = vmatprep.subr.bf16.mxu0 %v2532
        %3542 = vmatpush1.bf16.msra.mxu0 %v2531
        %3543 = vmatprep.mubr.bf16.mxu0 %v537
        %3544 = vmatmul.mubr.bf16.gmra.mrb[0].mxu0 %v536
        %v3545 = vpop.f32.mrb[0].mxu0
        %v3546 = vadd.f32 %v3505, %v3545
        %v3547 = vpop.f32.mrb[0].mxu0
        %v3548 = vadd.f32 %v3507, %v3547
        %v3549 = vpop.f32.mrb[0].mxu0
        %v3550 = vpop.f32.mrb[0].mxu0
        %3551 = vdwg.mxu0
        %3552 = vmatprep.subr.bf16.mxu0 %v2540
        %3553 = vmatpush1.bf16.msra.mxu0 %v2539
        %3554 = vmatprep.subr.bf16.mxu0 0
        %3555 = vmatpush1.bf16.msra.mxu0 0
        %3556 = vmatprep.subr.bf16.mxu0 0
        %3557 = vmatpush1.bf16.msra.mxu0 0
        %3558 = vmatprep.subr.bf16.mxu0 0
        %3559 = vmatpush1.bf16.msra.mxu0 0
        %3560 = vmatprep.subr.bf16.mxu0 0
        %3561 = vmatpush1.bf16.msra.mxu0 0
        %3562 = vmatprep.subr.bf16.mxu0 0
        %3563 = vmatpush1.bf16.msra.mxu0 0
        %3564 = vmatprep.subr.bf16.mxu0 0
        %3565 = vmatpush1.bf16.msra.mxu0 0
        %3566 = vmatprep.subr.bf16.mxu0 0
        %3567 = vmatpush1.bf16.msra.mxu0 0
        %3568 = vmatprep.subr.bf16.mxu0 0
        %3569 = vmatpush1.bf16.msra.mxu0 0
        %3570 = vmatprep.subr.bf16.mxu0 0
        %3571 = vmatpush1.bf16.msra.mxu0 0
        %3572 = vmatprep.subr.bf16.mxu0 0
        %3573 = vmatpush1.bf16.msra.mxu0 0
        %3574 = vmatprep.subr.bf16.mxu0 0
        %3575 = vmatpush1.bf16.msra.mxu0 0
        %3576 = vmatprep.subr.bf16.mxu0 0
        %3577 = vmatpush1.bf16.msra.mxu0 0
        %3578 = vmatprep.subr.bf16.mxu0 0
        %3579 = vmatpush1.bf16.msra.mxu0 0
        %3580 = vmatprep.subr.bf16.mxu0 0
        %3581 = vmatpush1.bf16.msra.mxu0 0
        %3582 = vmatprep.subr.bf16.mxu0 0
        %3583 = vmatpush1.bf16.msra.mxu0 0
        %3584 = vmatprep.mubr.bf16.mxu0 0
        %3585 = vmatmul.mubr.bf16.gmra.mrb[0].mxu0 %v2935
        %v3586 = vpop.f32.mrb[0].mxu0
        %v3587 = vadd.f32 %v3546, %v3586
        %v3588 = vpop.f32.mrb[0].mxu0
        %v3589 = vadd.f32 %v3548, %v3588
        %v3590 = vpop.f32.mrb[0].mxu0
        %v3591 = vpop.f32.mrb[0].mxu0
        %3592 = vdwg.mxu0
        %v3593 = vmax.f32 %v3095, 0.0
        %v3594 = vmax.f32 %v3097, 0.0
        %v3595 = vmax.f32 %v3259, 0.0
        %v3596 = vmax.f32 %v3261, 0.0
        %v3597 = vmax.f32 %v3423, 0.0
        %v3598 = vmax.f32 %v3425, 0.0
        %v3599 = vmax.f32 %v3587, 0.0
        %v3600 = vmax.f32 %v3589, 0.0
        %v3601 = vpack.c.bf16 %v3593, %v3593
        %v3602 = vpack.c.bf16 %v3594, %v3594
        %v3603 = vpack.c.bf16 %v3595, %v3595
        %v3604 = vpack.c.bf16 %v3596, %v3596
        %v3605 = vpack.c.bf16 %v3597, %v3597
        %v3606 = vpack.c.bf16 %v3598, %v3598
        %v3607 = vpack.c.bf16 %v3599, %v3599
        %v3608 = vpack.c.bf16 %v3600, %v3600
        %v3609 = vld [vmem:[#allocation4] sm:$0xff]
        %v3610 = vld [vmem:[#allocation4 + $0x8] sm:$0xff]
        %v3611 = vld [vmem:[#allocation4 + $0x10] sm:$0xff]
        %v3612 = vld [vmem:[#allocation4 + $0x18] sm:$0xff]
        %v3613 = vld [vmem:[#allocation4 + $0x20] sm:$0xff]
        %v3614 = vld [vmem:[#allocation4 + $0x28] sm:$0xff]
        %v3615 = vld [vmem:[#allocation4 + $0x30] sm:$0xff]
        %v3616 = vld [vmem:[#allocation4 + $0x38] sm:$0xff]
        %v3617 = vld [vmem:[#allocation4 + $0x40] sm:$0xff]
        %v3618 = vld [vmem:[#allocation4 + $0x48] sm:$0xff]
        %v3619 = vld [vmem:[#allocation4 + $0x50] sm:$0xff]
        %v3620 = vld [vmem:[#allocation4 + $0x58] sm:$0xff]
        %v3621 = vld [vmem:[#allocation4 + $0x60] sm:$0xff]
        %v3622 = vld [vmem:[#allocation4 + $0x68] sm:$0xff]
        %v3623 = vld [vmem:[#allocation4 + $0x70] sm:$0xff]
        %v3624 = vld [vmem:[#allocation4 + $0x78] sm:$0xff]
        %v3625 = vld [vmem:[#allocation4 + $0x80] sm:$0xff]
        %v3626 = vld [vmem:[#allocation4 + $0x88] sm:$0xff]
        %v3627 = vld [vmem:[#allocation4 + $0x90] sm:$0xff]
        %v3628 = vld [vmem:[#allocation4 + $0x98] sm:$0xff]
        %v3629 = vld [vmem:[#allocation4 + $0xa0] sm:$0xff]
        %v3630 = vld [vmem:[#allocation4 + $0xa8] sm:$0xff]
        %v3631 = vld [vmem:[#allocation4 + $0xb0] sm:$0xff]
        %v3632 = vld [vmem:[#allocation4 + $0xb8] sm:$0xff]
        %v3633 = vld [vmem:[#allocation4 + $0xc0] sm:$0xff]
        %v3634 = vld [vmem:[#allocation4 + $0xc8] sm:$0xff]
        %v3635 = vld [vmem:[#allocation4 + $0xd0] sm:$0xff]
        %v3636 = vld [vmem:[#allocation4 + $0xd8] sm:$0xff]
        %v3637 = vld [vmem:[#allocation4 + $0xe0] sm:$0xff]
        %v3638 = vld [vmem:[#allocation4 + $0xe8] sm:$0xff]
        %v3639 = vld [vmem:[#allocation4 + $0xf0] sm:$0xff]
        %v3640 = vld [vmem:[#allocation4 + $0xf8] sm:$0xff]
        %v3641 = vld [vmem:[#allocation4 + $0x100] sm:$0xff]
        %v3642 = vld [vmem:[#allocation4 + $0x108] sm:$0xff]
        %v3643 = vld [vmem:[#allocation4 + $0x110] sm:$0xff]
        %v3644 = vld [vmem:[#allocation4 + $0x118] sm:$0xff]
        %v3645 = vld [vmem:[#allocation4 + $0x120] sm:$0xff]
        %v3646 = vld [vmem:[#allocation4 + $0x128] sm:$0xff]
        %v3647 = vld [vmem:[#allocation4 + $0x130] sm:$0xff]
        %v3648 = vld [vmem:[#allocation4 + $0x138] sm:$0xff]
        %v3649 = vld [vmem:[#allocation4 + $0x140] sm:$0xff]
        %v3650 = vld [vmem:[#allocation4 + $0x148] sm:$0xff]
        %v3651 = vld [vmem:[#allocation4 + $0x150] sm:$0xff]
        %v3652 = vld [vmem:[#allocation4 + $0x158] sm:$0xff]
        %v3653 = vld [vmem:[#allocation4 + $0x160] sm:$0xff]
        %v3654 = vld [vmem:[#allocation4 + $0x168] sm:$0xff]
        %v3655 = vld [vmem:[#allocation4 + $0x170] sm:$0xff]
        %v3656 = vld [vmem:[#allocation4 + $0x178] sm:$0xff]
        %v3657 = vld [vmem:[#allocation4 + $0x180] sm:$0xff]
        %v3658 = vld [vmem:[#allocation4 + $0x188] sm:$0xff]
        %v3659 = vld [vmem:[#allocation4 + $0x190] sm:$0xff]
        %v3660 = vld [vmem:[#allocation4 + $0x198] sm:$0xff]
        %v3661 = vld [vmem:[#allocation4 + $0x1a0] sm:$0xff]
        %v3662 = vld [vmem:[#allocation4 + $0x1a8] sm:$0xff]
        %v3663 = vld [vmem:[#allocation4 + $0x1b0] sm:$0xff]
        %v3664 = vld [vmem:[#allocation4 + $0x1b8] sm:$0xff]
        %v3665 = vld [vmem:[#allocation4 + $0x1c0] sm:$0xff]
        %v3666 = vld [vmem:[#allocation4 + $0x1c8] sm:$0xff]
        %v3667 = vld [vmem:[#allocation4 + $0x1d0] sm:$0xff]
        %v3668 = vld [vmem:[#allocation4 + $0x1d8] sm:$0xff]
        %v3669 = vld [vmem:[#allocation4 + $0x1e0] sm:$0xff]
        %v3670 = vld [vmem:[#allocation4 + $0x1e8] sm:$0xff]
        %v3671 = vld [vmem:[#allocation4 + $0x1f0] sm:$0xff]
        %v3672 = vld [vmem:[#allocation4 + $0x1f8] sm:$0xff]
        %v3673 = vld [vmem:[#allocation4 + $0x200] sm:$0xff]
        %v3674 = vld [vmem:[#allocation4 + $0x208] sm:$0xff]
        %v3675 = vld [vmem:[#allocation4 + $0x210] sm:$0xff]
        %v3676 = vld [vmem:[#allocation4 + $0x218] sm:$0xff]
        %v3677 = vld [vmem:[#allocation4 + $0x220] sm:$0xff]
        %v3678 = vld [vmem:[#allocation4 + $0x228] sm:$0xff]
        %v3679 = vld [vmem:[#allocation4 + $0x230] sm:$0xff]
        %v3680 = vld [vmem:[#allocation4 + $0x238] sm:$0xff]
        %v3681 = vld [vmem:[#allocation4 + $0x240] sm:$0xff]
        %v3682 = vld [vmem:[#allocation4 + $0x248] sm:$0xff]
        %v3683 = vld [vmem:[#allocation4 + $0x250] sm:$0xff]
        %v3684 = vld [vmem:[#allocation4 + $0x258] sm:$0xff]
        %v3685 = vld [vmem:[#allocation4 + $0x260] sm:$0xff]
        %v3686 = vld [vmem:[#allocation4 + $0x268] sm:$0xff]
        %v3687 = vld [vmem:[#allocation4 + $0x270] sm:$0xff]
        %v3688 = vld [vmem:[#allocation4 + $0x278] sm:$0xff]
        %v3689 = vld [vmem:[#allocation4 + $0x280] sm:$0xff]
        %v3690 = vld [vmem:[#allocation4 + $0x288] sm:$0xff]
        %v3691 = vld [vmem:[#allocation4 + $0x290] sm:$0xff]
        %v3692 = vld [vmem:[#allocation4 + $0x298] sm:$0xff]
        %v3693 = vld [vmem:[#allocation4 + $0x2a0] sm:$0xff]
        %v3694 = vld [vmem:[#allocation4 + $0x2a8] sm:$0xff]
        %v3695 = vld [vmem:[#allocation4 + $0x2b0] sm:$0xff]
        %v3696 = vld [vmem:[#allocation4 + $0x2b8] sm:$0xff]
        %v3697 = vld [vmem:[#allocation4 + $0x2c0] sm:$0xff]
        %v3698 = vld [vmem:[#allocation4 + $0x2c8] sm:$0xff]
        %v3699 = vld [vmem:[#allocation4 + $0x2d0] sm:$0xff]
        %v3700 = vld [vmem:[#allocation4 + $0x2d8] sm:$0xff]
        %v3701 = vld [vmem:[#allocation4 + $0x2e0] sm:$0xff]
        %v3702 = vld [vmem:[#allocation4 + $0x2e8] sm:$0xff]
        %v3703 = vld [vmem:[#allocation4 + $0x2f0] sm:$0xff]
        %v3704 = vld [vmem:[#allocation4 + $0x2f8] sm:$0xff]
        %v3705 = vld [vmem:[#allocation4 + $0x300] sm:$0xff]
        %v3706 = vld [vmem:[#allocation4 + $0x308] sm:$0xff]
        %v3707 = vld [vmem:[#allocation4 + $0x310] sm:$0xff]
        %v3708 = vld [vmem:[#allocation4 + $0x318] sm:$0xff]
        %v3709 = vld [vmem:[#allocation4 + $0x320] sm:$0xff]
        %v3710 = vld [vmem:[#allocation4 + $0x328] sm:$0xff]
        %v3711 = vld [vmem:[#allocation4 + $0x330] sm:$0xff]
        %v3712 = vld [vmem:[#allocation4 + $0x338] sm:$0xff]
        %v3713 = vld [vmem:[#allocation4 + $0x340] sm:$0xff]
        %v3714 = vld [vmem:[#allocation4 + $0x348] sm:$0xff]
        %v3715 = vld [vmem:[#allocation4 + $0x350] sm:$0xff]
        %v3716 = vld [vmem:[#allocation4 + $0x358] sm:$0xff]
        %v3717 = vld [vmem:[#allocation4 + $0x360] sm:$0xff]
        %v3718 = vld [vmem:[#allocation4 + $0x368] sm:$0xff]
        %v3719 = vld [vmem:[#allocation4 + $0x370] sm:$0xff]
        %v3720 = vld [vmem:[#allocation4 + $0x378] sm:$0xff]
        %v3721 = vld [vmem:[#allocation4 + $0x380] sm:$0xff]
        %v3722 = vld [vmem:[#allocation4 + $0x388] sm:$0xff]
        %v3723 = vld [vmem:[#allocation4 + $0x390] sm:$0xff]
        %v3724 = vld [vmem:[#allocation4 + $0x398] sm:$0xff]
        %v3725 = vld [vmem:[#allocation4 + $0x3a0] sm:$0xff]
        %v3726 = vld [vmem:[#allocation4 + $0x3a8] sm:$0xff]
        %v3727 = vld [vmem:[#allocation4 + $0x3b0] sm:$0xff]
        %v3728 = vld [vmem:[#allocation4 + $0x3b8] sm:$0xff]
        %v3729 = vld [vmem:[#allocation4 + $0x3c0] sm:$0xff]
        %v3730 = vld [vmem:[#allocation4 + $0x3c8] sm:$0xff]
        %v3731 = vld [vmem:[#allocation4 + $0x3d0] sm:$0xff]
        %v3732 = vld [vmem:[#allocation4 + $0x3d8] sm:$0xff]
        %v3733 = vld [vmem:[#allocation4 + $0x3e0] sm:$0xff]
        %v3734 = vld [vmem:[#allocation4 + $0x3e8] sm:$0xff]
        %v3735 = vld [vmem:[#allocation4 + $0x3f0] sm:$0xff]
        %v3736 = vld [vmem:[#allocation4 + $0x3f8] sm:$0xff]
        %v3737 = vld [vmem:[#allocation4 + $0x400] sm:$0xff]
        %v3738 = vld [vmem:[#allocation4 + $0x408] sm:$0xff]
        %v3739 = vld [vmem:[#allocation4 + $0x410] sm:$0xff]
        %v3740 = vld [vmem:[#allocation4 + $0x418] sm:$0xff]
        %v3741 = vld [vmem:[#allocation4 + $0x420] sm:$0xff]
        %v3742 = vld [vmem:[#allocation4 + $0x428] sm:$0xff]
        %v3743 = vld [vmem:[#allocation4 + $0x430] sm:$0xff]
        %v3744 = vld [vmem:[#allocation4 + $0x438] sm:$0xff]
        %v3745 = vld [vmem:[#allocation4 + $0x440] sm:$0xff]
        %v3746 = vld [vmem:[#allocation4 + $0x448] sm:$0xff]
        %v3747 = vld [vmem:[#allocation4 + $0x450] sm:$0xff]
        %v3748 = vld [vmem:[#allocation4 + $0x458] sm:$0xff]
        %v3749 = vld [vmem:[#allocation4 + $0x460] sm:$0xff]
        %v3750 = vld [vmem:[#allocation4 + $0x468] sm:$0xff]
        %v3751 = vld [vmem:[#allocation4 + $0x470] sm:$0xff]
        %v3752 = vld [vmem:[#allocation4 + $0x478] sm:$0xff]
        %v3753 = vld [vmem:[#allocation4 + $0x480] sm:$0xff]
        %v3754 = vld [vmem:[#allocation4 + $0x488] sm:$0xff]
        %v3755 = vld [vmem:[#allocation4 + $0x490] sm:$0xff]
        %v3756 = vld [vmem:[#allocation4 + $0x498] sm:$0xff]
        %v3757 = vld [vmem:[#allocation4 + $0x4a0] sm:$0xff]
        %v3758 = vld [vmem:[#allocation4 + $0x4a8] sm:$0xff]
        %v3759 = vld [vmem:[#allocation4 + $0x4b0] sm:$0xff]
        %v3760 = vld [vmem:[#allocation4 + $0x4b8] sm:$0xff]
        %v3761 = vld [vmem:[#allocation4 + $0x4c0] sm:$0xff]
        %v3762 = vld [vmem:[#allocation4 + $0x4c8] sm:$0xff]
        %v3763 = vld [vmem:[#allocation4 + $0x4d0] sm:$0xff]
        %v3764 = vld [vmem:[#allocation4 + $0x4d8] sm:$0xff]
        %v3765 = vld [vmem:[#allocation4 + $0x4e0] sm:$0xff]
        %v3766 = vld [vmem:[#allocation4 + $0x4e8] sm:$0xff]
        %v3767 = vld [vmem:[#allocation4 + $0x4f0] sm:$0xff]
        %v3768 = vld [vmem:[#allocation4 + $0x4f8] sm:$0xff]
        %v3769 = vld [vmem:[#allocation4 + $0x500] sm:$0xff]
        %v3770 = vld [vmem:[#allocation4 + $0x508] sm:$0xff]
        %v3771 = vld [vmem:[#allocation4 + $0x510] sm:$0xff]
        %v3772 = vld [vmem:[#allocation4 + $0x518] sm:$0xff]
        %v3773 = vld [vmem:[#allocation4 + $0x520] sm:$0xff]
        %v3774 = vld [vmem:[#allocation4 + $0x528] sm:$0xff]
        %v3775 = vld [vmem:[#allocation4 + $0x530] sm:$0xff]
        %v3776 = vld [vmem:[#allocation4 + $0x538] sm:$0xff]
        %v3777 = vld [vmem:[#allocation4 + $0x540] sm:$0xff]
        %v3778 = vld [vmem:[#allocation4 + $0x548] sm:$0xff]
        %v3779 = vld [vmem:[#allocation4 + $0x550] sm:$0xff]
        %v3780 = vld [vmem:[#allocation4 + $0x558] sm:$0xff]
        %v3781 = vld [vmem:[#allocation4 + $0x560] sm:$0xff]
        %v3782 = vld [vmem:[#allocation4 + $0x568] sm:$0xff]
        %v3783 = vld [vmem:[#allocation4 + $0x570] sm:$0xff]
        %v3784 = vld [vmem:[#allocation4 + $0x578] sm:$0xff]
        %v3785 = vld [vmem:[#allocation4 + $0x580] sm:$0xff]
        %v3786 = vld [vmem:[#allocation4 + $0x588] sm:$0xff]
        %v3787 = vld [vmem:[#allocation4 + $0x590] sm:$0xff]
        %v3788 = vld [vmem:[#allocation4 + $0x598] sm:$0xff]
        %v3789 = vld [vmem:[#allocation4 + $0x5a0] sm:$0xff]
        %v3790 = vld [vmem:[#allocation4 + $0x5a8] sm:$0xff]
        %v3791 = vld [vmem:[#allocation4 + $0x5b0] sm:$0xff]
        %v3792 = vld [vmem:[#allocation4 + $0x5b8] sm:$0xff]
        %v3793 = vld [vmem:[#allocation4 + $0x5c0] sm:$0xff]
        %v3794 = vld [vmem:[#allocation4 + $0x5c8] sm:$0xff]
        %v3795 = vld [vmem:[#allocation4 + $0x5d0] sm:$0xff]
        %v3796 = vld [vmem:[#allocation4 + $0x5d8] sm:$0xff]
        %v3797 = vld [vmem:[#allocation4 + $0x5e0] sm:$0xff]
        %v3798 = vld [vmem:[#allocation4 + $0x5e8] sm:$0xff]
        %v3799 = vld [vmem:[#allocation4 + $0x5f0] sm:$0xff]
        %v3800 = vld [vmem:[#allocation4 + $0x5f8] sm:$0xff]
        %v3801 = vld [vmem:[#allocation4 + $0x600] sm:$0xff]
        %v3802 = vld [vmem:[#allocation4 + $0x608] sm:$0xff]
        %v3803 = vld [vmem:[#allocation4 + $0x610] sm:$0xff]
        %v3804 = vld [vmem:[#allocation4 + $0x618] sm:$0xff]
        %v3805 = vld [vmem:[#allocation4 + $0x620] sm:$0xff]
        %v3806 = vld [vmem:[#allocation4 + $0x628] sm:$0xff]
        %v3807 = vld [vmem:[#allocation4 + $0x630] sm:$0xff]
        %v3808 = vld [vmem:[#allocation4 + $0x638] sm:$0xff]
        %v3809 = vld [vmem:[#allocation4 + $0x640] sm:$0xff]
        %v3810 = vld [vmem:[#allocation4 + $0x648] sm:$0xff]
        %v3811 = vld [vmem:[#allocation4 + $0x650] sm:$0xff]
        %v3812 = vld [vmem:[#allocation4 + $0x658] sm:$0xff]
        %v3813 = vld [vmem:[#allocation4 + $0x660] sm:$0xff]
        %v3814 = vld [vmem:[#allocation4 + $0x668] sm:$0xff]
        %v3815 = vld [vmem:[#allocation4 + $0x670] sm:$0xff]
        %v3816 = vld [vmem:[#allocation4 + $0x678] sm:$0xff]
        %v3817 = vld [vmem:[#allocation4 + $0x680] sm:$0xff]
        %v3818 = vld [vmem:[#allocation4 + $0x688] sm:$0xff]
        %v3819 = vld [vmem:[#allocation4 + $0x690] sm:$0xff]
        %v3820 = vld [vmem:[#allocation4 + $0x698] sm:$0xff]
        %v3821 = vld [vmem:[#allocation4 + $0x6a0] sm:$0xff]
        %v3822 = vld [vmem:[#allocation4 + $0x6a8] sm:$0xff]
        %v3823 = vld [vmem:[#allocation4 + $0x6b0] sm:$0xff]
        %v3824 = vld [vmem:[#allocation4 + $0x6b8] sm:$0xff]
        %v3825 = vld [vmem:[#allocation4 + $0x6c0] sm:$0xff]
        %v3826 = vld [vmem:[#allocation4 + $0x6c8] sm:$0xff]
        %v3827 = vld [vmem:[#allocation4 + $0x6d0] sm:$0xff]
        %v3828 = vld [vmem:[#allocation4 + $0x6d8] sm:$0xff]
        %v3829 = vld [vmem:[#allocation4 + $0x6e0] sm:$0xff]
        %v3830 = vld [vmem:[#allocation4 + $0x6e8] sm:$0xff]
        %v3831 = vld [vmem:[#allocation4 + $0x6f0] sm:$0xff]
        %v3832 = vld [vmem:[#allocation4 + $0x6f8] sm:$0xff]
        %v3833 = vld [vmem:[#allocation4 + $0x700] sm:$0xff]
        %v3834 = vld [vmem:[#allocation4 + $0x708] sm:$0xff]
        %v3835 = vld [vmem:[#allocation4 + $0x710] sm:$0xff]
        %v3836 = vld [vmem:[#allocation4 + $0x718] sm:$0xff]
        %v3837 = vld [vmem:[#allocation4 + $0x720] sm:$0xff]
        %v3838 = vld [vmem:[#allocation4 + $0x728] sm:$0xff]
        %v3839 = vld [vmem:[#allocation4 + $0x730] sm:$0xff]
        %v3840 = vld [vmem:[#allocation4 + $0x738] sm:$0xff]
        %v3841 = vld [vmem:[#allocation4 + $0x740] sm:$0xff]
        %v3842 = vld [vmem:[#allocation4 + $0x748] sm:$0xff]
        %v3843 = vld [vmem:[#allocation4 + $0x750] sm:$0xff]
        %v3844 = vld [vmem:[#allocation4 + $0x758] sm:$0xff]
        %v3845 = vld [vmem:[#allocation4 + $0x760] sm:$0xff]
        %v3846 = vld [vmem:[#allocation4 + $0x768] sm:$0xff]
        %v3847 = vld [vmem:[#allocation4 + $0x770] sm:$0xff]
        %v3848 = vld [vmem:[#allocation4 + $0x778] sm:$0xff]
        %v3849 = vld [vmem:[#allocation4 + $0x780] sm:$0xff]
        %v3850 = vld [vmem:[#allocation4 + $0x788] sm:$0xff]
        %v3851 = vld [vmem:[#allocation4 + $0x790] sm:$0xff]
        %v3852 = vld [vmem:[#allocation4 + $0x798] sm:$0xff]
        %v3853 = vld [vmem:[#allocation4 + $0x7a0] sm:$0xff]
        %v3854 = vld [vmem:[#allocation4 + $0x7a8] sm:$0xff]
        %v3855 = vld [vmem:[#allocation4 + $0x7b0] sm:$0xff]
        %v3856 = vld [vmem:[#allocation4 + $0x7b8] sm:$0xff]
        %v3857 = vld [vmem:[#allocation4 + $0x7c0] sm:$0xff]
        %v3858 = vld [vmem:[#allocation4 + $0x7c8] sm:$0xff]
        %v3859 = vld [vmem:[#allocation4 + $0x7d0] sm:$0xff]
        %v3860 = vld [vmem:[#allocation4 + $0x7d8] sm:$0xff]
        %v3861 = vld [vmem:[#allocation4 + $0x7e0] sm:$0xff]
        %v3862 = vld [vmem:[#allocation4 + $0x7e8] sm:$0xff]
        %v3863 = vld [vmem:[#allocation4 + $0x7f0] sm:$0xff]
        %v3864 = vld [vmem:[#allocation4 + $0x7f8] sm:$0xff]
        %v3865 = vld [vmem:[#allocation4 + $0x800] sm:$0xff]
        %v3866 = vld [vmem:[#allocation4 + $0x808] sm:$0xff]
        %v3867 = vld [vmem:[#allocation4 + $0x810] sm:$0xff]
        %v3868 = vld [vmem:[#allocation4 + $0x818] sm:$0xff]
        %v3869 = vld [vmem:[#allocation4 + $0x820] sm:$0xff]
        %v3870 = vld [vmem:[#allocation4 + $0x828] sm:$0xff]
        %v3871 = vld [vmem:[#allocation4 + $0x830] sm:$0xff]
        %v3872 = vld [vmem:[#allocation4 + $0x838] sm:$0xff]
        %v3873 = vld [vmem:[#allocation4 + $0x840] sm:$0xff]
        %v3874 = vld [vmem:[#allocation4 + $0x848] sm:$0xff]
        %v3875 = vld [vmem:[#allocation4 + $0x850] sm:$0xff]
        %v3876 = vld [vmem:[#allocation4 + $0x858] sm:$0xff]
        %v3877 = vld [vmem:[#allocation4 + $0x860] sm:$0xff]
        %v3878 = vld [vmem:[#allocation4 + $0x868] sm:$0xff]
        %v3879 = vld [vmem:[#allocation4 + $0x870] sm:$0xff]
        %v3880 = vld [vmem:[#allocation4 + $0x878] sm:$0xff]
        %v3881 = vld [vmem:[#allocation4 + $0x880] sm:$0xff]
        %v3882 = vld [vmem:[#allocation4 + $0x888] sm:$0xff]
        %v3883 = vld [vmem:[#allocation4 + $0x890] sm:$0xff]
        %v3884 = vld [vmem:[#allocation4 + $0x898] sm:$0xff]
        %v3885 = vld [vmem:[#allocation4 + $0x8a0] sm:$0xff]
        %v3886 = vld [vmem:[#allocation4 + $0x8a8] sm:$0xff]
        %v3887 = vld [vmem:[#allocation4 + $0x8b0] sm:$0xff]
        %v3888 = vld [vmem:[#allocation4 + $0x8b8] sm:$0xff]
        %v3889 = vld [vmem:[#allocation4 + $0x8c0] sm:$0xff]
        %v3890 = vld [vmem:[#allocation4 + $0x8c8] sm:$0xff]
        %v3891 = vld [vmem:[#allocation4 + $0x8d0] sm:$0xff]
        %v3892 = vld [vmem:[#allocation4 + $0x8d8] sm:$0xff]
        %v3893 = vld [vmem:[#allocation4 + $0x8e0] sm:$0xff]
        %v3894 = vld [vmem:[#allocation4 + $0x8e8] sm:$0xff]
        %v3895 = vld [vmem:[#allocation4 + $0x8f0] sm:$0xff]
        %v3896 = vld [vmem:[#allocation4 + $0x8f8] sm:$0xff]
        %v3897 = vld [vmem:[#allocation4 + $0x900] sm:$0xff]
        %v3898 = vld [vmem:[#allocation4 + $0x908] sm:$0xff]
        %v3899 = vld [vmem:[#allocation4 + $0x910] sm:$0xff]
        %v3900 = vld [vmem:[#allocation4 + $0x918] sm:$0xff]
        %v3901 = vld [vmem:[#allocation4 + $0x920] sm:$0xff]
        %v3902 = vld [vmem:[#allocation4 + $0x928] sm:$0xff]
        %v3903 = vld [vmem:[#allocation4 + $0x930] sm:$0xff]
        %v3904 = vld [vmem:[#allocation4 + $0x938] sm:$0xff]
        %v3905 = vld [vmem:[#allocation4 + $0x940] sm:$0xff]
        %v3906 = vld [vmem:[#allocation4 + $0x948] sm:$0xff]
        %v3907 = vld [vmem:[#allocation4 + $0x950] sm:$0xff]
        %v3908 = vld [vmem:[#allocation4 + $0x958] sm:$0xff]
        %v3909 = vld [vmem:[#allocation4 + $0x960] sm:$0xff]
        %v3910 = vld [vmem:[#allocation4 + $0x968] sm:$0xff]
        %v3911 = vld [vmem:[#allocation4 + $0x970] sm:$0xff]
        %v3912 = vld [vmem:[#allocation4 + $0x978] sm:$0xff]
        %v3913 = vld [vmem:[#allocation4 + $0x980] sm:$0xff]
        %v3914 = vld [vmem:[#allocation4 + $0x988] sm:$0xff]
        %v3915 = vld [vmem:[#allocation4 + $0x990] sm:$0xff]
        %v3916 = vld [vmem:[#allocation4 + $0x998] sm:$0xff]
        %v3917 = vld [vmem:[#allocation4 + $0x9a0] sm:$0xff]
        %v3918 = vld [vmem:[#allocation4 + $0x9a8] sm:$0xff]
        %v3919 = vld [vmem:[#allocation4 + $0x9b0] sm:$0xff]
        %v3920 = vld [vmem:[#allocation4 + $0x9b8] sm:$0xff]
        %v3921 = vld [vmem:[#allocation4 + $0x9c0] sm:$0xff]
        %v3922 = vld [vmem:[#allocation4 + $0x9c8] sm:$0xff]
        %v3923 = vld [vmem:[#allocation4 + $0x9d0] sm:$0xff]
        %v3924 = vld [vmem:[#allocation4 + $0x9d8] sm:$0xff]
        %v3925 = vld [vmem:[#allocation4 + $0x9e0] sm:$0xff]
        %v3926 = vld [vmem:[#allocation4 + $0x9e8] sm:$0xff]
        %v3927 = vld [vmem:[#allocation4 + $0x9f0] sm:$0xff]
        %v3928 = vld [vmem:[#allocation4 + $0x9f8] sm:$0xff]
        %v3929 = vld [vmem:[#allocation4 + $0xa00] sm:$0xff]
        %v3930 = vld [vmem:[#allocation4 + $0xa08] sm:$0xff]
        %v3931 = vld [vmem:[#allocation4 + $0xa10] sm:$0xff]
        %v3932 = vld [vmem:[#allocation4 + $0xa18] sm:$0xff]
        %v3933 = vld [vmem:[#allocation4 + $0xa20] sm:$0xff]
        %v3934 = vld [vmem:[#allocation4 + $0xa28] sm:$0xff]
        %v3935 = vld [vmem:[#allocation4 + $0xa30] sm:$0xff]
        %v3936 = vld [vmem:[#allocation4 + $0xa38] sm:$0xff]
        %v3937 = vld [vmem:[#allocation4 + $0xa40] sm:$0xff]
        %v3938 = vld [vmem:[#allocation4 + $0xa48] sm:$0xff]
        %v3939 = vld [vmem:[#allocation4 + $0xa50] sm:$0xff]
        %v3940 = vld [vmem:[#allocation4 + $0xa58] sm:$0xff]
        %v3941 = vld [vmem:[#allocation4 + $0xa60] sm:$0xff]
        %v3942 = vld [vmem:[#allocation4 + $0xa68] sm:$0xff]
        %v3943 = vld [vmem:[#allocation4 + $0xa70] sm:$0xff]
        %v3944 = vld [vmem:[#allocation4 + $0xa78] sm:$0xff]
        %v3945 = vld [vmem:[#allocation4 + $0xa80] sm:$0xff]
        %v3946 = vld [vmem:[#allocation4 + $0xa88] sm:$0xff]
        %v3947 = vld [vmem:[#allocation4 + $0xa90] sm:$0xff]
        %v3948 = vld [vmem:[#allocation4 + $0xa98] sm:$0xff]
        %v3949 = vld [vmem:[#allocation4 + $0xaa0] sm:$0xff]
        %v3950 = vld [vmem:[#allocation4 + $0xaa8] sm:$0xff]
        %v3951 = vld [vmem:[#allocation4 + $0xab0] sm:$0xff]
        %v3952 = vld [vmem:[#allocation4 + $0xab8] sm:$0xff]
        %v3953 = vld [vmem:[#allocation4 + $0xac0] sm:$0xff]
        %v3954 = vld [vmem:[#allocation4 + $0xac8] sm:$0xff]
        %v3955 = vld [vmem:[#allocation4 + $0xad0] sm:$0xff]
        %v3956 = vld [vmem:[#allocation4 + $0xad8] sm:$0xff]
        %v3957 = vld [vmem:[#allocation4 + $0xae0] sm:$0xff]
        %v3958 = vld [vmem:[#allocation4 + $0xae8] sm:$0xff]
        %v3959 = vld [vmem:[#allocation4 + $0xaf0] sm:$0xff]
        %v3960 = vld [vmem:[#allocation4 + $0xaf8] sm:$0xff]
        %v3961 = vld [vmem:[#allocation4 + $0xb00] sm:$0xff]
        %v3962 = vld [vmem:[#allocation4 + $0xb08] sm:$0xff]
        %v3963 = vld [vmem:[#allocation4 + $0xb10] sm:$0xff]
        %v3964 = vld [vmem:[#allocation4 + $0xb18] sm:$0xff]
        %v3965 = vld [vmem:[#allocation4 + $0xb20] sm:$0xff]
        %v3966 = vld [vmem:[#allocation4 + $0xb28] sm:$0xff]
        %v3967 = vld [vmem:[#allocation4 + $0xb30] sm:$0xff]
        %v3968 = vld [vmem:[#allocation4 + $0xb38] sm:$0xff]
        %v3969 = vld [vmem:[#allocation4 + $0xb40] sm:$0xff]
        %v3970 = vld [vmem:[#allocation4 + $0xb48] sm:$0xff]
        %v3971 = vld [vmem:[#allocation4 + $0xb50] sm:$0xff]
        %v3972 = vld [vmem:[#allocation4 + $0xb58] sm:$0xff]
        %v3973 = vld [vmem:[#allocation4 + $0xb60] sm:$0xff]
        %v3974 = vld [vmem:[#allocation4 + $0xb68] sm:$0xff]
        %v3975 = vld [vmem:[#allocation4 + $0xb70] sm:$0xff]
        %v3976 = vld [vmem:[#allocation4 + $0xb78] sm:$0xff]
        %v3977 = vld [vmem:[#allocation4 + $0xb80] sm:$0xff]
        %v3978 = vld [vmem:[#allocation4 + $0xb88] sm:$0xff]
        %v3979 = vld [vmem:[#allocation4 + $0xb90] sm:$0xff]
        %v3980 = vld [vmem:[#allocation4 + $0xb98] sm:$0xff]
        %v3981 = vld [vmem:[#allocation4 + $0xba0] sm:$0xff]
        %v3982 = vld [vmem:[#allocation4 + $0xba8] sm:$0xff]
        %v3983 = vld [vmem:[#allocation4 + $0xbb0] sm:$0xff]
        %v3984 = vld [vmem:[#allocation4 + $0xbb8] sm:$0xff]
        %v3985 = vld [vmem:[#allocation4 + $0xbc0] sm:$0xff]
        %v3986 = vld [vmem:[#allocation4 + $0xbc8] sm:$0xff]
        %v3987 = vld [vmem:[#allocation4 + $0xbd0] sm:$0xff]
        %v3988 = vld [vmem:[#allocation4 + $0xbd8] sm:$0xff]
        %v3989 = vld [vmem:[#allocation4 + $0xbe0] sm:$0xff]
        %v3990 = vld [vmem:[#allocation4 + $0xbe8] sm:$0xff]
        %v3991 = vld [vmem:[#allocation4 + $0xbf0] sm:$0xff]
        %v3992 = vld [vmem:[#allocation4 + $0xbf8] sm:$0xff]
        %v3993 = vld [vmem:[#allocation4 + $0xc00] sm:$0xff]
        %v3994 = vld [vmem:[#allocation4 + $0xc08] sm:$0xff]
        %v3995 = vld [vmem:[#allocation4 + $0xc10] sm:$0xff]
        %v3996 = vld [vmem:[#allocation4 + $0xc18] sm:$0xff]
        %v3997 = vld [vmem:[#allocation4 + $0xc20] sm:$0xff]
        %v3998 = vld [vmem:[#allocation4 + $0xc28] sm:$0xff]
        %v3999 = vld [vmem:[#allocation4 + $0xc30] sm:$0xff]
        %v4000 = vld [vmem:[#allocation4 + $0xc38] sm:$0xff]
        %v4001 = vld [vmem:[#allocation4 + $0xc40] sm:$0xff]
        %v4002 = vld [vmem:[#allocation4 + $0xc48] sm:$0xff]
        %v4003 = vld [vmem:[#allocation4 + $0xc50] sm:$0xff]
        %v4004 = vld [vmem:[#allocation4 + $0xc58] sm:$0xff]
        %v4005 = vld [vmem:[#allocation4 + $0xc60] sm:$0xff]
        %v4006 = vld [vmem:[#allocation4 + $0xc68] sm:$0xff]
        %v4007 = vld [vmem:[#allocation4 + $0xc70] sm:$0xff]
        %v4008 = vld [vmem:[#allocation4 + $0xc78] sm:$0xff]
        %v4009 = vld [vmem:[#allocation4 + $0xc80] sm:$0xff]
        %v4010 = vld [vmem:[#allocation4 + $0xc88] sm:$0xff]
        %v4011 = vld [vmem:[#allocation4 + $0xc90] sm:$0xff]
        %v4012 = vld [vmem:[#allocation4 + $0xc98] sm:$0xff]
        %v4013 = vld [vmem:[#allocation4 + $0xca0] sm:$0xff]
        %v4014 = vld [vmem:[#allocation4 + $0xca8] sm:$0xff]
        %v4015 = vld [vmem:[#allocation4 + $0xcb0] sm:$0xff]
        %v4016 = vld [vmem:[#allocation4 + $0xcb8] sm:$0xff]
        %v4017 = vld [vmem:[#allocation4 + $0xcc0] sm:$0xff]
        %v4018 = vld [vmem:[#allocation4 + $0xcc8] sm:$0xff]
        %v4019 = vld [vmem:[#allocation4 + $0xcd0] sm:$0xff]
        %v4020 = vld [vmem:[#allocation4 + $0xcd8] sm:$0xff]
        %v4021 = vld [vmem:[#allocation4 + $0xce0] sm:$0xff]
        %v4022 = vld [vmem:[#allocation4 + $0xce8] sm:$0xff]
        %v4023 = vld [vmem:[#allocation4 + $0xcf0] sm:$0xff]
        %v4024 = vld [vmem:[#allocation4 + $0xcf8] sm:$0xff]
        %v4025 = vld [vmem:[#allocation4 + $0xd00] sm:$0xff]
        %v4026 = vld [vmem:[#allocation4 + $0xd08] sm:$0xff]
        %v4027 = vld [vmem:[#allocation4 + $0xd10] sm:$0xff]
        %v4028 = vld [vmem:[#allocation4 + $0xd18] sm:$0xff]
        %v4029 = vld [vmem:[#allocation4 + $0xd20] sm:$0xff]
        %v4030 = vld [vmem:[#allocation4 + $0xd28] sm:$0xff]
        %v4031 = vld [vmem:[#allocation4 + $0xd30] sm:$0xff]
        %v4032 = vld [vmem:[#allocation4 + $0xd38] sm:$0xff]
        %v4033 = vld [vmem:[#allocation4 + $0xd40] sm:$0xff]
        %v4034 = vld [vmem:[#allocation4 + $0xd48] sm:$0xff]
        %v4035 = vld [vmem:[#allocation4 + $0xd50] sm:$0xff]
        %v4036 = vld [vmem:[#allocation4 + $0xd58] sm:$0xff]
        %v4037 = vld [vmem:[#allocation4 + $0xd60] sm:$0xff]
        %v4038 = vld [vmem:[#allocation4 + $0xd68] sm:$0xff]
        %v4039 = vld [vmem:[#allocation4 + $0xd70] sm:$0xff]
        %v4040 = vld [vmem:[#allocation4 + $0xd78] sm:$0xff]
        %v4041 = vld [vmem:[#allocation4 + $0xd80] sm:$0xff]
        %v4042 = vld [vmem:[#allocation4 + $0xd88] sm:$0xff]
        %v4043 = vld [vmem:[#allocation4 + $0xd90] sm:$0xff]
        %v4044 = vld [vmem:[#allocation4 + $0xd98] sm:$0xff]
        %v4045 = vld [vmem:[#allocation4 + $0xda0] sm:$0xff]
        %v4046 = vld [vmem:[#allocation4 + $0xda8] sm:$0xff]
        %v4047 = vld [vmem:[#allocation4 + $0xdb0] sm:$0xff]
        %v4048 = vld [vmem:[#allocation4 + $0xdb8] sm:$0xff]
        %v4049 = vld [vmem:[#allocation4 + $0xdc0] sm:$0xff]
        %v4050 = vld [vmem:[#allocation4 + $0xdc8] sm:$0xff]
        %v4051 = vld [vmem:[#allocation4 + $0xdd0] sm:$0xff]
        %v4052 = vld [vmem:[#allocation4 + $0xdd8] sm:$0xff]
        %v4053 = vld [vmem:[#allocation4 + $0xde0] sm:$0xff]
        %v4054 = vld [vmem:[#allocation4 + $0xde8] sm:$0xff]
        %v4055 = vld [vmem:[#allocation4 + $0xdf0] sm:$0xff]
        %v4056 = vld [vmem:[#allocation4 + $0xdf8] sm:$0xff]
        %v4057 = vld [vmem:[#allocation4 + $0xe00] sm:$0xff]
        %v4058 = vld [vmem:[#allocation4 + $0xe08] sm:$0xff]
        %v4059 = vld [vmem:[#allocation4 + $0xe10] sm:$0xff]
        %v4060 = vld [vmem:[#allocation4 + $0xe18] sm:$0xff]
        %v4061 = vld [vmem:[#allocation4 + $0xe20] sm:$0xff]
        %v4062 = vld [vmem:[#allocation4 + $0xe28] sm:$0xff]
        %v4063 = vld [vmem:[#allocation4 + $0xe30] sm:$0xff]
        %v4064 = vld [vmem:[#allocation4 + $0xe38] sm:$0xff]
        %v4065 = vld [vmem:[#allocation4 + $0xe40] sm:$0xff]
        %v4066 = vld [vmem:[#allocation4 + $0xe48] sm:$0xff]
        %v4067 = vld [vmem:[#allocation4 + $0xe50] sm:$0xff]
        %v4068 = vld [vmem:[#allocation4 + $0xe58] sm:$0xff]
        %v4069 = vld [vmem:[#allocation4 + $0xe60] sm:$0xff]
        %v4070 = vld [vmem:[#allocation4 + $0xe68] sm:$0xff]
        %v4071 = vld [vmem:[#allocation4 + $0xe70] sm:$0xff]
        %v4072 = vld [vmem:[#allocation4 + $0xe78] sm:$0xff]
        %v4073 = vld [vmem:[#allocation4 + $0xe80] sm:$0xff]
        %v4074 = vld [vmem:[#allocation4 + $0xe88] sm:$0xff]
        %v4075 = vld [vmem:[#allocation4 + $0xe90] sm:$0xff]
        %v4076 = vld [vmem:[#allocation4 + $0xe98] sm:$0xff]
        %v4077 = vld [vmem:[#allocation4 + $0xea0] sm:$0xff]
        %v4078 = vld [vmem:[#allocation4 + $0xea8] sm:$0xff]
        %v4079 = vld [vmem:[#allocation4 + $0xeb0] sm:$0xff]
        %v4080 = vld [vmem:[#allocation4 + $0xeb8] sm:$0xff]
        %v4081 = vld [vmem:[#allocation4 + $0xec0] sm:$0xff]
        %v4082 = vld [vmem:[#allocation4 + $0xec8] sm:$0xff]
        %v4083 = vld [vmem:[#allocation4 + $0xed0] sm:$0xff]
        %v4084 = vld [vmem:[#allocation4 + $0xed8] sm:$0xff]
        %v4085 = vld [vmem:[#allocation4 + $0xee0] sm:$0xff]
        %v4086 = vld [vmem:[#allocation4 + $0xee8] sm:$0xff]
        %v4087 = vld [vmem:[#allocation4 + $0xef0] sm:$0xff]
        %v4088 = vld [vmem:[#allocation4 + $0xef8] sm:$0xff]
        %v4089 = vld [vmem:[#allocation4 + $0xf00] sm:$0xff]
        %v4090 = vld [vmem:[#allocation4 + $0xf08] sm:$0xff]
        %v4091 = vld [vmem:[#allocation4 + $0xf10] sm:$0xff]
        %v4092 = vld [vmem:[#allocation4 + $0xf18] sm:$0xff]
        %v4093 = vld [vmem:[#allocation4 + $0xf20] sm:$0xff]
        %v4094 = vld [vmem:[#allocation4 + $0xf28] sm:$0xff]
        %v4095 = vld [vmem:[#allocation4 + $0xf30] sm:$0xff]
        %v4096 = vld [vmem:[#allocation4 + $0xf38] sm:$0xff]
        %v4097 = vld [vmem:[#allocation4 + $0xf40] sm:$0xff]
        %v4098 = vld [vmem:[#allocation4 + $0xf48] sm:$0xff]
        %v4099 = vld [vmem:[#allocation4 + $0xf50] sm:$0xff]
        %v4100 = vld [vmem:[#allocation4 + $0xf58] sm:$0xff]
        %v4101 = vld [vmem:[#allocation4 + $0xf60] sm:$0xff]
        %v4102 = vld [vmem:[#allocation4 + $0xf68] sm:$0xff]
        %v4103 = vld [vmem:[#allocation4 + $0xf70] sm:$0xff]
        %v4104 = vld [vmem:[#allocation4 + $0xf78] sm:$0xff]
        %v4105 = vld [vmem:[#allocation4 + $0xf80] sm:$0xff]
        %v4106 = vld [vmem:[#allocation4 + $0xf88] sm:$0xff]
        %v4107 = vld [vmem:[#allocation4 + $0xf90] sm:$0xff]
        %v4108 = vld [vmem:[#allocation4 + $0xf98] sm:$0xff]
        %v4109 = vld [vmem:[#allocation4 + $0xfa0] sm:$0xff]
        %v4110 = vld [vmem:[#allocation4 + $0xfa8] sm:$0xff]
        %v4111 = vld [vmem:[#allocation4 + $0xfb0] sm:$0xff]
        %v4112 = vld [vmem:[#allocation4 + $0xfb8] sm:$0xff]
        %v4113 = vld [vmem:[#allocation4 + $0xfc0] sm:$0xff]
        %v4114 = vld [vmem:[#allocation4 + $0xfc8] sm:$0xff]
        %v4115 = vld [vmem:[#allocation4 + $0xfd0] sm:$0xff]
        %v4116 = vld [vmem:[#allocation4 + $0xfd8] sm:$0xff]
        %v4117 = vld [vmem:[#allocation4 + $0xfe0] sm:$0xff]
        %v4118 = vld [vmem:[#allocation4 + $0xfe8] sm:$0xff]
        %v4119 = vld [vmem:[#allocation4 + $0xff0] sm:$0xff]
        %v4120 = vld [vmem:[#allocation4 + $0xff8] sm:$0xff]
        %v4121 = vld [vmem:[#allocation6] sm:$0xff]
        %v4123 = vlaneseq
        %v4124 = vshrl.u32 %v4123, 7
        %v4125 = vsub.s32 0, %v4124
        %v4126 = vrot.slane %v4121, %v4125
        %v4127 = vlaneseq
        %v4128 = vshrl.u32 %v4127, 7
        %v4129 = vsub.s32 1, %v4128
        %v4130 = vrot.slane %v4121, %v4129
        %v4131 = vlaneseq
        %v4132 = vshrl.u32 %v4131, 7
        %v4133 = vsub.s32 2, %v4132
        %v4134 = vrot.slane %v4121, %v4133
        %v4135 = vlaneseq
        %v4136 = vshrl.u32 %v4135, 7
        %v4137 = vsub.s32 3, %v4136
        %v4138 = vrot.slane %v4121, %v4137
        %v4139 = vlaneseq
        %v4140 = vshrl.u32 %v4139, 7
        %v4141 = vsub.s32 4, %v4140
        %v4142 = vrot.slane %v4121, %v4141
        %v4143 = vlaneseq
        %v4144 = vshrl.u32 %v4143, 7
        %v4145 = vsub.s32 5, %v4144
        %v4146 = vrot.slane %v4121, %v4145
        %v4147 = vlaneseq
        %v4148 = vshrl.u32 %v4147, 7
        %v4149 = vsub.s32 6, %v4148
        %v4150 = vrot.slane %v4121, %v4149
        %v4151 = vlaneseq
        %v4152 = vshrl.u32 %v4151, 7
        %v4153 = vsub.s32 7, %v4152
        %v4154 = vrot.slane %v4121, %v4153
        %v4675 = vunpack.c.l.b16 %v3609
        %v4676 = vunpack.c.h.b16 %v3609
        %v4677 = vunpack.c.l.b16 %v3610
        %v4678 = vunpack.c.h.b16 %v3610
        %v4679 = vunpack.c.l.b16 %v3611
        %v4680 = vunpack.c.h.b16 %v3611
        %v4681 = vunpack.c.l.b16 %v3612
        %v4682 = vunpack.c.h.b16 %v3612
        %v4683 = vunpack.c.l.b16 %v3613
        %v4684 = vunpack.c.h.b16 %v3613
        %v4685 = vunpack.c.l.b16 %v3614
        %v4686 = vunpack.c.h.b16 %v3614
        %v4687 = vunpack.c.l.b16 %v3615
        %v4688 = vunpack.c.h.b16 %v3615
        %v4689 = vunpack.c.l.b16 %v3616
        %v4690 = vunpack.c.h.b16 %v3616
        %v4691 = vunpack.c.l.b16 %v3617
        %v4692 = vunpack.c.h.b16 %v3617
        %v4693 = vunpack.c.l.b16 %v3618
        %v4694 = vunpack.c.h.b16 %v3618
        %v4695 = vunpack.c.l.b16 %v3619
        %v4696 = vunpack.c.h.b16 %v3619
        %v4697 = vunpack.c.l.b16 %v3620
        %v4698 = vunpack.c.h.b16 %v3620
        %v4699 = vunpack.c.l.b16 %v3621
        %v4700 = vunpack.c.h.b16 %v3621
        %v4701 = vunpack.c.l.b16 %v3622
        %v4702 = vunpack.c.h.b16 %v3622
        %v4703 = vunpack.c.l.b16 %v3623
        %v4704 = vunpack.c.h.b16 %v3623
        %v4705 = vunpack.c.l.b16 %v3624
        %v4706 = vunpack.c.h.b16 %v3624
        %v4707 = vunpack.c.l.b16 %v3625
        %v4708 = vunpack.c.h.b16 %v3625
        %v4709 = vunpack.c.l.b16 %v3626
        %v4710 = vunpack.c.h.b16 %v3626
        %v4711 = vunpack.c.l.b16 %v3627
        %v4712 = vunpack.c.h.b16 %v3627
        %v4713 = vunpack.c.l.b16 %v3628
        %v4714 = vunpack.c.h.b16 %v3628
        %v4715 = vunpack.c.l.b16 %v3629
        %v4716 = vunpack.c.h.b16 %v3629
        %v4717 = vunpack.c.l.b16 %v3630
        %v4718 = vunpack.c.h.b16 %v3630
        %v4719 = vunpack.c.l.b16 %v3631
        %v4720 = vunpack.c.h.b16 %v3631
        %v4721 = vunpack.c.l.b16 %v3632
        %v4722 = vunpack.c.h.b16 %v3632
        %v4723 = vunpack.c.l.b16 %v3633
        %v4724 = vunpack.c.h.b16 %v3633
        %v4725 = vunpack.c.l.b16 %v3634
        %v4726 = vunpack.c.h.b16 %v3634
        %v4727 = vunpack.c.l.b16 %v3635
        %v4728 = vunpack.c.h.b16 %v3635
        %v4729 = vunpack.c.l.b16 %v3636
        %v4730 = vunpack.c.h.b16 %v3636
        %v4731 = vunpack.c.l.b16 %v3637
        %v4732 = vunpack.c.h.b16 %v3637
        %v4733 = vunpack.c.l.b16 %v3638
        %v4734 = vunpack.c.h.b16 %v3638
        %v4735 = vunpack.c.l.b16 %v3639
        %v4736 = vunpack.c.h.b16 %v3639
        %v4737 = vunpack.c.l.b16 %v3640
        %v4738 = vunpack.c.h.b16 %v3640
        %v4739 = vunpack.c.l.b16 %v3641
        %v4740 = vunpack.c.h.b16 %v3641
        %v4741 = vunpack.c.l.b16 %v3642
        %v4742 = vunpack.c.h.b16 %v3642
        %v4743 = vunpack.c.l.b16 %v3643
        %v4744 = vunpack.c.h.b16 %v3643
        %v4745 = vunpack.c.l.b16 %v3644
        %v4746 = vunpack.c.h.b16 %v3644
        %v4747 = vunpack.c.l.b16 %v3645
        %v4748 = vunpack.c.h.b16 %v3645
        %v4749 = vunpack.c.l.b16 %v3646
        %v4750 = vunpack.c.h.b16 %v3646
        %v4751 = vunpack.c.l.b16 %v3647
        %v4752 = vunpack.c.h.b16 %v3647
        %v4753 = vunpack.c.l.b16 %v3648
        %v4754 = vunpack.c.h.b16 %v3648
        %v4755 = vunpack.c.l.b16 %v3649
        %v4756 = vunpack.c.h.b16 %v3649
        %v4757 = vunpack.c.l.b16 %v3650
        %v4758 = vunpack.c.h.b16 %v3650
        %v4759 = vunpack.c.l.b16 %v3651
        %v4760 = vunpack.c.h.b16 %v3651
        %v4761 = vunpack.c.l.b16 %v3652
        %v4762 = vunpack.c.h.b16 %v3652
        %v4763 = vunpack.c.l.b16 %v3653
        %v4764 = vunpack.c.h.b16 %v3653
        %v4765 = vunpack.c.l.b16 %v3654
        %v4766 = vunpack.c.h.b16 %v3654
        %v4767 = vunpack.c.l.b16 %v3655
        %v4768 = vunpack.c.h.b16 %v3655
        %v4769 = vunpack.c.l.b16 %v3656
        %v4770 = vunpack.c.h.b16 %v3656
        %v4771 = vunpack.c.l.b16 %v3657
        %v4772 = vunpack.c.h.b16 %v3657
        %v4773 = vunpack.c.l.b16 %v3658
        %v4774 = vunpack.c.h.b16 %v3658
        %v4775 = vunpack.c.l.b16 %v3659
        %v4776 = vunpack.c.h.b16 %v3659
        %v4777 = vunpack.c.l.b16 %v3660
        %v4778 = vunpack.c.h.b16 %v3660
        %v4779 = vunpack.c.l.b16 %v3661
        %v4780 = vunpack.c.h.b16 %v3661
        %v4781 = vunpack.c.l.b16 %v3662
        %v4782 = vunpack.c.h.b16 %v3662
        %v4783 = vunpack.c.l.b16 %v3663
        %v4784 = vunpack.c.h.b16 %v3663
        %v4785 = vunpack.c.l.b16 %v3664
        %v4786 = vunpack.c.h.b16 %v3664
        %v4787 = vunpack.c.l.b16 %v3665
        %v4788 = vunpack.c.h.b16 %v3665
        %v4789 = vunpack.c.l.b16 %v3666
        %v4790 = vunpack.c.h.b16 %v3666
        %v4791 = vunpack.c.l.b16 %v3667
        %v4792 = vunpack.c.h.b16 %v3667
        %v4793 = vunpack.c.l.b16 %v3668
        %v4794 = vunpack.c.h.b16 %v3668
        %v4795 = vunpack.c.l.b16 %v3669
        %v4796 = vunpack.c.h.b16 %v3669
        %v4797 = vunpack.c.l.b16 %v3670
        %v4798 = vunpack.c.h.b16 %v3670
        %v4799 = vunpack.c.l.b16 %v3671
        %v4800 = vunpack.c.h.b16 %v3671
        %v4801 = vunpack.c.l.b16 %v3672
        %v4802 = vunpack.c.h.b16 %v3672
        %v4803 = vunpack.c.l.b16 %v3673
        %v4804 = vunpack.c.h.b16 %v3673
        %v4805 = vunpack.c.l.b16 %v3674
        %v4806 = vunpack.c.h.b16 %v3674
        %v4807 = vunpack.c.l.b16 %v3675
        %v4808 = vunpack.c.h.b16 %v3675
        %v4809 = vunpack.c.l.b16 %v3676
        %v4810 = vunpack.c.h.b16 %v3676
        %v4811 = vunpack.c.l.b16 %v3677
        %v4812 = vunpack.c.h.b16 %v3677
        %v4813 = vunpack.c.l.b16 %v3678
        %v4814 = vunpack.c.h.b16 %v3678
        %v4815 = vunpack.c.l.b16 %v3679
        %v4816 = vunpack.c.h.b16 %v3679
        %v4817 = vunpack.c.l.b16 %v3680
        %v4818 = vunpack.c.h.b16 %v3680
        %v4819 = vunpack.c.l.b16 %v3681
        %v4820 = vunpack.c.h.b16 %v3681
        %v4821 = vunpack.c.l.b16 %v3682
        %v4822 = vunpack.c.h.b16 %v3682
        %v4823 = vunpack.c.l.b16 %v3683
        %v4824 = vunpack.c.h.b16 %v3683
        %v4825 = vunpack.c.l.b16 %v3684
        %v4826 = vunpack.c.h.b16 %v3684
        %v4827 = vunpack.c.l.b16 %v3685
        %v4828 = vunpack.c.h.b16 %v3685
        %v4829 = vunpack.c.l.b16 %v3686
        %v4830 = vunpack.c.h.b16 %v3686
        %v4831 = vunpack.c.l.b16 %v3687
        %v4832 = vunpack.c.h.b16 %v3687
        %v4833 = vunpack.c.l.b16 %v3688
        %v4834 = vunpack.c.h.b16 %v3688
        %v4835 = vunpack.c.l.b16 %v3689
        %v4836 = vunpack.c.h.b16 %v3689
        %v4837 = vunpack.c.l.b16 %v3690
        %v4838 = vunpack.c.h.b16 %v3690
        %v4839 = vunpack.c.l.b16 %v3691
        %v4840 = vunpack.c.h.b16 %v3691
        %v4841 = vunpack.c.l.b16 %v3692
        %v4842 = vunpack.c.h.b16 %v3692
        %v4843 = vunpack.c.l.b16 %v3693
        %v4844 = vunpack.c.h.b16 %v3693
        %v4845 = vunpack.c.l.b16 %v3694
        %v4846 = vunpack.c.h.b16 %v3694
        %v4847 = vunpack.c.l.b16 %v3695
        %v4848 = vunpack.c.h.b16 %v3695
        %v4849 = vunpack.c.l.b16 %v3696
        %v4850 = vunpack.c.h.b16 %v3696
        %v4851 = vunpack.c.l.b16 %v3697
        %v4852 = vunpack.c.h.b16 %v3697
        %v4853 = vunpack.c.l.b16 %v3698
        %v4854 = vunpack.c.h.b16 %v3698
        %v4855 = vunpack.c.l.b16 %v3699
        %v4856 = vunpack.c.h.b16 %v3699
        %v4857 = vunpack.c.l.b16 %v3700
        %v4858 = vunpack.c.h.b16 %v3700
        %v4859 = vunpack.c.l.b16 %v3701
        %v4860 = vunpack.c.h.b16 %v3701
        %v4861 = vunpack.c.l.b16 %v3702
        %v4862 = vunpack.c.h.b16 %v3702
        %v4863 = vunpack.c.l.b16 %v3703
        %v4864 = vunpack.c.h.b16 %v3703
        %v4865 = vunpack.c.l.b16 %v3704
        %v4866 = vunpack.c.h.b16 %v3704
        %v4867 = vunpack.c.l.b16 %v3705
        %v4868 = vunpack.c.h.b16 %v3705
        %v4869 = vunpack.c.l.b16 %v3706
        %v4870 = vunpack.c.h.b16 %v3706
        %v4871 = vunpack.c.l.b16 %v3707
        %v4872 = vunpack.c.h.b16 %v3707
        %v4873 = vunpack.c.l.b16 %v3708
        %v4874 = vunpack.c.h.b16 %v3708
        %v4875 = vunpack.c.l.b16 %v3709
        %v4876 = vunpack.c.h.b16 %v3709
        %v4877 = vunpack.c.l.b16 %v3710
        %v4878 = vunpack.c.h.b16 %v3710
        %v4879 = vunpack.c.l.b16 %v3711
        %v4880 = vunpack.c.h.b16 %v3711
        %v4881 = vunpack.c.l.b16 %v3712
        %v4882 = vunpack.c.h.b16 %v3712
        %v4883 = vunpack.c.l.b16 %v3713
        %v4884 = vunpack.c.h.b16 %v3713
        %v4885 = vunpack.c.l.b16 %v3714
        %v4886 = vunpack.c.h.b16 %v3714
        %v4887 = vunpack.c.l.b16 %v3715
        %v4888 = vunpack.c.h.b16 %v3715
        %v4889 = vunpack.c.l.b16 %v3716
        %v4890 = vunpack.c.h.b16 %v3716
        %v4891 = vunpack.c.l.b16 %v3717
        %v4892 = vunpack.c.h.b16 %v3717
        %v4893 = vunpack.c.l.b16 %v3718
        %v4894 = vunpack.c.h.b16 %v3718
        %v4895 = vunpack.c.l.b16 %v3719
        %v4896 = vunpack.c.h.b16 %v3719
        %v4897 = vunpack.c.l.b16 %v3720
        %v4898 = vunpack.c.h.b16 %v3720
        %v4899 = vunpack.c.l.b16 %v3721
        %v4900 = vunpack.c.h.b16 %v3721
        %v4901 = vunpack.c.l.b16 %v3722
        %v4902 = vunpack.c.h.b16 %v3722
        %v4903 = vunpack.c.l.b16 %v3723
        %v4904 = vunpack.c.h.b16 %v3723
        %v4905 = vunpack.c.l.b16 %v3724
        %v4906 = vunpack.c.h.b16 %v3724
        %v4907 = vunpack.c.l.b16 %v3725
        %v4908 = vunpack.c.h.b16 %v3725
        %v4909 = vunpack.c.l.b16 %v3726
        %v4910 = vunpack.c.h.b16 %v3726
        %v4911 = vunpack.c.l.b16 %v3727
        %v4912 = vunpack.c.h.b16 %v3727
        %v4913 = vunpack.c.l.b16 %v3728
        %v4914 = vunpack.c.h.b16 %v3728
        %v4915 = vunpack.c.l.b16 %v3729
        %v4916 = vunpack.c.h.b16 %v3729
        %v4917 = vunpack.c.l.b16 %v3730
        %v4918 = vunpack.c.h.b16 %v3730
        %v4919 = vunpack.c.l.b16 %v3731
        %v4920 = vunpack.c.h.b16 %v3731
        %v4921 = vunpack.c.l.b16 %v3732
        %v4922 = vunpack.c.h.b16 %v3732
        %v4923 = vunpack.c.l.b16 %v3733
        %v4924 = vunpack.c.h.b16 %v3733
        %v4925 = vunpack.c.l.b16 %v3734
        %v4926 = vunpack.c.h.b16 %v3734
        %v4927 = vunpack.c.l.b16 %v3735
        %v4928 = vunpack.c.h.b16 %v3735
        %v4929 = vunpack.c.l.b16 %v3736
        %v4930 = vunpack.c.h.b16 %v3736
        %v4931 = vunpack.c.l.b16 %v3737
        %v4932 = vunpack.c.h.b16 %v3737
        %v4933 = vunpack.c.l.b16 %v3738
        %v4934 = vunpack.c.h.b16 %v3738
        %v4935 = vunpack.c.l.b16 %v3739
        %v4936 = vunpack.c.h.b16 %v3739
        %v4937 = vunpack.c.l.b16 %v3740
        %v4938 = vunpack.c.h.b16 %v3740
        %v4939 = vunpack.c.l.b16 %v3741
        %v4940 = vunpack.c.h.b16 %v3741
        %v4941 = vunpack.c.l.b16 %v3742
        %v4942 = vunpack.c.h.b16 %v3742
        %v4943 = vunpack.c.l.b16 %v3743
        %v4944 = vunpack.c.h.b16 %v3743
        %v4945 = vunpack.c.l.b16 %v3744
        %v4946 = vunpack.c.h.b16 %v3744
        %v4947 = vunpack.c.l.b16 %v3745
        %v4948 = vunpack.c.h.b16 %v3745
        %v4949 = vunpack.c.l.b16 %v3746
        %v4950 = vunpack.c.h.b16 %v3746
        %v4951 = vunpack.c.l.b16 %v3747
        %v4952 = vunpack.c.h.b16 %v3747
        %v4953 = vunpack.c.l.b16 %v3748
        %v4954 = vunpack.c.h.b16 %v3748
        %v4955 = vunpack.c.l.b16 %v3749
        %v4956 = vunpack.c.h.b16 %v3749
        %v4957 = vunpack.c.l.b16 %v3750
        %v4958 = vunpack.c.h.b16 %v3750
        %v4959 = vunpack.c.l.b16 %v3751
        %v4960 = vunpack.c.h.b16 %v3751
        %v4961 = vunpack.c.l.b16 %v3752
        %v4962 = vunpack.c.h.b16 %v3752
        %v4963 = vunpack.c.l.b16 %v3753
        %v4964 = vunpack.c.h.b16 %v3753
        %v4965 = vunpack.c.l.b16 %v3754
        %v4966 = vunpack.c.h.b16 %v3754
        %v4967 = vunpack.c.l.b16 %v3755
        %v4968 = vunpack.c.h.b16 %v3755
        %v4969 = vunpack.c.l.b16 %v3756
        %v4970 = vunpack.c.h.b16 %v3756
        %v4971 = vunpack.c.l.b16 %v3757
        %v4972 = vunpack.c.h.b16 %v3757
        %v4973 = vunpack.c.l.b16 %v3758
        %v4974 = vunpack.c.h.b16 %v3758
        %v4975 = vunpack.c.l.b16 %v3759
        %v4976 = vunpack.c.h.b16 %v3759
        %v4977 = vunpack.c.l.b16 %v3760
        %v4978 = vunpack.c.h.b16 %v3760
        %v4979 = vunpack.c.l.b16 %v3761
        %v4980 = vunpack.c.h.b16 %v3761
        %v4981 = vunpack.c.l.b16 %v3762
        %v4982 = vunpack.c.h.b16 %v3762
        %v4983 = vunpack.c.l.b16 %v3763
        %v4984 = vunpack.c.h.b16 %v3763
        %v4985 = vunpack.c.l.b16 %v3764
        %v4986 = vunpack.c.h.b16 %v3764
        %v4987 = vunpack.c.l.b16 %v3765
        %v4988 = vunpack.c.h.b16 %v3765
        %v4989 = vunpack.c.l.b16 %v3766
        %v4990 = vunpack.c.h.b16 %v3766
        %v4991 = vunpack.c.l.b16 %v3767
        %v4992 = vunpack.c.h.b16 %v3767
        %v4993 = vunpack.c.l.b16 %v3768
        %v4994 = vunpack.c.h.b16 %v3768
        %v4995 = vunpack.c.l.b16 %v3769
        %v4996 = vunpack.c.h.b16 %v3769
        %v4997 = vunpack.c.l.b16 %v3770
        %v4998 = vunpack.c.h.b16 %v3770
        %v4999 = vunpack.c.l.b16 %v3771
        %v5000 = vunpack.c.h.b16 %v3771
        %v5001 = vunpack.c.l.b16 %v3772
        %v5002 = vunpack.c.h.b16 %v3772
        %v5003 = vunpack.c.l.b16 %v3773
        %v5004 = vunpack.c.h.b16 %v3773
        %v5005 = vunpack.c.l.b16 %v3774
        %v5006 = vunpack.c.h.b16 %v3774
        %v5007 = vunpack.c.l.b16 %v3775
        %v5008 = vunpack.c.h.b16 %v3775
        %v5009 = vunpack.c.l.b16 %v3776
        %v5010 = vunpack.c.h.b16 %v3776
        %v5011 = vunpack.c.l.b16 %v3777
        %v5012 = vunpack.c.h.b16 %v3777
        %v5013 = vunpack.c.l.b16 %v3778
        %v5014 = vunpack.c.h.b16 %v3778
        %v5015 = vunpack.c.l.b16 %v3779
        %v5016 = vunpack.c.h.b16 %v3779
        %v5017 = vunpack.c.l.b16 %v3780
        %v5018 = vunpack.c.h.b16 %v3780
        %v5019 = vunpack.c.l.b16 %v3781
        %v5020 = vunpack.c.h.b16 %v3781
        %v5021 = vunpack.c.l.b16 %v3782
        %v5022 = vunpack.c.h.b16 %v3782
        %v5023 = vunpack.c.l.b16 %v3783
        %v5024 = vunpack.c.h.b16 %v3783
        %v5025 = vunpack.c.l.b16 %v3784
        %v5026 = vunpack.c.h.b16 %v3784
        %v5027 = vunpack.c.l.b16 %v3785
        %v5028 = vunpack.c.h.b16 %v3785
        %v5029 = vunpack.c.l.b16 %v3786
        %v5030 = vunpack.c.h.b16 %v3786
        %v5031 = vunpack.c.l.b16 %v3787
        %v5032 = vunpack.c.h.b16 %v3787
        %v5033 = vunpack.c.l.b16 %v3788
        %v5034 = vunpack.c.h.b16 %v3788
        %v5035 = vunpack.c.l.b16 %v3789
        %v5036 = vunpack.c.h.b16 %v3789
        %v5037 = vunpack.c.l.b16 %v3790
        %v5038 = vunpack.c.h.b16 %v3790
        %v5039 = vunpack.c.l.b16 %v3791
        %v5040 = vunpack.c.h.b16 %v3791
        %v5041 = vunpack.c.l.b16 %v3792
        %v5042 = vunpack.c.h.b16 %v3792
        %v5043 = vunpack.c.l.b16 %v3793
        %v5044 = vunpack.c.h.b16 %v3793
        %v5045 = vunpack.c.l.b16 %v3794
        %v5046 = vunpack.c.h.b16 %v3794
        %v5047 = vunpack.c.l.b16 %v3795
        %v5048 = vunpack.c.h.b16 %v3795
        %v5049 = vunpack.c.l.b16 %v3796
        %v5050 = vunpack.c.h.b16 %v3796
        %v5051 = vunpack.c.l.b16 %v3797
        %v5052 = vunpack.c.h.b16 %v3797
        %v5053 = vunpack.c.l.b16 %v3798
        %v5054 = vunpack.c.h.b16 %v3798
        %v5055 = vunpack.c.l.b16 %v3799
        %v5056 = vunpack.c.h.b16 %v3799
        %v5057 = vunpack.c.l.b16 %v3800
        %v5058 = vunpack.c.h.b16 %v3800
        %v5059 = vunpack.c.l.b16 %v3801
        %v5060 = vunpack.c.h.b16 %v3801
        %v5061 = vunpack.c.l.b16 %v3802
        %v5062 = vunpack.c.h.b16 %v3802
        %v5063 = vunpack.c.l.b16 %v3803
        %v5064 = vunpack.c.h.b16 %v3803
        %v5065 = vunpack.c.l.b16 %v3804
        %v5066 = vunpack.c.h.b16 %v3804
        %v5067 = vunpack.c.l.b16 %v3805
        %v5068 = vunpack.c.h.b16 %v3805
        %v5069 = vunpack.c.l.b16 %v3806
        %v5070 = vunpack.c.h.b16 %v3806
        %v5071 = vunpack.c.l.b16 %v3807
        %v5072 = vunpack.c.h.b16 %v3807
        %v5073 = vunpack.c.l.b16 %v3808
        %v5074 = vunpack.c.h.b16 %v3808
        %v5075 = vunpack.c.l.b16 %v3809
        %v5076 = vunpack.c.h.b16 %v3809
        %v5077 = vunpack.c.l.b16 %v3810
        %v5078 = vunpack.c.h.b16 %v3810
        %v5079 = vunpack.c.l.b16 %v3811
        %v5080 = vunpack.c.h.b16 %v3811
        %v5081 = vunpack.c.l.b16 %v3812
        %v5082 = vunpack.c.h.b16 %v3812
        %v5083 = vunpack.c.l.b16 %v3813
        %v5084 = vunpack.c.h.b16 %v3813
        %v5085 = vunpack.c.l.b16 %v3814
        %v5086 = vunpack.c.h.b16 %v3814
        %v5087 = vunpack.c.l.b16 %v3815
        %v5088 = vunpack.c.h.b16 %v3815
        %v5089 = vunpack.c.l.b16 %v3816
        %v5090 = vunpack.c.h.b16 %v3816
        %v5091 = vunpack.c.l.b16 %v3817
        %v5092 = vunpack.c.h.b16 %v3817
        %v5093 = vunpack.c.l.b16 %v3818
        %v5094 = vunpack.c.h.b16 %v3818
        %v5095 = vunpack.c.l.b16 %v3819
        %v5096 = vunpack.c.h.b16 %v3819
        %v5097 = vunpack.c.l.b16 %v3820
        %v5098 = vunpack.c.h.b16 %v3820
        %v5099 = vunpack.c.l.b16 %v3821
        %v5100 = vunpack.c.h.b16 %v3821
        %v5101 = vunpack.c.l.b16 %v3822
        %v5102 = vunpack.c.h.b16 %v3822
        %v5103 = vunpack.c.l.b16 %v3823
        %v5104 = vunpack.c.h.b16 %v3823
        %v5105 = vunpack.c.l.b16 %v3824
        %v5106 = vunpack.c.h.b16 %v3824
        %v5107 = vunpack.c.l.b16 %v3825
        %v5108 = vunpack.c.h.b16 %v3825
        %v5109 = vunpack.c.l.b16 %v3826
        %v5110 = vunpack.c.h.b16 %v3826
        %v5111 = vunpack.c.l.b16 %v3827
        %v5112 = vunpack.c.h.b16 %v3827
        %v5113 = vunpack.c.l.b16 %v3828
        %v5114 = vunpack.c.h.b16 %v3828
        %v5115 = vunpack.c.l.b16 %v3829
        %v5116 = vunpack.c.h.b16 %v3829
        %v5117 = vunpack.c.l.b16 %v3830
        %v5118 = vunpack.c.h.b16 %v3830
        %v5119 = vunpack.c.l.b16 %v3831
        %v5120 = vunpack.c.h.b16 %v3831
        %v5121 = vunpack.c.l.b16 %v3832
        %v5122 = vunpack.c.h.b16 %v3832
        %v5123 = vunpack.c.l.b16 %v3833
        %v5124 = vunpack.c.h.b16 %v3833
        %v5125 = vunpack.c.l.b16 %v3834
        %v5126 = vunpack.c.h.b16 %v3834
        %v5127 = vunpack.c.l.b16 %v3835
        %v5128 = vunpack.c.h.b16 %v3835
        %v5129 = vunpack.c.l.b16 %v3836
        %v5130 = vunpack.c.h.b16 %v3836
        %v5131 = vunpack.c.l.b16 %v3837
        %v5132 = vunpack.c.h.b16 %v3837
        %v5133 = vunpack.c.l.b16 %v3838
        %v5134 = vunpack.c.h.b16 %v3838
        %v5135 = vunpack.c.l.b16 %v3839
        %v5136 = vunpack.c.h.b16 %v3839
        %v5137 = vunpack.c.l.b16 %v3840
        %v5138 = vunpack.c.h.b16 %v3840
        %v5139 = vunpack.c.l.b16 %v3841
        %v5140 = vunpack.c.h.b16 %v3841
        %v5141 = vunpack.c.l.b16 %v3842
        %v5142 = vunpack.c.h.b16 %v3842
        %v5143 = vunpack.c.l.b16 %v3843
        %v5144 = vunpack.c.h.b16 %v3843
        %v5145 = vunpack.c.l.b16 %v3844
        %v5146 = vunpack.c.h.b16 %v3844
        %v5147 = vunpack.c.l.b16 %v3845
        %v5148 = vunpack.c.h.b16 %v3845
        %v5149 = vunpack.c.l.b16 %v3846
        %v5150 = vunpack.c.h.b16 %v3846
        %v5151 = vunpack.c.l.b16 %v3847
        %v5152 = vunpack.c.h.b16 %v3847
        %v5153 = vunpack.c.l.b16 %v3848
        %v5154 = vunpack.c.h.b16 %v3848
        %v5155 = vunpack.c.l.b16 %v3849
        %v5156 = vunpack.c.h.b16 %v3849
        %v5157 = vunpack.c.l.b16 %v3850
        %v5158 = vunpack.c.h.b16 %v3850
        %v5159 = vunpack.c.l.b16 %v3851
        %v5160 = vunpack.c.h.b16 %v3851
        %v5161 = vunpack.c.l.b16 %v3852
        %v5162 = vunpack.c.h.b16 %v3852
        %v5163 = vunpack.c.l.b16 %v3853
        %v5164 = vunpack.c.h.b16 %v3853
        %v5165 = vunpack.c.l.b16 %v3854
        %v5166 = vunpack.c.h.b16 %v3854
        %v5167 = vunpack.c.l.b16 %v3855
        %v5168 = vunpack.c.h.b16 %v3855
        %v5169 = vunpack.c.l.b16 %v3856
        %v5170 = vunpack.c.h.b16 %v3856
        %v5171 = vunpack.c.l.b16 %v3857
        %v5172 = vunpack.c.h.b16 %v3857
        %v5173 = vunpack.c.l.b16 %v3858
        %v5174 = vunpack.c.h.b16 %v3858
        %v5175 = vunpack.c.l.b16 %v3859
        %v5176 = vunpack.c.h.b16 %v3859
        %v5177 = vunpack.c.l.b16 %v3860
        %v5178 = vunpack.c.h.b16 %v3860
        %v5179 = vunpack.c.l.b16 %v3861
        %v5180 = vunpack.c.h.b16 %v3861
        %v5181 = vunpack.c.l.b16 %v3862
        %v5182 = vunpack.c.h.b16 %v3862
        %v5183 = vunpack.c.l.b16 %v3863
        %v5184 = vunpack.c.h.b16 %v3863
        %v5185 = vunpack.c.l.b16 %v3864
        %v5186 = vunpack.c.h.b16 %v3864
        %v5187 = vunpack.c.l.b16 %v3865
        %v5188 = vunpack.c.h.b16 %v3865
        %v5189 = vunpack.c.l.b16 %v3866
        %v5190 = vunpack.c.h.b16 %v3866
        %v5191 = vunpack.c.l.b16 %v3867
        %v5192 = vunpack.c.h.b16 %v3867
        %v5193 = vunpack.c.l.b16 %v3868
        %v5194 = vunpack.c.h.b16 %v3868
        %v5195 = vunpack.c.l.b16 %v3869
        %v5196 = vunpack.c.h.b16 %v3869
        %v5197 = vunpack.c.l.b16 %v3870
        %v5198 = vunpack.c.h.b16 %v3870
        %v5199 = vunpack.c.l.b16 %v3871
        %v5200 = vunpack.c.h.b16 %v3871
        %v5201 = vunpack.c.l.b16 %v3872
        %v5202 = vunpack.c.h.b16 %v3872
        %v5203 = vunpack.c.l.b16 %v3873
        %v5204 = vunpack.c.h.b16 %v3873
        %v5205 = vunpack.c.l.b16 %v3874
        %v5206 = vunpack.c.h.b16 %v3874
        %v5207 = vunpack.c.l.b16 %v3875
        %v5208 = vunpack.c.h.b16 %v3875
        %v5209 = vunpack.c.l.b16 %v3876
        %v5210 = vunpack.c.h.b16 %v3876
        %v5211 = vunpack.c.l.b16 %v3877
        %v5212 = vunpack.c.h.b16 %v3877
        %v5213 = vunpack.c.l.b16 %v3878
        %v5214 = vunpack.c.h.b16 %v3878
        %v5215 = vunpack.c.l.b16 %v3879
        %v5216 = vunpack.c.h.b16 %v3879
        %v5217 = vunpack.c.l.b16 %v3880
        %v5218 = vunpack.c.h.b16 %v3880
        %v5219 = vunpack.c.l.b16 %v3881
        %v5220 = vunpack.c.h.b16 %v3881
        %v5221 = vunpack.c.l.b16 %v3882
        %v5222 = vunpack.c.h.b16 %v3882
        %v5223 = vunpack.c.l.b16 %v3883
        %v5224 = vunpack.c.h.b16 %v3883
        %v5225 = vunpack.c.l.b16 %v3884
        %v5226 = vunpack.c.h.b16 %v3884
        %v5227 = vunpack.c.l.b16 %v3885
        %v5228 = vunpack.c.h.b16 %v3885
        %v5229 = vunpack.c.l.b16 %v3886
        %v5230 = vunpack.c.h.b16 %v3886
        %v5231 = vunpack.c.l.b16 %v3887
        %v5232 = vunpack.c.h.b16 %v3887
        %v5233 = vunpack.c.l.b16 %v3888
        %v5234 = vunpack.c.h.b16 %v3888
        %v5235 = vunpack.c.l.b16 %v3889
        %v5236 = vunpack.c.h.b16 %v3889
        %v5237 = vunpack.c.l.b16 %v3890
        %v5238 = vunpack.c.h.b16 %v3890
        %v5239 = vunpack.c.l.b16 %v3891
        %v5240 = vunpack.c.h.b16 %v3891
        %v5241 = vunpack.c.l.b16 %v3892
        %v5242 = vunpack.c.h.b16 %v3892
        %v5243 = vunpack.c.l.b16 %v3893
        %v5244 = vunpack.c.h.b16 %v3893
        %v5245 = vunpack.c.l.b16 %v3894
        %v5246 = vunpack.c.h.b16 %v3894
        %v5247 = vunpack.c.l.b16 %v3895
        %v5248 = vunpack.c.h.b16 %v3895
        %v5249 = vunpack.c.l.b16 %v3896
        %v5250 = vunpack.c.h.b16 %v3896
        %v5251 = vunpack.c.l.b16 %v3897
        %v5252 = vunpack.c.h.b16 %v3897
        %v5253 = vunpack.c.l.b16 %v3898
        %v5254 = vunpack.c.h.b16 %v3898
        %v5255 = vunpack.c.l.b16 %v3899
        %v5256 = vunpack.c.h.b16 %v3899
        %v5257 = vunpack.c.l.b16 %v3900
        %v5258 = vunpack.c.h.b16 %v3900
        %v5259 = vunpack.c.l.b16 %v3901
        %v5260 = vunpack.c.h.b16 %v3901
        %v5261 = vunpack.c.l.b16 %v3902
        %v5262 = vunpack.c.h.b16 %v3902
        %v5263 = vunpack.c.l.b16 %v3903
        %v5264 = vunpack.c.h.b16 %v3903
        %v5265 = vunpack.c.l.b16 %v3904
        %v5266 = vunpack.c.h.b16 %v3904
        %v5267 = vunpack.c.l.b16 %v3905
        %v5268 = vunpack.c.h.b16 %v3905
        %v5269 = vunpack.c.l.b16 %v3906
        %v5270 = vunpack.c.h.b16 %v3906
        %v5271 = vunpack.c.l.b16 %v3907
        %v5272 = vunpack.c.h.b16 %v3907
        %v5273 = vunpack.c.l.b16 %v3908
        %v5274 = vunpack.c.h.b16 %v3908
        %v5275 = vunpack.c.l.b16 %v3909
        %v5276 = vunpack.c.h.b16 %v3909
        %v5277 = vunpack.c.l.b16 %v3910
        %v5278 = vunpack.c.h.b16 %v3910
        %v5279 = vunpack.c.l.b16 %v3911
        %v5280 = vunpack.c.h.b16 %v3911
        %v5281 = vunpack.c.l.b16 %v3912
        %v5282 = vunpack.c.h.b16 %v3912
        %v5283 = vunpack.c.l.b16 %v3913
        %v5284 = vunpack.c.h.b16 %v3913
        %v5285 = vunpack.c.l.b16 %v3914
        %v5286 = vunpack.c.h.b16 %v3914
        %v5287 = vunpack.c.l.b16 %v3915
        %v5288 = vunpack.c.h.b16 %v3915
        %v5289 = vunpack.c.l.b16 %v3916
        %v5290 = vunpack.c.h.b16 %v3916
        %v5291 = vunpack.c.l.b16 %v3917
        %v5292 = vunpack.c.h.b16 %v3917
        %v5293 = vunpack.c.l.b16 %v3918
        %v5294 = vunpack.c.h.b16 %v3918
        %v5295 = vunpack.c.l.b16 %v3919
        %v5296 = vunpack.c.h.b16 %v3919
        %v5297 = vunpack.c.l.b16 %v3920
        %v5298 = vunpack.c.h.b16 %v3920
        %v5299 = vunpack.c.l.b16 %v3921
        %v5300 = vunpack.c.h.b16 %v3921
        %v5301 = vunpack.c.l.b16 %v3922
        %v5302 = vunpack.c.h.b16 %v3922
        %v5303 = vunpack.c.l.b16 %v3923
        %v5304 = vunpack.c.h.b16 %v3923
        %v5305 = vunpack.c.l.b16 %v3924
        %v5306 = vunpack.c.h.b16 %v3924
        %v5307 = vunpack.c.l.b16 %v3925
        %v5308 = vunpack.c.h.b16 %v3925
        %v5309 = vunpack.c.l.b16 %v3926
        %v5310 = vunpack.c.h.b16 %v3926
        %v5311 = vunpack.c.l.b16 %v3927
        %v5312 = vunpack.c.h.b16 %v3927
        %v5313 = vunpack.c.l.b16 %v3928
        %v5314 = vunpack.c.h.b16 %v3928
        %v5315 = vunpack.c.l.b16 %v3929
        %v5316 = vunpack.c.h.b16 %v3929
        %v5317 = vunpack.c.l.b16 %v3930
        %v5318 = vunpack.c.h.b16 %v3930
        %v5319 = vunpack.c.l.b16 %v3931
        %v5320 = vunpack.c.h.b16 %v3931
        %v5321 = vunpack.c.l.b16 %v3932
        %v5322 = vunpack.c.h.b16 %v3932
        %v5323 = vunpack.c.l.b16 %v3933
        %v5324 = vunpack.c.h.b16 %v3933
        %v5325 = vunpack.c.l.b16 %v3934
        %v5326 = vunpack.c.h.b16 %v3934
        %v5327 = vunpack.c.l.b16 %v3935
        %v5328 = vunpack.c.h.b16 %v3935
        %v5329 = vunpack.c.l.b16 %v3936
        %v5330 = vunpack.c.h.b16 %v3936
        %v5331 = vunpack.c.l.b16 %v3937
        %v5332 = vunpack.c.h.b16 %v3937
        %v5333 = vunpack.c.l.b16 %v3938
        %v5334 = vunpack.c.h.b16 %v3938
        %v5335 = vunpack.c.l.b16 %v3939
        %v5336 = vunpack.c.h.b16 %v3939
        %v5337 = vunpack.c.l.b16 %v3940
        %v5338 = vunpack.c.h.b16 %v3940
        %v5339 = vunpack.c.l.b16 %v3941
        %v5340 = vunpack.c.h.b16 %v3941
        %v5341 = vunpack.c.l.b16 %v3942
        %v5342 = vunpack.c.h.b16 %v3942
        %v5343 = vunpack.c.l.b16 %v3943
        %v5344 = vunpack.c.h.b16 %v3943
        %v5345 = vunpack.c.l.b16 %v3944
        %v5346 = vunpack.c.h.b16 %v3944
        %v5347 = vunpack.c.l.b16 %v3945
        %v5348 = vunpack.c.h.b16 %v3945
        %v5349 = vunpack.c.l.b16 %v3946
        %v5350 = vunpack.c.h.b16 %v3946
        %v5351 = vunpack.c.l.b16 %v3947
        %v5352 = vunpack.c.h.b16 %v3947
        %v5353 = vunpack.c.l.b16 %v3948
        %v5354 = vunpack.c.h.b16 %v3948
        %v5355 = vunpack.c.l.b16 %v3949
        %v5356 = vunpack.c.h.b16 %v3949
        %v5357 = vunpack.c.l.b16 %v3950
        %v5358 = vunpack.c.h.b16 %v3950
        %v5359 = vunpack.c.l.b16 %v3951
        %v5360 = vunpack.c.h.b16 %v3951
        %v5361 = vunpack.c.l.b16 %v3952
        %v5362 = vunpack.c.h.b16 %v3952
        %v5363 = vunpack.c.l.b16 %v3953
        %v5364 = vunpack.c.h.b16 %v3953
        %v5365 = vunpack.c.l.b16 %v3954
        %v5366 = vunpack.c.h.b16 %v3954
        %v5367 = vunpack.c.l.b16 %v3955
        %v5368 = vunpack.c.h.b16 %v3955
        %v5369 = vunpack.c.l.b16 %v3956
        %v5370 = vunpack.c.h.b16 %v3956
        %v5371 = vunpack.c.l.b16 %v3957
        %v5372 = vunpack.c.h.b16 %v3957
        %v5373 = vunpack.c.l.b16 %v3958
        %v5374 = vunpack.c.h.b16 %v3958
        %v5375 = vunpack.c.l.b16 %v3959
        %v5376 = vunpack.c.h.b16 %v3959
        %v5377 = vunpack.c.l.b16 %v3960
        %v5378 = vunpack.c.h.b16 %v3960
        %v5379 = vunpack.c.l.b16 %v3961
        %v5380 = vunpack.c.h.b16 %v3961
        %v5381 = vunpack.c.l.b16 %v3962
        %v5382 = vunpack.c.h.b16 %v3962
        %v5383 = vunpack.c.l.b16 %v3963
        %v5384 = vunpack.c.h.b16 %v3963
        %v5385 = vunpack.c.l.b16 %v3964
        %v5386 = vunpack.c.h.b16 %v3964
        %v5387 = vunpack.c.l.b16 %v3965
        %v5388 = vunpack.c.h.b16 %v3965
        %v5389 = vunpack.c.l.b16 %v3966
        %v5390 = vunpack.c.h.b16 %v3966
        %v5391 = vunpack.c.l.b16 %v3967
        %v5392 = vunpack.c.h.b16 %v3967
        %v5393 = vunpack.c.l.b16 %v3968
        %v5394 = vunpack.c.h.b16 %v3968
        %v5395 = vunpack.c.l.b16 %v3969
        %v5396 = vunpack.c.h.b16 %v3969
        %v5397 = vunpack.c.l.b16 %v3970
        %v5398 = vunpack.c.h.b16 %v3970
        %v5399 = vunpack.c.l.b16 %v3971
        %v5400 = vunpack.c.h.b16 %v3971
        %v5401 = vunpack.c.l.b16 %v3972
        %v5402 = vunpack.c.h.b16 %v3972
        %v5403 = vunpack.c.l.b16 %v3973
        %v5404 = vunpack.c.h.b16 %v3973
        %v5405 = vunpack.c.l.b16 %v3974
        %v5406 = vunpack.c.h.b16 %v3974
        %v5407 = vunpack.c.l.b16 %v3975
        %v5408 = vunpack.c.h.b16 %v3975
        %v5409 = vunpack.c.l.b16 %v3976
        %v5410 = vunpack.c.h.b16 %v3976
        %v5411 = vunpack.c.l.b16 %v3977
        %v5412 = vunpack.c.h.b16 %v3977
        %v5413 = vunpack.c.l.b16 %v3978
        %v5414 = vunpack.c.h.b16 %v3978
        %v5415 = vunpack.c.l.b16 %v3979
        %v5416 = vunpack.c.h.b16 %v3979
        %v5417 = vunpack.c.l.b16 %v3980
        %v5418 = vunpack.c.h.b16 %v3980
        %v5419 = vunpack.c.l.b16 %v3981
        %v5420 = vunpack.c.h.b16 %v3981
        %v5421 = vunpack.c.l.b16 %v3982
        %v5422 = vunpack.c.h.b16 %v3982
        %v5423 = vunpack.c.l.b16 %v3983
        %v5424 = vunpack.c.h.b16 %v3983
        %v5425 = vunpack.c.l.b16 %v3984
        %v5426 = vunpack.c.h.b16 %v3984
        %v5427 = vunpack.c.l.b16 %v3985
        %v5428 = vunpack.c.h.b16 %v3985
        %v5429 = vunpack.c.l.b16 %v3986
        %v5430 = vunpack.c.h.b16 %v3986
        %v5431 = vunpack.c.l.b16 %v3987
        %v5432 = vunpack.c.h.b16 %v3987
        %v5433 = vunpack.c.l.b16 %v3988
        %v5434 = vunpack.c.h.b16 %v3988
        %v5435 = vunpack.c.l.b16 %v3989
        %v5436 = vunpack.c.h.b16 %v3989
        %v5437 = vunpack.c.l.b16 %v3990
        %v5438 = vunpack.c.h.b16 %v3990
        %v5439 = vunpack.c.l.b16 %v3991
        %v5440 = vunpack.c.h.b16 %v3991
        %v5441 = vunpack.c.l.b16 %v3992
        %v5442 = vunpack.c.h.b16 %v3992
        %v5443 = vunpack.c.l.b16 %v3993
        %v5444 = vunpack.c.h.b16 %v3993
        %v5445 = vunpack.c.l.b16 %v3994
        %v5446 = vunpack.c.h.b16 %v3994
        %v5447 = vunpack.c.l.b16 %v3995
        %v5448 = vunpack.c.h.b16 %v3995
        %v5449 = vunpack.c.l.b16 %v3996
        %v5450 = vunpack.c.h.b16 %v3996
        %v5451 = vunpack.c.l.b16 %v3997
        %v5452 = vunpack.c.h.b16 %v3997
        %v5453 = vunpack.c.l.b16 %v3998
        %v5454 = vunpack.c.h.b16 %v3998
        %v5455 = vunpack.c.l.b16 %v3999
        %v5456 = vunpack.c.h.b16 %v3999
        %v5457 = vunpack.c.l.b16 %v4000
        %v5458 = vunpack.c.h.b16 %v4000
        %v5459 = vunpack.c.l.b16 %v4001
        %v5460 = vunpack.c.h.b16 %v4001
        %v5461 = vunpack.c.l.b16 %v4002
        %v5462 = vunpack.c.h.b16 %v4002
        %v5463 = vunpack.c.l.b16 %v4003
        %v5464 = vunpack.c.h.b16 %v4003
        %v5465 = vunpack.c.l.b16 %v4004
        %v5466 = vunpack.c.h.b16 %v4004
        %v5467 = vunpack.c.l.b16 %v4005
        %v5468 = vunpack.c.h.b16 %v4005
        %v5469 = vunpack.c.l.b16 %v4006
        %v5470 = vunpack.c.h.b16 %v4006
        %v5471 = vunpack.c.l.b16 %v4007
        %v5472 = vunpack.c.h.b16 %v4007
        %v5473 = vunpack.c.l.b16 %v4008
        %v5474 = vunpack.c.h.b16 %v4008
        %v5475 = vunpack.c.l.b16 %v4009
        %v5476 = vunpack.c.h.b16 %v4009
        %v5477 = vunpack.c.l.b16 %v4010
        %v5478 = vunpack.c.h.b16 %v4010
        %v5479 = vunpack.c.l.b16 %v4011
        %v5480 = vunpack.c.h.b16 %v4011
        %v5481 = vunpack.c.l.b16 %v4012
        %v5482 = vunpack.c.h.b16 %v4012
        %v5483 = vunpack.c.l.b16 %v4013
        %v5484 = vunpack.c.h.b16 %v4013
        %v5485 = vunpack.c.l.b16 %v4014
        %v5486 = vunpack.c.h.b16 %v4014
        %v5487 = vunpack.c.l.b16 %v4015
        %v5488 = vunpack.c.h.b16 %v4015
        %v5489 = vunpack.c.l.b16 %v4016
        %v5490 = vunpack.c.h.b16 %v4016
        %v5491 = vunpack.c.l.b16 %v4017
        %v5492 = vunpack.c.h.b16 %v4017
        %v5493 = vunpack.c.l.b16 %v4018
        %v5494 = vunpack.c.h.b16 %v4018
        %v5495 = vunpack.c.l.b16 %v4019
        %v5496 = vunpack.c.h.b16 %v4019
        %v5497 = vunpack.c.l.b16 %v4020
        %v5498 = vunpack.c.h.b16 %v4020
        %v5499 = vunpack.c.l.b16 %v4021
        %v5500 = vunpack.c.h.b16 %v4021
        %v5501 = vunpack.c.l.b16 %v4022
        %v5502 = vunpack.c.h.b16 %v4022
        %v5503 = vunpack.c.l.b16 %v4023
        %v5504 = vunpack.c.h.b16 %v4023
        %v5505 = vunpack.c.l.b16 %v4024
        %v5506 = vunpack.c.h.b16 %v4024
        %v5507 = vunpack.c.l.b16 %v4025
        %v5508 = vunpack.c.h.b16 %v4025
        %v5509 = vunpack.c.l.b16 %v4026
        %v5510 = vunpack.c.h.b16 %v4026
        %v5511 = vunpack.c.l.b16 %v4027
        %v5512 = vunpack.c.h.b16 %v4027
        %v5513 = vunpack.c.l.b16 %v4028
        %v5514 = vunpack.c.h.b16 %v4028
        %v5515 = vunpack.c.l.b16 %v4029
        %v5516 = vunpack.c.h.b16 %v4029
        %v5517 = vunpack.c.l.b16 %v4030
        %v5518 = vunpack.c.h.b16 %v4030
        %v5519 = vunpack.c.l.b16 %v4031
        %v5520 = vunpack.c.h.b16 %v4031
        %v5521 = vunpack.c.l.b16 %v4032
        %v5522 = vunpack.c.h.b16 %v4032
        %v5523 = vunpack.c.l.b16 %v4033
        %v5524 = vunpack.c.h.b16 %v4033
        %v5525 = vunpack.c.l.b16 %v4034
        %v5526 = vunpack.c.h.b16 %v4034
        %v5527 = vunpack.c.l.b16 %v4035
        %v5528 = vunpack.c.h.b16 %v4035
        %v5529 = vunpack.c.l.b16 %v4036
        %v5530 = vunpack.c.h.b16 %v4036
        %v5531 = vunpack.c.l.b16 %v4037
        %v5532 = vunpack.c.h.b16 %v4037
        %v5533 = vunpack.c.l.b16 %v4038
        %v5534 = vunpack.c.h.b16 %v4038
        %v5535 = vunpack.c.l.b16 %v4039
        %v5536 = vunpack.c.h.b16 %v4039
        %v5537 = vunpack.c.l.b16 %v4040
        %v5538 = vunpack.c.h.b16 %v4040
        %v5539 = vunpack.c.l.b16 %v4041
        %v5540 = vunpack.c.h.b16 %v4041
        %v5541 = vunpack.c.l.b16 %v4042
        %v5542 = vunpack.c.h.b16 %v4042
        %v5543 = vunpack.c.l.b16 %v4043
        %v5544 = vunpack.c.h.b16 %v4043
        %v5545 = vunpack.c.l.b16 %v4044
        %v5546 = vunpack.c.h.b16 %v4044
        %v5547 = vunpack.c.l.b16 %v4045
        %v5548 = vunpack.c.h.b16 %v4045
        %v5549 = vunpack.c.l.b16 %v4046
        %v5550 = vunpack.c.h.b16 %v4046
        %v5551 = vunpack.c.l.b16 %v4047
        %v5552 = vunpack.c.h.b16 %v4047
        %v5553 = vunpack.c.l.b16 %v4048
        %v5554 = vunpack.c.h.b16 %v4048
        %v5555 = vunpack.c.l.b16 %v4049
        %v5556 = vunpack.c.h.b16 %v4049
        %v5557 = vunpack.c.l.b16 %v4050
        %v5558 = vunpack.c.h.b16 %v4050
        %v5559 = vunpack.c.l.b16 %v4051
        %v5560 = vunpack.c.h.b16 %v4051
        %v5561 = vunpack.c.l.b16 %v4052
        %v5562 = vunpack.c.h.b16 %v4052
        %v5563 = vunpack.c.l.b16 %v4053
        %v5564 = vunpack.c.h.b16 %v4053
        %v5565 = vunpack.c.l.b16 %v4054
        %v5566 = vunpack.c.h.b16 %v4054
        %v5567 = vunpack.c.l.b16 %v4055
        %v5568 = vunpack.c.h.b16 %v4055
        %v5569 = vunpack.c.l.b16 %v4056
        %v5570 = vunpack.c.h.b16 %v4056
        %v5571 = vunpack.c.l.b16 %v4057
        %v5572 = vunpack.c.h.b16 %v4057
        %v5573 = vunpack.c.l.b16 %v4058
        %v5574 = vunpack.c.h.b16 %v4058
        %v5575 = vunpack.c.l.b16 %v4059
        %v5576 = vunpack.c.h.b16 %v4059
        %v5577 = vunpack.c.l.b16 %v4060
        %v5578 = vunpack.c.h.b16 %v4060
        %v5579 = vunpack.c.l.b16 %v4061
        %v5580 = vunpack.c.h.b16 %v4061
        %v5581 = vunpack.c.l.b16 %v4062
        %v5582 = vunpack.c.h.b16 %v4062
        %v5583 = vunpack.c.l.b16 %v4063
        %v5584 = vunpack.c.h.b16 %v4063
        %v5585 = vunpack.c.l.b16 %v4064
        %v5586 = vunpack.c.h.b16 %v4064
        %v5587 = vunpack.c.l.b16 %v4065
        %v5588 = vunpack.c.h.b16 %v4065
        %v5589 = vunpack.c.l.b16 %v4066
        %v5590 = vunpack.c.h.b16 %v4066
        %v5591 = vunpack.c.l.b16 %v4067
        %v5592 = vunpack.c.h.b16 %v4067
        %v5593 = vunpack.c.l.b16 %v4068
        %v5594 = vunpack.c.h.b16 %v4068
        %v5595 = vunpack.c.l.b16 %v4069
        %v5596 = vunpack.c.h.b16 %v4069
        %v5597 = vunpack.c.l.b16 %v4070
        %v5598 = vunpack.c.h.b16 %v4070
        %v5599 = vunpack.c.l.b16 %v4071
        %v5600 = vunpack.c.h.b16 %v4071
        %v5601 = vunpack.c.l.b16 %v4072
        %v5602 = vunpack.c.h.b16 %v4072
        %v5603 = vunpack.c.l.b16 %v4073
        %v5604 = vunpack.c.h.b16 %v4073
        %v5605 = vunpack.c.l.b16 %v4074
        %v5606 = vunpack.c.h.b16 %v4074
        %v5607 = vunpack.c.l.b16 %v4075
        %v5608 = vunpack.c.h.b16 %v4075
        %v5609 = vunpack.c.l.b16 %v4076
        %v5610 = vunpack.c.h.b16 %v4076
        %v5611 = vunpack.c.l.b16 %v4077
        %v5612 = vunpack.c.h.b16 %v4077
        %v5613 = vunpack.c.l.b16 %v4078
        %v5614 = vunpack.c.h.b16 %v4078
        %v5615 = vunpack.c.l.b16 %v4079
        %v5616 = vunpack.c.h.b16 %v4079
        %v5617 = vunpack.c.l.b16 %v4080
        %v5618 = vunpack.c.h.b16 %v4080
        %v5619 = vunpack.c.l.b16 %v4081
        %v5620 = vunpack.c.h.b16 %v4081
        %v5621 = vunpack.c.l.b16 %v4082
        %v5622 = vunpack.c.h.b16 %v4082
        %v5623 = vunpack.c.l.b16 %v4083
        %v5624 = vunpack.c.h.b16 %v4083
        %v5625 = vunpack.c.l.b16 %v4084
        %v5626 = vunpack.c.h.b16 %v4084
        %v5627 = vunpack.c.l.b16 %v4085
        %v5628 = vunpack.c.h.b16 %v4085
        %v5629 = vunpack.c.l.b16 %v4086
        %v5630 = vunpack.c.h.b16 %v4086
        %v5631 = vunpack.c.l.b16 %v4087
        %v5632 = vunpack.c.h.b16 %v4087
        %v5633 = vunpack.c.l.b16 %v4088
        %v5634 = vunpack.c.h.b16 %v4088
        %v5635 = vunpack.c.l.b16 %v4089
        %v5636 = vunpack.c.h.b16 %v4089
        %v5637 = vunpack.c.l.b16 %v4090
        %v5638 = vunpack.c.h.b16 %v4090
        %v5639 = vunpack.c.l.b16 %v4091
        %v5640 = vunpack.c.h.b16 %v4091
        %v5641 = vunpack.c.l.b16 %v4092
        %v5642 = vunpack.c.h.b16 %v4092
        %v5643 = vunpack.c.l.b16 %v4093
        %v5644 = vunpack.c.h.b16 %v4093
        %v5645 = vunpack.c.l.b16 %v4094
        %v5646 = vunpack.c.h.b16 %v4094
        %v5647 = vunpack.c.l.b16 %v4095
        %v5648 = vunpack.c.h.b16 %v4095
        %v5649 = vunpack.c.l.b16 %v4096
        %v5650 = vunpack.c.h.b16 %v4096
        %v5651 = vunpack.c.l.b16 %v4097
        %v5652 = vunpack.c.h.b16 %v4097
        %v5653 = vunpack.c.l.b16 %v4098
        %v5654 = vunpack.c.h.b16 %v4098
        %v5655 = vunpack.c.l.b16 %v4099
        %v5656 = vunpack.c.h.b16 %v4099
        %v5657 = vunpack.c.l.b16 %v4100
        %v5658 = vunpack.c.h.b16 %v4100
        %v5659 = vunpack.c.l.b16 %v4101
        %v5660 = vunpack.c.h.b16 %v4101
        %v5661 = vunpack.c.l.b16 %v4102
        %v5662 = vunpack.c.h.b16 %v4102
        %v5663 = vunpack.c.l.b16 %v4103
        %v5664 = vunpack.c.h.b16 %v4103
        %v5665 = vunpack.c.l.b16 %v4104
        %v5666 = vunpack.c.h.b16 %v4104
        %v5667 = vunpack.c.l.b16 %v4105
        %v5668 = vunpack.c.h.b16 %v4105
        %v5669 = vunpack.c.l.b16 %v4106
        %v5670 = vunpack.c.h.b16 %v4106
        %v5671 = vunpack.c.l.b16 %v4107
        %v5672 = vunpack.c.h.b16 %v4107
        %v5673 = vunpack.c.l.b16 %v4108
        %v5674 = vunpack.c.h.b16 %v4108
        %v5675 = vunpack.c.l.b16 %v4109
        %v5676 = vunpack.c.h.b16 %v4109
        %v5677 = vunpack.c.l.b16 %v4110
        %v5678 = vunpack.c.h.b16 %v4110
        %v5679 = vunpack.c.l.b16 %v4111
        %v5680 = vunpack.c.h.b16 %v4111
        %v5681 = vunpack.c.l.b16 %v4112
        %v5682 = vunpack.c.h.b16 %v4112
        %v5683 = vunpack.c.l.b16 %v4113
        %v5684 = vunpack.c.h.b16 %v4113
        %v5685 = vunpack.c.l.b16 %v4114
        %v5686 = vunpack.c.h.b16 %v4114
        %v5687 = vunpack.c.l.b16 %v4115
        %v5688 = vunpack.c.h.b16 %v4115
        %v5689 = vunpack.c.l.b16 %v4116
        %v5690 = vunpack.c.h.b16 %v4116
        %v5691 = vunpack.c.l.b16 %v4117
        %v5692 = vunpack.c.h.b16 %v4117
        %v5693 = vunpack.c.l.b16 %v4118
        %v5694 = vunpack.c.h.b16 %v4118
        %v5695 = vunpack.c.l.b16 %v4119
        %v5696 = vunpack.c.h.b16 %v4119
        %v5697 = vunpack.c.l.b16 %v4120
        %v5698 = vunpack.c.h.b16 %v4120
        %v5699 = vpack.c.b16 %v4683, %v4675
        %v5700 = vpack.c.b16 %v4684, %v4676
        %v5701 = vpack.c.b16 %v4685, %v4677
        %v5702 = vpack.c.b16 %v4686, %v4678
        %v5703 = vpack.c.b16 %v4687, %v4679
        %v5704 = vpack.c.b16 %v4688, %v4680
        %v5705 = vpack.c.b16 %v4689, %v4681
        %v5706 = vpack.c.b16 %v4690, %v4682
        %v5707 = vpack.c.b16 %v4699, %v4691
        %v5708 = vpack.c.b16 %v4700, %v4692
        %v5709 = vpack.c.b16 %v4701, %v4693
        %v5710 = vpack.c.b16 %v4702, %v4694
        %v5711 = vpack.c.b16 %v4703, %v4695
        %v5712 = vpack.c.b16 %v4704, %v4696
        %v5713 = vpack.c.b16 %v4705, %v4697
        %v5714 = vpack.c.b16 %v4706, %v4698
        %v5715 = vpack.c.b16 %v4715, %v4707
        %v5716 = vpack.c.b16 %v4716, %v4708
        %v5717 = vpack.c.b16 %v4717, %v4709
        %v5718 = vpack.c.b16 %v4718, %v4710
        %v5719 = vpack.c.b16 %v4719, %v4711
        %v5720 = vpack.c.b16 %v4720, %v4712
        %v5721 = vpack.c.b16 %v4721, %v4713
        %v5722 = vpack.c.b16 %v4722, %v4714
        %v5723 = vpack.c.b16 %v4731, %v4723
        %v5724 = vpack.c.b16 %v4732, %v4724
        %v5725 = vpack.c.b16 %v4733, %v4725
        %v5726 = vpack.c.b16 %v4734, %v4726
        %v5727 = vpack.c.b16 %v4735, %v4727
        %v5728 = vpack.c.b16 %v4736, %v4728
        %v5729 = vpack.c.b16 %v4737, %v4729
        %v5730 = vpack.c.b16 %v4738, %v4730
        %v5731 = vpack.c.b16 %v4747, %v4739
        %v5732 = vpack.c.b16 %v4748, %v4740
        %v5733 = vpack.c.b16 %v4749, %v4741
        %v5734 = vpack.c.b16 %v4750, %v4742
        %v5735 = vpack.c.b16 %v4751, %v4743
        %v5736 = vpack.c.b16 %v4752, %v4744
        %v5737 = vpack.c.b16 %v4753, %v4745
        %v5738 = vpack.c.b16 %v4754, %v4746
        %v5739 = vpack.c.b16 %v4763, %v4755
        %v5740 = vpack.c.b16 %v4764, %v4756
        %v5741 = vpack.c.b16 %v4765, %v4757
        %v5742 = vpack.c.b16 %v4766, %v4758
        %v5743 = vpack.c.b16 %v4767, %v4759
        %v5744 = vpack.c.b16 %v4768, %v4760
        %v5745 = vpack.c.b16 %v4769, %v4761
        %v5746 = vpack.c.b16 %v4770, %v4762
        %v5747 = vpack.c.b16 %v4779, %v4771
        %v5748 = vpack.c.b16 %v4780, %v4772
        %v5749 = vpack.c.b16 %v4781, %v4773
        %v5750 = vpack.c.b16 %v4782, %v4774
        %v5751 = vpack.c.b16 %v4783, %v4775
        %v5752 = vpack.c.b16 %v4784, %v4776
        %v5753 = vpack.c.b16 %v4785, %v4777
        %v5754 = vpack.c.b16 %v4786, %v4778
        %v5755 = vpack.c.b16 %v4795, %v4787
        %v5756 = vpack.c.b16 %v4796, %v4788
        %v5757 = vpack.c.b16 %v4797, %v4789
        %v5758 = vpack.c.b16 %v4798, %v4790
        %v5759 = vpack.c.b16 %v4799, %v4791
        %v5760 = vpack.c.b16 %v4800, %v4792
        %v5761 = vpack.c.b16 %v4801, %v4793
        %v5762 = vpack.c.b16 %v4802, %v4794
        %v5763 = vpack.c.b16 %v4811, %v4803
        %v5764 = vpack.c.b16 %v4812, %v4804
        %v5765 = vpack.c.b16 %v4813, %v4805
        %v5766 = vpack.c.b16 %v4814, %v4806
        %v5767 = vpack.c.b16 %v4815, %v4807
        %v5768 = vpack.c.b16 %v4816, %v4808
        %v5769 = vpack.c.b16 %v4817, %v4809
        %v5770 = vpack.c.b16 %v4818, %v4810
        %v5771 = vpack.c.b16 %v4827, %v4819
        %v5772 = vpack.c.b16 %v4828, %v4820
        %v5773 = vpack.c.b16 %v4829, %v4821
        %v5774 = vpack.c.b16 %v4830, %v4822
        %v5775 = vpack.c.b16 %v4831, %v4823
        %v5776 = vpack.c.b16 %v4832, %v4824
        %v5777 = vpack.c.b16 %v4833, %v4825
        %v5778 = vpack.c.b16 %v4834, %v4826
        %v5779 = vpack.c.b16 %v4843, %v4835
        %v5780 = vpack.c.b16 %v4844, %v4836
        %v5781 = vpack.c.b16 %v4845, %v4837
        %v5782 = vpack.c.b16 %v4846, %v4838
        %v5783 = vpack.c.b16 %v4847, %v4839
        %v5784 = vpack.c.b16 %v4848, %v4840
        %v5785 = vpack.c.b16 %v4849, %v4841
        %v5786 = vpack.c.b16 %v4850, %v4842
        %v5787 = vpack.c.b16 %v4859, %v4851
        %v5788 = vpack.c.b16 %v4860, %v4852
        %v5789 = vpack.c.b16 %v4861, %v4853
        %v5790 = vpack.c.b16 %v4862, %v4854
        %v5791 = vpack.c.b16 %v4863, %v4855
        %v5792 = vpack.c.b16 %v4864, %v4856
        %v5793 = vpack.c.b16 %v4865, %v4857
        %v5794 = vpack.c.b16 %v4866, %v4858
        %v5795 = vpack.c.b16 %v4875, %v4867
        %v5796 = vpack.c.b16 %v4876, %v4868
        %v5797 = vpack.c.b16 %v4877, %v4869
        %v5798 = vpack.c.b16 %v4878, %v4870
        %v5799 = vpack.c.b16 %v4879, %v4871
        %v5800 = vpack.c.b16 %v4880, %v4872
        %v5801 = vpack.c.b16 %v4881, %v4873
        %v5802 = vpack.c.b16 %v4882, %v4874
        %v5803 = vpack.c.b16 %v4891, %v4883
        %v5804 = vpack.c.b16 %v4892, %v4884
        %v5805 = vpack.c.b16 %v4893, %v4885
        %v5806 = vpack.c.b16 %v4894, %v4886
        %v5807 = vpack.c.b16 %v4895, %v4887
        %v5808 = vpack.c.b16 %v4896, %v4888
        %v5809 = vpack.c.b16 %v4897, %v4889
        %v5810 = vpack.c.b16 %v4898, %v4890
        %v5811 = vpack.c.b16 %v4907, %v4899
        %v5812 = vpack.c.b16 %v4908, %v4900
        %v5813 = vpack.c.b16 %v4909, %v4901
        %v5814 = vpack.c.b16 %v4910, %v4902
        %v5815 = vpack.c.b16 %v4911, %v4903
        %v5816 = vpack.c.b16 %v4912, %v4904
        %v5817 = vpack.c.b16 %v4913, %v4905
        %v5818 = vpack.c.b16 %v4914, %v4906
        %v5819 = vpack.c.b16 %v4923, %v4915
        %v5820 = vpack.c.b16 %v4924, %v4916
        %v5821 = vpack.c.b16 %v4925, %v4917
        %v5822 = vpack.c.b16 %v4926, %v4918
        %v5823 = vpack.c.b16 %v4927, %v4919
        %v5824 = vpack.c.b16 %v4928, %v4920
        %v5825 = vpack.c.b16 %v4929, %v4921
        %v5826 = vpack.c.b16 %v4930, %v4922
        %v5827 = vpack.c.b16 %v4939, %v4931
        %v5828 = vpack.c.b16 %v4940, %v4932
        %v5829 = vpack.c.b16 %v4941, %v4933
        %v5830 = vpack.c.b16 %v4942, %v4934
        %v5831 = vpack.c.b16 %v4943, %v4935
        %v5832 = vpack.c.b16 %v4944, %v4936
        %v5833 = vpack.c.b16 %v4945, %v4937
        %v5834 = vpack.c.b16 %v4946, %v4938
        %v5835 = vpack.c.b16 %v4955, %v4947
        %v5836 = vpack.c.b16 %v4956, %v4948
        %v5837 = vpack.c.b16 %v4957, %v4949
        %v5838 = vpack.c.b16 %v4958, %v4950
        %v5839 = vpack.c.b16 %v4959, %v4951
        %v5840 = vpack.c.b16 %v4960, %v4952
        %v5841 = vpack.c.b16 %v4961, %v4953
        %v5842 = vpack.c.b16 %v4962, %v4954
        %v5843 = vpack.c.b16 %v4971, %v4963
        %v5844 = vpack.c.b16 %v4972, %v4964
        %v5845 = vpack.c.b16 %v4973, %v4965
        %v5846 = vpack.c.b16 %v4974, %v4966
        %v5847 = vpack.c.b16 %v4975, %v4967
        %v5848 = vpack.c.b16 %v4976, %v4968
        %v5849 = vpack.c.b16 %v4977, %v4969
        %v5850 = vpack.c.b16 %v4978, %v4970
        %v5851 = vpack.c.b16 %v4987, %v4979
        %v5852 = vpack.c.b16 %v4988, %v4980
        %v5853 = vpack.c.b16 %v4989, %v4981
        %v5854 = vpack.c.b16 %v4990, %v4982
        %v5855 = vpack.c.b16 %v4991, %v4983
        %v5856 = vpack.c.b16 %v4992, %v4984
        %v5857 = vpack.c.b16 %v4993, %v4985
        %v5858 = vpack.c.b16 %v4994, %v4986
        %v5859 = vpack.c.b16 %v5003, %v4995
        %v5860 = vpack.c.b16 %v5004, %v4996
        %v5861 = vpack.c.b16 %v5005, %v4997
        %v5862 = vpack.c.b16 %v5006, %v4998
        %v5863 = vpack.c.b16 %v5007, %v4999
        %v5864 = vpack.c.b16 %v5008, %v5000
        %v5865 = vpack.c.b16 %v5009, %v5001
        %v5866 = vpack.c.b16 %v5010, %v5002
        %v5867 = vpack.c.b16 %v5019, %v5011
        %v5868 = vpack.c.b16 %v5020, %v5012
        %v5869 = vpack.c.b16 %v5021, %v5013
        %v5870 = vpack.c.b16 %v5022, %v5014
        %v5871 = vpack.c.b16 %v5023, %v5015
        %v5872 = vpack.c.b16 %v5024, %v5016
        %v5873 = vpack.c.b16 %v5025, %v5017
        %v5874 = vpack.c.b16 %v5026, %v5018
        %v5875 = vpack.c.b16 %v5035, %v5027
        %v5876 = vpack.c.b16 %v5036, %v5028
        %v5877 = vpack.c.b16 %v5037, %v5029
        %v5878 = vpack.c.b16 %v5038, %v5030
        %v5879 = vpack.c.b16 %v5039, %v5031
        %v5880 = vpack.c.b16 %v5040, %v5032
        %v5881 = vpack.c.b16 %v5041, %v5033
        %v5882 = vpack.c.b16 %v5042, %v5034
        %v5883 = vpack.c.b16 %v5051, %v5043
        %v5884 = vpack.c.b16 %v5052, %v5044
        %v5885 = vpack.c.b16 %v5053, %v5045
        %v5886 = vpack.c.b16 %v5054, %v5046
        %v5887 = vpack.c.b16 %v5055, %v5047
        %v5888 = vpack.c.b16 %v5056, %v5048
        %v5889 = vpack.c.b16 %v5057, %v5049
        %v5890 = vpack.c.b16 %v5058, %v5050
        %v5891 = vpack.c.b16 %v5067, %v5059
        %v5892 = vpack.c.b16 %v5068, %v5060
        %v5893 = vpack.c.b16 %v5069, %v5061
        %v5894 = vpack.c.b16 %v5070, %v5062
        %v5895 = vpack.c.b16 %v5071, %v5063
        %v5896 = vpack.c.b16 %v5072, %v5064
        %v5897 = vpack.c.b16 %v5073, %v5065
        %v5898 = vpack.c.b16 %v5074, %v5066
        %v5899 = vpack.c.b16 %v5083, %v5075
        %v5900 = vpack.c.b16 %v5084, %v5076
        %v5901 = vpack.c.b16 %v5085, %v5077
        %v5902 = vpack.c.b16 %v5086, %v5078
        %v5903 = vpack.c.b16 %v5087, %v5079
        %v5904 = vpack.c.b16 %v5088, %v5080
        %v5905 = vpack.c.b16 %v5089, %v5081
        %v5906 = vpack.c.b16 %v5090, %v5082
        %v5907 = vpack.c.b16 %v5099, %v5091
        %v5908 = vpack.c.b16 %v5100, %v5092
        %v5909 = vpack.c.b16 %v5101, %v5093
        %v5910 = vpack.c.b16 %v5102, %v5094
        %v5911 = vpack.c.b16 %v5103, %v5095
        %v5912 = vpack.c.b16 %v5104, %v5096
        %v5913 = vpack.c.b16 %v5105, %v5097
        %v5914 = vpack.c.b16 %v5106, %v5098
        %v5915 = vpack.c.b16 %v5115, %v5107
        %v5916 = vpack.c.b16 %v5116, %v5108
        %v5917 = vpack.c.b16 %v5117, %v5109
        %v5918 = vpack.c.b16 %v5118, %v5110
        %v5919 = vpack.c.b16 %v5119, %v5111
        %v5920 = vpack.c.b16 %v5120, %v5112
        %v5921 = vpack.c.b16 %v5121, %v5113
        %v5922 = vpack.c.b16 %v5122, %v5114
        %v5923 = vpack.c.b16 %v5131, %v5123
        %v5924 = vpack.c.b16 %v5132, %v5124
        %v5925 = vpack.c.b16 %v5133, %v5125
        %v5926 = vpack.c.b16 %v5134, %v5126
        %v5927 = vpack.c.b16 %v5135, %v5127
        %v5928 = vpack.c.b16 %v5136, %v5128
        %v5929 = vpack.c.b16 %v5137, %v5129
        %v5930 = vpack.c.b16 %v5138, %v5130
        %v5931 = vpack.c.b16 %v5147, %v5139
        %v5932 = vpack.c.b16 %v5148, %v5140
        %v5933 = vpack.c.b16 %v5149, %v5141
        %v5934 = vpack.c.b16 %v5150, %v5142
        %v5935 = vpack.c.b16 %v5151, %v5143
        %v5936 = vpack.c.b16 %v5152, %v5144
        %v5937 = vpack.c.b16 %v5153, %v5145
        %v5938 = vpack.c.b16 %v5154, %v5146
        %v5939 = vpack.c.b16 %v5163, %v5155
        %v5940 = vpack.c.b16 %v5164, %v5156
        %v5941 = vpack.c.b16 %v5165, %v5157
        %v5942 = vpack.c.b16 %v5166, %v5158
        %v5943 = vpack.c.b16 %v5167, %v5159
        %v5944 = vpack.c.b16 %v5168, %v5160
        %v5945 = vpack.c.b16 %v5169, %v5161
        %v5946 = vpack.c.b16 %v5170, %v5162
        %v5947 = vpack.c.b16 %v5179, %v5171
        %v5948 = vpack.c.b16 %v5180, %v5172
        %v5949 = vpack.c.b16 %v5181, %v5173
        %v5950 = vpack.c.b16 %v5182, %v5174
        %v5951 = vpack.c.b16 %v5183, %v5175
        %v5952 = vpack.c.b16 %v5184, %v5176
        %v5953 = vpack.c.b16 %v5185, %v5177
        %v5954 = vpack.c.b16 %v5186, %v5178
        %v5955 = vpack.c.b16 %v5195, %v5187
        %v5956 = vpack.c.b16 %v5196, %v5188
        %v5957 = vpack.c.b16 %v5197, %v5189
        %v5958 = vpack.c.b16 %v5198, %v5190
        %v5959 = vpack.c.b16 %v5199, %v5191
        %v5960 = vpack.c.b16 %v5200, %v5192
        %v5961 = vpack.c.b16 %v5201, %v5193
        %v5962 = vpack.c.b16 %v5202, %v5194
        %v5963 = vpack.c.b16 %v5211, %v5203
        %v5964 = vpack.c.b16 %v5212, %v5204
        %v5965 = vpack.c.b16 %v5213, %v5205
        %v5966 = vpack.c.b16 %v5214, %v5206
        %v5967 = vpack.c.b16 %v5215, %v5207
        %v5968 = vpack.c.b16 %v5216, %v5208
        %v5969 = vpack.c.b16 %v5217, %v5209
        %v5970 = vpack.c.b16 %v5218, %v5210
        %v5971 = vpack.c.b16 %v5227, %v5219
        %v5972 = vpack.c.b16 %v5228, %v5220
        %v5973 = vpack.c.b16 %v5229, %v5221
        %v5974 = vpack.c.b16 %v5230, %v5222
        %v5975 = vpack.c.b16 %v5231, %v5223
        %v5976 = vpack.c.b16 %v5232, %v5224
        %v5977 = vpack.c.b16 %v5233, %v5225
        %v5978 = vpack.c.b16 %v5234, %v5226
        %v5979 = vpack.c.b16 %v5243, %v5235
        %v5980 = vpack.c.b16 %v5244, %v5236
        %v5981 = vpack.c.b16 %v5245, %v5237
        %v5982 = vpack.c.b16 %v5246, %v5238
        %v5983 = vpack.c.b16 %v5247, %v5239
        %v5984 = vpack.c.b16 %v5248, %v5240
        %v5985 = vpack.c.b16 %v5249, %v5241
        %v5986 = vpack.c.b16 %v5250, %v5242
        %v5987 = vpack.c.b16 %v5259, %v5251
        %v5988 = vpack.c.b16 %v5260, %v5252
        %v5989 = vpack.c.b16 %v5261, %v5253
        %v5990 = vpack.c.b16 %v5262, %v5254
        %v5991 = vpack.c.b16 %v5263, %v5255
        %v5992 = vpack.c.b16 %v5264, %v5256
        %v5993 = vpack.c.b16 %v5265, %v5257
        %v5994 = vpack.c.b16 %v5266, %v5258
        %v5995 = vpack.c.b16 %v5275, %v5267
        %v5996 = vpack.c.b16 %v5276, %v5268
        %v5997 = vpack.c.b16 %v5277, %v5269
        %v5998 = vpack.c.b16 %v5278, %v5270
        %v5999 = vpack.c.b16 %v5279, %v5271
        %v6000 = vpack.c.b16 %v5280, %v5272
        %v6001 = vpack.c.b16 %v5281, %v5273
        %v6002 = vpack.c.b16 %v5282, %v5274
        %v6003 = vpack.c.b16 %v5291, %v5283
        %v6004 = vpack.c.b16 %v5292, %v5284
        %v6005 = vpack.c.b16 %v5293, %v5285
        %v6006 = vpack.c.b16 %v5294, %v5286
        %v6007 = vpack.c.b16 %v5295, %v5287
        %v6008 = vpack.c.b16 %v5296, %v5288
        %v6009 = vpack.c.b16 %v5297, %v5289
        %v6010 = vpack.c.b16 %v5298, %v5290
        %v6011 = vpack.c.b16 %v5307, %v5299
        %v6012 = vpack.c.b16 %v5308, %v5300
        %v6013 = vpack.c.b16 %v5309, %v5301
        %v6014 = vpack.c.b16 %v5310, %v5302
        %v6015 = vpack.c.b16 %v5311, %v5303
        %v6016 = vpack.c.b16 %v5312, %v5304
        %v6017 = vpack.c.b16 %v5313, %v5305
        %v6018 = vpack.c.b16 %v5314, %v5306
        %v6019 = vpack.c.b16 %v5323, %v5315
        %v6020 = vpack.c.b16 %v5324, %v5316
        %v6021 = vpack.c.b16 %v5325, %v5317
        %v6022 = vpack.c.b16 %v5326, %v5318
        %v6023 = vpack.c.b16 %v5327, %v5319
        %v6024 = vpack.c.b16 %v5328, %v5320
        %v6025 = vpack.c.b16 %v5329, %v5321
        %v6026 = vpack.c.b16 %v5330, %v5322
        %v6027 = vpack.c.b16 %v5339, %v5331
        %v6028 = vpack.c.b16 %v5340, %v5332
        %v6029 = vpack.c.b16 %v5341, %v5333
        %v6030 = vpack.c.b16 %v5342, %v5334
        %v6031 = vpack.c.b16 %v5343, %v5335
        %v6032 = vpack.c.b16 %v5344, %v5336
        %v6033 = vpack.c.b16 %v5345, %v5337
        %v6034 = vpack.c.b16 %v5346, %v5338
        %v6035 = vpack.c.b16 %v5355, %v5347
        %v6036 = vpack.c.b16 %v5356, %v5348
        %v6037 = vpack.c.b16 %v5357, %v5349
        %v6038 = vpack.c.b16 %v5358, %v5350
        %v6039 = vpack.c.b16 %v5359, %v5351
        %v6040 = vpack.c.b16 %v5360, %v5352
        %v6041 = vpack.c.b16 %v5361, %v5353
        %v6042 = vpack.c.b16 %v5362, %v5354
        %v6043 = vpack.c.b16 %v5371, %v5363
        %v6044 = vpack.c.b16 %v5372, %v5364
        %v6045 = vpack.c.b16 %v5373, %v5365
        %v6046 = vpack.c.b16 %v5374, %v5366
        %v6047 = vpack.c.b16 %v5375, %v5367
        %v6048 = vpack.c.b16 %v5376, %v5368
        %v6049 = vpack.c.b16 %v5377, %v5369
        %v6050 = vpack.c.b16 %v5378, %v5370
        %v6051 = vpack.c.b16 %v5387, %v5379
        %v6052 = vpack.c.b16 %v5388, %v5380
        %v6053 = vpack.c.b16 %v5389, %v5381
        %v6054 = vpack.c.b16 %v5390, %v5382
        %v6055 = vpack.c.b16 %v5391, %v5383
        %v6056 = vpack.c.b16 %v5392, %v5384
        %v6057 = vpack.c.b16 %v5393, %v5385
        %v6058 = vpack.c.b16 %v5394, %v5386
        %v6059 = vpack.c.b16 %v5403, %v5395
        %v6060 = vpack.c.b16 %v5404, %v5396
        %v6061 = vpack.c.b16 %v5405, %v5397
        %v6062 = vpack.c.b16 %v5406, %v5398
        %v6063 = vpack.c.b16 %v5407, %v5399
        %v6064 = vpack.c.b16 %v5408, %v5400
        %v6065 = vpack.c.b16 %v5409, %v5401
        %v6066 = vpack.c.b16 %v5410, %v5402
        %v6067 = vpack.c.b16 %v5419, %v5411
        %v6068 = vpack.c.b16 %v5420, %v5412
        %v6069 = vpack.c.b16 %v5421, %v5413
        %v6070 = vpack.c.b16 %v5422, %v5414
        %v6071 = vpack.c.b16 %v5423, %v5415
        %v6072 = vpack.c.b16 %v5424, %v5416
        %v6073 = vpack.c.b16 %v5425, %v5417
        %v6074 = vpack.c.b16 %v5426, %v5418
        %v6075 = vpack.c.b16 %v5435, %v5427
        %v6076 = vpack.c.b16 %v5436, %v5428
        %v6077 = vpack.c.b16 %v5437, %v5429
        %v6078 = vpack.c.b16 %v5438, %v5430
        %v6079 = vpack.c.b16 %v5439, %v5431
        %v6080 = vpack.c.b16 %v5440, %v5432
        %v6081 = vpack.c.b16 %v5441, %v5433
        %v6082 = vpack.c.b16 %v5442, %v5434
        %v6083 = vpack.c.b16 %v5451, %v5443
        %v6084 = vpack.c.b16 %v5452, %v5444
        %v6085 = vpack.c.b16 %v5453, %v5445
        %v6086 = vpack.c.b16 %v5454, %v5446
        %v6087 = vpack.c.b16 %v5455, %v5447
        %v6088 = vpack.c.b16 %v5456, %v5448
        %v6089 = vpack.c.b16 %v5457, %v5449
        %v6090 = vpack.c.b16 %v5458, %v5450
        %v6091 = vpack.c.b16 %v5467, %v5459
        %v6092 = vpack.c.b16 %v5468, %v5460
        %v6093 = vpack.c.b16 %v5469, %v5461
        %v6094 = vpack.c.b16 %v5470, %v5462
        %v6095 = vpack.c.b16 %v5471, %v5463
        %v6096 = vpack.c.b16 %v5472, %v5464
        %v6097 = vpack.c.b16 %v5473, %v5465
        %v6098 = vpack.c.b16 %v5474, %v5466
        %v6099 = vpack.c.b16 %v5483, %v5475
        %v6100 = vpack.c.b16 %v5484, %v5476
        %v6101 = vpack.c.b16 %v5485, %v5477
        %v6102 = vpack.c.b16 %v5486, %v5478
        %v6103 = vpack.c.b16 %v5487, %v5479
        %v6104 = vpack.c.b16 %v5488, %v5480
        %v6105 = vpack.c.b16 %v5489, %v5481
        %v6106 = vpack.c.b16 %v5490, %v5482
        %v6107 = vpack.c.b16 %v5499, %v5491
        %v6108 = vpack.c.b16 %v5500, %v5492
        %v6109 = vpack.c.b16 %v5501, %v5493
        %v6110 = vpack.c.b16 %v5502, %v5494
        %v6111 = vpack.c.b16 %v5503, %v5495
        %v6112 = vpack.c.b16 %v5504, %v5496
        %v6113 = vpack.c.b16 %v5505, %v5497
        %v6114 = vpack.c.b16 %v5506, %v5498
        %v6115 = vpack.c.b16 %v5515, %v5507
        %v6116 = vpack.c.b16 %v5516, %v5508
        %v6117 = vpack.c.b16 %v5517, %v5509
        %v6118 = vpack.c.b16 %v5518, %v5510
        %v6119 = vpack.c.b16 %v5519, %v5511
        %v6120 = vpack.c.b16 %v5520, %v5512
        %v6121 = vpack.c.b16 %v5521, %v5513
        %v6122 = vpack.c.b16 %v5522, %v5514
        %v6123 = vpack.c.b16 %v5531, %v5523
        %v6124 = vpack.c.b16 %v5532, %v5524
        %v6125 = vpack.c.b16 %v5533, %v5525
        %v6126 = vpack.c.b16 %v5534, %v5526
        %v6127 = vpack.c.b16 %v5535, %v5527
        %v6128 = vpack.c.b16 %v5536, %v5528
        %v6129 = vpack.c.b16 %v5537, %v5529
        %v6130 = vpack.c.b16 %v5538, %v5530
        %v6131 = vpack.c.b16 %v5547, %v5539
        %v6132 = vpack.c.b16 %v5548, %v5540
        %v6133 = vpack.c.b16 %v5549, %v5541
        %v6134 = vpack.c.b16 %v5550, %v5542
        %v6135 = vpack.c.b16 %v5551, %v5543
        %v6136 = vpack.c.b16 %v5552, %v5544
        %v6137 = vpack.c.b16 %v5553, %v5545
        %v6138 = vpack.c.b16 %v5554, %v5546
        %v6139 = vpack.c.b16 %v5563, %v5555
        %v6140 = vpack.c.b16 %v5564, %v5556
        %v6141 = vpack.c.b16 %v5565, %v5557
        %v6142 = vpack.c.b16 %v5566, %v5558
        %v6143 = vpack.c.b16 %v5567, %v5559
        %v6144 = vpack.c.b16 %v5568, %v5560
        %v6145 = vpack.c.b16 %v5569, %v5561
        %v6146 = vpack.c.b16 %v5570, %v5562
        %v6147 = vpack.c.b16 %v5579, %v5571
        %v6148 = vpack.c.b16 %v5580, %v5572
        %v6149 = vpack.c.b16 %v5581, %v5573
        %v6150 = vpack.c.b16 %v5582, %v5574
        %v6151 = vpack.c.b16 %v5583, %v5575
        %v6152 = vpack.c.b16 %v5584, %v5576
        %v6153 = vpack.c.b16 %v5585, %v5577
        %v6154 = vpack.c.b16 %v5586, %v5578
        %v6155 = vpack.c.b16 %v5595, %v5587
        %v6156 = vpack.c.b16 %v5596, %v5588
        %v6157 = vpack.c.b16 %v5597, %v5589
        %v6158 = vpack.c.b16 %v5598, %v5590
        %v6159 = vpack.c.b16 %v5599, %v5591
        %v6160 = vpack.c.b16 %v5600, %v5592
        %v6161 = vpack.c.b16 %v5601, %v5593
        %v6162 = vpack.c.b16 %v5602, %v5594
        %v6163 = vpack.c.b16 %v5611, %v5603
        %v6164 = vpack.c.b16 %v5612, %v5604
        %v6165 = vpack.c.b16 %v5613, %v5605
        %v6166 = vpack.c.b16 %v5614, %v5606
        %v6167 = vpack.c.b16 %v5615, %v5607
        %v6168 = vpack.c.b16 %v5616, %v5608
        %v6169 = vpack.c.b16 %v5617, %v5609
        %v6170 = vpack.c.b16 %v5618, %v5610
        %v6171 = vpack.c.b16 %v5627, %v5619
        %v6172 = vpack.c.b16 %v5628, %v5620
        %v6173 = vpack.c.b16 %v5629, %v5621
        %v6174 = vpack.c.b16 %v5630, %v5622
        %v6175 = vpack.c.b16 %v5631, %v5623
        %v6176 = vpack.c.b16 %v5632, %v5624
        %v6177 = vpack.c.b16 %v5633, %v5625
        %v6178 = vpack.c.b16 %v5634, %v5626
        %v6179 = vpack.c.b16 %v5643, %v5635
        %v6180 = vpack.c.b16 %v5644, %v5636
        %v6181 = vpack.c.b16 %v5645, %v5637
        %v6182 = vpack.c.b16 %v5646, %v5638
        %v6183 = vpack.c.b16 %v5647, %v5639
        %v6184 = vpack.c.b16 %v5648, %v5640
        %v6185 = vpack.c.b16 %v5649, %v5641
        %v6186 = vpack.c.b16 %v5650, %v5642
        %v6187 = vpack.c.b16 %v5659, %v5651
        %v6188 = vpack.c.b16 %v5660, %v5652
        %v6189 = vpack.c.b16 %v5661, %v5653
        %v6190 = vpack.c.b16 %v5662, %v5654
        %v6191 = vpack.c.b16 %v5663, %v5655
        %v6192 = vpack.c.b16 %v5664, %v5656
        %v6193 = vpack.c.b16 %v5665, %v5657
        %v6194 = vpack.c.b16 %v5666, %v5658
        %v6195 = vpack.c.b16 %v5675, %v5667
        %v6196 = vpack.c.b16 %v5676, %v5668
        %v6197 = vpack.c.b16 %v5677, %v5669
        %v6198 = vpack.c.b16 %v5678, %v5670
        %v6199 = vpack.c.b16 %v5679, %v5671
        %v6200 = vpack.c.b16 %v5680, %v5672
        %v6201 = vpack.c.b16 %v5681, %v5673
        %v6202 = vpack.c.b16 %v5682, %v5674
        %v6203 = vpack.c.b16 %v5691, %v5683
        %v6204 = vpack.c.b16 %v5692, %v5684
        %v6205 = vpack.c.b16 %v5693, %v5685
        %v6206 = vpack.c.b16 %v5694, %v5686
        %v6207 = vpack.c.b16 %v5695, %v5687
        %v6208 = vpack.c.b16 %v5696, %v5688
        %v6209 = vpack.c.b16 %v5697, %v5689
        %v6210 = vpack.c.b16 %v5698, %v5690
        %6723 = vmatprep.subr.bf16.mxu0 %v5700
        %6724 = vmatpush1.bf16.msra.mxu0 %v5699
        %6725 = vmatprep.subr.bf16.mxu0 %v5708
        %6726 = vmatpush1.bf16.msra.mxu0 %v5707
        %6727 = vmatprep.subr.bf16.mxu0 %v5716
        %6728 = vmatpush1.bf16.msra.mxu0 %v5715
        %6729 = vmatprep.subr.bf16.mxu0 %v5724
        %6730 = vmatpush1.bf16.msra.mxu0 %v5723
        %6731 = vmatprep.subr.bf16.mxu0 %v5732
        %6732 = vmatpush1.bf16.msra.mxu0 %v5731
        %6733 = vmatprep.subr.bf16.mxu0 %v5740
        %6734 = vmatpush1.bf16.msra.mxu0 %v5739
        %6735 = vmatprep.subr.bf16.mxu0 %v5748
        %6736 = vmatpush1.bf16.msra.mxu0 %v5747
        %6737 = vmatprep.subr.bf16.mxu0 %v5756
        %6738 = vmatpush1.bf16.msra.mxu0 %v5755
        %6739 = vmatprep.subr.bf16.mxu0 %v5764
        %6740 = vmatpush1.bf16.msra.mxu0 %v5763
        %6741 = vmatprep.subr.bf16.mxu0 %v5772
        %6742 = vmatpush1.bf16.msra.mxu0 %v5771
        %6743 = vmatprep.subr.bf16.mxu0 %v5780
        %6744 = vmatpush1.bf16.msra.mxu0 %v5779
        %6745 = vmatprep.subr.bf16.mxu0 %v5788
        %6746 = vmatpush1.bf16.msra.mxu0 %v5787
        %6747 = vmatprep.subr.bf16.mxu0 %v5796
        %6748 = vmatpush1.bf16.msra.mxu0 %v5795
        %6749 = vmatprep.subr.bf16.mxu0 %v5804
        %6750 = vmatpush1.bf16.msra.mxu0 %v5803
        %6751 = vmatprep.subr.bf16.mxu0 %v5812
        %6752 = vmatpush1.bf16.msra.mxu0 %v5811
        %6753 = vmatprep.subr.bf16.mxu0 %v5820
        %6754 = vmatpush1.bf16.msra.mxu0 %v5819
        %6755 = vmatprep.mubr.bf16.mxu0 %v3602
        %6756 = vmatmul.mubr.bf16.gmra.mrb[0].mxu0 %v3601
        %v6757 = vpop.f32.mrb[0].mxu0
        %v6758 = vadd.f32 %v4126, %v6757
        %v6759 = vpop.f32.mrb[0].mxu0
        %v6760 = vadd.f32 %v4130, %v6759
        %v6761 = vpop.f32.mrb[0].mxu0
        %v6762 = vpop.f32.mrb[0].mxu0
        %6763 = vdwg.mxu0
        %6764 = vmatprep.subr.bf16.mxu0 %v5828
        %6765 = vmatpush1.bf16.msra.mxu0 %v5827
        %6766 = vmatprep.subr.bf16.mxu0 %v5836
        %6767 = vmatpush1.bf16.msra.mxu0 %v5835
        %6768 = vmatprep.subr.bf16.mxu0 %v5844
        %6769 = vmatpush1.bf16.msra.mxu0 %v5843
        %6770 = vmatprep.subr.bf16.mxu0 %v5852
        %6771 = vmatpush1.bf16.msra.mxu0 %v5851
        %6772 = vmatprep.subr.bf16.mxu0 %v5860
        %6773 = vmatpush1.bf16.msra.mxu0 %v5859
        %6774 = vmatprep.subr.bf16.mxu0 %v5868
        %6775 = vmatpush1.bf16.msra.mxu0 %v5867
        %6776 = vmatprep.subr.bf16.mxu0 %v5876
        %6777 = vmatpush1.bf16.msra.mxu0 %v5875
        %6778 = vmatprep.subr.bf16.mxu0 %v5884
        %6779 = vmatpush1.bf16.msra.mxu0 %v5883
        %6780 = vmatprep.subr.bf16.mxu0 %v5892
        %6781 = vmatpush1.bf16.msra.mxu0 %v5891
        %6782 = vmatprep.subr.bf16.mxu0 %v5900
        %6783 = vmatpush1.bf16.msra.mxu0 %v5899
        %6784 = vmatprep.subr.bf16.mxu0 %v5908
        %6785 = vmatpush1.bf16.msra.mxu0 %v5907
        %6786 = vmatprep.subr.bf16.mxu0 %v5916
        %6787 = vmatpush1.bf16.msra.mxu0 %v5915
        %6788 = vmatprep.subr.bf16.mxu0 %v5924
        %6789 = vmatpush1.bf16.msra.mxu0 %v5923
        %6790 = vmatprep.subr.bf16.mxu0 %v5932
        %6791 = vmatpush1.bf16.msra.mxu0 %v5931
        %6792 = vmatprep.subr.bf16.mxu0 %v5940
        %6793 = vmatpush1.bf16.msra.mxu0 %v5939
        %6794 = vmatprep.subr.bf16.mxu0 %v5948
        %6795 = vmatpush1.bf16.msra.mxu0 %v5947
        %6796 = vmatprep.mubr.bf16.mxu0 %v3604
        %6797 = vmatmul.mubr.bf16.gmra.mrb[0].mxu0 %v3603
        %v6798 = vpop.f32.mrb[0].mxu0
        %v6799 = vadd.f32 %v6758, %v6798
        %v6800 = vpop.f32.mrb[0].mxu0
        %v6801 = vadd.f32 %v6760, %v6800
        %v6802 = vpop.f32.mrb[0].mxu0
        %v6803 = vpop.f32.mrb[0].mxu0
        %6804 = vdwg.mxu0
        %6805 = vmatprep.subr.bf16.mxu0 %v5956
        %6806 = vmatpush1.bf16.msra.mxu0 %v5955
        %6807 = vmatprep.subr.bf16.mxu0 %v5964
        %6808 = vmatpush1.bf16.msra.mxu0 %v5963
        %6809 = vmatprep.subr.bf16.mxu0 %v5972
        %6810 = vmatpush1.bf16.msra.mxu0 %v5971
        %6811 = vmatprep.subr.bf16.mxu0 %v5980
        %6812 = vmatpush1.bf16.msra.mxu0 %v5979
        %6813 = vmatprep.subr.bf16.mxu0 %v5988
        %6814 = vmatpush1.bf16.msra.mxu0 %v5987
        %6815 = vmatprep.subr.bf16.mxu0 %v5996
        %6816 = vmatpush1.bf16.msra.mxu0 %v5995
        %6817 = vmatprep.subr.bf16.mxu0 %v6004
        %6818 = vmatpush1.bf16.msra.mxu0 %v6003
        %6819 = vmatprep.subr.bf16.mxu0 %v6012
        %6820 = vmatpush1.bf16.msra.mxu0 %v6011
        %6821 = vmatprep.subr.bf16.mxu0 %v6020
        %6822 = vmatpush1.bf16.msra.mxu0 %v6019
        %6823 = vmatprep.subr.bf16.mxu0 %v6028
        %6824 = vmatpush1.bf16.msra.mxu0 %v6027
        %6825 = vmatprep.subr.bf16.mxu0 %v6036
        %6826 = vmatpush1.bf16.msra.mxu0 %v6035
        %6827 = vmatprep.subr.bf16.mxu0 %v6044
        %6828 = vmatpush1.bf16.msra.mxu0 %v6043
        %6829 = vmatprep.subr.bf16.mxu0 %v6052
        %6830 = vmatpush1.bf16.msra.mxu0 %v6051
        %6831 = vmatprep.subr.bf16.mxu0 %v6060
        %6832 = vmatpush1.bf16.msra.mxu0 %v6059
        %6833 = vmatprep.subr.bf16.mxu0 %v6068
        %6834 = vmatpush1.bf16.msra.mxu0 %v6067
        %6835 = vmatprep.subr.bf16.mxu0 %v6076
        %6836 = vmatpush1.bf16.msra.mxu0 %v6075
        %6837 = vmatprep.mubr.bf16.mxu0 %v3606
        %6838 = vmatmul.mubr.bf16.gmra.mrb[0].mxu0 %v3605
        %v6839 = vpop.f32.mrb[0].mxu0
        %v6840 = vadd.f32 %v6799, %v6839
        %v6841 = vpop.f32.mrb[0].mxu0
        %v6842 = vadd.f32 %v6801, %v6841
        %v6843 = vpop.f32.mrb[0].mxu0
        %v6844 = vpop.f32.mrb[0].mxu0
        %6845 = vdwg.mxu0
        %6846 = vmatprep.subr.bf16.mxu0 %v6084
        %6847 = vmatpush1.bf16.msra.mxu0 %v6083
        %6848 = vmatprep.subr.bf16.mxu0 %v6092
        %6849 = vmatpush1.bf16.msra.mxu0 %v6091
        %6850 = vmatprep.subr.bf16.mxu0 %v6100
        %6851 = vmatpush1.bf16.msra.mxu0 %v6099
        %6852 = vmatprep.subr.bf16.mxu0 %v6108
        %6853 = vmatpush1.bf16.msra.mxu0 %v6107
        %6854 = vmatprep.subr.bf16.mxu0 %v6116
        %6855 = vmatpush1.bf16.msra.mxu0 %v6115
        %6856 = vmatprep.subr.bf16.mxu0 %v6124
        %6857 = vmatpush1.bf16.msra.mxu0 %v6123
        %6858 = vmatprep.subr.bf16.mxu0 %v6132
        %6859 = vmatpush1.bf16.msra.mxu0 %v6131
        %6860 = vmatprep.subr.bf16.mxu0 %v6140
        %6861 = vmatpush1.bf16.msra.mxu0 %v6139
        %6862 = vmatprep.subr.bf16.mxu0 %v6148
        %6863 = vmatpush1.bf16.msra.mxu0 %v6147
        %6864 = vmatprep.subr.bf16.mxu0 %v6156
        %6865 = vmatpush1.bf16.msra.mxu0 %v6155
        %6866 = vmatprep.subr.bf16.mxu0 %v6164
        %6867 = vmatpush1.bf16.msra.mxu0 %v6163
        %6868 = vmatprep.subr.bf16.mxu0 %v6172
        %6869 = vmatpush1.bf16.msra.mxu0 %v6171
        %6870 = vmatprep.subr.bf16.mxu0 %v6180
        %6871 = vmatpush1.bf16.msra.mxu0 %v6179
        %6872 = vmatprep.subr.bf16.mxu0 %v6188
        %6873 = vmatpush1.bf16.msra.mxu0 %v6187
        %6874 = vmatprep.subr.bf16.mxu0 %v6196
        %6875 = vmatpush1.bf16.msra.mxu0 %v6195
        %6876 = vmatprep.subr.bf16.mxu0 %v6204
        %6877 = vmatpush1.bf16.msra.mxu0 %v6203
        %6878 = vmatprep.mubr.bf16.mxu0 %v3608
        %6879 = vmatmul.mubr.bf16.gmra.mrb[0].mxu0 %v3607
        %v6880 = vpop.f32.mrb[0].mxu0
        %v6881 = vadd.f32 %v6840, %v6880
        %v6882 = vpop.f32.mrb[0].mxu0
        %v6883 = vadd.f32 %v6842, %v6882
        %v6884 = vpop.f32.mrb[0].mxu0
        %v6885 = vpop.f32.mrb[0].mxu0
        %6886 = vdwg.mxu0
        %6887 = vmatprep.subr.bf16.mxu0 %v5702
        %6888 = vmatpush1.bf16.msra.mxu0 %v5701
        %6889 = vmatprep.subr.bf16.mxu0 %v5710
        %6890 = vmatpush1.bf16.msra.mxu0 %v5709
        %6891 = vmatprep.subr.bf16.mxu0 %v5718
        %6892 = vmatpush1.bf16.msra.mxu0 %v5717
        %6893 = vmatprep.subr.bf16.mxu0 %v5726
        %6894 = vmatpush1.bf16.msra.mxu0 %v5725
        %6895 = vmatprep.subr.bf16.mxu0 %v5734
        %6896 = vmatpush1.bf16.msra.mxu0 %v5733
        %6897 = vmatprep.subr.bf16.mxu0 %v5742
        %6898 = vmatpush1.bf16.msra.mxu0 %v5741
        %6899 = vmatprep.subr.bf16.mxu0 %v5750
        %6900 = vmatpush1.bf16.msra.mxu0 %v5749
        %6901 = vmatprep.subr.bf16.mxu0 %v5758
        %6902 = vmatpush1.bf16.msra.mxu0 %v5757
        %6903 = vmatprep.subr.bf16.mxu0 %v5766
        %6904 = vmatpush1.bf16.msra.mxu0 %v5765
        %6905 = vmatprep.subr.bf16.mxu0 %v5774
        %6906 = vmatpush1.bf16.msra.mxu0 %v5773
        %6907 = vmatprep.subr.bf16.mxu0 %v5782
        %6908 = vmatpush1.bf16.msra.mxu0 %v5781
        %6909 = vmatprep.subr.bf16.mxu0 %v5790
        %6910 = vmatpush1.bf16.msra.mxu0 %v5789
        %6911 = vmatprep.subr.bf16.mxu0 %v5798
        %6912 = vmatpush1.bf16.msra.mxu0 %v5797
        %6913 = vmatprep.subr.bf16.mxu0 %v5806
        %6914 = vmatpush1.bf16.msra.mxu0 %v5805
        %6915 = vmatprep.subr.bf16.mxu0 %v5814
        %6916 = vmatpush1.bf16.msra.mxu0 %v5813
        %6917 = vmatprep.subr.bf16.mxu0 %v5822
        %6918 = vmatpush1.bf16.msra.mxu0 %v5821
        %6919 = vmatprep.mubr.bf16.mxu0 %v3602
        %6920 = vmatmul.mubr.bf16.gmra.mrb[0].mxu0 %v3601
        %v6921 = vpop.f32.mrb[0].mxu0
        %v6922 = vadd.f32 %v4134, %v6921
        %v6923 = vpop.f32.mrb[0].mxu0
        %v6924 = vadd.f32 %v4138, %v6923
        %v6925 = vpop.f32.mrb[0].mxu0
        %v6926 = vpop.f32.mrb[0].mxu0
        %6927 = vdwg.mxu0
        %6928 = vmatprep.subr.bf16.mxu0 %v5830
        %6929 = vmatpush1.bf16.msra.mxu0 %v5829
        %6930 = vmatprep.subr.bf16.mxu0 %v5838
        %6931 = vmatpush1.bf16.msra.mxu0 %v5837
        %6932 = vmatprep.subr.bf16.mxu0 %v5846
        %6933 = vmatpush1.bf16.msra.mxu0 %v5845
        %6934 = vmatprep.subr.bf16.mxu0 %v5854
        %6935 = vmatpush1.bf16.msra.mxu0 %v5853
        %6936 = vmatprep.subr.bf16.mxu0 %v5862
        %6937 = vmatpush1.bf16.msra.mxu0 %v5861
        %6938 = vmatprep.subr.bf16.mxu0 %v5870
        %6939 = vmatpush1.bf16.msra.mxu0 %v5869
        %6940 = vmatprep.subr.bf16.mxu0 %v5878
        %6941 = vmatpush1.bf16.msra.mxu0 %v5877
        %6942 = vmatprep.subr.bf16.mxu0 %v5886
        %6943 = vmatpush1.bf16.msra.mxu0 %v5885
        %6944 = vmatprep.subr.bf16.mxu0 %v5894
        %6945 = vmatpush1.bf16.msra.mxu0 %v5893
        %6946 = vmatprep.subr.bf16.mxu0 %v5902
        %6947 = vmatpush1.bf16.msra.mxu0 %v5901
        %6948 = vmatprep.subr.bf16.mxu0 %v5910
        %6949 = vmatpush1.bf16.msra.mxu0 %v5909
        %6950 = vmatprep.subr.bf16.mxu0 %v5918
        %6951 = vmatpush1.bf16.msra.mxu0 %v5917
        %6952 = vmatprep.subr.bf16.mxu0 %v5926
        %6953 = vmatpush1.bf16.msra.mxu0 %v5925
        %6954 = vmatprep.subr.bf16.mxu0 %v5934
        %6955 = vmatpush1.bf16.msra.mxu0 %v5933
        %6956 = vmatprep.subr.bf16.mxu0 %v5942
        %6957 = vmatpush1.bf16.msra.mxu0 %v5941
        %6958 = vmatprep.subr.bf16.mxu0 %v5950
        %6959 = vmatpush1.bf16.msra.mxu0 %v5949
        %6960 = vmatprep.mubr.bf16.mxu0 %v3604
        %6961 = vmatmul.mubr.bf16.gmra.mrb[0].mxu0 %v3603
        %v6962 = vpop.f32.mrb[0].mxu0
        %v6963 = vadd.f32 %v6922, %v6962
        %v6964 = vpop.f32.mrb[0].mxu0
        %v6965 = vadd.f32 %v6924, %v6964
        %v6966 = vpop.f32.mrb[0].mxu0
        %v6967 = vpop.f32.mrb[0].mxu0
        %6968 = vdwg.mxu0
        %6969 = vmatprep.subr.bf16.mxu0 %v5958
        %6970 = vmatpush1.bf16.msra.mxu0 %v5957
        %6971 = vmatprep.subr.bf16.mxu0 %v5966
        %6972 = vmatpush1.bf16.msra.mxu0 %v5965
        %6973 = vmatprep.subr.bf16.mxu0 %v5974
        %6974 = vmatpush1.bf16.msra.mxu0 %v5973
        %6975 = vmatprep.subr.bf16.mxu0 %v5982
        %6976 = vmatpush1.bf16.msra.mxu0 %v5981
        %6977 = vmatprep.subr.bf16.mxu0 %v5990
        %6978 = vmatpush1.bf16.msra.mxu0 %v5989
        %6979 = vmatprep.subr.bf16.mxu0 %v5998
        %6980 = vmatpush1.bf16.msra.mxu0 %v5997
        %6981 = vmatprep.subr.bf16.mxu0 %v6006
        %6982 = vmatpush1.bf16.msra.mxu0 %v6005
        %6983 = vmatprep.subr.bf16.mxu0 %v6014
        %6984 = vmatpush1.bf16.msra.mxu0 %v6013
        %6985 = vmatprep.subr.bf16.mxu0 %v6022
        %6986 = vmatpush1.bf16.msra.mxu0 %v6021
        %6987 = vmatprep.subr.bf16.mxu0 %v6030
        %6988 = vmatpush1.bf16.msra.mxu0 %v6029
        %6989 = vmatprep.subr.bf16.mxu0 %v6038
        %6990 = vmatpush1.bf16.msra.mxu0 %v6037
        %6991 = vmatprep.subr.bf16.mxu0 %v6046
        %6992 = vmatpush1.bf16.msra.mxu0 %v6045
        %6993 = vmatprep.subr.bf16.mxu0 %v6054
        %6994 = vmatpush1.bf16.msra.mxu0 %v6053
        %6995 = vmatprep.subr.bf16.mxu0 %v6062
        %6996 = vmatpush1.bf16.msra.mxu0 %v6061
        %6997 = vmatprep.subr.bf16.mxu0 %v6070
        %6998 = vmatpush1.bf16.msra.mxu0 %v6069
        %6999 = vmatprep.subr.bf16.mxu0 %v6078
        %7000 = vmatpush1.bf16.msra.mxu0 %v6077
        %7001 = vmatprep.mubr.bf16.mxu0 %v3606
        %7002 = vmatmul.mubr.bf16.gmra.mrb[0].mxu0 %v3605
        %v7003 = vpop.f32.mrb[0].mxu0
        %v7004 = vadd.f32 %v6963, %v7003
        %v7005 = vpop.f32.mrb[0].mxu0
        %v7006 = vadd.f32 %v6965, %v7005
        %v7007 = vpop.f32.mrb[0].mxu0
        %v7008 = vpop.f32.mrb[0].mxu0
        %7009 = vdwg.mxu0
        %7010 = vmatprep.subr.bf16.mxu0 %v6086
        %7011 = vmatpush1.bf16.msra.mxu0 %v6085
        %7012 = vmatprep.subr.bf16.mxu0 %v6094
        %7013 = vmatpush1.bf16.msra.mxu0 %v6093
        %7014 = vmatprep.subr.bf16.mxu0 %v6102
        %7015 = vmatpush1.bf16.msra.mxu0 %v6101
        %7016 = vmatprep.subr.bf16.mxu0 %v6110
        %7017 = vmatpush1.bf16.msra.mxu0 %v6109
        %7018 = vmatprep.subr.bf16.mxu0 %v6118
        %7019 = vmatpush1.bf16.msra.mxu0 %v6117
        %7020 = vmatprep.subr.bf16.mxu0 %v6126
        %7021 = vmatpush1.bf16.msra.mxu0 %v6125
        %7022 = vmatprep.subr.bf16.mxu0 %v6134
        %7023 = vmatpush1.bf16.msra.mxu0 %v6133
        %7024 = vmatprep.subr.bf16.mxu0 %v6142
        %7025 = vmatpush1.bf16.msra.mxu0 %v6141
        %7026 = vmatprep.subr.bf16.mxu0 %v6150
        %7027 = vmatpush1.bf16.msra.mxu0 %v6149
        %7028 = vmatprep.subr.bf16.mxu0 %v6158
        %7029 = vmatpush1.bf16.msra.mxu0 %v6157
        %7030 = vmatprep.subr.bf16.mxu0 %v6166
        %7031 = vmatpush1.bf16.msra.mxu0 %v6165
        %7032 = vmatprep.subr.bf16.mxu0 %v6174
        %7033 = vmatpush1.bf16.msra.mxu0 %v6173
        %7034 = vmatprep.subr.bf16.mxu0 %v6182
        %7035 = vmatpush1.bf16.msra.mxu0 %v6181
        %7036 = vmatprep.subr.bf16.mxu0 %v6190
        %7037 = vmatpush1.bf16.msra.mxu0 %v6189
        %7038 = vmatprep.subr.bf16.mxu0 %v6198
        %7039 = vmatpush1.bf16.msra.mxu0 %v6197
        %7040 = vmatprep.subr.bf16.mxu0 %v6206
        %7041 = vmatpush1.bf16.msra.mxu0 %v6205
        %7042 = vmatprep.mubr.bf16.mxu0 %v3608
        %7043 = vmatmul.mubr.bf16.gmra.mrb[0].mxu0 %v3607
        %v7044 = vpop.f32.mrb[0].mxu0
        %v7045 = vadd.f32 %v7004, %v7044
        %v7046 = vpop.f32.mrb[0].mxu0
        %v7047 = vadd.f32 %v7006, %v7046
        %v7048 = vpop.f32.mrb[0].mxu0
        %v7049 = vpop.f32.mrb[0].mxu0
        %7050 = vdwg.mxu0
        %7051 = vmatprep.subr.bf16.mxu0 %v5704
        %7052 = vmatpush1.bf16.msra.mxu0 %v5703
        %7053 = vmatprep.subr.bf16.mxu0 %v5712
        %7054 = vmatpush1.bf16.msra.mxu0 %v5711
        %7055 = vmatprep.subr.bf16.mxu0 %v5720
        %7056 = vmatpush1.bf16.msra.mxu0 %v5719
        %7057 = vmatprep.subr.bf16.mxu0 %v5728
        %7058 = vmatpush1.bf16.msra.mxu0 %v5727
        %7059 = vmatprep.subr.bf16.mxu0 %v5736
        %7060 = vmatpush1.bf16.msra.mxu0 %v5735
        %7061 = vmatprep.subr.bf16.mxu0 %v5744
        %7062 = vmatpush1.bf16.msra.mxu0 %v5743
        %7063 = vmatprep.subr.bf16.mxu0 %v5752
        %7064 = vmatpush1.bf16.msra.mxu0 %v5751
        %7065 = vmatprep.subr.bf16.mxu0 %v5760
        %7066 = vmatpush1.bf16.msra.mxu0 %v5759
        %7067 = vmatprep.subr.bf16.mxu0 %v5768
        %7068 = vmatpush1.bf16.msra.mxu0 %v5767
        %7069 = vmatprep.subr.bf16.mxu0 %v5776
        %7070 = vmatpush1.bf16.msra.mxu0 %v5775
        %7071 = vmatprep.subr.bf16.mxu0 %v5784
        %7072 = vmatpush1.bf16.msra.mxu0 %v5783
        %7073 = vmatprep.subr.bf16.mxu0 %v5792
        %7074 = vmatpush1.bf16.msra.mxu0 %v5791
        %7075 = vmatprep.subr.bf16.mxu0 %v5800
        %7076 = vmatpush1.bf16.msra.mxu0 %v5799
        %7077 = vmatprep.subr.bf16.mxu0 %v5808
        %7078 = vmatpush1.bf16.msra.mxu0 %v5807
        %7079 = vmatprep.subr.bf16.mxu0 %v5816
        %7080 = vmatpush1.bf16.msra.mxu0 %v5815
        %7081 = vmatprep.subr.bf16.mxu0 %v5824
        %7082 = vmatpush1.bf16.msra.mxu0 %v5823
        %7083 = vmatprep.mubr.bf16.mxu0 %v3602
        %7084 = vmatmul.mubr.bf16.gmra.mrb[0].mxu0 %v3601
        %v7085 = vpop.f32.mrb[0].mxu0
        %v7086 = vadd.f32 %v4142, %v7085
        %v7087 = vpop.f32.mrb[0].mxu0
        %v7088 = vadd.f32 %v4146, %v7087
        %v7089 = vpop.f32.mrb[0].mxu0
        %v7090 = vpop.f32.mrb[0].mxu0
        %7091 = vdwg.mxu0
        %7092 = vmatprep.subr.bf16.mxu0 %v5832
        %7093 = vmatpush1.bf16.msra.mxu0 %v5831
        %7094 = vmatprep.subr.bf16.mxu0 %v5840
        %7095 = vmatpush1.bf16.msra.mxu0 %v5839
        %7096 = vmatprep.subr.bf16.mxu0 %v5848
        %7097 = vmatpush1.bf16.msra.mxu0 %v5847
        %7098 = vmatprep.subr.bf16.mxu0 %v5856
        %7099 = vmatpush1.bf16.msra.mxu0 %v5855
        %7100 = vmatprep.subr.bf16.mxu0 %v5864
        %7101 = vmatpush1.bf16.msra.mxu0 %v5863
        %7102 = vmatprep.subr.bf16.mxu0 %v5872
        %7103 = vmatpush1.bf16.msra.mxu0 %v5871
        %7104 = vmatprep.subr.bf16.mxu0 %v5880
        %7105 = vmatpush1.bf16.msra.mxu0 %v5879
        %7106 = vmatprep.subr.bf16.mxu0 %v5888
        %7107 = vmatpush1.bf16.msra.mxu0 %v5887
        %7108 = vmatprep.subr.bf16.mxu0 %v5896
        %7109 = vmatpush1.bf16.msra.mxu0 %v5895
        %7110 = vmatprep.subr.bf16.mxu0 %v5904
        %7111 = vmatpush1.bf16.msra.mxu0 %v5903
        %7112 = vmatprep.subr.bf16.mxu0 %v5912
        %7113 = vmatpush1.bf16.msra.mxu0 %v5911
        %7114 = vmatprep.subr.bf16.mxu0 %v5920
        %7115 = vmatpush1.bf16.msra.mxu0 %v5919
        %7116 = vmatprep.subr.bf16.mxu0 %v5928
        %7117 = vmatpush1.bf16.msra.mxu0 %v5927
        %7118 = vmatprep.subr.bf16.mxu0 %v5936
        %7119 = vmatpush1.bf16.msra.mxu0 %v5935
        %7120 = vmatprep.subr.bf16.mxu0 %v5944
        %7121 = vmatpush1.bf16.msra.mxu0 %v5943
        %7122 = vmatprep.subr.bf16.mxu0 %v5952
        %7123 = vmatpush1.bf16.msra.mxu0 %v5951
        %7124 = vmatprep.mubr.bf16.mxu0 %v3604
        %7125 = vmatmul.mubr.bf16.gmra.mrb[0].mxu0 %v3603
        %v7126 = vpop.f32.mrb[0].mxu0
        %v7127 = vadd.f32 %v7086, %v7126
        %v7128 = vpop.f32.mrb[0].mxu0
        %v7129 = vadd.f32 %v7088, %v7128
        %v7130 = vpop.f32.mrb[0].mxu0
        %v7131 = vpop.f32.mrb[0].mxu0
        %7132 = vdwg.mxu0
        %7133 = vmatprep.subr.bf16.mxu0 %v5960
        %7134 = vmatpush1.bf16.msra.mxu0 %v5959
        %7135 = vmatprep.subr.bf16.mxu0 %v5968
        %7136 = vmatpush1.bf16.msra.mxu0 %v5967
        %7137 = vmatprep.subr.bf16.mxu0 %v5976
        %7138 = vmatpush1.bf16.msra.mxu0 %v5975
        %7139 = vmatprep.subr.bf16.mxu0 %v5984
        %7140 = vmatpush1.bf16.msra.mxu0 %v5983
        %7141 = vmatprep.subr.bf16.mxu0 %v5992
        %7142 = vmatpush1.bf16.msra.mxu0 %v5991
        %7143 = vmatprep.subr.bf16.mxu0 %v6000
        %7144 = vmatpush1.bf16.msra.mxu0 %v5999
        %7145 = vmatprep.subr.bf16.mxu0 %v6008
        %7146 = vmatpush1.bf16.msra.mxu0 %v6007
        %7147 = vmatprep.subr.bf16.mxu0 %v6016
        %7148 = vmatpush1.bf16.msra.mxu0 %v6015
        %7149 = vmatprep.subr.bf16.mxu0 %v6024
        %7150 = vmatpush1.bf16.msra.mxu0 %v6023
        %7151 = vmatprep.subr.bf16.mxu0 %v6032
        %7152 = vmatpush1.bf16.msra.mxu0 %v6031
        %7153 = vmatprep.subr.bf16.mxu0 %v6040
        %7154 = vmatpush1.bf16.msra.mxu0 %v6039
        %7155 = vmatprep.subr.bf16.mxu0 %v6048
        %7156 = vmatpush1.bf16.msra.mxu0 %v6047
        %7157 = vmatprep.subr.bf16.mxu0 %v6056
        %7158 = vmatpush1.bf16.msra.mxu0 %v6055
        %7159 = vmatprep.subr.bf16.mxu0 %v6064
        %7160 = vmatpush1.bf16.msra.mxu0 %v6063
        %7161 = vmatprep.subr.bf16.mxu0 %v6072
        %7162 = vmatpush1.bf16.msra.mxu0 %v6071
        %7163 = vmatprep.subr.bf16.mxu0 %v6080
        %7164 = vmatpush1.bf16.msra.mxu0 %v6079
        %7165 = vmatprep.mubr.bf16.mxu0 %v3606
        %7166 = vmatmul.mubr.bf16.gmra.mrb[0].mxu0 %v3605
        %v7167 = vpop.f32.mrb[0].mxu0
        %v7168 = vadd.f32 %v7127, %v7167
        %v7169 = vpop.f32.mrb[0].mxu0
        %v7170 = vadd.f32 %v7129, %v7169
        %v7171 = vpop.f32.mrb[0].mxu0
        %v7172 = vpop.f32.mrb[0].mxu0
        %7173 = vdwg.mxu0
        %7174 = vmatprep.subr.bf16.mxu0 %v6088
        %7175 = vmatpush1.bf16.msra.mxu0 %v6087
        %7176 = vmatprep.subr.bf16.mxu0 %v6096
        %7177 = vmatpush1.bf16.msra.mxu0 %v6095
        %7178 = vmatprep.subr.bf16.mxu0 %v6104
        %7179 = vmatpush1.bf16.msra.mxu0 %v6103
        %7180 = vmatprep.subr.bf16.mxu0 %v6112
        %7181 = vmatpush1.bf16.msra.mxu0 %v6111
        %7182 = vmatprep.subr.bf16.mxu0 %v6120
        %7183 = vmatpush1.bf16.msra.mxu0 %v6119
        %7184 = vmatprep.subr.bf16.mxu0 %v6128
        %7185 = vmatpush1.bf16.msra.mxu0 %v6127
        %7186 = vmatprep.subr.bf16.mxu0 %v6136
        %7187 = vmatpush1.bf16.msra.mxu0 %v6135
        %7188 = vmatprep.subr.bf16.mxu0 %v6144
        %7189 = vmatpush1.bf16.msra.mxu0 %v6143
        %7190 = vmatprep.subr.bf16.mxu0 %v6152
        %7191 = vmatpush1.bf16.msra.mxu0 %v6151
        %7192 = vmatprep.subr.bf16.mxu0 %v6160
        %7193 = vmatpush1.bf16.msra.mxu0 %v6159
        %7194 = vmatprep.subr.bf16.mxu0 %v6168
        %7195 = vmatpush1.bf16.msra.mxu0 %v6167
        %7196 = vmatprep.subr.bf16.mxu0 %v6176
        %7197 = vmatpush1.bf16.msra.mxu0 %v6175
        %7198 = vmatprep.subr.bf16.mxu0 %v6184
        %7199 = vmatpush1.bf16.msra.mxu0 %v6183
        %7200 = vmatprep.subr.bf16.mxu0 %v6192
        %7201 = vmatpush1.bf16.msra.mxu0 %v6191
        %7202 = vmatprep.subr.bf16.mxu0 %v6200
        %7203 = vmatpush1.bf16.msra.mxu0 %v6199
        %7204 = vmatprep.subr.bf16.mxu0 %v6208
        %7205 = vmatpush1.bf16.msra.mxu0 %v6207
        %7206 = vmatprep.mubr.bf16.mxu0 %v3608
        %7207 = vmatmul.mubr.bf16.gmra.mrb[0].mxu0 %v3607
        %v7208 = vpop.f32.mrb[0].mxu0
        %v7209 = vadd.f32 %v7168, %v7208
        %v7210 = vpop.f32.mrb[0].mxu0
        %v7211 = vadd.f32 %v7170, %v7210
        %v7212 = vpop.f32.mrb[0].mxu0
        %v7213 = vpop.f32.mrb[0].mxu0
        %7214 = vdwg.mxu0
        %7215 = vmatprep.subr.bf16.mxu0 %v5706
        %7216 = vmatpush1.bf16.msra.mxu0 %v5705
        %7217 = vmatprep.subr.bf16.mxu0 %v5714
        %7218 = vmatpush1.bf16.msra.mxu0 %v5713
        %7219 = vmatprep.subr.bf16.mxu0 %v5722
        %7220 = vmatpush1.bf16.msra.mxu0 %v5721
        %7221 = vmatprep.subr.bf16.mxu0 %v5730
        %7222 = vmatpush1.bf16.msra.mxu0 %v5729
        %7223 = vmatprep.subr.bf16.mxu0 %v5738
        %7224 = vmatpush1.bf16.msra.mxu0 %v5737
        %7225 = vmatprep.subr.bf16.mxu0 %v5746
        %7226 = vmatpush1.bf16.msra.mxu0 %v5745
        %7227 = vmatprep.subr.bf16.mxu0 %v5754
        %7228 = vmatpush1.bf16.msra.mxu0 %v5753
        %7229 = vmatprep.subr.bf16.mxu0 %v5762
        %7230 = vmatpush1.bf16.msra.mxu0 %v5761
        %7231 = vmatprep.subr.bf16.mxu0 %v5770
        %7232 = vmatpush1.bf16.msra.mxu0 %v5769
        %7233 = vmatprep.subr.bf16.mxu0 %v5778
        %7234 = vmatpush1.bf16.msra.mxu0 %v5777
        %7235 = vmatprep.subr.bf16.mxu0 %v5786
        %7236 = vmatpush1.bf16.msra.mxu0 %v5785
        %7237 = vmatprep.subr.bf16.mxu0 %v5794
        %7238 = vmatpush1.bf16.msra.mxu0 %v5793
        %7239 = vmatprep.subr.bf16.mxu0 %v5802
        %7240 = vmatpush1.bf16.msra.mxu0 %v5801
        %7241 = vmatprep.subr.bf16.mxu0 %v5810
        %7242 = vmatpush1.bf16.msra.mxu0 %v5809
        %7243 = vmatprep.subr.bf16.mxu0 %v5818
        %7244 = vmatpush1.bf16.msra.mxu0 %v5817
        %7245 = vmatprep.subr.bf16.mxu0 %v5826
        %7246 = vmatpush1.bf16.msra.mxu0 %v5825
        %7247 = vmatprep.mubr.bf16.mxu0 %v3602
        %7248 = vmatmul.mubr.bf16.gmra.mrb[0].mxu0 %v3601
        %v7249 = vpop.f32.mrb[0].mxu0
        %v7250 = vadd.f32 %v4150, %v7249
        %v7251 = vpop.f32.mrb[0].mxu0
        %v7252 = vadd.f32 %v4154, %v7251
        %v7253 = vpop.f32.mrb[0].mxu0
        %v7254 = vpop.f32.mrb[0].mxu0
        %7255 = vdwg.mxu0
        %7256 = vmatprep.subr.bf16.mxu0 %v5834
        %7257 = vmatpush1.bf16.msra.mxu0 %v5833
        %7258 = vmatprep.subr.bf16.mxu0 %v5842
        %7259 = vmatpush1.bf16.msra.mxu0 %v5841
        %7260 = vmatprep.subr.bf16.mxu0 %v5850
        %7261 = vmatpush1.bf16.msra.mxu0 %v5849
        %7262 = vmatprep.subr.bf16.mxu0 %v5858
        %7263 = vmatpush1.bf16.msra.mxu0 %v5857
        %7264 = vmatprep.subr.bf16.mxu0 %v5866
        %7265 = vmatpush1.bf16.msra.mxu0 %v5865
        %7266 = vmatprep.subr.bf16.mxu0 %v5874
        %7267 = vmatpush1.bf16.msra.mxu0 %v5873
        %7268 = vmatprep.subr.bf16.mxu0 %v5882
        %7269 = vmatpush1.bf16.msra.mxu0 %v5881
        %7270 = vmatprep.subr.bf16.mxu0 %v5890
        %7271 = vmatpush1.bf16.msra.mxu0 %v5889
        %7272 = vmatprep.subr.bf16.mxu0 %v5898
        %7273 = vmatpush1.bf16.msra.mxu0 %v5897
        %7274 = vmatprep.subr.bf16.mxu0 %v5906
        %7275 = vmatpush1.bf16.msra.mxu0 %v5905
        %7276 = vmatprep.subr.bf16.mxu0 %v5914
        %7277 = vmatpush1.bf16.msra.mxu0 %v5913
        %7278 = vmatprep.subr.bf16.mxu0 %v5922
        %7279 = vmatpush1.bf16.msra.mxu0 %v5921
        %7280 = vmatprep.subr.bf16.mxu0 %v5930
        %7281 = vmatpush1.bf16.msra.mxu0 %v5929
        %7282 = vmatprep.subr.bf16.mxu0 %v5938
        %7283 = vmatpush1.bf16.msra.mxu0 %v5937
        %7284 = vmatprep.subr.bf16.mxu0 %v5946
        %7285 = vmatpush1.bf16.msra.mxu0 %v5945
        %7286 = vmatprep.subr.bf16.mxu0 %v5954
        %7287 = vmatpush1.bf16.msra.mxu0 %v5953
        %7288 = vmatprep.mubr.bf16.mxu0 %v3604
        %7289 = vmatmul.mubr.bf16.gmra.mrb[0].mxu0 %v3603
        %v7290 = vpop.f32.mrb[0].mxu0
        %v7291 = vadd.f32 %v7250, %v7290
        %v7292 = vpop.f32.mrb[0].mxu0
        %v7293 = vadd.f32 %v7252, %v7292
        %v7294 = vpop.f32.mrb[0].mxu0
        %v7295 = vpop.f32.mrb[0].mxu0
        %7296 = vdwg.mxu0
        %7297 = vmatprep.subr.bf16.mxu0 %v5962
        %7298 = vmatpush1.bf16.msra.mxu0 %v5961
        %7299 = vmatprep.subr.bf16.mxu0 %v5970
        %7300 = vmatpush1.bf16.msra.mxu0 %v5969
        %7301 = vmatprep.subr.bf16.mxu0 %v5978
        %7302 = vmatpush1.bf16.msra.mxu0 %v5977
        %7303 = vmatprep.subr.bf16.mxu0 %v5986
        %7304 = vmatpush1.bf16.msra.mxu0 %v5985
        %7305 = vmatprep.subr.bf16.mxu0 %v5994
        %7306 = vmatpush1.bf16.msra.mxu0 %v5993
        %7307 = vmatprep.subr.bf16.mxu0 %v6002
        %7308 = vmatpush1.bf16.msra.mxu0 %v6001
        %7309 = vmatprep.subr.bf16.mxu0 %v6010
        %7310 = vmatpush1.bf16.msra.mxu0 %v6009
        %7311 = vmatprep.subr.bf16.mxu0 %v6018
        %7312 = vmatpush1.bf16.msra.mxu0 %v6017
        %7313 = vmatprep.subr.bf16.mxu0 %v6026
        %7314 = vmatpush1.bf16.msra.mxu0 %v6025
        %7315 = vmatprep.subr.bf16.mxu0 %v6034
        %7316 = vmatpush1.bf16.msra.mxu0 %v6033
        %7317 = vmatprep.subr.bf16.mxu0 %v6042
        %7318 = vmatpush1.bf16.msra.mxu0 %v6041
        %7319 = vmatprep.subr.bf16.mxu0 %v6050
        %7320 = vmatpush1.bf16.msra.mxu0 %v6049
        %7321 = vmatprep.subr.bf16.mxu0 %v6058
        %7322 = vmatpush1.bf16.msra.mxu0 %v6057
        %7323 = vmatprep.subr.bf16.mxu0 %v6066
        %7324 = vmatpush1.bf16.msra.mxu0 %v6065
        %7325 = vmatprep.subr.bf16.mxu0 %v6074
        %7326 = vmatpush1.bf16.msra.mxu0 %v6073
        %7327 = vmatprep.subr.bf16.mxu0 %v6082
        %7328 = vmatpush1.bf16.msra.mxu0 %v6081
        %7329 = vmatprep.mubr.bf16.mxu0 %v3606
        %7330 = vmatmul.mubr.bf16.gmra.mrb[0].mxu0 %v3605
        %v7331 = vpop.f32.mrb[0].mxu0
        %v7332 = vadd.f32 %v7291, %v7331
        %v7333 = vpop.f32.mrb[0].mxu0
        %v7334 = vadd.f32 %v7293, %v7333
        %v7335 = vpop.f32.mrb[0].mxu0
        %v7336 = vpop.f32.mrb[0].mxu0
        %7337 = vdwg.mxu0
        %7338 = vmatprep.subr.bf16.mxu0 %v6090
        %7339 = vmatpush1.bf16.msra.mxu0 %v6089
        %7340 = vmatprep.subr.bf16.mxu0 %v6098
        %7341 = vmatpush1.bf16.msra.mxu0 %v6097
        %7342 = vmatprep.subr.bf16.mxu0 %v6106
        %7343 = vmatpush1.bf16.msra.mxu0 %v6105
        %7344 = vmatprep.subr.bf16.mxu0 %v6114
        %7345 = vmatpush1.bf16.msra.mxu0 %v6113
        %7346 = vmatprep.subr.bf16.mxu0 %v6122
        %7347 = vmatpush1.bf16.msra.mxu0 %v6121
        %7348 = vmatprep.subr.bf16.mxu0 %v6130
        %7349 = vmatpush1.bf16.msra.mxu0 %v6129
        %7350 = vmatprep.subr.bf16.mxu0 %v6138
        %7351 = vmatpush1.bf16.msra.mxu0 %v6137
        %7352 = vmatprep.subr.bf16.mxu0 %v6146
        %7353 = vmatpush1.bf16.msra.mxu0 %v6145
        %7354 = vmatprep.subr.bf16.mxu0 %v6154
        %7355 = vmatpush1.bf16.msra.mxu0 %v6153
        %7356 = vmatprep.subr.bf16.mxu0 %v6162
        %7357 = vmatpush1.bf16.msra.mxu0 %v6161
        %7358 = vmatprep.subr.bf16.mxu0 %v6170
        %7359 = vmatpush1.bf16.msra.mxu0 %v6169
        %7360 = vmatprep.subr.bf16.mxu0 %v6178
        %7361 = vmatpush1.bf16.msra.mxu0 %v6177
        %7362 = vmatprep.subr.bf16.mxu0 %v6186
        %7363 = vmatpush1.bf16.msra.mxu0 %v6185
        %7364 = vmatprep.subr.bf16.mxu0 %v6194
        %7365 = vmatpush1.bf16.msra.mxu0 %v6193
        %7366 = vmatprep.subr.bf16.mxu0 %v6202
        %7367 = vmatpush1.bf16.msra.mxu0 %v6201
        %7368 = vmatprep.subr.bf16.mxu0 %v6210
        %7369 = vmatpush1.bf16.msra.mxu0 %v6209
        %7370 = vmatprep.mubr.bf16.mxu0 %v3608
        %7371 = vmatmul.mubr.bf16.gmra.mrb[0].mxu0 %v3607
        %v7372 = vpop.f32.mrb[0].mxu0
        %v7373 = vadd.f32 %v7332, %v7372
        %v7374 = vpop.f32.mrb[0].mxu0
        %v7375 = vadd.f32 %v7334, %v7374
        %v7376 = vpop.f32.mrb[0].mxu0
        %v7377 = vpop.f32.mrb[0].mxu0
        %7378 = vdwg.mxu0
        %v7379 = vmax.f32 %v6881, 0.0
        %v7380 = vmax.f32 %v6883, 0.0
        %v7381 = vmax.f32 %v7045, 0.0
        %v7382 = vmax.f32 %v7047, 0.0
        %v7383 = vmax.f32 %v7209, 0.0
        %v7384 = vmax.f32 %v7211, 0.0
        %v7385 = vmax.f32 %v7373, 0.0
        %v7386 = vmax.f32 %v7375, 0.0
        %v7387 = vpack.c.bf16 %v7379, %v7379
        %v7388 = vpack.c.bf16 %v7380, %v7380
        %v7389 = vpack.c.bf16 %v7381, %v7381
        %v7390 = vpack.c.bf16 %v7382, %v7382
        %v7391 = vpack.c.bf16 %v7383, %v7383
        %v7392 = vpack.c.bf16 %v7384, %v7384
        %v7393 = vpack.c.bf16 %v7385, %v7385
        %v7394 = vpack.c.bf16 %v7386, %v7386
        %v7395 = vld [vmem:[#allocation7] sm:$0xff]
        %v7396 = vld [vmem:[#allocation7 + $0x8] sm:$0xff]
        %v7397 = vld [vmem:[#allocation7 + $0x10] sm:$0xff]
        %v7398 = vld [vmem:[#allocation7 + $0x18] sm:$0xff]
        %v7399 = vld [vmem:[#allocation7 + $0x20] sm:$0xff]
        %v7400 = vld [vmem:[#allocation7 + $0x28] sm:$0xff]
        %v7401 = vld [vmem:[#allocation7 + $0x30] sm:$0xff]
        %v7402 = vld [vmem:[#allocation7 + $0x38] sm:$0xff]
        %v7403 = vld [vmem:[#allocation7 + $0x40] sm:$0xff]
        %v7404 = vld [vmem:[#allocation7 + $0x48] sm:$0xff]
        %v7405 = vld [vmem:[#allocation7 + $0x50] sm:$0xff]
        %v7406 = vld [vmem:[#allocation7 + $0x58] sm:$0xff]
        %v7407 = vld [vmem:[#allocation7 + $0x60] sm:$0xff]
        %v7408 = vld [vmem:[#allocation7 + $0x68] sm:$0xff]
        %v7409 = vld [vmem:[#allocation7 + $0x70] sm:$0xff]
        %v7410 = vld [vmem:[#allocation7 + $0x78] sm:$0xff]
        %v7411 = vld [vmem:[#allocation7 + $0x80] sm:$0xff]
        %v7412 = vld [vmem:[#allocation7 + $0x88] sm:$0xff]
        %v7413 = vld [vmem:[#allocation7 + $0x90] sm:$0xff]
        %v7414 = vld [vmem:[#allocation7 + $0x98] sm:$0xff]
        %v7415 = vld [vmem:[#allocation7 + $0xa0] sm:$0xff]
        %v7416 = vld [vmem:[#allocation7 + $0xa8] sm:$0xff]
        %v7417 = vld [vmem:[#allocation7 + $0xb0] sm:$0xff]
        %v7418 = vld [vmem:[#allocation7 + $0xb8] sm:$0xff]
        %v7419 = vld [vmem:[#allocation7 + $0xc0] sm:$0xff]
        %v7420 = vld [vmem:[#allocation7 + $0xc8] sm:$0xff]
        %v7421 = vld [vmem:[#allocation7 + $0xd0] sm:$0xff]
        %v7422 = vld [vmem:[#allocation7 + $0xd8] sm:$0xff]
        %v7423 = vld [vmem:[#allocation7 + $0xe0] sm:$0xff]
        %v7424 = vld [vmem:[#allocation7 + $0xe8] sm:$0xff]
        %v7425 = vld [vmem:[#allocation7 + $0xf0] sm:$0xff]
        %v7426 = vld [vmem:[#allocation7 + $0xf8] sm:$0xff]
        %v7427 = vld [vmem:[#allocation7 + $0x100] sm:$0xff]
        %v7428 = vld [vmem:[#allocation7 + $0x108] sm:$0xff]
        %v7429 = vld [vmem:[#allocation7 + $0x110] sm:$0xff]
        %v7430 = vld [vmem:[#allocation7 + $0x118] sm:$0xff]
        %v7431 = vld [vmem:[#allocation7 + $0x120] sm:$0xff]
        %v7432 = vld [vmem:[#allocation7 + $0x128] sm:$0xff]
        %v7433 = vld [vmem:[#allocation7 + $0x130] sm:$0xff]
        %v7434 = vld [vmem:[#allocation7 + $0x138] sm:$0xff]
        %v7435 = vld [vmem:[#allocation7 + $0x140] sm:$0xff]
        %v7436 = vld [vmem:[#allocation7 + $0x148] sm:$0xff]
        %v7437 = vld [vmem:[#allocation7 + $0x150] sm:$0xff]
        %v7438 = vld [vmem:[#allocation7 + $0x158] sm:$0xff]
        %v7439 = vld [vmem:[#allocation7 + $0x160] sm:$0xff]
        %v7440 = vld [vmem:[#allocation7 + $0x168] sm:$0xff]
        %v7441 = vld [vmem:[#allocation7 + $0x170] sm:$0xff]
        %v7442 = vld [vmem:[#allocation7 + $0x178] sm:$0xff]
        %v7443 = vld [vmem:[#allocation7 + $0x180] sm:$0xff]
        %v7444 = vld [vmem:[#allocation7 + $0x188] sm:$0xff]
        %v7445 = vld [vmem:[#allocation7 + $0x190] sm:$0xff]
        %v7446 = vld [vmem:[#allocation7 + $0x198] sm:$0xff]
        %v7447 = vld [vmem:[#allocation7 + $0x1a0] sm:$0xff]
        %v7448 = vld [vmem:[#allocation7 + $0x1a8] sm:$0xff]
        %v7449 = vld [vmem:[#allocation7 + $0x1b0] sm:$0xff]
        %v7450 = vld [vmem:[#allocation7 + $0x1b8] sm:$0xff]
        %v7451 = vld [vmem:[#allocation7 + $0x1c0] sm:$0xff]
        %v7452 = vld [vmem:[#allocation7 + $0x1c8] sm:$0xff]
        %v7453 = vld [vmem:[#allocation7 + $0x1d0] sm:$0xff]
        %v7454 = vld [vmem:[#allocation7 + $0x1d8] sm:$0xff]
        %v7455 = vld [vmem:[#allocation7 + $0x1e0] sm:$0xff]
        %v7456 = vld [vmem:[#allocation7 + $0x1e8] sm:$0xff]
        %v7457 = vld [vmem:[#allocation7 + $0x1f0] sm:$0xff]
        %v7458 = vld [vmem:[#allocation7 + $0x1f8] sm:$0xff]
        %v7459 = vld [vmem:[#allocation7 + $0x200] sm:$0xff]
        %v7460 = vld [vmem:[#allocation7 + $0x208] sm:$0xff]
        %v7461 = vld [vmem:[#allocation7 + $0x210] sm:$0xff]
        %v7462 = vld [vmem:[#allocation7 + $0x218] sm:$0xff]
        %v7463 = vld [vmem:[#allocation7 + $0x220] sm:$0xff]
        %v7464 = vld [vmem:[#allocation7 + $0x228] sm:$0xff]
        %v7465 = vld [vmem:[#allocation7 + $0x230] sm:$0xff]
        %v7466 = vld [vmem:[#allocation7 + $0x238] sm:$0xff]
        %v7467 = vld [vmem:[#allocation7 + $0x240] sm:$0xff]
        %v7468 = vld [vmem:[#allocation7 + $0x248] sm:$0xff]
        %v7469 = vld [vmem:[#allocation7 + $0x250] sm:$0xff]
        %v7470 = vld [vmem:[#allocation7 + $0x258] sm:$0xff]
        %v7471 = vld [vmem:[#allocation7 + $0x260] sm:$0xff]
        %v7472 = vld [vmem:[#allocation7 + $0x268] sm:$0xff]
        %v7473 = vld [vmem:[#allocation7 + $0x270] sm:$0xff]
        %v7474 = vld [vmem:[#allocation7 + $0x278] sm:$0xff]
        %v7475 = vld [vmem:[#allocation7 + $0x280] sm:$0xff]
        %v7476 = vld [vmem:[#allocation7 + $0x288] sm:$0xff]
        %v7477 = vld [vmem:[#allocation7 + $0x290] sm:$0xff]
        %v7478 = vld [vmem:[#allocation7 + $0x298] sm:$0xff]
        %v7479 = vld [vmem:[#allocation7 + $0x2a0] sm:$0xff]
        %v7480 = vld [vmem:[#allocation7 + $0x2a8] sm:$0xff]
        %v7481 = vld [vmem:[#allocation7 + $0x2b0] sm:$0xff]
        %v7482 = vld [vmem:[#allocation7 + $0x2b8] sm:$0xff]
        %v7483 = vld [vmem:[#allocation7 + $0x2c0] sm:$0xff]
        %v7484 = vld [vmem:[#allocation7 + $0x2c8] sm:$0xff]
        %v7485 = vld [vmem:[#allocation7 + $0x2d0] sm:$0xff]
        %v7486 = vld [vmem:[#allocation7 + $0x2d8] sm:$0xff]
        %v7487 = vld [vmem:[#allocation7 + $0x2e0] sm:$0xff]
        %v7488 = vld [vmem:[#allocation7 + $0x2e8] sm:$0xff]
        %v7489 = vld [vmem:[#allocation7 + $0x2f0] sm:$0xff]
        %v7490 = vld [vmem:[#allocation7 + $0x2f8] sm:$0xff]
        %v7491 = vld [vmem:[#allocation7 + $0x300] sm:$0xff]
        %v7492 = vld [vmem:[#allocation7 + $0x308] sm:$0xff]
        %v7493 = vld [vmem:[#allocation7 + $0x310] sm:$0xff]
        %v7494 = vld [vmem:[#allocation7 + $0x318] sm:$0xff]
        %v7495 = vld [vmem:[#allocation7 + $0x320] sm:$0xff]
        %v7496 = vld [vmem:[#allocation7 + $0x328] sm:$0xff]
        %v7497 = vld [vmem:[#allocation7 + $0x330] sm:$0xff]
        %v7498 = vld [vmem:[#allocation7 + $0x338] sm:$0xff]
        %v7499 = vld [vmem:[#allocation7 + $0x340] sm:$0xff]
        %v7500 = vld [vmem:[#allocation7 + $0x348] sm:$0xff]
        %v7501 = vld [vmem:[#allocation7 + $0x350] sm:$0xff]
        %v7502 = vld [vmem:[#allocation7 + $0x358] sm:$0xff]
        %v7503 = vld [vmem:[#allocation7 + $0x360] sm:$0xff]
        %v7504 = vld [vmem:[#allocation7 + $0x368] sm:$0xff]
        %v7505 = vld [vmem:[#allocation7 + $0x370] sm:$0xff]
        %v7506 = vld [vmem:[#allocation7 + $0x378] sm:$0xff]
        %v7507 = vld [vmem:[#allocation7 + $0x380] sm:$0xff]
        %v7508 = vld [vmem:[#allocation7 + $0x388] sm:$0xff]
        %v7509 = vld [vmem:[#allocation7 + $0x390] sm:$0xff]
        %v7510 = vld [vmem:[#allocation7 + $0x398] sm:$0xff]
        %v7511 = vld [vmem:[#allocation7 + $0x3a0] sm:$0xff]
        %v7512 = vld [vmem:[#allocation7 + $0x3a8] sm:$0xff]
        %v7513 = vld [vmem:[#allocation7 + $0x3b0] sm:$0xff]
        %v7514 = vld [vmem:[#allocation7 + $0x3b8] sm:$0xff]
        %v7515 = vld [vmem:[#allocation7 + $0x3c0] sm:$0xff]
        %v7516 = vld [vmem:[#allocation7 + $0x3c8] sm:$0xff]
        %v7517 = vld [vmem:[#allocation7 + $0x3d0] sm:$0xff]
        %v7518 = vld [vmem:[#allocation7 + $0x3d8] sm:$0xff]
        %v7519 = vld [vmem:[#allocation7 + $0x3e0] sm:$0xff]
        %v7520 = vld [vmem:[#allocation7 + $0x3e8] sm:$0xff]
        %v7521 = vld [vmem:[#allocation7 + $0x3f0] sm:$0xff]
        %v7522 = vld [vmem:[#allocation7 + $0x3f8] sm:$0xff]
        %v7523 = vld [vmem:[#allocation7 + $0x400] sm:$0xff]
        %v7524 = vld [vmem:[#allocation7 + $0x408] sm:$0xff]
        %v7525 = vld [vmem:[#allocation7 + $0x410] sm:$0xff]
        %v7526 = vld [vmem:[#allocation7 + $0x418] sm:$0xff]
        %v7527 = vld [vmem:[#allocation7 + $0x420] sm:$0xff]
        %v7528 = vld [vmem:[#allocation7 + $0x428] sm:$0xff]
        %v7529 = vld [vmem:[#allocation7 + $0x430] sm:$0xff]
        %v7530 = vld [vmem:[#allocation7 + $0x438] sm:$0xff]
        %v7531 = vld [vmem:[#allocation7 + $0x440] sm:$0xff]
        %v7532 = vld [vmem:[#allocation7 + $0x448] sm:$0xff]
        %v7533 = vld [vmem:[#allocation7 + $0x450] sm:$0xff]
        %v7534 = vld [vmem:[#allocation7 + $0x458] sm:$0xff]
        %v7535 = vld [vmem:[#allocation7 + $0x460] sm:$0xff]
        %v7536 = vld [vmem:[#allocation7 + $0x468] sm:$0xff]
        %v7537 = vld [vmem:[#allocation7 + $0x470] sm:$0xff]
        %v7538 = vld [vmem:[#allocation7 + $0x478] sm:$0xff]
        %v7539 = vld [vmem:[#allocation7 + $0x480] sm:$0xff]
        %v7540 = vld [vmem:[#allocation7 + $0x488] sm:$0xff]
        %v7541 = vld [vmem:[#allocation7 + $0x490] sm:$0xff]
        %v7542 = vld [vmem:[#allocation7 + $0x498] sm:$0xff]
        %v7543 = vld [vmem:[#allocation7 + $0x4a0] sm:$0xff]
        %v7544 = vld [vmem:[#allocation7 + $0x4a8] sm:$0xff]
        %v7545 = vld [vmem:[#allocation7 + $0x4b0] sm:$0xff]
        %v7546 = vld [vmem:[#allocation7 + $0x4b8] sm:$0xff]
        %v7547 = vld [vmem:[#allocation7 + $0x4c0] sm:$0xff]
        %v7548 = vld [vmem:[#allocation7 + $0x4c8] sm:$0xff]
        %v7549 = vld [vmem:[#allocation7 + $0x4d0] sm:$0xff]
        %v7550 = vld [vmem:[#allocation7 + $0x4d8] sm:$0xff]
        %v7551 = vld [vmem:[#allocation7 + $0x4e0] sm:$0xff]
        %v7552 = vld [vmem:[#allocation7 + $0x4e8] sm:$0xff]
        %v7553 = vld [vmem:[#allocation7 + $0x4f0] sm:$0xff]
        %v7554 = vld [vmem:[#allocation7 + $0x4f8] sm:$0xff]
        %v7555 = vld [vmem:[#allocation7 + $0x500] sm:$0xff]
        %v7556 = vld [vmem:[#allocation7 + $0x508] sm:$0xff]
        %v7557 = vld [vmem:[#allocation7 + $0x510] sm:$0xff]
        %v7558 = vld [vmem:[#allocation7 + $0x518] sm:$0xff]
        %v7559 = vld [vmem:[#allocation7 + $0x520] sm:$0xff]
        %v7560 = vld [vmem:[#allocation7 + $0x528] sm:$0xff]
        %v7561 = vld [vmem:[#allocation7 + $0x530] sm:$0xff]
        %v7562 = vld [vmem:[#allocation7 + $0x538] sm:$0xff]
        %v7563 = vld [vmem:[#allocation7 + $0x540] sm:$0xff]
        %v7564 = vld [vmem:[#allocation7 + $0x548] sm:$0xff]
        %v7565 = vld [vmem:[#allocation7 + $0x550] sm:$0xff]
        %v7566 = vld [vmem:[#allocation7 + $0x558] sm:$0xff]
        %v7567 = vld [vmem:[#allocation7 + $0x560] sm:$0xff]
        %v7568 = vld [vmem:[#allocation7 + $0x568] sm:$0xff]
        %v7569 = vld [vmem:[#allocation7 + $0x570] sm:$0xff]
        %v7570 = vld [vmem:[#allocation7 + $0x578] sm:$0xff]
        %v7571 = vld [vmem:[#allocation7 + $0x580] sm:$0xff]
        %v7572 = vld [vmem:[#allocation7 + $0x588] sm:$0xff]
        %v7573 = vld [vmem:[#allocation7 + $0x590] sm:$0xff]
        %v7574 = vld [vmem:[#allocation7 + $0x598] sm:$0xff]
        %v7575 = vld [vmem:[#allocation7 + $0x5a0] sm:$0xff]
        %v7576 = vld [vmem:[#allocation7 + $0x5a8] sm:$0xff]
        %v7577 = vld [vmem:[#allocation7 + $0x5b0] sm:$0xff]
        %v7578 = vld [vmem:[#allocation7 + $0x5b8] sm:$0xff]
        %v7579 = vld [vmem:[#allocation7 + $0x5c0] sm:$0xff]
        %v7580 = vld [vmem:[#allocation7 + $0x5c8] sm:$0xff]
        %v7581 = vld [vmem:[#allocation7 + $0x5d0] sm:$0xff]
        %v7582 = vld [vmem:[#allocation7 + $0x5d8] sm:$0xff]
        %v7583 = vld [vmem:[#allocation7 + $0x5e0] sm:$0xff]
        %v7584 = vld [vmem:[#allocation7 + $0x5e8] sm:$0xff]
        %v7585 = vld [vmem:[#allocation7 + $0x5f0] sm:$0xff]
        %v7586 = vld [vmem:[#allocation7 + $0x5f8] sm:$0xff]
        %v7587 = vld [vmem:[#allocation7 + $0x600] sm:$0xff]
        %v7588 = vld [vmem:[#allocation7 + $0x608] sm:$0xff]
        %v7589 = vld [vmem:[#allocation7 + $0x610] sm:$0xff]
        %v7590 = vld [vmem:[#allocation7 + $0x618] sm:$0xff]
        %v7591 = vld [vmem:[#allocation7 + $0x620] sm:$0xff]
        %v7592 = vld [vmem:[#allocation7 + $0x628] sm:$0xff]
        %v7593 = vld [vmem:[#allocation7 + $0x630] sm:$0xff]
        %v7594 = vld [vmem:[#allocation7 + $0x638] sm:$0xff]
        %v7595 = vld [vmem:[#allocation7 + $0x640] sm:$0xff]
        %v7596 = vld [vmem:[#allocation7 + $0x648] sm:$0xff]
        %v7597 = vld [vmem:[#allocation7 + $0x650] sm:$0xff]
        %v7598 = vld [vmem:[#allocation7 + $0x658] sm:$0xff]
        %v7599 = vld [vmem:[#allocation7 + $0x660] sm:$0xff]
        %v7600 = vld [vmem:[#allocation7 + $0x668] sm:$0xff]
        %v7601 = vld [vmem:[#allocation7 + $0x670] sm:$0xff]
        %v7602 = vld [vmem:[#allocation7 + $0x678] sm:$0xff]
        %v7603 = vld [vmem:[#allocation7 + $0x680] sm:$0xff]
        %v7604 = vld [vmem:[#allocation7 + $0x688] sm:$0xff]
        %v7605 = vld [vmem:[#allocation7 + $0x690] sm:$0xff]
        %v7606 = vld [vmem:[#allocation7 + $0x698] sm:$0xff]
        %v7607 = vld [vmem:[#allocation7 + $0x6a0] sm:$0xff]
        %v7608 = vld [vmem:[#allocation7 + $0x6a8] sm:$0xff]
        %v7609 = vld [vmem:[#allocation7 + $0x6b0] sm:$0xff]
        %v7610 = vld [vmem:[#allocation7 + $0x6b8] sm:$0xff]
        %v7611 = vld [vmem:[#allocation7 + $0x6c0] sm:$0xff]
        %v7612 = vld [vmem:[#allocation7 + $0x6c8] sm:$0xff]
        %v7613 = vld [vmem:[#allocation7 + $0x6d0] sm:$0xff]
        %v7614 = vld [vmem:[#allocation7 + $0x6d8] sm:$0xff]
        %v7615 = vld [vmem:[#allocation7 + $0x6e0] sm:$0xff]
        %v7616 = vld [vmem:[#allocation7 + $0x6e8] sm:$0xff]
        %v7617 = vld [vmem:[#allocation7 + $0x6f0] sm:$0xff]
        %v7618 = vld [vmem:[#allocation7 + $0x6f8] sm:$0xff]
        %v7619 = vld [vmem:[#allocation7 + $0x700] sm:$0xff]
        %v7620 = vld [vmem:[#allocation7 + $0x708] sm:$0xff]
        %v7621 = vld [vmem:[#allocation7 + $0x710] sm:$0xff]
        %v7622 = vld [vmem:[#allocation7 + $0x718] sm:$0xff]
        %v7623 = vld [vmem:[#allocation7 + $0x720] sm:$0xff]
        %v7624 = vld [vmem:[#allocation7 + $0x728] sm:$0xff]
        %v7625 = vld [vmem:[#allocation7 + $0x730] sm:$0xff]
        %v7626 = vld [vmem:[#allocation7 + $0x738] sm:$0xff]
        %v7627 = vld [vmem:[#allocation7 + $0x740] sm:$0xff]
        %v7628 = vld [vmem:[#allocation7 + $0x748] sm:$0xff]
        %v7629 = vld [vmem:[#allocation7 + $0x750] sm:$0xff]
        %v7630 = vld [vmem:[#allocation7 + $0x758] sm:$0xff]
        %v7631 = vld [vmem:[#allocation7 + $0x760] sm:$0xff]
        %v7632 = vld [vmem:[#allocation7 + $0x768] sm:$0xff]
        %v7633 = vld [vmem:[#allocation7 + $0x770] sm:$0xff]
        %v7634 = vld [vmem:[#allocation7 + $0x778] sm:$0xff]
        %v7635 = vld [vmem:[#allocation7 + $0x780] sm:$0xff]
        %v7636 = vld [vmem:[#allocation7 + $0x788] sm:$0xff]
        %v7637 = vld [vmem:[#allocation7 + $0x790] sm:$0xff]
        %v7638 = vld [vmem:[#allocation7 + $0x798] sm:$0xff]
        %v7639 = vld [vmem:[#allocation7 + $0x7a0] sm:$0xff]
        %v7640 = vld [vmem:[#allocation7 + $0x7a8] sm:$0xff]
        %v7641 = vld [vmem:[#allocation7 + $0x7b0] sm:$0xff]
        %v7642 = vld [vmem:[#allocation7 + $0x7b8] sm:$0xff]
        %v7643 = vld [vmem:[#allocation7 + $0x7c0] sm:$0xff]
        %v7644 = vld [vmem:[#allocation7 + $0x7c8] sm:$0xff]
        %v7645 = vld [vmem:[#allocation7 + $0x7d0] sm:$0xff]
        %v7646 = vld [vmem:[#allocation7 + $0x7d8] sm:$0xff]
        %v7647 = vld [vmem:[#allocation7 + $0x7e0] sm:$0xff]
        %v7648 = vld [vmem:[#allocation7 + $0x7e8] sm:$0xff]
        %v7649 = vld [vmem:[#allocation7 + $0x7f0] sm:$0xff]
        %v7650 = vld [vmem:[#allocation7 + $0x7f8] sm:$0xff]
        %v7651 = vld [vmem:[#allocation9] sm:$0xf]
        %v7653 = vlaneseq
        %v7654 = vshrl.u32 %v7653, 7
        %v7655 = vsub.s32 0, %v7654
        %v7656 = vrot.slane %v7651, %v7655
        %v7657 = vlaneseq
        %v7658 = vshrl.u32 %v7657, 7
        %v7659 = vsub.s32 1, %v7658
        %v7660 = vrot.slane %v7651, %v7659
        %v7661 = vlaneseq
        %v7662 = vshrl.u32 %v7661, 7
        %v7663 = vsub.s32 2, %v7662
        %v7664 = vrot.slane %v7651, %v7663
        %v7665 = vlaneseq
        %v7666 = vshrl.u32 %v7665, 7
        %v7667 = vsub.s32 3, %v7666
        %v7668 = vrot.slane %v7651, %v7667
        %v7929 = vunpack.c.l.b16 %v7395
        %v7930 = vunpack.c.h.b16 %v7395
        %v7931 = vunpack.c.l.b16 %v7396
        %v7932 = vunpack.c.h.b16 %v7396
        %v7933 = vunpack.c.l.b16 %v7397
        %v7934 = vunpack.c.h.b16 %v7397
        %v7935 = vunpack.c.l.b16 %v7398
        %v7936 = vunpack.c.h.b16 %v7398
        %v7937 = vunpack.c.l.b16 %v7399
        %v7938 = vunpack.c.h.b16 %v7399
        %v7939 = vunpack.c.l.b16 %v7400
        %v7940 = vunpack.c.h.b16 %v7400
        %v7941 = vunpack.c.l.b16 %v7401
        %v7942 = vunpack.c.h.b16 %v7401
        %v7943 = vunpack.c.l.b16 %v7402
        %v7944 = vunpack.c.h.b16 %v7402
        %v7945 = vunpack.c.l.b16 %v7403
        %v7946 = vunpack.c.h.b16 %v7403
        %v7947 = vunpack.c.l.b16 %v7404
        %v7948 = vunpack.c.h.b16 %v7404
        %v7949 = vunpack.c.l.b16 %v7405
        %v7950 = vunpack.c.h.b16 %v7405
        %v7951 = vunpack.c.l.b16 %v7406
        %v7952 = vunpack.c.h.b16 %v7406
        %v7953 = vunpack.c.l.b16 %v7407
        %v7954 = vunpack.c.h.b16 %v7407
        %v7955 = vunpack.c.l.b16 %v7408
        %v7956 = vunpack.c.h.b16 %v7408
        %v7957 = vunpack.c.l.b16 %v7409
        %v7958 = vunpack.c.h.b16 %v7409
        %v7959 = vunpack.c.l.b16 %v7410
        %v7960 = vunpack.c.h.b16 %v7410
        %v7961 = vunpack.c.l.b16 %v7411
        %v7962 = vunpack.c.h.b16 %v7411
        %v7963 = vunpack.c.l.b16 %v7412
        %v7964 = vunpack.c.h.b16 %v7412
        %v7965 = vunpack.c.l.b16 %v7413
        %v7966 = vunpack.c.h.b16 %v7413
        %v7967 = vunpack.c.l.b16 %v7414
        %v7968 = vunpack.c.h.b16 %v7414
        %v7969 = vunpack.c.l.b16 %v7415
        %v7970 = vunpack.c.h.b16 %v7415
        %v7971 = vunpack.c.l.b16 %v7416
        %v7972 = vunpack.c.h.b16 %v7416
        %v7973 = vunpack.c.l.b16 %v7417
        %v7974 = vunpack.c.h.b16 %v7417
        %v7975 = vunpack.c.l.b16 %v7418
        %v7976 = vunpack.c.h.b16 %v7418
        %v7977 = vunpack.c.l.b16 %v7419
        %v7978 = vunpack.c.h.b16 %v7419
        %v7979 = vunpack.c.l.b16 %v7420
        %v7980 = vunpack.c.h.b16 %v7420
        %v7981 = vunpack.c.l.b16 %v7421
        %v7982 = vunpack.c.h.b16 %v7421
        %v7983 = vunpack.c.l.b16 %v7422
        %v7984 = vunpack.c.h.b16 %v7422
        %v7985 = vunpack.c.l.b16 %v7423
        %v7986 = vunpack.c.h.b16 %v7423
        %v7987 = vunpack.c.l.b16 %v7424
        %v7988 = vunpack.c.h.b16 %v7424
        %v7989 = vunpack.c.l.b16 %v7425
        %v7990 = vunpack.c.h.b16 %v7425
        %v7991 = vunpack.c.l.b16 %v7426
        %v7992 = vunpack.c.h.b16 %v7426
        %v7993 = vunpack.c.l.b16 %v7427
        %v7994 = vunpack.c.h.b16 %v7427
        %v7995 = vunpack.c.l.b16 %v7428
        %v7996 = vunpack.c.h.b16 %v7428
        %v7997 = vunpack.c.l.b16 %v7429
        %v7998 = vunpack.c.h.b16 %v7429
        %v7999 = vunpack.c.l.b16 %v7430
        %v8000 = vunpack.c.h.b16 %v7430
        %v8001 = vunpack.c.l.b16 %v7431
        %v8002 = vunpack.c.h.b16 %v7431
        %v8003 = vunpack.c.l.b16 %v7432
        %v8004 = vunpack.c.h.b16 %v7432
        %v8005 = vunpack.c.l.b16 %v7433
        %v8006 = vunpack.c.h.b16 %v7433
        %v8007 = vunpack.c.l.b16 %v7434
        %v8008 = vunpack.c.h.b16 %v7434
        %v8009 = vunpack.c.l.b16 %v7435
        %v8010 = vunpack.c.h.b16 %v7435
        %v8011 = vunpack.c.l.b16 %v7436
        %v8012 = vunpack.c.h.b16 %v7436
        %v8013 = vunpack.c.l.b16 %v7437
        %v8014 = vunpack.c.h.b16 %v7437
        %v8015 = vunpack.c.l.b16 %v7438
        %v8016 = vunpack.c.h.b16 %v7438
        %v8017 = vunpack.c.l.b16 %v7439
        %v8018 = vunpack.c.h.b16 %v7439
        %v8019 = vunpack.c.l.b16 %v7440
        %v8020 = vunpack.c.h.b16 %v7440
        %v8021 = vunpack.c.l.b16 %v7441
        %v8022 = vunpack.c.h.b16 %v7441
        %v8023 = vunpack.c.l.b16 %v7442
        %v8024 = vunpack.c.h.b16 %v7442
        %v8025 = vunpack.c.l.b16 %v7443
        %v8026 = vunpack.c.h.b16 %v7443
        %v8027 = vunpack.c.l.b16 %v7444
        %v8028 = vunpack.c.h.b16 %v7444
        %v8029 = vunpack.c.l.b16 %v7445
        %v8030 = vunpack.c.h.b16 %v7445
        %v8031 = vunpack.c.l.b16 %v7446
        %v8032 = vunpack.c.h.b16 %v7446
        %v8033 = vunpack.c.l.b16 %v7447
        %v8034 = vunpack.c.h.b16 %v7447
        %v8035 = vunpack.c.l.b16 %v7448
        %v8036 = vunpack.c.h.b16 %v7448
        %v8037 = vunpack.c.l.b16 %v7449
        %v8038 = vunpack.c.h.b16 %v7449
        %v8039 = vunpack.c.l.b16 %v7450
        %v8040 = vunpack.c.h.b16 %v7450
        %v8041 = vunpack.c.l.b16 %v7451
        %v8042 = vunpack.c.h.b16 %v7451
        %v8043 = vunpack.c.l.b16 %v7452
        %v8044 = vunpack.c.h.b16 %v7452
        %v8045 = vunpack.c.l.b16 %v7453
        %v8046 = vunpack.c.h.b16 %v7453
        %v8047 = vunpack.c.l.b16 %v7454
        %v8048 = vunpack.c.h.b16 %v7454
        %v8049 = vunpack.c.l.b16 %v7455
        %v8050 = vunpack.c.h.b16 %v7455
        %v8051 = vunpack.c.l.b16 %v7456
        %v8052 = vunpack.c.h.b16 %v7456
        %v8053 = vunpack.c.l.b16 %v7457
        %v8054 = vunpack.c.h.b16 %v7457
        %v8055 = vunpack.c.l.b16 %v7458
        %v8056 = vunpack.c.h.b16 %v7458
        %v8057 = vunpack.c.l.b16 %v7459
        %v8058 = vunpack.c.h.b16 %v7459
        %v8059 = vunpack.c.l.b16 %v7460
        %v8060 = vunpack.c.h.b16 %v7460
        %v8061 = vunpack.c.l.b16 %v7461
        %v8062 = vunpack.c.h.b16 %v7461
        %v8063 = vunpack.c.l.b16 %v7462
        %v8064 = vunpack.c.h.b16 %v7462
        %v8065 = vunpack.c.l.b16 %v7463
        %v8066 = vunpack.c.h.b16 %v7463
        %v8067 = vunpack.c.l.b16 %v7464
        %v8068 = vunpack.c.h.b16 %v7464
        %v8069 = vunpack.c.l.b16 %v7465
        %v8070 = vunpack.c.h.b16 %v7465
        %v8071 = vunpack.c.l.b16 %v7466
        %v8072 = vunpack.c.h.b16 %v7466
        %v8073 = vunpack.c.l.b16 %v7467
        %v8074 = vunpack.c.h.b16 %v7467
        %v8075 = vunpack.c.l.b16 %v7468
        %v8076 = vunpack.c.h.b16 %v7468
        %v8077 = vunpack.c.l.b16 %v7469
        %v8078 = vunpack.c.h.b16 %v7469
        %v8079 = vunpack.c.l.b16 %v7470
        %v8080 = vunpack.c.h.b16 %v7470
        %v8081 = vunpack.c.l.b16 %v7471
        %v8082 = vunpack.c.h.b16 %v7471
        %v8083 = vunpack.c.l.b16 %v7472
        %v8084 = vunpack.c.h.b16 %v7472
        %v8085 = vunpack.c.l.b16 %v7473
        %v8086 = vunpack.c.h.b16 %v7473
        %v8087 = vunpack.c.l.b16 %v7474
        %v8088 = vunpack.c.h.b16 %v7474
        %v8089 = vunpack.c.l.b16 %v7475
        %v8090 = vunpack.c.h.b16 %v7475
        %v8091 = vunpack.c.l.b16 %v7476
        %v8092 = vunpack.c.h.b16 %v7476
        %v8093 = vunpack.c.l.b16 %v7477
        %v8094 = vunpack.c.h.b16 %v7477
        %v8095 = vunpack.c.l.b16 %v7478
        %v8096 = vunpack.c.h.b16 %v7478
        %v8097 = vunpack.c.l.b16 %v7479
        %v8098 = vunpack.c.h.b16 %v7479
        %v8099 = vunpack.c.l.b16 %v7480
        %v8100 = vunpack.c.h.b16 %v7480
        %v8101 = vunpack.c.l.b16 %v7481
        %v8102 = vunpack.c.h.b16 %v7481
        %v8103 = vunpack.c.l.b16 %v7482
        %v8104 = vunpack.c.h.b16 %v7482
        %v8105 = vunpack.c.l.b16 %v7483
        %v8106 = vunpack.c.h.b16 %v7483
        %v8107 = vunpack.c.l.b16 %v7484
        %v8108 = vunpack.c.h.b16 %v7484
        %v8109 = vunpack.c.l.b16 %v7485
        %v8110 = vunpack.c.h.b16 %v7485
        %v8111 = vunpack.c.l.b16 %v7486
        %v8112 = vunpack.c.h.b16 %v7486
        %v8113 = vunpack.c.l.b16 %v7487
        %v8114 = vunpack.c.h.b16 %v7487
        %v8115 = vunpack.c.l.b16 %v7488
        %v8116 = vunpack.c.h.b16 %v7488
        %v8117 = vunpack.c.l.b16 %v7489
        %v8118 = vunpack.c.h.b16 %v7489
        %v8119 = vunpack.c.l.b16 %v7490
        %v8120 = vunpack.c.h.b16 %v7490
        %v8121 = vunpack.c.l.b16 %v7491
        %v8122 = vunpack.c.h.b16 %v7491
        %v8123 = vunpack.c.l.b16 %v7492
        %v8124 = vunpack.c.h.b16 %v7492
        %v8125 = vunpack.c.l.b16 %v7493
        %v8126 = vunpack.c.h.b16 %v7493
        %v8127 = vunpack.c.l.b16 %v7494
        %v8128 = vunpack.c.h.b16 %v7494
        %v8129 = vunpack.c.l.b16 %v7495
        %v8130 = vunpack.c.h.b16 %v7495
        %v8131 = vunpack.c.l.b16 %v7496
        %v8132 = vunpack.c.h.b16 %v7496
        %v8133 = vunpack.c.l.b16 %v7497
        %v8134 = vunpack.c.h.b16 %v7497
        %v8135 = vunpack.c.l.b16 %v7498
        %v8136 = vunpack.c.h.b16 %v7498
        %v8137 = vunpack.c.l.b16 %v7499
        %v8138 = vunpack.c.h.b16 %v7499
        %v8139 = vunpack.c.l.b16 %v7500
        %v8140 = vunpack.c.h.b16 %v7500
        %v8141 = vunpack.c.l.b16 %v7501
        %v8142 = vunpack.c.h.b16 %v7501
        %v8143 = vunpack.c.l.b16 %v7502
        %v8144 = vunpack.c.h.b16 %v7502
        %v8145 = vunpack.c.l.b16 %v7503
        %v8146 = vunpack.c.h.b16 %v7503
        %v8147 = vunpack.c.l.b16 %v7504
        %v8148 = vunpack.c.h.b16 %v7504
        %v8149 = vunpack.c.l.b16 %v7505
        %v8150 = vunpack.c.h.b16 %v7505
        %v8151 = vunpack.c.l.b16 %v7506
        %v8152 = vunpack.c.h.b16 %v7506
        %v8153 = vunpack.c.l.b16 %v7507
        %v8154 = vunpack.c.h.b16 %v7507
        %v8155 = vunpack.c.l.b16 %v7508
        %v8156 = vunpack.c.h.b16 %v7508
        %v8157 = vunpack.c.l.b16 %v7509
        %v8158 = vunpack.c.h.b16 %v7509
        %v8159 = vunpack.c.l.b16 %v7510
        %v8160 = vunpack.c.h.b16 %v7510
        %v8161 = vunpack.c.l.b16 %v7511
        %v8162 = vunpack.c.h.b16 %v7511
        %v8163 = vunpack.c.l.b16 %v7512
        %v8164 = vunpack.c.h.b16 %v7512
        %v8165 = vunpack.c.l.b16 %v7513
        %v8166 = vunpack.c.h.b16 %v7513
        %v8167 = vunpack.c.l.b16 %v7514
        %v8168 = vunpack.c.h.b16 %v7514
        %v8169 = vunpack.c.l.b16 %v7515
        %v8170 = vunpack.c.h.b16 %v7515
        %v8171 = vunpack.c.l.b16 %v7516
        %v8172 = vunpack.c.h.b16 %v7516
        %v8173 = vunpack.c.l.b16 %v7517
        %v8174 = vunpack.c.h.b16 %v7517
        %v8175 = vunpack.c.l.b16 %v7518
        %v8176 = vunpack.c.h.b16 %v7518
        %v8177 = vunpack.c.l.b16 %v7519
        %v8178 = vunpack.c.h.b16 %v7519
        %v8179 = vunpack.c.l.b16 %v7520
        %v8180 = vunpack.c.h.b16 %v7520
        %v8181 = vunpack.c.l.b16 %v7521
        %v8182 = vunpack.c.h.b16 %v7521
        %v8183 = vunpack.c.l.b16 %v7522
        %v8184 = vunpack.c.h.b16 %v7522
        %v8185 = vunpack.c.l.b16 %v7523
        %v8186 = vunpack.c.h.b16 %v7523
        %v8187 = vunpack.c.l.b16 %v7524
        %v8188 = vunpack.c.h.b16 %v7524
        %v8189 = vunpack.c.l.b16 %v7525
        %v8190 = vunpack.c.h.b16 %v7525
        %v8191 = vunpack.c.l.b16 %v7526
        %v8192 = vunpack.c.h.b16 %v7526
        %v8193 = vunpack.c.l.b16 %v7527
        %v8194 = vunpack.c.h.b16 %v7527
        %v8195 = vunpack.c.l.b16 %v7528
        %v8196 = vunpack.c.h.b16 %v7528
        %v8197 = vunpack.c.l.b16 %v7529
        %v8198 = vunpack.c.h.b16 %v7529
        %v8199 = vunpack.c.l.b16 %v7530
        %v8200 = vunpack.c.h.b16 %v7530
        %v8201 = vunpack.c.l.b16 %v7531
        %v8202 = vunpack.c.h.b16 %v7531
        %v8203 = vunpack.c.l.b16 %v7532
        %v8204 = vunpack.c.h.b16 %v7532
        %v8205 = vunpack.c.l.b16 %v7533
        %v8206 = vunpack.c.h.b16 %v7533
        %v8207 = vunpack.c.l.b16 %v7534
        %v8208 = vunpack.c.h.b16 %v7534
        %v8209 = vunpack.c.l.b16 %v7535
        %v8210 = vunpack.c.h.b16 %v7535
        %v8211 = vunpack.c.l.b16 %v7536
        %v8212 = vunpack.c.h.b16 %v7536
        %v8213 = vunpack.c.l.b16 %v7537
        %v8214 = vunpack.c.h.b16 %v7537
        %v8215 = vunpack.c.l.b16 %v7538
        %v8216 = vunpack.c.h.b16 %v7538
        %v8217 = vunpack.c.l.b16 %v7539
        %v8218 = vunpack.c.h.b16 %v7539
        %v8219 = vunpack.c.l.b16 %v7540
        %v8220 = vunpack.c.h.b16 %v7540
        %v8221 = vunpack.c.l.b16 %v7541
        %v8222 = vunpack.c.h.b16 %v7541
        %v8223 = vunpack.c.l.b16 %v7542
        %v8224 = vunpack.c.h.b16 %v7542
        %v8225 = vunpack.c.l.b16 %v7543
        %v8226 = vunpack.c.h.b16 %v7543
        %v8227 = vunpack.c.l.b16 %v7544
        %v8228 = vunpack.c.h.b16 %v7544
        %v8229 = vunpack.c.l.b16 %v7545
        %v8230 = vunpack.c.h.b16 %v7545
        %v8231 = vunpack.c.l.b16 %v7546
        %v8232 = vunpack.c.h.b16 %v7546
        %v8233 = vunpack.c.l.b16 %v7547
        %v8234 = vunpack.c.h.b16 %v7547
        %v8235 = vunpack.c.l.b16 %v7548
        %v8236 = vunpack.c.h.b16 %v7548
        %v8237 = vunpack.c.l.b16 %v7549
        %v8238 = vunpack.c.h.b16 %v7549
        %v8239 = vunpack.c.l.b16 %v7550
        %v8240 = vunpack.c.h.b16 %v7550
        %v8241 = vunpack.c.l.b16 %v7551
        %v8242 = vunpack.c.h.b16 %v7551
        %v8243 = vunpack.c.l.b16 %v7552
        %v8244 = vunpack.c.h.b16 %v7552
        %v8245 = vunpack.c.l.b16 %v7553
        %v8246 = vunpack.c.h.b16 %v7553
        %v8247 = vunpack.c.l.b16 %v7554
        %v8248 = vunpack.c.h.b16 %v7554
        %v8249 = vunpack.c.l.b16 %v7555
        %v8250 = vunpack.c.h.b16 %v7555
        %v8251 = vunpack.c.l.b16 %v7556
        %v8252 = vunpack.c.h.b16 %v7556
        %v8253 = vunpack.c.l.b16 %v7557
        %v8254 = vunpack.c.h.b16 %v7557
        %v8255 = vunpack.c.l.b16 %v7558
        %v8256 = vunpack.c.h.b16 %v7558
        %v8257 = vunpack.c.l.b16 %v7559
        %v8258 = vunpack.c.h.b16 %v7559
        %v8259 = vunpack.c.l.b16 %v7560
        %v8260 = vunpack.c.h.b16 %v7560
        %v8261 = vunpack.c.l.b16 %v7561
        %v8262 = vunpack.c.h.b16 %v7561
        %v8263 = vunpack.c.l.b16 %v7562
        %v8264 = vunpack.c.h.b16 %v7562
        %v8265 = vunpack.c.l.b16 %v7563
        %v8266 = vunpack.c.h.b16 %v7563
        %v8267 = vunpack.c.l.b16 %v7564
        %v8268 = vunpack.c.h.b16 %v7564
        %v8269 = vunpack.c.l.b16 %v7565
        %v8270 = vunpack.c.h.b16 %v7565
        %v8271 = vunpack.c.l.b16 %v7566
        %v8272 = vunpack.c.h.b16 %v7566
        %v8273 = vunpack.c.l.b16 %v7567
        %v8274 = vunpack.c.h.b16 %v7567
        %v8275 = vunpack.c.l.b16 %v7568
        %v8276 = vunpack.c.h.b16 %v7568
        %v8277 = vunpack.c.l.b16 %v7569
        %v8278 = vunpack.c.h.b16 %v7569
        %v8279 = vunpack.c.l.b16 %v7570
        %v8280 = vunpack.c.h.b16 %v7570
        %v8281 = vunpack.c.l.b16 %v7571
        %v8282 = vunpack.c.h.b16 %v7571
        %v8283 = vunpack.c.l.b16 %v7572
        %v8284 = vunpack.c.h.b16 %v7572
        %v8285 = vunpack.c.l.b16 %v7573
        %v8286 = vunpack.c.h.b16 %v7573
        %v8287 = vunpack.c.l.b16 %v7574
        %v8288 = vunpack.c.h.b16 %v7574
        %v8289 = vunpack.c.l.b16 %v7575
        %v8290 = vunpack.c.h.b16 %v7575
        %v8291 = vunpack.c.l.b16 %v7576
        %v8292 = vunpack.c.h.b16 %v7576
        %v8293 = vunpack.c.l.b16 %v7577
        %v8294 = vunpack.c.h.b16 %v7577
        %v8295 = vunpack.c.l.b16 %v7578
        %v8296 = vunpack.c.h.b16 %v7578
        %v8297 = vunpack.c.l.b16 %v7579
        %v8298 = vunpack.c.h.b16 %v7579
        %v8299 = vunpack.c.l.b16 %v7580
        %v8300 = vunpack.c.h.b16 %v7580
        %v8301 = vunpack.c.l.b16 %v7581
        %v8302 = vunpack.c.h.b16 %v7581
        %v8303 = vunpack.c.l.b16 %v7582
        %v8304 = vunpack.c.h.b16 %v7582
        %v8305 = vunpack.c.l.b16 %v7583
        %v8306 = vunpack.c.h.b16 %v7583
        %v8307 = vunpack.c.l.b16 %v7584
        %v8308 = vunpack.c.h.b16 %v7584
        %v8309 = vunpack.c.l.b16 %v7585
        %v8310 = vunpack.c.h.b16 %v7585
        %v8311 = vunpack.c.l.b16 %v7586
        %v8312 = vunpack.c.h.b16 %v7586
        %v8313 = vunpack.c.l.b16 %v7587
        %v8314 = vunpack.c.h.b16 %v7587
        %v8315 = vunpack.c.l.b16 %v7588
        %v8316 = vunpack.c.h.b16 %v7588
        %v8317 = vunpack.c.l.b16 %v7589
        %v8318 = vunpack.c.h.b16 %v7589
        %v8319 = vunpack.c.l.b16 %v7590
        %v8320 = vunpack.c.h.b16 %v7590
        %v8321 = vunpack.c.l.b16 %v7591
        %v8322 = vunpack.c.h.b16 %v7591
        %v8323 = vunpack.c.l.b16 %v7592
        %v8324 = vunpack.c.h.b16 %v7592
        %v8325 = vunpack.c.l.b16 %v7593
        %v8326 = vunpack.c.h.b16 %v7593
        %v8327 = vunpack.c.l.b16 %v7594
        %v8328 = vunpack.c.h.b16 %v7594
        %v8329 = vunpack.c.l.b16 %v7595
        %v8330 = vunpack.c.h.b16 %v7595
        %v8331 = vunpack.c.l.b16 %v7596
        %v8332 = vunpack.c.h.b16 %v7596
        %v8333 = vunpack.c.l.b16 %v7597
        %v8334 = vunpack.c.h.b16 %v7597
        %v8335 = vunpack.c.l.b16 %v7598
        %v8336 = vunpack.c.h.b16 %v7598
        %v8337 = vunpack.c.l.b16 %v7599
        %v8338 = vunpack.c.h.b16 %v7599
        %v8339 = vunpack.c.l.b16 %v7600
        %v8340 = vunpack.c.h.b16 %v7600
        %v8341 = vunpack.c.l.b16 %v7601
        %v8342 = vunpack.c.h.b16 %v7601
        %v8343 = vunpack.c.l.b16 %v7602
        %v8344 = vunpack.c.h.b16 %v7602
        %v8345 = vunpack.c.l.b16 %v7603
        %v8346 = vunpack.c.h.b16 %v7603
        %v8347 = vunpack.c.l.b16 %v7604
        %v8348 = vunpack.c.h.b16 %v7604
        %v8349 = vunpack.c.l.b16 %v7605
        %v8350 = vunpack.c.h.b16 %v7605
        %v8351 = vunpack.c.l.b16 %v7606
        %v8352 = vunpack.c.h.b16 %v7606
        %v8353 = vunpack.c.l.b16 %v7607
        %v8354 = vunpack.c.h.b16 %v7607
        %v8355 = vunpack.c.l.b16 %v7608
        %v8356 = vunpack.c.h.b16 %v7608
        %v8357 = vunpack.c.l.b16 %v7609
        %v8358 = vunpack.c.h.b16 %v7609
        %v8359 = vunpack.c.l.b16 %v7610
        %v8360 = vunpack.c.h.b16 %v7610
        %v8361 = vunpack.c.l.b16 %v7611
        %v8362 = vunpack.c.h.b16 %v7611
        %v8363 = vunpack.c.l.b16 %v7612
        %v8364 = vunpack.c.h.b16 %v7612
        %v8365 = vunpack.c.l.b16 %v7613
        %v8366 = vunpack.c.h.b16 %v7613
        %v8367 = vunpack.c.l.b16 %v7614
        %v8368 = vunpack.c.h.b16 %v7614
        %v8369 = vunpack.c.l.b16 %v7615
        %v8370 = vunpack.c.h.b16 %v7615
        %v8371 = vunpack.c.l.b16 %v7616
        %v8372 = vunpack.c.h.b16 %v7616
        %v8373 = vunpack.c.l.b16 %v7617
        %v8374 = vunpack.c.h.b16 %v7617
        %v8375 = vunpack.c.l.b16 %v7618
        %v8376 = vunpack.c.h.b16 %v7618
        %v8377 = vunpack.c.l.b16 %v7619
        %v8378 = vunpack.c.h.b16 %v7619
        %v8379 = vunpack.c.l.b16 %v7620
        %v8380 = vunpack.c.h.b16 %v7620
        %v8381 = vunpack.c.l.b16 %v7621
        %v8382 = vunpack.c.h.b16 %v7621
        %v8383 = vunpack.c.l.b16 %v7622
        %v8384 = vunpack.c.h.b16 %v7622
        %v8385 = vunpack.c.l.b16 %v7623
        %v8386 = vunpack.c.h.b16 %v7623
        %v8387 = vunpack.c.l.b16 %v7624
        %v8388 = vunpack.c.h.b16 %v7624
        %v8389 = vunpack.c.l.b16 %v7625
        %v8390 = vunpack.c.h.b16 %v7625
        %v8391 = vunpack.c.l.b16 %v7626
        %v8392 = vunpack.c.h.b16 %v7626
        %v8393 = vunpack.c.l.b16 %v7627
        %v8394 = vunpack.c.h.b16 %v7627
        %v8395 = vunpack.c.l.b16 %v7628
        %v8396 = vunpack.c.h.b16 %v7628
        %v8397 = vunpack.c.l.b16 %v7629
        %v8398 = vunpack.c.h.b16 %v7629
        %v8399 = vunpack.c.l.b16 %v7630
        %v8400 = vunpack.c.h.b16 %v7630
        %v8401 = vunpack.c.l.b16 %v7631
        %v8402 = vunpack.c.h.b16 %v7631
        %v8403 = vunpack.c.l.b16 %v7632
        %v8404 = vunpack.c.h.b16 %v7632
        %v8405 = vunpack.c.l.b16 %v7633
        %v8406 = vunpack.c.h.b16 %v7633
        %v8407 = vunpack.c.l.b16 %v7634
        %v8408 = vunpack.c.h.b16 %v7634
        %v8409 = vunpack.c.l.b16 %v7635
        %v8410 = vunpack.c.h.b16 %v7635
        %v8411 = vunpack.c.l.b16 %v7636
        %v8412 = vunpack.c.h.b16 %v7636
        %v8413 = vunpack.c.l.b16 %v7637
        %v8414 = vunpack.c.h.b16 %v7637
        %v8415 = vunpack.c.l.b16 %v7638
        %v8416 = vunpack.c.h.b16 %v7638
        %v8417 = vunpack.c.l.b16 %v7639
        %v8418 = vunpack.c.h.b16 %v7639
        %v8419 = vunpack.c.l.b16 %v7640
        %v8420 = vunpack.c.h.b16 %v7640
        %v8421 = vunpack.c.l.b16 %v7641
        %v8422 = vunpack.c.h.b16 %v7641
        %v8423 = vunpack.c.l.b16 %v7642
        %v8424 = vunpack.c.h.b16 %v7642
        %v8425 = vunpack.c.l.b16 %v7643
        %v8426 = vunpack.c.h.b16 %v7643
        %v8427 = vunpack.c.l.b16 %v7644
        %v8428 = vunpack.c.h.b16 %v7644
        %v8429 = vunpack.c.l.b16 %v7645
        %v8430 = vunpack.c.h.b16 %v7645
        %v8431 = vunpack.c.l.b16 %v7646
        %v8432 = vunpack.c.h.b16 %v7646
        %v8433 = vunpack.c.l.b16 %v7647
        %v8434 = vunpack.c.h.b16 %v7647
        %v8435 = vunpack.c.l.b16 %v7648
        %v8436 = vunpack.c.h.b16 %v7648
        %v8437 = vunpack.c.l.b16 %v7649
        %v8438 = vunpack.c.h.b16 %v7649
        %v8439 = vunpack.c.l.b16 %v7650
        %v8440 = vunpack.c.h.b16 %v7650
        %v8441 = vpack.c.b16 %v7933, %v7929
        %v8442 = vpack.c.b16 %v7934, %v7930
        %v8443 = vpack.c.b16 %v7935, %v7931
        %v8444 = vpack.c.b16 %v7936, %v7932
        %v8445 = vpack.c.b16 %v7941, %v7937
        %v8446 = vpack.c.b16 %v7942, %v7938
        %v8447 = vpack.c.b16 %v7943, %v7939
        %v8448 = vpack.c.b16 %v7944, %v7940
        %v8449 = vpack.c.b16 %v7949, %v7945
        %v8450 = vpack.c.b16 %v7950, %v7946
        %v8451 = vpack.c.b16 %v7951, %v7947
        %v8452 = vpack.c.b16 %v7952, %v7948
        %v8453 = vpack.c.b16 %v7957, %v7953
        %v8454 = vpack.c.b16 %v7958, %v7954
        %v8455 = vpack.c.b16 %v7959, %v7955
        %v8456 = vpack.c.b16 %v7960, %v7956
        %v8457 = vpack.c.b16 %v7965, %v7961
        %v8458 = vpack.c.b16 %v7966, %v7962
        %v8459 = vpack.c.b16 %v7967, %v7963
        %v8460 = vpack.c.b16 %v7968, %v7964
        %v8461 = vpack.c.b16 %v7973, %v7969
        %v8462 = vpack.c.b16 %v7974, %v7970
        %v8463 = vpack.c.b16 %v7975, %v7971
        %v8464 = vpack.c.b16 %v7976, %v7972
        %v8465 = vpack.c.b16 %v7981, %v7977
        %v8466 = vpack.c.b16 %v7982, %v7978
        %v8467 = vpack.c.b16 %v7983, %v7979
        %v8468 = vpack.c.b16 %v7984, %v7980
        %v8469 = vpack.c.b16 %v7989, %v7985
        %v8470 = vpack.c.b16 %v7990, %v7986
        %v8471 = vpack.c.b16 %v7991, %v7987
        %v8472 = vpack.c.b16 %v7992, %v7988
        %v8473 = vpack.c.b16 %v7997, %v7993
        %v8474 = vpack.c.b16 %v7998, %v7994
        %v8475 = vpack.c.b16 %v7999, %v7995
        %v8476 = vpack.c.b16 %v8000, %v7996
        %v8477 = vpack.c.b16 %v8005, %v8001
        %v8478 = vpack.c.b16 %v8006, %v8002
        %v8479 = vpack.c.b16 %v8007, %v8003
        %v8480 = vpack.c.b16 %v8008, %v8004
        %v8481 = vpack.c.b16 %v8013, %v8009
        %v8482 = vpack.c.b16 %v8014, %v8010
        %v8483 = vpack.c.b16 %v8015, %v8011
        %v8484 = vpack.c.b16 %v8016, %v8012
        %v8485 = vpack.c.b16 %v8021, %v8017
        %v8486 = vpack.c.b16 %v8022, %v8018
        %v8487 = vpack.c.b16 %v8023, %v8019
        %v8488 = vpack.c.b16 %v8024, %v8020
        %v8489 = vpack.c.b16 %v8029, %v8025
        %v8490 = vpack.c.b16 %v8030, %v8026
        %v8491 = vpack.c.b16 %v8031, %v8027
        %v8492 = vpack.c.b16 %v8032, %v8028
        %v8493 = vpack.c.b16 %v8037, %v8033
        %v8494 = vpack.c.b16 %v8038, %v8034
        %v8495 = vpack.c.b16 %v8039, %v8035
        %v8496 = vpack.c.b16 %v8040, %v8036
        %v8497 = vpack.c.b16 %v8045, %v8041
        %v8498 = vpack.c.b16 %v8046, %v8042
        %v8499 = vpack.c.b16 %v8047, %v8043
        %v8500 = vpack.c.b16 %v8048, %v8044
        %v8501 = vpack.c.b16 %v8053, %v8049
        %v8502 = vpack.c.b16 %v8054, %v8050
        %v8503 = vpack.c.b16 %v8055, %v8051
        %v8504 = vpack.c.b16 %v8056, %v8052
        %v8505 = vpack.c.b16 %v8061, %v8057
        %v8506 = vpack.c.b16 %v8062, %v8058
        %v8507 = vpack.c.b16 %v8063, %v8059
        %v8508 = vpack.c.b16 %v8064, %v8060
        %v8509 = vpack.c.b16 %v8069, %v8065
        %v8510 = vpack.c.b16 %v8070, %v8066
        %v8511 = vpack.c.b16 %v8071, %v8067
        %v8512 = vpack.c.b16 %v8072, %v8068
        %v8513 = vpack.c.b16 %v8077, %v8073
        %v8514 = vpack.c.b16 %v8078, %v8074
        %v8515 = vpack.c.b16 %v8079, %v8075
        %v8516 = vpack.c.b16 %v8080, %v8076
        %v8517 = vpack.c.b16 %v8085, %v8081
        %v8518 = vpack.c.b16 %v8086, %v8082
        %v8519 = vpack.c.b16 %v8087, %v8083
        %v8520 = vpack.c.b16 %v8088, %v8084
        %v8521 = vpack.c.b16 %v8093, %v8089
        %v8522 = vpack.c.b16 %v8094, %v8090
        %v8523 = vpack.c.b16 %v8095, %v8091
        %v8524 = vpack.c.b16 %v8096, %v8092
        %v8525 = vpack.c.b16 %v8101, %v8097
        %v8526 = vpack.c.b16 %v8102, %v8098
        %v8527 = vpack.c.b16 %v8103, %v8099
        %v8528 = vpack.c.b16 %v8104, %v8100
        %v8529 = vpack.c.b16 %v8109, %v8105
        %v8530 = vpack.c.b16 %v8110, %v8106
        %v8531 = vpack.c.b16 %v8111, %v8107
        %v8532 = vpack.c.b16 %v8112, %v8108
        %v8533 = vpack.c.b16 %v8117, %v8113
        %v8534 = vpack.c.b16 %v8118, %v8114
        %v8535 = vpack.c.b16 %v8119, %v8115
        %v8536 = vpack.c.b16 %v8120, %v8116
        %v8537 = vpack.c.b16 %v8125, %v8121
        %v8538 = vpack.c.b16 %v8126, %v8122
        %v8539 = vpack.c.b16 %v8127, %v8123
        %v8540 = vpack.c.b16 %v8128, %v8124
        %v8541 = vpack.c.b16 %v8133, %v8129
        %v8542 = vpack.c.b16 %v8134, %v8130
        %v8543 = vpack.c.b16 %v8135, %v8131
        %v8544 = vpack.c.b16 %v8136, %v8132
        %v8545 = vpack.c.b16 %v8141, %v8137
        %v8546 = vpack.c.b16 %v8142, %v8138
        %v8547 = vpack.c.b16 %v8143, %v8139
        %v8548 = vpack.c.b16 %v8144, %v8140
        %v8549 = vpack.c.b16 %v8149, %v8145
        %v8550 = vpack.c.b16 %v8150, %v8146
        %v8551 = vpack.c.b16 %v8151, %v8147
        %v8552 = vpack.c.b16 %v8152, %v8148
        %v8553 = vpack.c.b16 %v8157, %v8153
        %v8554 = vpack.c.b16 %v8158, %v8154
        %v8555 = vpack.c.b16 %v8159, %v8155
        %v8556 = vpack.c.b16 %v8160, %v8156
        %v8557 = vpack.c.b16 %v8165, %v8161
        %v8558 = vpack.c.b16 %v8166, %v8162
        %v8559 = vpack.c.b16 %v8167, %v8163
        %v8560 = vpack.c.b16 %v8168, %v8164
        %v8561 = vpack.c.b16 %v8173, %v8169
        %v8562 = vpack.c.b16 %v8174, %v8170
        %v8563 = vpack.c.b16 %v8175, %v8171
        %v8564 = vpack.c.b16 %v8176, %v8172
        %v8565 = vpack.c.b16 %v8181, %v8177
        %v8566 = vpack.c.b16 %v8182, %v8178
        %v8567 = vpack.c.b16 %v8183, %v8179
        %v8568 = vpack.c.b16 %v8184, %v8180
        %v8569 = vpack.c.b16 %v8189, %v8185
        %v8570 = vpack.c.b16 %v8190, %v8186
        %v8571 = vpack.c.b16 %v8191, %v8187
        %v8572 = vpack.c.b16 %v8192, %v8188
        %v8573 = vpack.c.b16 %v8197, %v8193
        %v8574 = vpack.c.b16 %v8198, %v8194
        %v8575 = vpack.c.b16 %v8199, %v8195
        %v8576 = vpack.c.b16 %v8200, %v8196
        %v8577 = vpack.c.b16 %v8205, %v8201
        %v8578 = vpack.c.b16 %v8206, %v8202
        %v8579 = vpack.c.b16 %v8207, %v8203
        %v8580 = vpack.c.b16 %v8208, %v8204
        %v8581 = vpack.c.b16 %v8213, %v8209
        %v8582 = vpack.c.b16 %v8214, %v8210
        %v8583 = vpack.c.b16 %v8215, %v8211
        %v8584 = vpack.c.b16 %v8216, %v8212
        %v8585 = vpack.c.b16 %v8221, %v8217
        %v8586 = vpack.c.b16 %v8222, %v8218
        %v8587 = vpack.c.b16 %v8223, %v8219
        %v8588 = vpack.c.b16 %v8224, %v8220
        %v8589 = vpack.c.b16 %v8229, %v8225
        %v8590 = vpack.c.b16 %v8230, %v8226
        %v8591 = vpack.c.b16 %v8231, %v8227
        %v8592 = vpack.c.b16 %v8232, %v8228
        %v8593 = vpack.c.b16 %v8237, %v8233
        %v8594 = vpack.c.b16 %v8238, %v8234
        %v8595 = vpack.c.b16 %v8239, %v8235
        %v8596 = vpack.c.b16 %v8240, %v8236
        %v8597 = vpack.c.b16 %v8245, %v8241
        %v8598 = vpack.c.b16 %v8246, %v8242
        %v8599 = vpack.c.b16 %v8247, %v8243
        %v8600 = vpack.c.b16 %v8248, %v8244
        %v8601 = vpack.c.b16 %v8253, %v8249
        %v8602 = vpack.c.b16 %v8254, %v8250
        %v8603 = vpack.c.b16 %v8255, %v8251
        %v8604 = vpack.c.b16 %v8256, %v8252
        %v8605 = vpack.c.b16 %v8261, %v8257
        %v8606 = vpack.c.b16 %v8262, %v8258
        %v8607 = vpack.c.b16 %v8263, %v8259
        %v8608 = vpack.c.b16 %v8264, %v8260
        %v8609 = vpack.c.b16 %v8269, %v8265
        %v8610 = vpack.c.b16 %v8270, %v8266
        %v8611 = vpack.c.b16 %v8271, %v8267
        %v8612 = vpack.c.b16 %v8272, %v8268
        %v8613 = vpack.c.b16 %v8277, %v8273
        %v8614 = vpack.c.b16 %v8278, %v8274
        %v8615 = vpack.c.b16 %v8279, %v8275
        %v8616 = vpack.c.b16 %v8280, %v8276
        %v8617 = vpack.c.b16 %v8285, %v8281
        %v8618 = vpack.c.b16 %v8286, %v8282
        %v8619 = vpack.c.b16 %v8287, %v8283
        %v8620 = vpack.c.b16 %v8288, %v8284
        %v8621 = vpack.c.b16 %v8293, %v8289
        %v8622 = vpack.c.b16 %v8294, %v8290
        %v8623 = vpack.c.b16 %v8295, %v8291
        %v8624 = vpack.c.b16 %v8296, %v8292
        %v8625 = vpack.c.b16 %v8301, %v8297
        %v8626 = vpack.c.b16 %v8302, %v8298
        %v8627 = vpack.c.b16 %v8303, %v8299
        %v8628 = vpack.c.b16 %v8304, %v8300
        %v8629 = vpack.c.b16 %v8309, %v8305
        %v8630 = vpack.c.b16 %v8310, %v8306
        %v8631 = vpack.c.b16 %v8311, %v8307
        %v8632 = vpack.c.b16 %v8312, %v8308
        %v8633 = vpack.c.b16 %v8317, %v8313
        %v8634 = vpack.c.b16 %v8318, %v8314
        %v8635 = vpack.c.b16 %v8319, %v8315
        %v8636 = vpack.c.b16 %v8320, %v8316
        %v8637 = vpack.c.b16 %v8325, %v8321
        %v8638 = vpack.c.b16 %v8326, %v8322
        %v8639 = vpack.c.b16 %v8327, %v8323
        %v8640 = vpack.c.b16 %v8328, %v8324
        %v8641 = vpack.c.b16 %v8333, %v8329
        %v8642 = vpack.c.b16 %v8334, %v8330
        %v8643 = vpack.c.b16 %v8335, %v8331
        %v8644 = vpack.c.b16 %v8336, %v8332
        %v8645 = vpack.c.b16 %v8341, %v8337
        %v8646 = vpack.c.b16 %v8342, %v8338
        %v8647 = vpack.c.b16 %v8343, %v8339
        %v8648 = vpack.c.b16 %v8344, %v8340
        %v8649 = vpack.c.b16 %v8349, %v8345
        %v8650 = vpack.c.b16 %v8350, %v8346
        %v8651 = vpack.c.b16 %v8351, %v8347
        %v8652 = vpack.c.b16 %v8352, %v8348
        %v8653 = vpack.c.b16 %v8357, %v8353
        %v8654 = vpack.c.b16 %v8358, %v8354
        %v8655 = vpack.c.b16 %v8359, %v8355
        %v8656 = vpack.c.b16 %v8360, %v8356
        %v8657 = vpack.c.b16 %v8365, %v8361
        %v8658 = vpack.c.b16 %v8366, %v8362
        %v8659 = vpack.c.b16 %v8367, %v8363
        %v8660 = vpack.c.b16 %v8368, %v8364
        %v8661 = vpack.c.b16 %v8373, %v8369
        %v8662 = vpack.c.b16 %v8374, %v8370
        %v8663 = vpack.c.b16 %v8375, %v8371
        %v8664 = vpack.c.b16 %v8376, %v8372
        %v8665 = vpack.c.b16 %v8381, %v8377
        %v8666 = vpack.c.b16 %v8382, %v8378
        %v8667 = vpack.c.b16 %v8383, %v8379
        %v8668 = vpack.c.b16 %v8384, %v8380
        %v8669 = vpack.c.b16 %v8389, %v8385
        %v8670 = vpack.c.b16 %v8390, %v8386
        %v8671 = vpack.c.b16 %v8391, %v8387
        %v8672 = vpack.c.b16 %v8392, %v8388
        %v8673 = vpack.c.b16 %v8397, %v8393
        %v8674 = vpack.c.b16 %v8398, %v8394
        %v8675 = vpack.c.b16 %v8399, %v8395
        %v8676 = vpack.c.b16 %v8400, %v8396
        %v8677 = vpack.c.b16 %v8405, %v8401
        %v8678 = vpack.c.b16 %v8406, %v8402
        %v8679 = vpack.c.b16 %v8407, %v8403
        %v8680 = vpack.c.b16 %v8408, %v8404
        %v8681 = vpack.c.b16 %v8413, %v8409
        %v8682 = vpack.c.b16 %v8414, %v8410
        %v8683 = vpack.c.b16 %v8415, %v8411
        %v8684 = vpack.c.b16 %v8416, %v8412
        %v8685 = vpack.c.b16 %v8421, %v8417
        %v8686 = vpack.c.b16 %v8422, %v8418
        %v8687 = vpack.c.b16 %v8423, %v8419
        %v8688 = vpack.c.b16 %v8424, %v8420
        %v8689 = vpack.c.b16 %v8429, %v8425
        %v8690 = vpack.c.b16 %v8430, %v8426
        %v8691 = vpack.c.b16 %v8431, %v8427
        %v8692 = vpack.c.b16 %v8432, %v8428
        %v8693 = vpack.c.b16 %v8437, %v8433
        %v8694 = vpack.c.b16 %v8438, %v8434
        %v8695 = vpack.c.b16 %v8439, %v8435
        %v8696 = vpack.c.b16 %v8440, %v8436
        %8953 = vmatprep.subr.bf16.mxu0 %v8442
        %8954 = vmatpush1.bf16.msra.mxu0 %v8441
        %8955 = vmatprep.subr.bf16.mxu0 %v8446
        %8956 = vmatpush1.bf16.msra.mxu0 %v8445
        %8957 = vmatprep.subr.bf16.mxu0 %v8450
        %8958 = vmatpush1.bf16.msra.mxu0 %v8449
        %8959 = vmatprep.subr.bf16.mxu0 %v8454
        %8960 = vmatpush1.bf16.msra.mxu0 %v8453
        %8961 = vmatprep.subr.bf16.mxu0 %v8458
        %8962 = vmatpush1.bf16.msra.mxu0 %v8457
        %8963 = vmatprep.subr.bf16.mxu0 %v8462
        %8964 = vmatpush1.bf16.msra.mxu0 %v8461
        %8965 = vmatprep.subr.bf16.mxu0 %v8466
        %8966 = vmatpush1.bf16.msra.mxu0 %v8465
        %8967 = vmatprep.subr.bf16.mxu0 %v8470
        %8968 = vmatpush1.bf16.msra.mxu0 %v8469
        %8969 = vmatprep.subr.bf16.mxu0 %v8474
        %8970 = vmatpush1.bf16.msra.mxu0 %v8473
        %8971 = vmatprep.subr.bf16.mxu0 %v8478
        %8972 = vmatpush1.bf16.msra.mxu0 %v8477
        %8973 = vmatprep.subr.bf16.mxu0 %v8482
        %8974 = vmatpush1.bf16.msra.mxu0 %v8481
        %8975 = vmatprep.subr.bf16.mxu0 %v8486
        %8976 = vmatpush1.bf16.msra.mxu0 %v8485
        %8977 = vmatprep.subr.bf16.mxu0 %v8490
        %8978 = vmatpush1.bf16.msra.mxu0 %v8489
        %8979 = vmatprep.subr.bf16.mxu0 %v8494
        %8980 = vmatpush1.bf16.msra.mxu0 %v8493
        %8981 = vmatprep.subr.bf16.mxu0 %v8498
        %8982 = vmatpush1.bf16.msra.mxu0 %v8497
        %8983 = vmatprep.subr.bf16.mxu0 %v8502
        %8984 = vmatpush1.bf16.msra.mxu0 %v8501
        %8985 = vmatprep.mubr.bf16.mxu0 %v7388
        %8986 = vmatmul.mubr.bf16.gmra.mrb[0].mxu0 %v7387
        %v8987 = vpop.f32.mrb[0].mxu0
        %v8988 = vadd.f32 %v7656, %v8987
        %v8989 = vpop.f32.mrb[0].mxu0
        %v8990 = vadd.f32 %v7660, %v8989
        %v8991 = vpop.f32.mrb[0].mxu0
        %v8992 = vpop.f32.mrb[0].mxu0
        %8993 = vdwg.mxu0
        %8994 = vmatprep.subr.bf16.mxu0 %v8506
        %8995 = vmatpush1.bf16.msra.mxu0 %v8505
        %8996 = vmatprep.subr.bf16.mxu0 %v8510
        %8997 = vmatpush1.bf16.msra.mxu0 %v8509
        %8998 = vmatprep.subr.bf16.mxu0 %v8514
        %8999 = vmatpush1.bf16.msra.mxu0 %v8513
        %9000 = vmatprep.subr.bf16.mxu0 %v8518
        %9001 = vmatpush1.bf16.msra.mxu0 %v8517
        %9002 = vmatprep.subr.bf16.mxu0 %v8522
        %9003 = vmatpush1.bf16.msra.mxu0 %v8521
        %9004 = vmatprep.subr.bf16.mxu0 %v8526
        %9005 = vmatpush1.bf16.msra.mxu0 %v8525
        %9006 = vmatprep.subr.bf16.mxu0 %v8530
        %9007 = vmatpush1.bf16.msra.mxu0 %v8529
        %9008 = vmatprep.subr.bf16.mxu0 %v8534
        %9009 = vmatpush1.bf16.msra.mxu0 %v8533
        %9010 = vmatprep.subr.bf16.mxu0 %v8538
        %9011 = vmatpush1.bf16.msra.mxu0 %v8537
        %9012 = vmatprep.subr.bf16.mxu0 %v8542
        %9013 = vmatpush1.bf16.msra.mxu0 %v8541
        %9014 = vmatprep.subr.bf16.mxu0 %v8546
        %9015 = vmatpush1.bf16.msra.mxu0 %v8545
        %9016 = vmatprep.subr.bf16.mxu0 %v8550
        %9017 = vmatpush1.bf16.msra.mxu0 %v8549
        %9018 = vmatprep.subr.bf16.mxu0 %v8554
        %9019 = vmatpush1.bf16.msra.mxu0 %v8553
        %9020 = vmatprep.subr.bf16.mxu0 %v8558
        %9021 = vmatpush1.bf16.msra.mxu0 %v8557
        %9022 = vmatprep.subr.bf16.mxu0 %v8562
        %9023 = vmatpush1.bf16.msra.mxu0 %v8561
        %9024 = vmatprep.subr.bf16.mxu0 %v8566
        %9025 = vmatpush1.bf16.msra.mxu0 %v8565
        %9026 = vmatprep.mubr.bf16.mxu0 %v7390
        %9027 = vmatmul.mubr.bf16.gmra.mrb[0].mxu0 %v7389
        %v9028 = vpop.f32.mrb[0].mxu0
        %v9029 = vadd.f32 %v8988, %v9028
        %v9030 = vpop.f32.mrb[0].mxu0
        %v9031 = vadd.f32 %v8990, %v9030
        %v9032 = vpop.f32.mrb[0].mxu0
        %v9033 = vpop.f32.mrb[0].mxu0
        %9034 = vdwg.mxu0
        %9035 = vmatprep.subr.bf16.mxu0 %v8570
        %9036 = vmatpush1.bf16.msra.mxu0 %v8569
        %9037 = vmatprep.subr.bf16.mxu0 %v8574
        %9038 = vmatpush1.bf16.msra.mxu0 %v8573
        %9039 = vmatprep.subr.bf16.mxu0 %v8578
        %9040 = vmatpush1.bf16.msra.mxu0 %v8577
        %9041 = vmatprep.subr.bf16.mxu0 %v8582
        %9042 = vmatpush1.bf16.msra.mxu0 %v8581
        %9043 = vmatprep.subr.bf16.mxu0 %v8586
        %9044 = vmatpush1.bf16.msra.mxu0 %v8585
        %9045 = vmatprep.subr.bf16.mxu0 %v8590
        %9046 = vmatpush1.bf16.msra.mxu0 %v8589
        %9047 = vmatprep.subr.bf16.mxu0 %v8594
        %9048 = vmatpush1.bf16.msra.mxu0 %v8593
        %9049 = vmatprep.subr.bf16.mxu0 %v8598
        %9050 = vmatpush1.bf16.msra.mxu0 %v8597
        %9051 = vmatprep.subr.bf16.mxu0 %v8602
        %9052 = vmatpush1.bf16.msra.mxu0 %v8601
        %9053 = vmatprep.subr.bf16.mxu0 %v8606
        %9054 = vmatpush1.bf16.msra.mxu0 %v8605
        %9055 = vmatprep.subr.bf16.mxu0 %v8610
        %9056 = vmatpush1.bf16.msra.mxu0 %v8609
        %9057 = vmatprep.subr.bf16.mxu0 %v8614
        %9058 = vmatpush1.bf16.msra.mxu0 %v8613
        %9059 = vmatprep.subr.bf16.mxu0 %v8618
        %9060 = vmatpush1.bf16.msra.mxu0 %v8617
        %9061 = vmatprep.subr.bf16.mxu0 %v8622
        %9062 = vmatpush1.bf16.msra.mxu0 %v8621
        %9063 = vmatprep.subr.bf16.mxu0 %v8626
        %9064 = vmatpush1.bf16.msra.mxu0 %v8625
        %9065 = vmatprep.subr.bf16.mxu0 %v8630
        %9066 = vmatpush1.bf16.msra.mxu0 %v8629
        %9067 = vmatprep.mubr.bf16.mxu0 %v7392
        %9068 = vmatmul.mubr.bf16.gmra.mrb[0].mxu0 %v7391
        %v9069 = vpop.f32.mrb[0].mxu0
        %v9070 = vadd.f32 %v9029, %v9069
        %v9071 = vpop.f32.mrb[0].mxu0
        %v9072 = vadd.f32 %v9031, %v9071
        %v9073 = vpop.f32.mrb[0].mxu0
        %v9074 = vpop.f32.mrb[0].mxu0
        %9075 = vdwg.mxu0
        %9076 = vmatprep.subr.bf16.mxu0 %v8634
        %9077 = vmatpush1.bf16.msra.mxu0 %v8633
        %9078 = vmatprep.subr.bf16.mxu0 %v8638
        %9079 = vmatpush1.bf16.msra.mxu0 %v8637
        %9080 = vmatprep.subr.bf16.mxu0 %v8642
        %9081 = vmatpush1.bf16.msra.mxu0 %v8641
        %9082 = vmatprep.subr.bf16.mxu0 %v8646
        %9083 = vmatpush1.bf16.msra.mxu0 %v8645
        %9084 = vmatprep.subr.bf16.mxu0 %v8650
        %9085 = vmatpush1.bf16.msra.mxu0 %v8649
        %9086 = vmatprep.subr.bf16.mxu0 %v8654
        %9087 = vmatpush1.bf16.msra.mxu0 %v8653
        %9088 = vmatprep.subr.bf16.mxu0 %v8658
        %9089 = vmatpush1.bf16.msra.mxu0 %v8657
        %9090 = vmatprep.subr.bf16.mxu0 %v8662
        %9091 = vmatpush1.bf16.msra.mxu0 %v8661
        %9092 = vmatprep.subr.bf16.mxu0 %v8666
        %9093 = vmatpush1.bf16.msra.mxu0 %v8665
        %9094 = vmatprep.subr.bf16.mxu0 %v8670
        %9095 = vmatpush1.bf16.msra.mxu0 %v8669
        %9096 = vmatprep.subr.bf16.mxu0 %v8674
        %9097 = vmatpush1.bf16.msra.mxu0 %v8673
        %9098 = vmatprep.subr.bf16.mxu0 %v8678
        %9099 = vmatpush1.bf16.msra.mxu0 %v8677
        %9100 = vmatprep.subr.bf16.mxu0 %v8682
        %9101 = vmatpush1.bf16.msra.mxu0 %v8681
        %9102 = vmatprep.subr.bf16.mxu0 %v8686
        %9103 = vmatpush1.bf16.msra.mxu0 %v8685
        %9104 = vmatprep.subr.bf16.mxu0 %v8690
        %9105 = vmatpush1.bf16.msra.mxu0 %v8689
        %9106 = vmatprep.subr.bf16.mxu0 %v8694
        %9107 = vmatpush1.bf16.msra.mxu0 %v8693
        %9108 = vmatprep.mubr.bf16.mxu0 %v7394
        %9109 = vmatmul.mubr.bf16.gmra.mrb[0].mxu0 %v7393
        %v9110 = vpop.f32.mrb[0].mxu0
        %v9111 = vadd.f32 %v9070, %v9110
        %v9112 = vpop.f32.mrb[0].mxu0
        %v9113 = vadd.f32 %v9072, %v9112
        %v9114 = vpop.f32.mrb[0].mxu0
        %v9115 = vpop.f32.mrb[0].mxu0
        %9116 = vdwg.mxu0
        %9117 = vmatprep.subr.bf16.mxu0 %v8444
        %9118 = vmatpush1.bf16.msra.mxu0 %v8443
        %9119 = vmatprep.subr.bf16.mxu0 %v8448
        %9120 = vmatpush1.bf16.msra.mxu0 %v8447
        %9121 = vmatprep.subr.bf16.mxu0 %v8452
        %9122 = vmatpush1.bf16.msra.mxu0 %v8451
        %9123 = vmatprep.subr.bf16.mxu0 %v8456
        %9124 = vmatpush1.bf16.msra.mxu0 %v8455
        %9125 = vmatprep.subr.bf16.mxu0 %v8460
        %9126 = vmatpush1.bf16.msra.mxu0 %v8459
        %9127 = vmatprep.subr.bf16.mxu0 %v8464
        %9128 = vmatpush1.bf16.msra.mxu0 %v8463
        %9129 = vmatprep.subr.bf16.mxu0 %v8468
        %9130 = vmatpush1.bf16.msra.mxu0 %v8467
        %9131 = vmatprep.subr.bf16.mxu0 %v8472
        %9132 = vmatpush1.bf16.msra.mxu0 %v8471
        %9133 = vmatprep.subr.bf16.mxu0 %v8476
        %9134 = vmatpush1.bf16.msra.mxu0 %v8475
        %9135 = vmatprep.subr.bf16.mxu0 %v8480
        %9136 = vmatpush1.bf16.msra.mxu0 %v8479
        %9137 = vmatprep.subr.bf16.mxu0 %v8484
        %9138 = vmatpush1.bf16.msra.mxu0 %v8483
        %9139 = vmatprep.subr.bf16.mxu0 %v8488
        %9140 = vmatpush1.bf16.msra.mxu0 %v8487
        %9141 = vmatprep.subr.bf16.mxu0 %v8492
        %9142 = vmatpush1.bf16.msra.mxu0 %v8491
        %9143 = vmatprep.subr.bf16.mxu0 %v8496
        %9144 = vmatpush1.bf16.msra.mxu0 %v8495
        %9145 = vmatprep.subr.bf16.mxu0 %v8500
        %9146 = vmatpush1.bf16.msra.mxu0 %v8499
        %9147 = vmatprep.subr.bf16.mxu0 %v8504
        %9148 = vmatpush1.bf16.msra.mxu0 %v8503
        %9149 = vmatprep.mubr.bf16.mxu0 %v7388
        %9150 = vmatmul.mubr.bf16.gmra.mrb[0].mxu0 %v7387
        %v9151 = vpop.f32.mrb[0].mxu0
        %v9152 = vadd.f32 %v7664, %v9151
        %v9153 = vpop.f32.mrb[0].mxu0
        %v9154 = vadd.f32 %v7668, %v9153
        %v9155 = vpop.f32.mrb[0].mxu0
        %v9156 = vpop.f32.mrb[0].mxu0
        %9157 = vdwg.mxu0
        %9158 = vmatprep.subr.bf16.mxu0 %v8508
        %9159 = vmatpush1.bf16.msra.mxu0 %v8507
        %9160 = vmatprep.subr.bf16.mxu0 %v8512
        %9161 = vmatpush1.bf16.msra.mxu0 %v8511
        %9162 = vmatprep.subr.bf16.mxu0 %v8516
        %9163 = vmatpush1.bf16.msra.mxu0 %v8515
        %9164 = vmatprep.subr.bf16.mxu0 %v8520
        %9165 = vmatpush1.bf16.msra.mxu0 %v8519
        %9166 = vmatprep.subr.bf16.mxu0 %v8524
        %9167 = vmatpush1.bf16.msra.mxu0 %v8523
        %9168 = vmatprep.subr.bf16.mxu0 %v8528
        %9169 = vmatpush1.bf16.msra.mxu0 %v8527
        %9170 = vmatprep.subr.bf16.mxu0 %v8532
        %9171 = vmatpush1.bf16.msra.mxu0 %v8531
        %9172 = vmatprep.subr.bf16.mxu0 %v8536
        %9173 = vmatpush1.bf16.msra.mxu0 %v8535
        %9174 = vmatprep.subr.bf16.mxu0 %v8540
        %9175 = vmatpush1.bf16.msra.mxu0 %v8539
        %9176 = vmatprep.subr.bf16.mxu0 %v8544
        %9177 = vmatpush1.bf16.msra.mxu0 %v8543
        %9178 = vmatprep.subr.bf16.mxu0 %v8548
        %9179 = vmatpush1.bf16.msra.mxu0 %v8547
        %9180 = vmatprep.subr.bf16.mxu0 %v8552
        %9181 = vmatpush1.bf16.msra.mxu0 %v8551
        %9182 = vmatprep.subr.bf16.mxu0 %v8556
        %9183 = vmatpush1.bf16.msra.mxu0 %v8555
        %9184 = vmatprep.subr.bf16.mxu0 %v8560
        %9185 = vmatpush1.bf16.msra.mxu0 %v8559
        %9186 = vmatprep.subr.bf16.mxu0 %v8564
        %9187 = vmatpush1.bf16.msra.mxu0 %v8563
        %9188 = vmatprep.subr.bf16.mxu0 %v8568
        %9189 = vmatpush1.bf16.msra.mxu0 %v8567
        %9190 = vmatprep.mubr.bf16.mxu0 %v7390
        %9191 = vmatmul.mubr.bf16.gmra.mrb[0].mxu0 %v7389
        %v9192 = vpop.f32.mrb[0].mxu0
        %v9193 = vadd.f32 %v9152, %v9192
        %v9194 = vpop.f32.mrb[0].mxu0
        %v9195 = vadd.f32 %v9154, %v9194
        %v9196 = vpop.f32.mrb[0].mxu0
        %v9197 = vpop.f32.mrb[0].mxu0
        %9198 = vdwg.mxu0
        %9199 = vmatprep.subr.bf16.mxu0 %v8572
        %9200 = vmatpush1.bf16.msra.mxu0 %v8571
        %9201 = vmatprep.subr.bf16.mxu0 %v8576
        %9202 = vmatpush1.bf16.msra.mxu0 %v8575
        %9203 = vmatprep.subr.bf16.mxu0 %v8580
        %9204 = vmatpush1.bf16.msra.mxu0 %v8579
        %9205 = vmatprep.subr.bf16.mxu0 %v8584
        %9206 = vmatpush1.bf16.msra.mxu0 %v8583
        %9207 = vmatprep.subr.bf16.mxu0 %v8588
        %9208 = vmatpush1.bf16.msra.mxu0 %v8587
        %9209 = vmatprep.subr.bf16.mxu0 %v8592
        %9210 = vmatpush1.bf16.msra.mxu0 %v8591
        %9211 = vmatprep.subr.bf16.mxu0 %v8596
        %9212 = vmatpush1.bf16.msra.mxu0 %v8595
        %9213 = vmatprep.subr.bf16.mxu0 %v8600
        %9214 = vmatpush1.bf16.msra.mxu0 %v8599
        %9215 = vmatprep.subr.bf16.mxu0 %v8604
        %9216 = vmatpush1.bf16.msra.mxu0 %v8603
        %9217 = vmatprep.subr.bf16.mxu0 %v8608
        %9218 = vmatpush1.bf16.msra.mxu0 %v8607
        %9219 = vmatprep.subr.bf16.mxu0 %v8612
        %9220 = vmatpush1.bf16.msra.mxu0 %v8611
        %9221 = vmatprep.subr.bf16.mxu0 %v8616
        %9222 = vmatpush1.bf16.msra.mxu0 %v8615
        %9223 = vmatprep.subr.bf16.mxu0 %v8620
        %9224 = vmatpush1.bf16.msra.mxu0 %v8619
        %9225 = vmatprep.subr.bf16.mxu0 %v8624
        %9226 = vmatpush1.bf16.msra.mxu0 %v8623
        %9227 = vmatprep.subr.bf16.mxu0 %v8628
        %9228 = vmatpush1.bf16.msra.mxu0 %v8627
        %9229 = vmatprep.subr.bf16.mxu0 %v8632
        %9230 = vmatpush1.bf16.msra.mxu0 %v8631
        %9231 = vmatprep.mubr.bf16.mxu0 %v7392
        %9232 = vmatmul.mubr.bf16.gmra.mrb[0].mxu0 %v7391
        %v9233 = vpop.f32.mrb[0].mxu0
        %v9234 = vadd.f32 %v9193, %v9233
        %v9235 = vpop.f32.mrb[0].mxu0
        %v9236 = vadd.f32 %v9195, %v9235
        %v9237 = vpop.f32.mrb[0].mxu0
        %v9238 = vpop.f32.mrb[0].mxu0
        %9239 = vdwg.mxu0
        %9240 = vmatprep.subr.bf16.mxu0 %v8636
        %9241 = vmatpush1.bf16.msra.mxu0 %v8635
        %9242 = vmatprep.subr.bf16.mxu0 %v8640
        %9243 = vmatpush1.bf16.msra.mxu0 %v8639
        %9244 = vmatprep.subr.bf16.mxu0 %v8644
        %9245 = vmatpush1.bf16.msra.mxu0 %v8643
        %9246 = vmatprep.subr.bf16.mxu0 %v8648
        %9247 = vmatpush1.bf16.msra.mxu0 %v8647
        %9248 = vmatprep.subr.bf16.mxu0 %v8652
        %9249 = vmatpush1.bf16.msra.mxu0 %v8651
        %9250 = vmatprep.subr.bf16.mxu0 %v8656
        %9251 = vmatpush1.bf16.msra.mxu0 %v8655
        %9252 = vmatprep.subr.bf16.mxu0 %v8660
        %9253 = vmatpush1.bf16.msra.mxu0 %v8659
        %9254 = vmatprep.subr.bf16.mxu0 %v8664
        %9255 = vmatpush1.bf16.msra.mxu0 %v8663
        %9256 = vmatprep.subr.bf16.mxu0 %v8668
        %9257 = vmatpush1.bf16.msra.mxu0 %v8667
        %9258 = vmatprep.subr.bf16.mxu0 %v8672
        %9259 = vmatpush1.bf16.msra.mxu0 %v8671
        %9260 = vmatprep.subr.bf16.mxu0 %v8676
        %9261 = vmatpush1.bf16.msra.mxu0 %v8675
        %9262 = vmatprep.subr.bf16.mxu0 %v8680
        %9263 = vmatpush1.bf16.msra.mxu0 %v8679
        %9264 = vmatprep.subr.bf16.mxu0 %v8684
        %9265 = vmatpush1.bf16.msra.mxu0 %v8683
        %9266 = vmatprep.subr.bf16.mxu0 %v8688
        %9267 = vmatpush1.bf16.msra.mxu0 %v8687
        %9268 = vmatprep.subr.bf16.mxu0 %v8692
        %9269 = vmatpush1.bf16.msra.mxu0 %v8691
        %9270 = vmatprep.subr.bf16.mxu0 %v8696
        %9271 = vmatpush1.bf16.msra.mxu0 %v8695
        %9272 = vmatprep.mubr.bf16.mxu0 %v7394
        %9273 = vmatmul.mubr.bf16.gmra.mrb[0].mxu0 %v7393
        %v9274 = vpop.f32.mrb[0].mxu0
        %v9275 = vadd.f32 %v9234, %v9274
        %v9276 = vpop.f32.mrb[0].mxu0
        %v9277 = vadd.f32 %v9236, %v9276
        %v9278 = vpop.f32.mrb[0].mxu0
        %v9279 = vpop.f32.mrb[0].mxu0
        %9280 = vdwg.mxu0
        %v9281 = vsub.f32 %v9275, 5.0
        %v9282 = vsub.f32 %v9277, 5.0
        %v9283 = vmax.f32 %v9281, 0.0
        %v9284 = vmax.f32 %v9282, 0.0
        %vm9285 = vcmp.ne.f32.partialorder %v9281, %v9281
        %vm9286 = vcmp.ne.f32.partialorder %v9282, %v9282
        %v9287 = vadd.f32 %v9281, 0.0
        %v9288 = vadd.f32 %v9282, 0.0
        %v9289 = vand.u32 2147483647, %v9281
        %v9290 = vand.u32 2147483647, %v9282
        %v9291 = vsub.f32 0.0, %v9289
        %v9292 = vsub.f32 0.0, %v9290
        %v9293 = vmul.f32 %v9291, 1.442695
        %v9294 = vpow.pop %v9293
        %v9295 = vmul.f32 %v9292, 1.442695
        %v9296 = vpow.pop %v9295
        %v9297 = vadd.f32 %v9294, 1.0
        %v9298 = vlog2.pop %v9297
        %v9299 = vmul.f32 %v9298, 0.6931472
        %v9300 = vmul.f32 -0.5, %v9294
        %v9301 = vadd.f32 %v9300, 1.0
        %v9302 = vmul.f32 %v9301, %v9294
        %v9303 = vand.u32 2147483647, %v9294
        %vm9304 = vcmp.lt.f32.partialorder %v9303, 0.0004427343
        %v9305 = vsel %vm9304, %v9302, %v9299
        %v9306 = vadd.f32 %v9296, 1.0
        %v9307 = vlog2.pop %v9306
        %v9308 = vmul.f32 %v9307, 0.6931472
        %v9309 = vmul.f32 -0.5, %v9296
        %v9310 = vadd.f32 %v9309, 1.0
        %v9311 = vmul.f32 %v9310, %v9296
        %v9312 = vand.u32 2147483647, %v9296
        %vm9313 = vcmp.lt.f32.partialorder %v9312, 0.0004427343
        %v9314 = vsel %vm9313, %v9311, %v9308
        %v9315 = vadd.f32 %v9283, %v9305
        %v9316 = vadd.f32 %v9284, %v9314
        %v9317 = vsel %vm9285, %v9287, %v9315
        %v9318 = vsel %vm9286, %v9288, %v9316
        %9319 = vst [vmem:[%s514] sm:$0xff] %v9111
        %9320 = vst [vmem:[%s514 + $0x8] sm:$0xff] %v9113
        %9321 = vst [vmem:[%s519] sm:$0xff] %v9317
        %9322 = vst [vmem:[%s519 + $0x8] sm:$0xff] %v9318
        %v9323 = vld [vmem:[%s509] sm:$0xff]
        %v9324 = vld [vmem:[%s509 + $0x8] sm:$0xff]
        %v9325 = vmul.f32 %v9317, %v9323
        %v9326 = vmul.f32 %v9318, %v9324
        %v9327 = vadd.f32 %v9111, %v9325
        %v9328 = vadd.f32 %v9113, %v9326
        %v9329 = vld [vmem:[%s8] sm:$0xff]
        %v9330 = vld [vmem:[%s8 + $0x8] sm:$0xff]
        %v9331 = vld [vmem:[%s8 + $0x10] sm:$0xff]
        %v9332 = vld [vmem:[%s8 + $0x18] sm:$0xff]
        %v9333 = vld [vmem:[%s8 + $0x20] sm:$0xff]
        %v9334 = vld [vmem:[%s8 + $0x28] sm:$0xff]
        %v9335 = vld [vmem:[%s8 + $0x30] sm:$0xff]
        %v9336 = vld [vmem:[%s8 + $0x38] sm:$0xff]
        %v9337 = vld [vmem:[%s8 + $0x40] sm:$0xff]
        %v9338 = vld [vmem:[%s8 + $0x48] sm:$0xff]
        %v9339 = vld [vmem:[%s8 + $0x50] sm:$0xff]
        %v9340 = vld [vmem:[%s8 + $0x58] sm:$0xff]
        %v9341 = vld [vmem:[%s8 + $0x60] sm:$0xff]
        %v9342 = vld [vmem:[%s8 + $0x68] sm:$0xff]
        %v9343 = vld [vmem:[%s8 + $0x70] sm:$0xff]
        %v9344 = vld [vmem:[%s8 + $0x78] sm:$0xff]
        %v9345 = vld [vmem:[%s8 + $0x80] sm:$0xff]
        %v9346 = vld [vmem:[%s8 + $0x88] sm:$0xff]
        %v9347 = vld [vmem:[%s8 + $0x90] sm:$0xff]
        %v9348 = vld [vmem:[%s8 + $0x98] sm:$0xff]
        %v9349 = vld [vmem:[%s8 + $0xa0] sm:$0xff]
        %v9350 = vld [vmem:[%s8 + $0xa8] sm:$0xff]
        %v9351 = vld [vmem:[%s8 + $0xb0] sm:$0xff]
        %v9352 = vld [vmem:[%s8 + $0xb8] sm:$0xff]
        %v9353 = vld [vmem:[%s8 + $0xc0] sm:$0xff]
        %v9354 = vld [vmem:[%s8 + $0xc8] sm:$0xff]
        %v9355 = vld [vmem:[%s8 + $0xd0] sm:$0xff]
        %v9356 = vld [vmem:[%s8 + $0xd8] sm:$0xff]
        %v9357 = vld [vmem:[%s8 + $0xe0] sm:$0xff]
        %v9358 = vld [vmem:[%s8 + $0xe8] sm:$0xff]
        %v9359 = vld [vmem:[%s8 + $0xf0] sm:$0xff]
        %v9360 = vld [vmem:[%s8 + $0xf8] sm:$0xff]
        %v9361 = vld [vmem:[%s9] sm:$0x1]
        %v9363 = vlaneseq
        %v9364 = vshrl.u32 %v9363, 7
        %v9365 = vsub.s32 0, %v9364
        %v9366 = vrot.slane %v9361, %v9365
        %9368 = vmatprep.subr.mxu0 0.0
        %9369 = vmatpush1.msra.mxu0 %v9329
        %9370 = vmatprep.subr.mxu0 0.0
        %9371 = vmatpush1.msra.mxu0 %v9330
        %9372 = vmatprep.subr.mxu0 0.0
        %9373 = vmatpush1.msra.mxu0 %v9331
        %9374 = vmatprep.subr.mxu0 0.0
        %9375 = vmatpush1.msra.mxu0 %v9332
        %9376 = vmatprep.subr.mxu0 0.0
        %9377 = vmatpush1.msra.mxu0 %v9333
        %9378 = vmatprep.subr.mxu0 0.0
        %9379 = vmatpush1.msra.mxu0 %v9334
        %9380 = vmatprep.subr.mxu0 0.0
        %9381 = vmatpush1.msra.mxu0 %v9335
        %9382 = vmatprep.subr.mxu0 0.0
        %9383 = vmatpush1.msra.mxu0 %v9336
        %9384 = vmatprep.subr.mxu0 0.0
        %9385 = vmatpush1.msra.mxu0 %v9337
        %9386 = vmatprep.subr.mxu0 0.0
        %9387 = vmatpush1.msra.mxu0 %v9338
        %9388 = vmatprep.subr.mxu0 0.0
        %9389 = vmatpush1.msra.mxu0 %v9339
        %9390 = vmatprep.subr.mxu0 0.0
        %9391 = vmatpush1.msra.mxu0 %v9340
        %9392 = vmatprep.subr.mxu0 0.0
        %9393 = vmatpush1.msra.mxu0 %v9341
        %9394 = vmatprep.subr.mxu0 0.0
        %9395 = vmatpush1.msra.mxu0 %v9342
        %9396 = vmatprep.subr.mxu0 0.0
        %9397 = vmatpush1.msra.mxu0 %v9343
        %9398 = vmatprep.subr.mxu0 0.0
        %9399 = vmatpush1.msra.mxu0 %v9344
        %9400 = vmatprep.subr.mxu0 0.0
        %9401 = vmatpush1.msra.mxu0 %v9345
        %9402 = vmatprep.subr.mxu0 0.0
        %9403 = vmatpush1.msra.mxu0 %v9346
        %9404 = vmatprep.subr.mxu0 0.0
        %9405 = vmatpush1.msra.mxu0 %v9347
        %9406 = vmatprep.subr.mxu0 0.0
        %9407 = vmatpush1.msra.mxu0 %v9348
        %9408 = vmatprep.subr.mxu0 0.0
        %9409 = vmatpush1.msra.mxu0 %v9349
        %9410 = vmatprep.subr.mxu0 0.0
        %9411 = vmatpush1.msra.mxu0 %v9350
        %9412 = vmatprep.subr.mxu0 0.0
        %9413 = vmatpush1.msra.mxu0 %v9351
        %9414 = vmatprep.subr.mxu0 0.0
        %9415 = vmatpush1.msra.mxu0 %v9352
        %9416 = vmatprep.subr.mxu0 0.0
        %9417 = vmatpush1.msra.mxu0 %v9353
        %9418 = vmatprep.subr.mxu0 0.0
        %9419 = vmatpush1.msra.mxu0 %v9354
        %9420 = vmatprep.subr.mxu0 0.0
        %9421 = vmatpush1.msra.mxu0 %v9355
        %9422 = vmatprep.subr.mxu0 0.0
        %9423 = vmatpush1.msra.mxu0 %v9356
        %9424 = vmatprep.subr.mxu0 0.0
        %9425 = vmatpush1.msra.mxu0 %v9357
        %9426 = vmatprep.subr.mxu0 0.0
        %9427 = vmatpush1.msra.mxu0 %v9358
        %9428 = vmatprep.subr.mxu0 0.0
        %9429 = vmatpush1.msra.mxu0 %v9359
        %9430 = vmatprep.subr.mxu0 0.0
        %9431 = vmatpush1.msra.mxu0 %v9360
        %9432 = vmatprep.mubr.f32.mxu0 %v9328
        %9433 = vmatmul.mubr.f32.gmra.mrb[0].mxu0 %v9327
        %v9434 = vpop.f32.mrb[0].mxu0
        %v9435 = vadd.f32 %v9366, %v9434
        %v9436 = vpop.f32.mrb[0].mxu0
        %9437 = vdwg.mxu0
        %9438 = vst [vmem:[%s523] sm:$0xff] %v9435
        %p9439 = scmp.lt.s32.totalorder %s27, 1
        %s9440 = scalar_select %p9439, %s27, 1
        %s9441 = smul.addr %s9440, 2
        %s9442 = smul.addr %s9441, 8
        %s9443 = scalar_lea.vmem %s10, %s9442
        %p9444 = scmp.lt.s32.totalorder %s27, 1
        %s9445 = scalar_select %p9444, %s27, 1
        %s9446 = smul.addr %s9445, 2
        %s9447 = smul.addr %s9446, 8
        %s9448 = scalar_lea.vmem %s11, %s9447
        %p9449 = scmp.lt.s32.totalorder %s27, 1
        %s9450 = scalar_select %p9449, %s27, 1
        %s9451 = smul.addr %s9450, 8
        %s9452 = scalar_lea.vmem %s12, %s9451
        // Predicated region
        $region81: #{mnist_ib_vae_gmm_forward.1} parent=59 // pred_check
          %p9453 = pneg %p265
        $region82: #{mnist_ib_vae_gmm_forward.1} parent=59 // pred_check_branch
          %9455 = sbr.rel (%p9453) target = $region84
        $region83: #{mnist_ib_vae_gmm_forward.1} parent=59 // pred_region
          _
        $region84: #{mnist_ib_vae_gmm_forward.1} parent=59 // pred_fallthru
          _
        // Predicated region
        $region85: #{mnist_ib_vae_gmm_forward.1} parent=59 // pred_check
          %p9456 = pneg %p291
        $region86: #{mnist_ib_vae_gmm_forward.1} parent=59 // pred_check_branch
          %9458 = sbr.rel (%p9456) target = $region88
        $region87: #{mnist_ib_vae_gmm_forward.1} parent=59 // pred_region
          _
        $region88: #{mnist_ib_vae_gmm_forward.1} parent=59 // pred_fallthru
          _
        // Predicated region
        $region89: #{mnist_ib_vae_gmm_forward.1} parent=59 // pred_check
          %p9459 = pneg %p317
        $region90: #{mnist_ib_vae_gmm_forward.1} parent=59 // pred_check_branch
          %9461 = sbr.rel (%p9459) target = $region92
        $region91: #{mnist_ib_vae_gmm_forward.1} parent=59 // pred_region
          _
        $region92: #{mnist_ib_vae_gmm_forward.1} parent=59 // pred_fallthru
          _
      $region60: #{mnist_ib_vae_gmm_forward.1} parent=5 // pred_fallthru
        _
      %p9462 = scmp.le.s32.totalorder 2, %s22
      // Predicated region
      $region93: #{mnist_ib_vae_gmm_forward.1} parent=5 // pred_check
        %p9463 = pneg %p9462
      $region94: #{mnist_ib_vae_gmm_forward.1} parent=5 // pred_check_branch
        %9465 = sbr.rel (%p9463) target = $region96
      $region95: #{mnist_ib_vae_gmm_forward.1} parent=5 // pred_region
        %s9466 = ssub.s32 %s22, 2
        // Predicated region
        $region97: #{mnist_ib_vae_gmm_forward.1} parent=95 // pred_check
          %p9467 = pneg %p271
        $region98: #{mnist_ib_vae_gmm_forward.1} parent=95 // pred_check_branch
          %9469 = sbr.rel (%p9467) target = $region100
        $region99: #{mnist_ib_vae_gmm_forward.1} parent=95 // pred_region
          %p9470 = scmp.lt.s32.totalorder %s28, 1
          %s9471 = scalar_select %p9470, %s28, 1
          %s9472 = smul.addr %s9471, 2
          %s9473 = smul.addr %s9472, 8
          %s9474 = scalar_lea.vmem %s10, %s9473
        $region100: #{mnist_ib_vae_gmm_forward.1} parent=95 // pred_fallthru
          _
        // Predicated region
        $region101: #{mnist_ib_vae_gmm_forward.1} parent=95 // pred_check
          %p9475 = pneg %p297
        $region102: #{mnist_ib_vae_gmm_forward.1} parent=95 // pred_check_branch
          %9477 = sbr.rel (%p9475) target = $region104
        $region103: #{mnist_ib_vae_gmm_forward.1} parent=95 // pred_region
          %p9478 = scmp.lt.s32.totalorder %s28, 1
          %s9479 = scalar_select %p9478, %s28, 1
          %s9480 = smul.addr %s9479, 2
          %s9481 = smul.addr %s9480, 8
          %s9482 = scalar_lea.vmem %s11, %s9481
        $region104: #{mnist_ib_vae_gmm_forward.1} parent=95 // pred_fallthru
          _
        // Predicated region
        $region105: #{mnist_ib_vae_gmm_forward.1} parent=95 // pred_check
          %p9483 = pneg %p323
        $region106: #{mnist_ib_vae_gmm_forward.1} parent=95 // pred_check_branch
          %9485 = sbr.rel (%p9483) target = $region108
        $region107: #{mnist_ib_vae_gmm_forward.1} parent=95 // pred_region
          %p9486 = scmp.lt.s32.totalorder %s28, 1
          %s9487 = scalar_select %p9486, %s28, 1
          %s9488 = smul.addr %s9487, 8
          %s9489 = scalar_lea.vmem %s12, %s9488
        $region108: #{mnist_ib_vae_gmm_forward.1} parent=95 // pred_fallthru
          _
      $region96: #{mnist_ib_vae_gmm_forward.1} parent=5 // pred_fallthru
        _
    $region6: #{mnist_ib_vae_gmm_forward.1} parent=1 // loop_footer
      %s26 = sadd.s32 1, %s22
    $region7: #{mnist_ib_vae_gmm_forward.1} parent=1 // loop_footer_branch
      %21 = sbr.rel target = $region3
    $region8: #{mnist_ib_vae_gmm_forward.1} parent=1 // loop_exit
      _
    %9490 = vsyncpa [#allocation3], 1
    %s9491 = scalar_lea.sflag [#allocation3], 1
    %9492 = vsyncpa %s9491, 1
    %9493 = vsyncpa [#allocation5], 1
    %9494 = vsyncpa [#allocation8], 1

</llo_original>
